<compile_context>
chip_gen: v7x
topology: tpu7x:2x2x1
jax: 0.10.0
libtpu: 0.0.40
codegen_flags: <defaults>
</compile_context>

<pallas_src>
import jax
import jax.numpy as jnp
from jax.experimental import pallas as pl
from jax.experimental.pallas import tpu as pltpu

NEG_SLOPE = 0.01   # nn.LeakyReLU default negative_slope
C_ACT = 64         # trunk feature width (conv_in / conv_mid output channels)
NUM_MID = 10       # number of (shared-weight) conv_mid applications


def _make_fused_kernel(H, W):
    C = C_ACT
    K = 3 * C  # ky-packed contraction size

    def kernel(img_ref, w_in_ref, w_mid_ref, w_out_ref, out_ref,
               act_ref, pk_ref, acc_ref):
        # act_ref : (H+2, W, C) f32 ; rows 0 and H+1 are the zero H-padding.
        # pk_ref  : (H, W, 3*C) bf16 ; ky-packed im2col patch for one layer.
        # acc_ref : (H, W, C)   f32 ; matmul accumulator.

        def conv_step(w_ref, leaky):
            """One 3x3 'same' conv over act_ref; returns the (H, W, C) f32 result."""
            # ky-packed patch: slices along the untiled H axis are cheap; the three
            # pieces land at lane offsets 0 / 64 / 128 of the packed buffer.
            pk_ref[:, :, 0 * C:1 * C] = act_ref[0:H, :, :].astype(jnp.bfloat16)
            pk_ref[:, :, 1 * C:2 * C] = act_ref[1:H + 1, :, :].astype(jnp.bfloat16)
            pk_ref[:, :, 2 * C:3 * C] = act_ref[2:H + 2, :, :].astype(jnp.bfloat16)
            zcol = jnp.zeros((H, 1, K), jnp.bfloat16)
            # Three kx taps -> three K=192 MXU matmuls, f32 accumulation in VMEM.
            for kx in range(3):
                if kx == 0:      # tap reads x[.., w-1, ..]; zero column at w == 0
                    patch = jnp.concatenate([zcol, pk_ref[:, :W - 1, :]], axis=1)
                elif kx == 1:    # tap reads x[.., w, ..]
                    patch = pk_ref[...]
                else:            # tap reads x[.., w+1, ..]; zero column at w == W-1
                    patch = jnp.concatenate([pk_ref[:, 1:, :], zcol], axis=1)
                contrib = jax.lax.dot_general(
                    patch, w_ref[kx],
                    dimension_numbers=(((2,), (0,)), ((), ())),
                    preferred_element_type=jnp.float32)          # (H, W, C) f32
                if kx == 0:
                    acc_ref[...] = contrib
                else:
                    acc_ref[...] += contrib
            a = acc_ref[...]
            if leaky:
                a = jnp.where(a >= 0, a, NEG_SLOPE * a)
            return a

        # --- init: zeroed H-padded activation buffer, image in channels [0:3).
        act_ref[...] = jnp.zeros_like(act_ref)
        act_ref[1:H + 1, :, 0:3] = img_ref[0].astype(jnp.float32)

        # --- conv_in (3 -> 64; Cin zero-padded to 64) + LeakyReLU
        act_ref[1:H + 1, :, :] = conv_step(w_in_ref, leaky=True)

        # --- 10 x shared-weight conv_mid (64 -> 64) + LeakyReLU
        def mid_body(_, carry):
            act_ref[1:H + 1, :, :] = conv_step(w_mid_ref, leaky=True)
            return carry

        jax.lax.fori_loop(0, NUM_MID, mid_body, 0)

        # --- conv_out (64 -> 3; Cout zero-padded to 64) + residual add of the input.
        o = conv_step(w_out_ref, leaky=False)[:, :, 0:3]
        o = o + img_ref[0].astype(jnp.float32)
        out_ref[0] = o.astype(out_ref.dtype)

    return kernel


def _pack_w(w_hwio):
    """(3, 3, Cin, Cout) HWIO -> (kx, ky*Cin, Cout) bf16 for the ky-packed matmul."""
    kh, kw, cin, cout = w_hwio.shape
    return (jnp.transpose(w_hwio, (1, 0, 2, 3))
            .reshape(kw, kh * cin, cout)
            .astype(jnp.bfloat16))


def deblurring_fused_nhwc(x_nhwc, w_in, w_mid, w_out):
    """Fused forward pass on NHWC input; returns NHWC output."""
    N, H, W, cin = x_nhwc.shape
    assert cin == 3 and W >= 2
    assert w_in.shape == (3, 3, 3, C_ACT)
    assert w_mid.shape == (3, 3, C_ACT, C_ACT)
    assert w_out.shape == (3, 3, C_ACT, 3)

    # Zero-pad conv_in's input channels and conv_out's output channels to 64 so
    # every layer runs the identical lane-dense (H*W, 192) x (192, 64) matmul.
    # (These pads touch only the tiny weight tensors, not activations.)
    w_in_p = _pack_w(jnp.pad(w_in, ((0, 0), (0, 0), (0, C_ACT - 3), (0, 0))))
    w_mid_p = _pack_w(w_mid)
    w_out_p = _pack_w(jnp.pad(w_out, ((0, 0), (0, 0), (0, 0), (0, C_ACT - 3))))

    kernel = _make_fused_kernel(H, W)
    wspec = pl.BlockSpec((3, 3 * C_ACT, C_ACT), lambda n: (0, 0, 0))

    return pl.pallas_call(
        kernel,
        out_shape=jax.ShapeDtypeStruct((N, H, W, 3), x_nhwc.dtype),
        grid=(N,),
        in_specs=[
            pl.BlockSpec((1, H, W, 3), lambda n: (n, 0, 0, 0)),   # image
            wspec, wspec, wspec,                                  # packed weights
        ],
        out_specs=pl.BlockSpec((1, H, W, 3), lambda n: (n, 0, 0, 0)),
        scratch_shapes=[
            pltpu.VMEM((H + 2, W, C_ACT), jnp.float32),      # H-padded activations
            pltpu.VMEM((H, W, 3 * C_ACT), jnp.bfloat16),     # ky-packed im2col patch
            pltpu.VMEM((H, W, C_ACT), jnp.float32),          # conv accumulator
        ],
        compiler_params=pltpu.CompilerParams(
            dimension_semantics=("parallel",)),
    )(x_nhwc, w_in_p, w_mid_p, w_out_p)


def init_params(key, kernel_size=3):
    """Deterministic synthetic weights, HWIO layout (shapes match the PyTorch module)."""
    assert kernel_size % 2 == 1
    k1, k2, k3 = jax.random.split(key, 3)
    w_in = jax.random.normal(k1, (kernel_size, kernel_size, 3, C_ACT), jnp.float32) * 0.10
    w_mid = jax.random.normal(k2, (kernel_size, kernel_size, C_ACT, C_ACT), jnp.float32) * 0.05
    w_out = jax.random.normal(k3, (kernel_size, kernel_size, C_ACT, 3), jnp.float32) * 0.10
    return {"w_in": w_in, "w_mid": w_mid, "w_out": w_out}


@jax.jit
def deblurring_forward(img_nchw, params):
    """Matches DeblurringModule.forward; input/output are NCHW like PyTorch."""
    x = jnp.transpose(img_nchw, (0, 2, 3, 1))                    # NCHW -> NHWC
    out = deblurring_fused_nhwc(x, params["w_in"], params["w_mid"], params["w_out"])
    return jnp.transpose(out, (0, 3, 1, 2))                      # NHWC -> NCHW


@jax.jit
def _reference_forward(img_nchw, params):
    """Pure-JAX reference (same bf16 matmul inputs / f32 accumulation as the kernel)."""
    def conv(h, w):
        return jax.lax.conv_general_dilated(
            h.astype(jnp.bfloat16), w.astype(jnp.bfloat16),
            window_strides=(1, 1), padding="SAME",
            dimension_numbers=("NHWC", "HWIO", "NHWC"),
            preferred_element_type=jnp.float32)

    def lrelu(a):
        return jnp.where(a >= 0, a, NEG_SLOPE * a)

    x = jnp.transpose(img_nchw, (0, 2, 3, 1))
    h = lrelu(conv(x, params["w_in"]))
    for _ in range(NUM_MID):
        h = lrelu(conv(h, params["w_mid"]))
    out = conv(h, params["w_out"]) + x
    return jnp.transpose(out, (0, 3, 1, 2))


if __name__ == "__main__":
    key = jax.random.PRNGKey(0)
    kp, kx = jax.random.split(key)

    params = init_params(kp, kernel_size=3)
    # Small deterministic input: batch=2, channels=3 (fixed by the module), 16x16 spatial.
    img = jax.random.normal(kx, (2, 3, 16, 16), jnp.float32)

    out = jax.block_until_ready(deblurring_forward(img, params))
    ref = jax.block_until_ready(_reference_forward(img, params))

    assert out.shape == img.shape, (out.shape, img.shape)
    assert out.dtype == jnp.float32
    assert bool(jnp.all(jnp.isfinite(out)))
    max_err = float(jnp.max(jnp.abs(out - ref)))
    assert max_err < 2e-2, f"kernel/reference mismatch: max |diff| = {max_err}"

    print("KERNEL_OK")
</pallas_src>

<mosaic_0001>
module attributes {stable_mosaic.version = 11 : i64} {
  func.func @kernel(%arg0: i32, %arg1: memref<1x16x16x3xf32, #tpu.memory_space<vmem>>, %arg2: memref<3x192x64xbf16, #tpu.memory_space<vmem>>, %arg3: memref<3x192x64xbf16, #tpu.memory_space<vmem>>, %arg4: memref<3x192x64xbf16, #tpu.memory_space<vmem>>, %arg5: memref<1x16x16x3xf32, #tpu.memory_space<vmem>>, %arg6: memref<18x16x64xf32, #tpu.memory_space<vmem>>, %arg7: memref<16x16x192xbf16, #tpu.memory_space<vmem>>, %arg8: memref<16x16x64xf32, #tpu.memory_space<vmem>>) attributes {dimension_semantics = [#tpu.dimension_semantics<parallel>], iteration_bounds = array<i64: 2>, scalar_prefetch = 0 : i64, scratch_operands = 3 : i64, tpu.core_type = #tpu.core_type<tc>, window_params = [{transform_indices = @transform_0, window_bounds = array<i64: 1, 16, 16, 3>}, {pipeline_mode = #tpu.pipeline_mode<synchronous>, transform_indices = @transform_1, window_bounds = array<i64: 3, 192, 64>}, {pipeline_mode = #tpu.pipeline_mode<synchronous>, transform_indices = @transform_2, window_bounds = array<i64: 3, 192, 64>}, {pipeline_mode = #tpu.pipeline_mode<synchronous>, transform_indices = @transform_3, window_bounds = array<i64: 3, 192, 64>}, {transform_indices = @transform_4, window_bounds = array<i64: 1, 16, 16, 3>}]} {
    %cst = arith.constant 0.000000e+00 : f32
    %0 = vector.broadcast %cst : f32 to vector<18x16x64xf32>
    %c0 = arith.constant 0 : index
    %c0_0 = arith.constant 0 : index
    %c0_1 = arith.constant 0 : index
    %1 = vector.load %arg6[%c0, %c0_0, %c0_1] : memref<18x16x64xf32, #tpu.memory_space<vmem>>, vector<18x16x64xf32>
    tpu.vector_store %arg6[%c0, %c0_0, %c0_1], %0 {strides = array<i32>} : memref<18x16x64xf32, #tpu.memory_space<vmem>>, vector<18x16x64xf32>,
    %c0_2 = arith.constant 0 : index
    %c0_3 = arith.constant 0 : index
    %c0_4 = arith.constant 0 : index
    %c0_5 = arith.constant 0 : index
    %2 = vector.load %arg1[%c0_2, %c0_3, %c0_4, %c0_5] : memref<1x16x16x3xf32, #tpu.memory_space<vmem>>, vector<1x16x16x3xf32>
    %3 = vector.shape_cast %2 : vector<1x16x16x3xf32> to vector<16x16x3xf32>
    %c1 = arith.constant 1 : index
    %c0_6 = arith.constant 0 : index
    %c0_7 = arith.constant 0 : index
    %4 = vector.load %arg6[%c1, %c0_6, %c0_7] : memref<18x16x64xf32, #tpu.memory_space<vmem>>, vector<16x16x3xf32>
    tpu.vector_store %arg6[%c1, %c0_6, %c0_7], %3 {strides = array<i32>} : memref<18x16x64xf32, #tpu.memory_space<vmem>>, vector<16x16x3xf32>,
    %c0_8 = arith.constant 0 : index
    %c0_9 = arith.constant 0 : index
    %c0_10 = arith.constant 0 : index
    %5 = vector.load %arg6[%c0_8, %c0_9, %c0_10] : memref<18x16x64xf32, #tpu.memory_space<vmem>>, vector<16x16x64xf32>
    %6 = arith.truncf %5 : vector<16x16x64xf32> to vector<16x16x64xbf16>
    %c0_11 = arith.constant 0 : index
    %c0_12 = arith.constant 0 : index
    %c0_13 = arith.constant 0 : index
    %7 = vector.load %arg7[%c0_11, %c0_12, %c0_13] : memref<16x16x192xbf16, #tpu.memory_space<vmem>>, vector<16x16x64xbf16>
    tpu.vector_store %arg7[%c0_11, %c0_12, %c0_13], %6 {strides = array<i32>} : memref<16x16x192xbf16, #tpu.memory_space<vmem>>, vector<16x16x64xbf16>,
    %c1_14 = arith.constant 1 : index
    %c0_15 = arith.constant 0 : index
    %c0_16 = arith.constant 0 : index
    %8 = vector.load %arg6[%c1_14, %c0_15, %c0_16] : memref<18x16x64xf32, #tpu.memory_space<vmem>>, vector<16x16x64xf32>
    %9 = arith.truncf %8 : vector<16x16x64xf32> to vector<16x16x64xbf16>
    %c0_17 = arith.constant 0 : index
    %c0_18 = arith.constant 0 : index
    %c64 = arith.constant 64 : index
    %10 = vector.load %arg7[%c0_17, %c0_18, %c64] : memref<16x16x192xbf16, #tpu.memory_space<vmem>>, vector<16x16x64xbf16>
    tpu.vector_store %arg7[%c0_17, %c0_18, %c64], %9 {strides = array<i32>} : memref<16x16x192xbf16, #tpu.memory_space<vmem>>, vector<16x16x64xbf16>,
    %c2 = arith.constant 2 : index
    %c0_19 = arith.constant 0 : index
    %c0_20 = arith.constant 0 : index
    %11 = vector.load %arg6[%c2, %c0_19, %c0_20] : memref<18x16x64xf32, #tpu.memory_space<vmem>>, vector<16x16x64xf32>
    %12 = arith.truncf %11 : vector<16x16x64xf32> to vector<16x16x64xbf16>
    %c0_21 = arith.constant 0 : index
    %c0_22 = arith.constant 0 : index
    %c128 = arith.constant 128 : index
    %13 = vector.load %arg7[%c0_21, %c0_22, %c128] : memref<16x16x192xbf16, #tpu.memory_space<vmem>>, vector<16x16x64xbf16>
    tpu.vector_store %arg7[%c0_21, %c0_22, %c128], %12 {strides = array<i32>} : memref<16x16x192xbf16, #tpu.memory_space<vmem>>, vector<16x16x64xbf16>,
    %cst_23 = arith.constant 0.000000e+00 : bf16
    %14 = vector.broadcast %cst_23 : bf16 to vector<16x1x192xbf16>
    %c0_24 = arith.constant 0 : index
    %c0_25 = arith.constant 0 : index
    %c0_26 = arith.constant 0 : index
    %15 = vector.load %arg7[%c0_24, %c0_25, %c0_26] : memref<16x16x192xbf16, #tpu.memory_space<vmem>>, vector<16x15x192xbf16>
    %16 = tpu.concatenate %14, %15 in 1 : vector<16x1x192xbf16>, vector<16x15x192xbf16> -> vector<16x16x192xbf16>
    %c0_27 = arith.constant 0 : index
    %c0_28 = arith.constant 0 : index
    %c0_29 = arith.constant 0 : index
    %17 = vector.load %arg2[%c0_27, %c0_28, %c0_29] : memref<3x192x64xbf16, #tpu.memory_space<vmem>>, vector<1x192x64xbf16>
    %18 = vector.shape_cast %17 : vector<1x192x64xbf16> to vector<192x64xbf16>
    %cst_30 = arith.constant dense<0.000000e+00> : vector<16x16x64xf32>
    %19 = tpu.matmul %16, %18, %cst_30 {dimension_numbers = #tpu.dot_dimension_numbers<[2], [0], [0, 1], [1], [0, 0, 0, 1, 1, 1], [], []>} : vector<16x16x192xbf16>, vector<192x64xbf16>, vector<16x16x64xf32> -> vector<16x16x64xf32>
    %c0_31 = arith.constant 0 : index
    %c0_32 = arith.constant 0 : index
    %c0_33 = arith.constant 0 : index
    %20 = vector.load %arg8[%c0_31, %c0_32, %c0_33] : memref<16x16x64xf32, #tpu.memory_space<vmem>>, vector<16x16x64xf32>
    tpu.vector_store %arg8[%c0_31, %c0_32, %c0_33], %19 {strides = array<i32>} : memref<16x16x64xf32, #tpu.memory_space<vmem>>, vector<16x16x64xf32>,
    %c0_34 = arith.constant 0 : index
    %c0_35 = arith.constant 0 : index
    %c0_36 = arith.constant 0 : index
    %21 = vector.load %arg7[%c0_34, %c0_35, %c0_36] : memref<16x16x192xbf16, #tpu.memory_space<vmem>>, vector<16x16x192xbf16>
    %c1_37 = arith.constant 1 : index
    %c0_38 = arith.constant 0 : index
    %c0_39 = arith.constant 0 : index
    %22 = vector.load %arg2[%c1_37, %c0_38, %c0_39] : memref<3x192x64xbf16, #tpu.memory_space<vmem>>, vector<1x192x64xbf16>
    %23 = vector.shape_cast %22 : vector<1x192x64xbf16> to vector<192x64xbf16>
    %cst_40 = arith.constant dense<0.000000e+00> : vector<16x16x64xf32>
    %24 = tpu.matmul %21, %23, %cst_40 {dimension_numbers = #tpu.dot_dimension_numbers<[2], [0], [0, 1], [1], [0, 0, 0, 1, 1, 1], [], []>} : vector<16x16x192xbf16>, vector<192x64xbf16>, vector<16x16x64xf32> -> vector<16x16x64xf32>
    %c0_41 = arith.constant 0 : index
    %c0_42 = arith.constant 0 : index
    %c0_43 = arith.constant 0 : index
    %25 = vector.load %arg8[%c0_41, %c0_42, %c0_43] : memref<16x16x64xf32, #tpu.memory_space<vmem>>, vector<16x16x64xf32>
    %26 = arith.addf %25, %24 : vector<16x16x64xf32>
    %c0_44 = arith.constant 0 : index
    %c0_45 = arith.constant 0 : index
    %c0_46 = arith.constant 0 : index
    %27 = vector.load %arg8[%c0_44, %c0_45, %c0_46] : memref<16x16x64xf32, #tpu.memory_space<vmem>>, vector<16x16x64xf32>
    tpu.vector_store %arg8[%c0_44, %c0_45, %c0_46], %26 {strides = array<i32>} : memref<16x16x64xf32, #tpu.memory_space<vmem>>, vector<16x16x64xf32>,
    %c0_47 = arith.constant 0 : index
    %c1_48 = arith.constant 1 : index
    %c0_49 = arith.constant 0 : index
    %28 = vector.load %arg7[%c0_47, %c1_48, %c0_49] : memref<16x16x192xbf16, #tpu.memory_space<vmem>>, vector<16x15x192xbf16>
    %29 = tpu.concatenate %28, %14 in 1 : vector<16x15x192xbf16>, vector<16x1x192xbf16> -> vector<16x16x192xbf16>
    %c2_50 = arith.constant 2 : index
    %c0_51 = arith.constant 0 : index
    %c0_52 = arith.constant 0 : index
    %30 = vector.load %arg2[%c2_50, %c0_51, %c0_52] : memref<3x192x64xbf16, #tpu.memory_space<vmem>>, vector<1x192x64xbf16>
    %31 = vector.shape_cast %30 : vector<1x192x64xbf16> to vector<192x64xbf16>
    %cst_53 = arith.constant dense<0.000000e+00> : vector<16x16x64xf32>
    %32 = tpu.matmul %29, %31, %cst_53 {dimension_numbers = #tpu.dot_dimension_numbers<[2], [0], [0, 1], [1], [0, 0, 0, 1, 1, 1], [], []>} : vector<16x16x192xbf16>, vector<192x64xbf16>, vector<16x16x64xf32> -> vector<16x16x64xf32>
    %c0_54 = arith.constant 0 : index
    %c0_55 = arith.constant 0 : index
    %c0_56 = arith.constant 0 : index
    %33 = vector.load %arg8[%c0_54, %c0_55, %c0_56] : memref<16x16x64xf32, #tpu.memory_space<vmem>>, vector<16x16x64xf32>
    %34 = arith.addf %33, %32 : vector<16x16x64xf32>
    %c0_57 = arith.constant 0 : index
    %c0_58 = arith.constant 0 : index
    %c0_59 = arith.constant 0 : index
    %35 = vector.load %arg8[%c0_57, %c0_58, %c0_59] : memref<16x16x64xf32, #tpu.memory_space<vmem>>, vector<16x16x64xf32>
    tpu.vector_store %arg8[%c0_57, %c0_58, %c0_59], %34 {strides = array<i32>} : memref<16x16x64xf32, #tpu.memory_space<vmem>>, vector<16x16x64xf32>,
    %c0_60 = arith.constant 0 : index
    %c0_61 = arith.constant 0 : index
    %c0_62 = arith.constant 0 : index
    %36 = vector.load %arg8[%c0_60, %c0_61, %c0_62] : memref<16x16x64xf32, #tpu.memory_space<vmem>>, vector<16x16x64xf32>
    %cst_63 = arith.constant 0.000000e+00 : f32
    %37 = vector.broadcast %cst_63 : f32 to vector<16x16x64xf32>
    %38 = arith.cmpf oge, %36, %37 : vector<16x16x64xf32>
    %cst_64 = arith.constant 0.00999999977 : f32
    %39 = vector.broadcast %cst_64 : f32 to vector<16x16x64xf32>
    %40 = arith.mulf %39, %36 : vector<16x16x64xf32>
    %41 = arith.select %38, %36, %40 : vector<16x16x64xi1>, vector<16x16x64xf32>
    %c1_65 = arith.constant 1 : index
    %c0_66 = arith.constant 0 : index
    %c0_67 = arith.constant 0 : index
    %42 = vector.load %arg6[%c1_65, %c0_66, %c0_67] : memref<18x16x64xf32, #tpu.memory_space<vmem>>, vector<16x16x64xf32>
    tpu.vector_store %arg6[%c1_65, %c0_66, %c0_67], %41 {strides = array<i32>} : memref<18x16x64xf32, #tpu.memory_space<vmem>>, vector<16x16x64xf32>,
    %c0_i32 = arith.constant 0 : i32
    %c10_i32 = arith.constant 10 : i32
    %43 = arith.addi %c0_i32, %c10_i32 : i32
    %c1_i32 = arith.constant 1 : i32
    scf.for %arg9 = %c0_i32 to %43 step %c1_i32  : i32 {
      %c0_134 = arith.constant 0 : index
      %c0_135 = arith.constant 0 : index
      %c0_136 = arith.constant 0 : index
      %83 = vector.load %arg6[%c0_134, %c0_135, %c0_136] : memref<18x16x64xf32, #tpu.memory_space<vmem>>, vector<16x16x64xf32>
      %84 = arith.truncf %83 : vector<16x16x64xf32> to vector<16x16x64xbf16>
      %c0_137 = arith.constant 0 : index
      %c0_138 = arith.constant 0 : index
      %c0_139 = arith.constant 0 : index
      %85 = vector.load %arg7[%c0_137, %c0_138, %c0_139] : memref<16x16x192xbf16, #tpu.memory_space<vmem>>, vector<16x16x64xbf16>
      tpu.vector_store %arg7[%c0_137, %c0_138, %c0_139], %84 {strides = array<i32>} : memref<16x16x192xbf16, #tpu.memory_space<vmem>>, vector<16x16x64xbf16>,
      %c1_140 = arith.constant 1 : index
      %c0_141 = arith.constant 0 : index
      %c0_142 = arith.constant 0 : index
      %86 = vector.load %arg6[%c1_140, %c0_141, %c0_142] : memref<18x16x64xf32, #tpu.memory_space<vmem>>, vector<16x16x64xf32>
      %87 = arith.truncf %86 : vector<16x16x64xf32> to vector<16x16x64xbf16>
      %c0_143 = arith.constant 0 : index
      %c0_144 = arith.constant 0 : index
      %c64_145 = arith.constant 64 : index
      %88 = vector.load %arg7[%c0_143, %c0_144, %c64_145] : memref<16x16x192xbf16, #tpu.memory_space<vmem>>, vector<16x16x64xbf16>
      tpu.vector_store %arg7[%c0_143, %c0_144, %c64_145], %87 {strides = array<i32>} : memref<16x16x192xbf16, #tpu.memory_space<vmem>>, vector<16x16x64xbf16>,
      %c2_146 = arith.constant 2 : index
      %c0_147 = arith.constant 0 : index
      %c0_148 = arith.constant 0 : index
      %89 = vector.load %arg6[%c2_146, %c0_147, %c0_148] : memref<18x16x64xf32, #tpu.memory_space<vmem>>, vector<16x16x64xf32>
      %90 = arith.truncf %89 : vector<16x16x64xf32> to vector<16x16x64xbf16>
      %c0_149 = arith.constant 0 : index
      %c0_150 = arith.constant 0 : index
      %c128_151 = arith.constant 128 : index
      %91 = vector.load %arg7[%c0_149, %c0_150, %c128_151] : memref<16x16x192xbf16, #tpu.memory_space<vmem>>, vector<16x16x64xbf16>
      tpu.vector_store %arg7[%c0_149, %c0_150, %c128_151], %90 {strides = array<i32>} : memref<16x16x192xbf16, #tpu.memory_space<vmem>>, vector<16x16x64xbf16>,
      %cst_152 = arith.constant 0.000000e+00 : bf16
      %92 = vector.broadcast %cst_152 : bf16 to vector<16x1x192xbf16>
      %c0_153 = arith.constant 0 : index
      %c0_154 = arith.constant 0 : index
      %c0_155 = arith.constant 0 : index
      %93 = vector.load %arg7[%c0_153, %c0_154, %c0_155] : memref<16x16x192xbf16, #tpu.memory_space<vmem>>, vector<16x15x192xbf16>
      %94 = tpu.concatenate %92, %93 in 1 : vector<16x1x192xbf16>, vector<16x15x192xbf16> -> vector<16x16x192xbf16>
      %c0_156 = arith.constant 0 : index
      %c0_157 = arith.constant 0 : index
      %c0_158 = arith.constant 0 : index
      %95 = vector.load %arg3[%c0_156, %c0_157, %c0_158] : memref<3x192x64xbf16, #tpu.memory_space<vmem>>, vector<1x192x64xbf16>
      %96 = vector.shape_cast %95 : vector<1x192x64xbf16> to vector<192x64xbf16>
      %cst_159 = arith.constant dense<0.000000e+00> : vector<16x16x64xf32>
      %97 = tpu.matmul %94, %96, %cst_159 {dimension_numbers = #tpu.dot_dimension_numbers<[2], [0], [0, 1], [1], [0, 0, 0, 1, 1, 1], [], []>} : vector<16x16x192xbf16>, vector<192x64xbf16>, vector<16x16x64xf32> -> vector<16x16x64xf32>
      %c0_160 = arith.constant 0 : index
      %c0_161 = arith.constant 0 : index
      %c0_162 = arith.constant 0 : index
      %98 = vector.load %arg8[%c0_160, %c0_161, %c0_162] : memref<16x16x64xf32, #tpu.memory_space<vmem>>, vector<16x16x64xf32>
      tpu.vector_store %arg8[%c0_160, %c0_161, %c0_162], %97 {strides = array<i32>} : memref<16x16x64xf32, #tpu.memory_space<vmem>>, vector<16x16x64xf32>,
      %c0_163 = arith.constant 0 : index
      %c0_164 = arith.constant 0 : index
      %c0_165 = arith.constant 0 : index
      %99 = vector.load %arg7[%c0_163, %c0_164, %c0_165] : memref<16x16x192xbf16, #tpu.memory_space<vmem>>, vector<16x16x192xbf16>
      %c1_166 = arith.constant 1 : index
      %c0_167 = arith.constant 0 : index
      %c0_168 = arith.constant 0 : index
      %100 = vector.load %arg3[%c1_166, %c0_167, %c0_168] : memref<3x192x64xbf16, #tpu.memory_space<vmem>>, vector<1x192x64xbf16>
      %101 = vector.shape_cast %100 : vector<1x192x64xbf16> to vector<192x64xbf16>
      %cst_169 = arith.constant dense<0.000000e+00> : vector<16x16x64xf32>
      %102 = tpu.matmul %99, %101, %cst_169 {dimension_numbers = #tpu.dot_dimension_numbers<[2], [0], [0, 1], [1], [0, 0, 0, 1, 1, 1], [], []>} : vector<16x16x192xbf16>, vector<192x64xbf16>, vector<16x16x64xf32> -> vector<16x16x64xf32>
      %c0_170 = arith.constant 0 : index
      %c0_171 = arith.constant 0 : index
      %c0_172 = arith.constant 0 : index
      %103 = vector.load %arg8[%c0_170, %c0_171, %c0_172] : memref<16x16x64xf32, #tpu.memory_space<vmem>>, vector<16x16x64xf32>
      %104 = arith.addf %103, %102 : vector<16x16x64xf32>
      %c0_173 = arith.constant 0 : index
      %c0_174 = arith.constant 0 : index
      %c0_175 = arith.constant 0 : index
      %105 = vector.load %arg8[%c0_173, %c0_174, %c0_175] : memref<16x16x64xf32, #tpu.memory_space<vmem>>, vector<16x16x64xf32>
      tpu.vector_store %arg8[%c0_173, %c0_174, %c0_175], %104 {strides = array<i32>} : memref<16x16x64xf32, #tpu.memory_space<vmem>>, vector<16x16x64xf32>,
      %c0_176 = arith.constant 0 : index
      %c1_177 = arith.constant 1 : index
      %c0_178 = arith.constant 0 : index
      %106 = vector.load %arg7[%c0_176, %c1_177, %c0_178] : memref<16x16x192xbf16, #tpu.memory_space<vmem>>, vector<16x15x192xbf16>
      %107 = tpu.concatenate %106, %92 in 1 : vector<16x15x192xbf16>, vector<16x1x192xbf16> -> vector<16x16x192xbf16>
      %c2_179 = arith.constant 2 : index
      %c0_180 = arith.constant 0 : index
      %c0_181 = arith.constant 0 : index
      %108 = vector.load %arg3[%c2_179, %c0_180, %c0_181] : memref<3x192x64xbf16, #tpu.memory_space<vmem>>, vector<1x192x64xbf16>
      %109 = vector.shape_cast %108 : vector<1x192x64xbf16> to vector<192x64xbf16>
      %cst_182 = arith.constant dense<0.000000e+00> : vector<16x16x64xf32>
      %110 = tpu.matmul %107, %109, %cst_182 {dimension_numbers = #tpu.dot_dimension_numbers<[2], [0], [0, 1], [1], [0, 0, 0, 1, 1, 1], [], []>} : vector<16x16x192xbf16>, vector<192x64xbf16>, vector<16x16x64xf32> -> vector<16x16x64xf32>
      %c0_183 = arith.constant 0 : index
      %c0_184 = arith.constant 0 : index
      %c0_185 = arith.constant 0 : index
      %111 = vector.load %arg8[%c0_183, %c0_184, %c0_185] : memref<16x16x64xf32, #tpu.memory_space<vmem>>, vector<16x16x64xf32>
      %112 = arith.addf %111, %110 : vector<16x16x64xf32>
      %c0_186 = arith.constant 0 : index
      %c0_187 = arith.constant 0 : index
      %c0_188 = arith.constant 0 : index
      %113 = vector.load %arg8[%c0_186, %c0_187, %c0_188] : memref<16x16x64xf32, #tpu.memory_space<vmem>>, vector<16x16x64xf32>
      tpu.vector_store %arg8[%c0_186, %c0_187, %c0_188], %112 {strides = array<i32>} : memref<16x16x64xf32, #tpu.memory_space<vmem>>, vector<16x16x64xf32>,
      %c0_189 = arith.constant 0 : index
      %c0_190 = arith.constant 0 : index
      %c0_191 = arith.constant 0 : index
      %114 = vector.load %arg8[%c0_189, %c0_190, %c0_191] : memref<16x16x64xf32, #tpu.memory_space<vmem>>, vector<16x16x64xf32>
      %cst_192 = arith.constant 0.000000e+00 : f32
      %115 = vector.broadcast %cst_192 : f32 to vector<16x16x64xf32>
      %116 = arith.cmpf oge, %114, %115 : vector<16x16x64xf32>
      %cst_193 = arith.constant 0.00999999977 : f32
      %117 = vector.broadcast %cst_193 : f32 to vector<16x16x64xf32>
      %118 = arith.mulf %117, %114 : vector<16x16x64xf32>
      %119 = arith.select %116, %114, %118 : vector<16x16x64xi1>, vector<16x16x64xf32>
      %c1_194 = arith.constant 1 : index
      %c0_195 = arith.constant 0 : index
      %c0_196 = arith.constant 0 : index
      %120 = vector.load %arg6[%c1_194, %c0_195, %c0_196] : memref<18x16x64xf32, #tpu.memory_space<vmem>>, vector<16x16x64xf32>
      tpu.vector_store %arg6[%c1_194, %c0_195, %c0_196], %119 {strides = array<i32>} : memref<18x16x64xf32, #tpu.memory_space<vmem>>, vector<16x16x64xf32>,
    }
    %c0_68 = arith.constant 0 : index
    %c0_69 = arith.constant 0 : index
    %c0_70 = arith.constant 0 : index
    %44 = vector.load %arg6[%c0_68, %c0_69, %c0_70] : memref<18x16x64xf32, #tpu.memory_space<vmem>>, vector<16x16x64xf32>
    %45 = arith.truncf %44 : vector<16x16x64xf32> to vector<16x16x64xbf16>
    %c0_71 = arith.constant 0 : index
    %c0_72 = arith.constant 0 : index
    %c0_73 = arith.constant 0 : index
    %46 = vector.load %arg7[%c0_71, %c0_72, %c0_73] : memref<16x16x192xbf16, #tpu.memory_space<vmem>>, vector<16x16x64xbf16>
    tpu.vector_store %arg7[%c0_71, %c0_72, %c0_73], %45 {strides = array<i32>} : memref<16x16x192xbf16, #tpu.memory_space<vmem>>, vector<16x16x64xbf16>,
    %c1_74 = arith.constant 1 : index
    %c0_75 = arith.constant 0 : index
    %c0_76 = arith.constant 0 : index
    %47 = vector.load %arg6[%c1_74, %c0_75, %c0_76] : memref<18x16x64xf32, #tpu.memory_space<vmem>>, vector<16x16x64xf32>
    %48 = arith.truncf %47 : vector<16x16x64xf32> to vector<16x16x64xbf16>
    %c0_77 = arith.constant 0 : index
    %c0_78 = arith.constant 0 : index
    %c64_79 = arith.constant 64 : index
    %49 = vector.load %arg7[%c0_77, %c0_78, %c64_79] : memref<16x16x192xbf16, #tpu.memory_space<vmem>>, vector<16x16x64xbf16>
    tpu.vector_store %arg7[%c0_77, %c0_78, %c64_79], %48 {strides = array<i32>} : memref<16x16x192xbf16, #tpu.memory_space<vmem>>, vector<16x16x64xbf16>,
    %c2_80 = arith.constant 2 : index
    %c0_81 = arith.constant 0 : index
    %c0_82 = arith.constant 0 : index
    %50 = vector.load %arg6[%c2_80, %c0_81, %c0_82] : memref<18x16x64xf32, #tpu.memory_space<vmem>>, vector<16x16x64xf32>
    %51 = arith.truncf %50 : vector<16x16x64xf32> to vector<16x16x64xbf16>
    %c0_83 = arith.constant 0 : index
    %c0_84 = arith.constant 0 : index
    %c128_85 = arith.constant 128 : index
    %52 = vector.load %arg7[%c0_83, %c0_84, %c128_85] : memref<16x16x192xbf16, #tpu.memory_space<vmem>>, vector<16x16x64xbf16>
    tpu.vector_store %arg7[%c0_83, %c0_84, %c128_85], %51 {strides = array<i32>} : memref<16x16x192xbf16, #tpu.memory_space<vmem>>, vector<16x16x64xbf16>,
    %cst_86 = arith.constant 0.000000e+00 : bf16
    %53 = vector.broadcast %cst_86 : bf16 to vector<16x1x192xbf16>
    %c0_87 = arith.constant 0 : index
    %c0_88 = arith.constant 0 : index
    %c0_89 = arith.constant 0 : index
    %54 = vector.load %arg7[%c0_87, %c0_88, %c0_89] : memref<16x16x192xbf16, #tpu.memory_space<vmem>>, vector<16x15x192xbf16>
    %55 = tpu.concatenate %53, %54 in 1 : vector<16x1x192xbf16>, vector<16x15x192xbf16> -> vector<16x16x192xbf16>
    %c0_90 = arith.constant 0 : index
    %c0_91 = arith.constant 0 : index
    %c0_92 = arith.constant 0 : index
    %56 = vector.load %arg4[%c0_90, %c0_91, %c0_92] : memref<3x192x64xbf16, #tpu.memory_space<vmem>>, vector<1x192x64xbf16>
    %57 = vector.shape_cast %56 : vector<1x192x64xbf16> to vector<192x64xbf16>
    %cst_93 = arith.constant dense<0.000000e+00> : vector<16x16x64xf32>
    %58 = tpu.matmul %55, %57, %cst_93 {dimension_numbers = #tpu.dot_dimension_numbers<[2], [0], [0, 1], [1], [0, 0, 0, 1, 1, 1], [], []>} : vector<16x16x192xbf16>, vector<192x64xbf16>, vector<16x16x64xf32> -> vector<16x16x64xf32>
    %c0_94 = arith.constant 0 : index
    %c0_95 = arith.constant 0 : index
    %c0_96 = arith.constant 0 : index
    %59 = vector.load %arg8[%c0_94, %c0_95, %c0_96] : memref<16x16x64xf32, #tpu.memory_space<vmem>>, vector<16x16x64xf32>
    tpu.vector_store %arg8[%c0_94, %c0_95, %c0_96], %58 {strides = array<i32>} : memref<16x16x64xf32, #tpu.memory_space<vmem>>, vector<16x16x64xf32>,
    %c0_97 = arith.constant 0 : index
    %c0_98 = arith.constant 0 : index
    %c0_99 = arith.constant 0 : index
    %60 = vector.load %arg7[%c0_97, %c0_98, %c0_99] : memref<16x16x192xbf16, #tpu.memory_space<vmem>>, vector<16x16x192xbf16>
    %c1_100 = arith.constant 1 : index
    %c0_101 = arith.constant 0 : index
    %c0_102 = arith.constant 0 : index
    %61 = vector.load %arg4[%c1_100, %c0_101, %c0_102] : memref<3x192x64xbf16, #tpu.memory_space<vmem>>, vector<1x192x64xbf16>
    %62 = vector.shape_cast %61 : vector<1x192x64xbf16> to vector<192x64xbf16>
    %cst_103 = arith.constant dense<0.000000e+00> : vector<16x16x64xf32>
    %63 = tpu.matmul %60, %62, %cst_103 {dimension_numbers = #tpu.dot_dimension_numbers<[2], [0], [0, 1], [1], [0, 0, 0, 1, 1, 1], [], []>} : vector<16x16x192xbf16>, vector<192x64xbf16>, vector<16x16x64xf32> -> vector<16x16x64xf32>
    %c0_104 = arith.constant 0 : index
    %c0_105 = arith.constant 0 : index
    %c0_106 = arith.constant 0 : index
    %64 = vector.load %arg8[%c0_104, %c0_105, %c0_106] : memref<16x16x64xf32, #tpu.memory_space<vmem>>, vector<16x16x64xf32>
    %65 = arith.addf %64, %63 : vector<16x16x64xf32>
    %c0_107 = arith.constant 0 : index
    %c0_108 = arith.constant 0 : index
    %c0_109 = arith.constant 0 : index
    %66 = vector.load %arg8[%c0_107, %c0_108, %c0_109] : memref<16x16x64xf32, #tpu.memory_space<vmem>>, vector<16x16x64xf32>
    tpu.vector_store %arg8[%c0_107, %c0_108, %c0_109], %65 {strides = array<i32>} : memref<16x16x64xf32, #tpu.memory_space<vmem>>, vector<16x16x64xf32>,
    %c0_110 = arith.constant 0 : index
    %c1_111 = arith.constant 1 : index
    %c0_112 = arith.constant 0 : index
    %67 = vector.load %arg7[%c0_110, %c1_111, %c0_112] : memref<16x16x192xbf16, #tpu.memory_space<vmem>>, vector<16x15x192xbf16>
    %68 = tpu.concatenate %67, %53 in 1 : vector<16x15x192xbf16>, vector<16x1x192xbf16> -> vector<16x16x192xbf16>
    %c2_113 = arith.constant 2 : index
    %c0_114 = arith.constant 0 : index
    %c0_115 = arith.constant 0 : index
    %69 = vector.load %arg4[%c2_113, %c0_114, %c0_115] : memref<3x192x64xbf16, #tpu.memory_space<vmem>>, vector<1x192x64xbf16>
    %70 = vector.shape_cast %69 : vector<1x192x64xbf16> to vector<192x64xbf16>
    %cst_116 = arith.constant dense<0.000000e+00> : vector<16x16x64xf32>
    %71 = tpu.matmul %68, %70, %cst_116 {dimension_numbers = #tpu.dot_dimension_numbers<[2], [0], [0, 1], [1], [0, 0, 0, 1, 1, 1], [], []>} : vector<16x16x192xbf16>, vector<192x64xbf16>, vector<16x16x64xf32> -> vector<16x16x64xf32>
    %c0_117 = arith.constant 0 : index
    %c0_118 = arith.constant 0 : index
    %c0_119 = arith.constant 0 : index
    %72 = vector.load %arg8[%c0_117, %c0_118, %c0_119] : memref<16x16x64xf32, #tpu.memory_space<vmem>>, vector<16x16x64xf32>
    %73 = arith.addf %72, %71 : vector<16x16x64xf32>
    %c0_120 = arith.constant 0 : index
    %c0_121 = arith.constant 0 : index
    %c0_122 = arith.constant 0 : index
    %74 = vector.load %arg8[%c0_120, %c0_121, %c0_122] : memref<16x16x64xf32, #tpu.memory_space<vmem>>, vector<16x16x64xf32>
    tpu.vector_store %arg8[%c0_120, %c0_121, %c0_122], %73 {strides = array<i32>} : memref<16x16x64xf32, #tpu.memory_space<vmem>>, vector<16x16x64xf32>,
    %c0_123 = arith.constant 0 : index
    %c0_124 = arith.constant 0 : index
    %c0_125 = arith.constant 0 : index
    %75 = vector.load %arg8[%c0_123, %c0_124, %c0_125] : memref<16x16x64xf32, #tpu.memory_space<vmem>>, vector<16x16x64xf32>
    %76 = vector.extract_strided_slice %75 {offsets = [0, 0, 0], sizes = [16, 16, 3], strides = [1, 1, 1]} : vector<16x16x64xf32> to vector<16x16x3xf32>
    %c0_126 = arith.constant 0 : index
    %c0_127 = arith.constant 0 : index
    %c0_128 = arith.constant 0 : index
    %c0_129 = arith.constant 0 : index
    %77 = vector.load %arg1[%c0_126, %c0_127, %c0_128, %c0_129] : memref<1x16x16x3xf32, #tpu.memory_space<vmem>>, vector<1x16x16x3xf32>
    %78 = vector.shape_cast %77 : vector<1x16x16x3xf32> to vector<16x16x3xf32>
    %79 = arith.addf %76, %78 : vector<16x16x3xf32>
    %c0_130 = arith.constant 0 : index
    %c0_131 = arith.constant 0 : index
    %c0_132 = arith.constant 0 : index
    %c0_133 = arith.constant 0 : index
    %80 = vector.load %arg5[%c0_130, %c0_131, %c0_132, %c0_133] : memref<1x16x16x3xf32, #tpu.memory_space<vmem>>, vector<1x16x16x3xf32>
    %81 = vector.shape_cast %80 : vector<1x16x16x3xf32> to vector<16x16x3xf32>
    %82 = vector.shape_cast %79 : vector<16x16x3xf32> to vector<1x16x16x3xf32>
    tpu.vector_store %arg5[%c0_130, %c0_131, %c0_132, %c0_133], %82 {strides = array<i32>} : memref<1x16x16x3xf32, #tpu.memory_space<vmem>>, vector<1x16x16x3xf32>,
    return
  }
  func.func @transform_0(%arg0: i32) -> (i32, i32, i32, i32) {
    %c0_i32 = arith.constant 0 : i32
    %c0_i32_0 = arith.constant 0 : i32
    %c0_i32_1 = arith.constant 0 : i32
    %c0_i32_2 = arith.constant 0 : i32
    return %arg0, %c0_i32, %c0_i32_0, %c0_i32_1 : i32, i32, i32, i32
  }
  func.func @transform_1(%arg0: i32) -> (i32, i32, i32) {
    %c0_i32 = arith.constant 0 : i32
    %c0_i32_0 = arith.constant 0 : i32
    %c0_i32_1 = arith.constant 0 : i32
    %c0_i32_2 = arith.constant 0 : i32
    return %c0_i32, %c0_i32_0, %c0_i32_1 : i32, i32, i32
  }
  func.func @transform_2(%arg0: i32) -> (i32, i32, i32) {
    %c0_i32 = arith.constant 0 : i32
    %c0_i32_0 = arith.constant 0 : i32
    %c0_i32_1 = arith.constant 0 : i32
    %c0_i32_2 = arith.constant 0 : i32
    return %c0_i32, %c0_i32_0, %c0_i32_1 : i32, i32, i32
  }
  func.func @transform_3(%arg0: i32) -> (i32, i32, i32) {
    %c0_i32 = arith.constant 0 : i32
    %c0_i32_0 = arith.constant 0 : i32
    %c0_i32_1 = arith.constant 0 : i32
    %c0_i32_2 = arith.constant 0 : i32
    return %c0_i32, %c0_i32_0, %c0_i32_1 : i32, i32, i32
  }
  func.func @transform_4(%arg0: i32) -> (i32, i32, i32, i32) {
    %c0_i32 = arith.constant 0 : i32
    %c0_i32_0 = arith.constant 0 : i32
    %c0_i32_1 = arith.constant 0 : i32
    %c0_i32_2 = arith.constant 0 : i32
    return %arg0, %c0_i32, %c0_i32_0, %c0_i32_1 : i32, i32, i32, i32
  }
}

</mosaic_0001>

<llo_original>
// kernel: deblurring_forward.1
$region0: #{deblurring_forward.1}
  #allocation0 [shape = 'u32[]', space=smem, size = 0x4, offset = 0x4, fixed_abs, tag = 'smem constant byte address 0x4 - core index']
  #allocation1 [shape = 'u32[144,128]{1,0:T(1,128)}', space=vmem, size = 0x12000, scoped, tag = 'internal scratch']
  #allocation2 [shape = 'f32[18,16,64]{2,1,0:T(8,128)}', space=vmem, size = 0x24000, scoped, tag = 'scratch operand']
  #allocation3 [shape = 'bf16[16,16,192]{2,1,0:T(16,128)(2,1)}', space=vmem, size = 0x20000, scoped, tag = 'scratch operand']
  #allocation4 [shape = 'f32[16,16,64]{2,1,0:T(8,128)}', space=vmem, size = 0x20000, scoped, tag = 'scratch operand']
  %s0 = inlined_call_operand.vmem [shape: f32[2,16,16,3], index: 0, kind: input, shape index: {}]
  %s1 = inlined_call_operand.vmem [shape: bf16[3,192,64], index: 1, kind: input, shape index: {}]
  %s2 = inlined_call_operand.vmem [shape: bf16[3,192,64], index: 2, kind: input, shape index: {}]
  %s3 = inlined_call_operand.vmem [shape: bf16[3,192,64], index: 3, kind: input, shape index: {}]
  %s4 = inlined_call_operand.vmem [shape: f32[2,16,16,3], index: 4, kind: output, shape index: {}]
  %s5 = sld [smem:[#allocation0]]
  $region56: #{deblurring_forward.1} parent=0
    _
  %s7 = ssub.s32 1, %s5
  %s8 = scalar_select 0, %s7, %s5
  loop: start=0, step=1, limit=4
  $region2: #{deblurring_forward.1} parent=0 // loop_pre_header
    _
  $region3: #{deblurring_forward.1} parent=0 // loop_header
    %s10 = sphi 0, %s14
    %p11 = scmp.ge.s32.totalorder %s10, 4
    %s20 = sphi 0, %s22
    %s23 = sphi 0, %s20
    %s24 = sphi 0, %s23
    %s40 = sphi 0, %s24
    %s44 = sphi 0, %s44
    %s46 = sphi 0, %s44
    %s47 = sphi 0, %s46
    %s61 = sphi 0, %s47
    %s65 = sphi 0, %s65
    %s67 = sphi 0, %s65
    %s68 = sphi 0, %s67
    %s82 = sphi 0, %s68
    %s86 = sphi 0, %s86
    %s88 = sphi 0, %s86
    %s89 = sphi 0, %s88
    %s103 = sphi 0, %s89
    %s109 = sphi 0, %s111
    %s112 = sphi 0, %s109
    %s113 = sphi 0, %s112
    %s129 = sphi 0, %s113
  $region4: #{deblurring_forward.1} parent=0 // loop_header_branch
    %13 = sbr.rel (%p11) target = $region8
  $region5: #{deblurring_forward.1} parent=0 // loop_body
    %s15 = ssub.s32 %s10, 1
    %s16 = ssub.s32 %s10, 2
    %s17 = sadd.s32 %s10, 1
    %s18 = ssub.s32 %s10, %s17
    %p19 = scmp.eq.s32.totalorder %s18, 0
    %s21 = sadd.s32 %s20, 1
    %s22 = scalar_select %p19, %s20, %s21
    %p25 = pneg %p19
    %p26 = scmp.eq.s32.totalorder %s10, 1
    %p27 = por %p25, %p26
    %p28 = scmp.ne.s32.totalorder %s20, %s23
    %p29 = scmp.eq.s32.totalorder %s10, 0
    %p30 = por %p28, %p29
    %p31 = scmp.ne.s32.totalorder %s20, %s23
    %p32 = scmp.eq.s32.totalorder %s15, 1
    %p33 = por %p31, %p32
    %p34 = scmp.ne.s32.totalorder %s23, %s24
    %p35 = scmp.eq.s32.totalorder %s15, 0
    %p36 = por %p34, %p35
    %p37 = scmp.ne.s32.totalorder %s23, %s24
    %p38 = scmp.eq.s32.totalorder %s16, 1
    %p39 = por %p37, %p38
    %p41 = scmp.ne.s32.totalorder %s24, %s40
    %p42 = scmp.eq.s32.totalorder %s16, 0
    %p43 = por %p41, %p42
    %s45 = sadd.s32 %s44, 1
    %p48 = scmp.eq.s32.totalorder %s10, 1
    %p49 = scmp.ne.s32.totalorder %s44, %s46
    %p50 = scmp.eq.s32.totalorder %s10, 0
    %p51 = por %p49, %p50
    %p52 = scmp.ne.s32.totalorder %s44, %s46
    %p53 = scmp.eq.s32.totalorder %s15, 1
    %p54 = por %p52, %p53
    %p55 = scmp.ne.s32.totalorder %s46, %s47
    %p56 = scmp.eq.s32.totalorder %s15, 0
    %p57 = por %p55, %p56
    %p58 = scmp.ne.s32.totalorder %s46, %s47
    %p59 = scmp.eq.s32.totalorder %s16, 1
    %p60 = por %p58, %p59
    %p62 = scmp.ne.s32.totalorder %s47, %s61
    %p63 = scmp.eq.s32.totalorder %s16, 0
    %p64 = por %p62, %p63
    %s66 = sadd.s32 %s65, 1
    %p69 = scmp.eq.s32.totalorder %s10, 1
    %p70 = scmp.ne.s32.totalorder %s65, %s67
    %p71 = scmp.eq.s32.totalorder %s10, 0
    %p72 = por %p70, %p71
    %p73 = scmp.ne.s32.totalorder %s65, %s67
    %p74 = scmp.eq.s32.totalorder %s15, 1
    %p75 = por %p73, %p74
    %p76 = scmp.ne.s32.totalorder %s67, %s68
    %p77 = scmp.eq.s32.totalorder %s15, 0
    %p78 = por %p76, %p77
    %p79 = scmp.ne.s32.totalorder %s67, %s68
    %p80 = scmp.eq.s32.totalorder %s16, 1
    %p81 = por %p79, %p80
    %p83 = scmp.ne.s32.totalorder %s68, %s82
    %p84 = scmp.eq.s32.totalorder %s16, 0
    %p85 = por %p83, %p84
    %s87 = sadd.s32 %s86, 1
    %p90 = scmp.eq.s32.totalorder %s10, 1
    %p91 = scmp.ne.s32.totalorder %s86, %s88
    %p92 = scmp.eq.s32.totalorder %s10, 0
    %p93 = por %p91, %p92
    %p94 = scmp.ne.s32.totalorder %s86, %s88
    %p95 = scmp.eq.s32.totalorder %s15, 1
    %p96 = por %p94, %p95
    %p97 = scmp.ne.s32.totalorder %s88, %s89
    %p98 = scmp.eq.s32.totalorder %s15, 0
    %p99 = por %p97, %p98
    %p100 = scmp.ne.s32.totalorder %s88, %s89
    %p101 = scmp.eq.s32.totalorder %s16, 1
    %p102 = por %p100, %p101
    %p104 = scmp.ne.s32.totalorder %s89, %s103
    %p105 = scmp.eq.s32.totalorder %s16, 0
    %p106 = por %p104, %p105
    %s107 = ssub.s32 %s10, %s17
    %p108 = scmp.eq.s32.totalorder %s107, 0
    %s110 = sadd.s32 %s109, 1
    %s111 = scalar_select %p108, %s109, %s110
    %p114 = pneg %p108
    %p115 = scmp.eq.s32.totalorder %s10, 1
    %p116 = por %p114, %p115
    %p117 = scmp.ne.s32.totalorder %s109, %s112
    %p118 = scmp.eq.s32.totalorder %s10, 0
    %p119 = por %p117, %p118
    %p120 = scmp.ne.s32.totalorder %s109, %s112
    %p121 = scmp.eq.s32.totalorder %s15, 1
    %p122 = por %p120, %p121
    %p123 = scmp.ne.s32.totalorder %s112, %s113
    %p124 = scmp.eq.s32.totalorder %s15, 0
    %p125 = por %p123, %p124
    %p126 = scmp.ne.s32.totalorder %s112, %s113
    %p127 = scmp.eq.s32.totalorder %s16, 1
    %p128 = por %p126, %p127
    %p130 = scmp.ne.s32.totalorder %s113, %s129
    %p131 = scmp.eq.s32.totalorder %s16, 0
    %p132 = por %p130, %p131
    %p133 = scmp.le.s32.totalorder 1, %s10
    %p134 = scmp.lt.s32.totalorder %s10, 3
    %p135 = pnand %p133, %p134
    %p136 = pneg %p135
    // Predicated region
    $region9: #{deblurring_forward.1} parent=5 // pred_check
      _
    $region10: #{deblurring_forward.1} parent=5 // pred_check_branch
      %138 = sbr.rel (%p135) target = $region12
    $region11: #{deblurring_forward.1} parent=5 // pred_region
      %s139 = ssub.s32 %s10, 1
      // Predicated region
      $region13: #{deblurring_forward.1} parent=11 // pred_check
        %p140 = pneg %p57
      $region14: #{deblurring_forward.1} parent=11 // pred_check_branch
        %142 = sbr.rel (%p140) target = $region16
      $region15: #{deblurring_forward.1} parent=11 // pred_region
        _
      $region16: #{deblurring_forward.1} parent=11 // pred_fallthru
        _
      // Predicated region
      $region17: #{deblurring_forward.1} parent=11 // pred_check
        %p143 = pneg %p78
      $region18: #{deblurring_forward.1} parent=11 // pred_check_branch
        %145 = sbr.rel (%p143) target = $region20
      $region19: #{deblurring_forward.1} parent=11 // pred_region
        _
      $region20: #{deblurring_forward.1} parent=11 // pred_fallthru
        _
      // Predicated region
      $region21: #{deblurring_forward.1} parent=11 // pred_check
        %p146 = pneg %p99
      $region22: #{deblurring_forward.1} parent=11 // pred_check_branch
        %148 = sbr.rel (%p146) target = $region24
      $region23: #{deblurring_forward.1} parent=11 // pred_region
        _
      $region24: #{deblurring_forward.1} parent=11 // pred_fallthru
        _
    $region12: #{deblurring_forward.1} parent=5 // pred_fallthru
      _
    %p149 = scmp.lt.s32.totalorder %s10, 2
    // Predicated region
    $region25: #{deblurring_forward.1} parent=5 // pred_check
      %p150 = pneg %p149
    $region26: #{deblurring_forward.1} parent=5 // pred_check_branch
      %152 = sbr.rel (%p150) target = $region28
    $region27: #{deblurring_forward.1} parent=5 // pred_region
      // Predicated region
      $region29: #{deblurring_forward.1} parent=27 // pred_check
        %p153 = pneg %p30
      $region30: #{deblurring_forward.1} parent=27 // pred_check_branch
        %155 = sbr.rel (%p153) target = $region32
      $region31: #{deblurring_forward.1} parent=27 // pred_region
        %p156 = scmp.lt.s32.totalorder %s10, 1
        %s157 = scalar_select %p156, %s10, 1
        %s158 = smul.addr %s157, 32
        %s159 = smul.addr %s158, 8
        %s160 = scalar_lea.vmem %s0, %s159
      $region32: #{deblurring_forward.1} parent=27 // pred_fallthru
        _
    $region28: #{deblurring_forward.1} parent=5 // pred_fallthru
      _
    %p161 = scmp.le.s32.totalorder 1, %s10
    %p162 = scmp.lt.s32.totalorder %s10, 3
    %p163 = pnand %p161, %p162
    %p164 = pneg %p163
    // Predicated region
    $region33: #{deblurring_forward.1} parent=5 // pred_check
      _
    $region34: #{deblurring_forward.1} parent=5 // pred_check_branch
      %166 = sbr.rel (%p163) target = $region36
    $region35: #{deblurring_forward.1} parent=5 // pred_region
      %s167 = ssub.s32 %s10, 1
      %p168 = scmp.lt.s32.totalorder %s15, 1
      %s169 = scalar_select %p168, %s15, 1
      %s170 = smul.addr %s169, 32
      %s171 = smul.addr %s170, 8
      %s172 = scalar_lea.vmem %s0, %s171
      %p173 = pneg %p36
      %p174 = pneg %p33
      %p175 = pneg %p57
      %p176 = pneg %p54
      %p177 = pneg %p78
      %p178 = pneg %p75
      %p179 = pneg %p99
      %p180 = pneg %p96
      %p181 = pneg %p125
      %p182 = pneg %p122
      %p183 = scmp.lt.s32.totalorder %s15, 1
      %s184 = scalar_select %p183, %s15, 1
      %s185 = smul.addr %s184, 32
      %s186 = smul.addr %s185, 8
      %s187 = scalar_lea.vmem %s4, %s186
      %p188 = scmp.lt.s32.totalorder %s15, 1
      %s189 = scalar_select %p188, %s15, 1
      %s190 = smul.addr %s189, 32
      %s191 = smul.addr %s190, 8
      %s192 = scalar_lea.vmem %s0, %s191
      %p193 = scmp.lt.s32.totalorder %s15, 1
      %s194 = scalar_select %p193, %s15, 1
      %s195 = smul.addr %s194, 32
      %s196 = smul.addr %s195, 8
      %s197 = scalar_lea.vmem %s4, %s196
      %vm199 = vcmask 523264
      %200 = vst.msk [vmem:[#allocation2] sm:$0xff] %vm199, 0.0
      %201 = vst.msk [vmem:[#allocation2 + $0x8] sm:$0xff] %vm199, 0.0
      %202 = vst.msk [vmem:[#allocation2 + $0x10] sm:$0xff] %vm199, 0.0
      %203 = vst.msk [vmem:[#allocation2 + $0x18] sm:$0xff] %vm199, 0.0
      %204 = vst.msk [vmem:[#allocation2 + $0x20] sm:$0xff] %vm199, 0.0
      %205 = vst.msk [vmem:[#allocation2 + $0x28] sm:$0xff] %vm199, 0.0
      %206 = vst.msk [vmem:[#allocation2 + $0x30] sm:$0xff] %vm199, 0.0
      %207 = vst.msk [vmem:[#allocation2 + $0x38] sm:$0xff] %vm199, 0.0
      %208 = vst.msk [vmem:[#allocation2 + $0x40] sm:$0xff] %vm199, 0.0
      %209 = vst.msk [vmem:[#allocation2 + $0x48] sm:$0xff] %vm199, 0.0
      %210 = vst.msk [vmem:[#allocation2 + $0x50] sm:$0xff] %vm199, 0.0
      %211 = vst.msk [vmem:[#allocation2 + $0x58] sm:$0xff] %vm199, 0.0
      %212 = vst.msk [vmem:[#allocation2 + $0x60] sm:$0xff] %vm199, 0.0
      %213 = vst.msk [vmem:[#allocation2 + $0x68] sm:$0xff] %vm199, 0.0
      %214 = vst.msk [vmem:[#allocation2 + $0x70] sm:$0xff] %vm199, 0.0
      %215 = vst.msk [vmem:[#allocation2 + $0x78] sm:$0xff] %vm199, 0.0
      %216 = vst.msk [vmem:[#allocation2 + $0x80] sm:$0xff] %vm199, 0.0
      %217 = vst.msk [vmem:[#allocation2 + $0x88] sm:$0xff] %vm199, 0.0
      %218 = vst.msk [vmem:[#allocation2 + $0x90] sm:$0xff] %vm199, 0.0
      %219 = vst.msk [vmem:[#allocation2 + $0x98] sm:$0xff] %vm199, 0.0
      %220 = vst.msk [vmem:[#allocation2 + $0xa0] sm:$0xff] %vm199, 0.0
      %221 = vst.msk [vmem:[#allocation2 + $0xa8] sm:$0xff] %vm199, 0.0
      %222 = vst.msk [vmem:[#allocation2 + $0xb0] sm:$0xff] %vm199, 0.0
      %223 = vst.msk [vmem:[#allocation2 + $0xb8] sm:$0xff] %vm199, 0.0
      %224 = vst.msk [vmem:[#allocation2 + $0xc0] sm:$0xff] %vm199, 0.0
      %225 = vst.msk [vmem:[#allocation2 + $0xc8] sm:$0xff] %vm199, 0.0
      %226 = vst.msk [vmem:[#allocation2 + $0xd0] sm:$0xff] %vm199, 0.0
      %227 = vst.msk [vmem:[#allocation2 + $0xd8] sm:$0xff] %vm199, 0.0
      %228 = vst.msk [vmem:[#allocation2 + $0xe0] sm:$0xff] %vm199, 0.0
      %229 = vst.msk [vmem:[#allocation2 + $0xe8] sm:$0xff] %vm199, 0.0
      %230 = vst.msk [vmem:[#allocation2 + $0xf0] sm:$0xff] %vm199, 0.0
      %231 = vst.msk [vmem:[#allocation2 + $0xf8] sm:$0xff] %vm199, 0.0
      %232 = vst.msk [vmem:[#allocation2 + $0x100] sm:$0xff] %vm199, 0.0
      %233 = vst.msk [vmem:[#allocation2 + $0x108] sm:$0xff] %vm199, 0.0
      %234 = vst.msk [vmem:[#allocation2 + $0x110] sm:$0xff] %vm199, 0.0
      %235 = vst.msk [vmem:[#allocation2 + $0x118] sm:$0xff] %vm199, 0.0
      %v236 = vld [vmem:[%s192] sm:$0xff]
      %v237 = vld [vmem:[%s192 + $0x8] sm:$0xff]
      %v238 = vld [vmem:[%s192 + $0x10] sm:$0xff]
      %v239 = vld [vmem:[%s192 + $0x18] sm:$0xff]
      %v240 = vld [vmem:[%s192 + $0x20] sm:$0xff]
      %v241 = vld [vmem:[%s192 + $0x28] sm:$0xff]
      %v242 = vld [vmem:[%s192 + $0x30] sm:$0xff]
      %v243 = vld [vmem:[%s192 + $0x38] sm:$0xff]
      %v244 = vld [vmem:[%s192 + $0x40] sm:$0xff]
      %v245 = vld [vmem:[%s192 + $0x48] sm:$0xff]
      %v246 = vld [vmem:[%s192 + $0x50] sm:$0xff]
      %v247 = vld [vmem:[%s192 + $0x58] sm:$0xff]
      %v248 = vld [vmem:[%s192 + $0x60] sm:$0xff]
      %v249 = vld [vmem:[%s192 + $0x68] sm:$0xff]
      %v250 = vld [vmem:[%s192 + $0x70] sm:$0xff]
      %v251 = vld [vmem:[%s192 + $0x78] sm:$0xff]
      %v252 = vld [vmem:[%s192 + $0x80] sm:$0xff]
      %v253 = vld [vmem:[%s192 + $0x88] sm:$0xff]
      %v254 = vld [vmem:[%s192 + $0x90] sm:$0xff]
      %v255 = vld [vmem:[%s192 + $0x98] sm:$0xff]
      %v256 = vld [vmem:[%s192 + $0xa0] sm:$0xff]
      %v257 = vld [vmem:[%s192 + $0xa8] sm:$0xff]
      %v258 = vld [vmem:[%s192 + $0xb0] sm:$0xff]
      %v259 = vld [vmem:[%s192 + $0xb8] sm:$0xff]
      %v260 = vld [vmem:[%s192 + $0xc0] sm:$0xff]
      %v261 = vld [vmem:[%s192 + $0xc8] sm:$0xff]
      %v262 = vld [vmem:[%s192 + $0xd0] sm:$0xff]
      %v263 = vld [vmem:[%s192 + $0xd8] sm:$0xff]
      %v264 = vld [vmem:[%s192 + $0xe0] sm:$0xff]
      %v265 = vld [vmem:[%s192 + $0xe8] sm:$0xff]
      %v266 = vld [vmem:[%s192 + $0xf0] sm:$0xff]
      %v267 = vld [vmem:[%s192 + $0xf8] sm:$0xff]
      %s268 = scalar_lea.vmem [#allocation2], 16
      %vm269 = vcmask 23552
      %270 = vst.msk [vmem:[%s268] sm:$0xff] %vm269, %v236
      %271 = vst.msk [vmem:[%s268 + $0x8] sm:$0xff] %vm269, %v237
      %272 = vst.msk [vmem:[%s268 + $0x10] sm:$0xff] %vm269, %v238
      %273 = vst.msk [vmem:[%s268 + $0x18] sm:$0xff] %vm269, %v239
      %274 = vst.msk [vmem:[%s268 + $0x20] sm:$0xff] %vm269, %v240
      %275 = vst.msk [vmem:[%s268 + $0x28] sm:$0xff] %vm269, %v241
      %276 = vst.msk [vmem:[%s268 + $0x30] sm:$0xff] %vm269, %v242
      %277 = vst.msk [vmem:[%s268 + $0x38] sm:$0xff] %vm269, %v243
      %278 = vst.msk [vmem:[%s268 + $0x40] sm:$0xff] %vm269, %v244
      %279 = vst.msk [vmem:[%s268 + $0x48] sm:$0xff] %vm269, %v245
      %280 = vst.msk [vmem:[%s268 + $0x50] sm:$0xff] %vm269, %v246
      %281 = vst.msk [vmem:[%s268 + $0x58] sm:$0xff] %vm269, %v247
      %282 = vst.msk [vmem:[%s268 + $0x60] sm:$0xff] %vm269, %v248
      %283 = vst.msk [vmem:[%s268 + $0x68] sm:$0xff] %vm269, %v249
      %284 = vst.msk [vmem:[%s268 + $0x70] sm:$0xff] %vm269, %v250
      %285 = vst.msk [vmem:[%s268 + $0x78] sm:$0xff] %vm269, %v251
      %286 = vst.msk [vmem:[%s268 + $0x80] sm:$0xff] %vm269, %v252
      %287 = vst.msk [vmem:[%s268 + $0x88] sm:$0xff] %vm269, %v253
      %288 = vst.msk [vmem:[%s268 + $0x90] sm:$0xff] %vm269, %v254
      %289 = vst.msk [vmem:[%s268 + $0x98] sm:$0xff] %vm269, %v255
      %290 = vst.msk [vmem:[%s268 + $0xa0] sm:$0xff] %vm269, %v256
      %291 = vst.msk [vmem:[%s268 + $0xa8] sm:$0xff] %vm269, %v257
      %292 = vst.msk [vmem:[%s268 + $0xb0] sm:$0xff] %vm269, %v258
      %293 = vst.msk [vmem:[%s268 + $0xb8] sm:$0xff] %vm269, %v259
      %294 = vst.msk [vmem:[%s268 + $0xc0] sm:$0xff] %vm269, %v260
      %295 = vst.msk [vmem:[%s268 + $0xc8] sm:$0xff] %vm269, %v261
      %296 = vst.msk [vmem:[%s268 + $0xd0] sm:$0xff] %vm269, %v262
      %297 = vst.msk [vmem:[%s268 + $0xd8] sm:$0xff] %vm269, %v263
      %298 = vst.msk [vmem:[%s268 + $0xe0] sm:$0xff] %vm269, %v264
      %299 = vst.msk [vmem:[%s268 + $0xe8] sm:$0xff] %vm269, %v265
      %300 = vst.msk [vmem:[%s268 + $0xf0] sm:$0xff] %vm269, %v266
      %301 = vst.msk [vmem:[%s268 + $0xf8] sm:$0xff] %vm269, %v267
      %v302 = vld [vmem:[#allocation2] sm:$0xff]
      %v303 = vld [vmem:[#allocation2 + $0x8] sm:$0xff]
      %v304 = vld [vmem:[#allocation2 + $0x10] sm:$0xff]
      %v305 = vld [vmem:[#allocation2 + $0x18] sm:$0xff]
      %v306 = vld [vmem:[#allocation2 + $0x20] sm:$0xff]
      %v307 = vld [vmem:[#allocation2 + $0x28] sm:$0xff]
      %v308 = vld [vmem:[#allocation2 + $0x30] sm:$0xff]
      %v309 = vld [vmem:[#allocation2 + $0x38] sm:$0xff]
      %v310 = vld [vmem:[#allocation2 + $0x40] sm:$0xff]
      %v311 = vld [vmem:[#allocation2 + $0x48] sm:$0xff]
      %v312 = vld [vmem:[#allocation2 + $0x50] sm:$0xff]
      %v313 = vld [vmem:[#allocation2 + $0x58] sm:$0xff]
      %v314 = vld [vmem:[#allocation2 + $0x60] sm:$0xff]
      %v315 = vld [vmem:[#allocation2 + $0x68] sm:$0xff]
      %v316 = vld [vmem:[#allocation2 + $0x70] sm:$0xff]
      %v317 = vld [vmem:[#allocation2 + $0x78] sm:$0xff]
      %v318 = vld [vmem:[#allocation2 + $0x80] sm:$0xff]
      %v319 = vld [vmem:[#allocation2 + $0x88] sm:$0xff]
      %v320 = vld [vmem:[#allocation2 + $0x90] sm:$0xff]
      %v321 = vld [vmem:[#allocation2 + $0x98] sm:$0xff]
      %v322 = vld [vmem:[#allocation2 + $0xa0] sm:$0xff]
      %v323 = vld [vmem:[#allocation2 + $0xa8] sm:$0xff]
      %v324 = vld [vmem:[#allocation2 + $0xb0] sm:$0xff]
      %v325 = vld [vmem:[#allocation2 + $0xb8] sm:$0xff]
      %v326 = vld [vmem:[#allocation2 + $0xc0] sm:$0xff]
      %v327 = vld [vmem:[#allocation2 + $0xc8] sm:$0xff]
      %v328 = vld [vmem:[#allocation2 + $0xd0] sm:$0xff]
      %v329 = vld [vmem:[#allocation2 + $0xd8] sm:$0xff]
      %v330 = vld [vmem:[#allocation2 + $0xe0] sm:$0xff]
      %v331 = vld [vmem:[#allocation2 + $0xe8] sm:$0xff]
      %v332 = vld [vmem:[#allocation2 + $0xf0] sm:$0xff]
      %v333 = vld [vmem:[#allocation2 + $0xf8] sm:$0xff]
      %v334 = vpack.c.bf16 %v303, %v302
      %v335 = vpack.c.bf16 %v305, %v304
      %v336 = vpack.c.bf16 %v307, %v306
      %v337 = vpack.c.bf16 %v309, %v308
      %v338 = vpack.c.bf16 %v311, %v310
      %v339 = vpack.c.bf16 %v313, %v312
      %v340 = vpack.c.bf16 %v315, %v314
      %v341 = vpack.c.bf16 %v317, %v316
      %v342 = vpack.c.bf16 %v319, %v318
      %v343 = vpack.c.bf16 %v321, %v320
      %v344 = vpack.c.bf16 %v323, %v322
      %v345 = vpack.c.bf16 %v325, %v324
      %v346 = vpack.c.bf16 %v327, %v326
      %v347 = vpack.c.bf16 %v329, %v328
      %v348 = vpack.c.bf16 %v331, %v330
      %v349 = vpack.c.bf16 %v333, %v332
      %350 = vst.msk [vmem:[#allocation3] sm:$0xff] %vm199, %v334
      %351 = vst.msk [vmem:[#allocation3 + $0x10] sm:$0xff] %vm199, %v335
      %352 = vst.msk [vmem:[#allocation3 + $0x20] sm:$0xff] %vm199, %v336
      %353 = vst.msk [vmem:[#allocation3 + $0x30] sm:$0xff] %vm199, %v337
      %354 = vst.msk [vmem:[#allocation3 + $0x40] sm:$0xff] %vm199, %v338
      %355 = vst.msk [vmem:[#allocation3 + $0x50] sm:$0xff] %vm199, %v339
      %356 = vst.msk [vmem:[#allocation3 + $0x60] sm:$0xff] %vm199, %v340
      %357 = vst.msk [vmem:[#allocation3 + $0x70] sm:$0xff] %vm199, %v341
      %358 = vst.msk [vmem:[#allocation3 + $0x80] sm:$0xff] %vm199, %v342
      %359 = vst.msk [vmem:[#allocation3 + $0x90] sm:$0xff] %vm199, %v343
      %360 = vst.msk [vmem:[#allocation3 + $0xa0] sm:$0xff] %vm199, %v344
      %361 = vst.msk [vmem:[#allocation3 + $0xb0] sm:$0xff] %vm199, %v345
      %362 = vst.msk [vmem:[#allocation3 + $0xc0] sm:$0xff] %vm199, %v346
      %363 = vst.msk [vmem:[#allocation3 + $0xd0] sm:$0xff] %vm199, %v347
      %364 = vst.msk [vmem:[#allocation3 + $0xe0] sm:$0xff] %vm199, %v348
      %365 = vst.msk [vmem:[#allocation3 + $0xf0] sm:$0xff] %vm199, %v349
      %v366 = vld [vmem:[%s268] sm:$0xff]
      %v367 = vld [vmem:[%s268 + $0x8] sm:$0xff]
      %v368 = vld [vmem:[%s268 + $0x10] sm:$0xff]
      %v369 = vld [vmem:[%s268 + $0x18] sm:$0xff]
      %v370 = vld [vmem:[%s268 + $0x20] sm:$0xff]
      %v371 = vld [vmem:[%s268 + $0x28] sm:$0xff]
      %v372 = vld [vmem:[%s268 + $0x30] sm:$0xff]
      %v373 = vld [vmem:[%s268 + $0x38] sm:$0xff]
      %v374 = vld [vmem:[%s268 + $0x40] sm:$0xff]
      %v375 = vld [vmem:[%s268 + $0x48] sm:$0xff]
      %v376 = vld [vmem:[%s268 + $0x50] sm:$0xff]
      %v377 = vld [vmem:[%s268 + $0x58] sm:$0xff]
      %v378 = vld [vmem:[%s268 + $0x60] sm:$0xff]
      %v379 = vld [vmem:[%s268 + $0x68] sm:$0xff]
      %v380 = vld [vmem:[%s268 + $0x70] sm:$0xff]
      %v381 = vld [vmem:[%s268 + $0x78] sm:$0xff]
      %v382 = vld [vmem:[%s268 + $0x80] sm:$0xff]
      %v383 = vld [vmem:[%s268 + $0x88] sm:$0xff]
      %v384 = vld [vmem:[%s268 + $0x90] sm:$0xff]
      %v385 = vld [vmem:[%s268 + $0x98] sm:$0xff]
      %v386 = vld [vmem:[%s268 + $0xa0] sm:$0xff]
      %v387 = vld [vmem:[%s268 + $0xa8] sm:$0xff]
      %v388 = vld [vmem:[%s268 + $0xb0] sm:$0xff]
      %v389 = vld [vmem:[%s268 + $0xb8] sm:$0xff]
      %v390 = vld [vmem:[%s268 + $0xc0] sm:$0xff]
      %v391 = vld [vmem:[%s268 + $0xc8] sm:$0xff]
      %v392 = vld [vmem:[%s268 + $0xd0] sm:$0xff]
      %v393 = vld [vmem:[%s268 + $0xd8] sm:$0xff]
      %v394 = vld [vmem:[%s268 + $0xe0] sm:$0xff]
      %v395 = vld [vmem:[%s268 + $0xe8] sm:$0xff]
      %v396 = vld [vmem:[%s268 + $0xf0] sm:$0xff]
      %v397 = vld [vmem:[%s268 + $0xf8] sm:$0xff]
      %v398 = vpack.c.bf16 %v367, %v366
      %v399 = vpack.c.bf16 %v369, %v368
      %v400 = vpack.c.bf16 %v371, %v370
      %v401 = vpack.c.bf16 %v373, %v372
      %v402 = vpack.c.bf16 %v375, %v374
      %v403 = vpack.c.bf16 %v377, %v376
      %v404 = vpack.c.bf16 %v379, %v378
      %v405 = vpack.c.bf16 %v381, %v380
      %v406 = vpack.c.bf16 %v383, %v382
      %v407 = vpack.c.bf16 %v385, %v384
      %v408 = vpack.c.bf16 %v387, %v386
      %v409 = vpack.c.bf16 %v389, %v388
      %v410 = vpack.c.bf16 %v391, %v390
      %v411 = vpack.c.bf16 %v393, %v392
      %v412 = vpack.c.bf16 %v395, %v394
      %v413 = vpack.c.bf16 %v397, %v396
      %430 = vrot.lane.b32.xlu0 %v398, 64
      %v431 = vpop.permute.xlu0 %430
      %432 = vrot.lane.b32.xlu0 %v399, 64
      %v433 = vpop.permute.xlu0 %432
      %434 = vrot.lane.b32.xlu0 %v400, 64
      %v435 = vpop.permute.xlu0 %434
      %436 = vrot.lane.b32.xlu0 %v401, 64
      %v437 = vpop.permute.xlu0 %436
      %438 = vrot.lane.b32.xlu0 %v402, 64
      %v439 = vpop.permute.xlu0 %438
      %440 = vrot.lane.b32.xlu0 %v403, 64
      %v441 = vpop.permute.xlu0 %440
      %442 = vrot.lane.b32.xlu0 %v404, 64
      %v443 = vpop.permute.xlu0 %442
      %444 = vrot.lane.b32.xlu0 %v405, 64
      %v445 = vpop.permute.xlu0 %444
      %446 = vrot.lane.b32.xlu0 %v406, 64
      %v447 = vpop.permute.xlu0 %446
      %448 = vrot.lane.b32.xlu0 %v407, 64
      %v449 = vpop.permute.xlu0 %448
      %450 = vrot.lane.b32.xlu0 %v408, 64
      %v451 = vpop.permute.xlu0 %450
      %452 = vrot.lane.b32.xlu0 %v409, 64
      %v453 = vpop.permute.xlu0 %452
      %454 = vrot.lane.b32.xlu0 %v410, 64
      %v455 = vpop.permute.xlu0 %454
      %456 = vrot.lane.b32.xlu0 %v411, 64
      %v457 = vpop.permute.xlu0 %456
      %458 = vrot.lane.b32.xlu0 %v412, 64
      %v459 = vpop.permute.xlu0 %458
      %460 = vrot.lane.b32.xlu0 %v413, 64
      %v461 = vpop.permute.xlu0 %460
      %vm478 = vcmask 1048064
      %479 = vst.msk [vmem:[#allocation3] sm:$0xff] %vm478, %v431
      %480 = vst.msk [vmem:[#allocation3 + $0x10] sm:$0xff] %vm478, %v433
      %481 = vst.msk [vmem:[#allocation3 + $0x20] sm:$0xff] %vm478, %v435
      %482 = vst.msk [vmem:[#allocation3 + $0x30] sm:$0xff] %vm478, %v437
      %483 = vst.msk [vmem:[#allocation3 + $0x40] sm:$0xff] %vm478, %v439
      %484 = vst.msk [vmem:[#allocation3 + $0x50] sm:$0xff] %vm478, %v441
      %485 = vst.msk [vmem:[#allocation3 + $0x60] sm:$0xff] %vm478, %v443
      %486 = vst.msk [vmem:[#allocation3 + $0x70] sm:$0xff] %vm478, %v445
      %487 = vst.msk [vmem:[#allocation3 + $0x80] sm:$0xff] %vm478, %v447
      %488 = vst.msk [vmem:[#allocation3 + $0x90] sm:$0xff] %vm478, %v449
      %489 = vst.msk [vmem:[#allocation3 + $0xa0] sm:$0xff] %vm478, %v451
      %490 = vst.msk [vmem:[#allocation3 + $0xb0] sm:$0xff] %vm478, %v453
      %491 = vst.msk [vmem:[#allocation3 + $0xc0] sm:$0xff] %vm478, %v455
      %492 = vst.msk [vmem:[#allocation3 + $0xd0] sm:$0xff] %vm478, %v457
      %493 = vst.msk [vmem:[#allocation3 + $0xe0] sm:$0xff] %vm478, %v459
      %494 = vst.msk [vmem:[#allocation3 + $0xf0] sm:$0xff] %vm478, %v461
      %s495 = scalar_lea.vmem [#allocation2], 32
      %v496 = vld [vmem:[%s495] sm:$0xff]
      %v497 = vld [vmem:[%s495 + $0x8] sm:$0xff]
      %v498 = vld [vmem:[%s495 + $0x10] sm:$0xff]
      %v499 = vld [vmem:[%s495 + $0x18] sm:$0xff]
      %v500 = vld [vmem:[%s495 + $0x20] sm:$0xff]
      %v501 = vld [vmem:[%s495 + $0x28] sm:$0xff]
      %v502 = vld [vmem:[%s495 + $0x30] sm:$0xff]
      %v503 = vld [vmem:[%s495 + $0x38] sm:$0xff]
      %v504 = vld [vmem:[%s495 + $0x40] sm:$0xff]
      %v505 = vld [vmem:[%s495 + $0x48] sm:$0xff]
      %v506 = vld [vmem:[%s495 + $0x50] sm:$0xff]
      %v507 = vld [vmem:[%s495 + $0x58] sm:$0xff]
      %v508 = vld [vmem:[%s495 + $0x60] sm:$0xff]
      %v509 = vld [vmem:[%s495 + $0x68] sm:$0xff]
      %v510 = vld [vmem:[%s495 + $0x70] sm:$0xff]
      %v511 = vld [vmem:[%s495 + $0x78] sm:$0xff]
      %v512 = vld [vmem:[%s495 + $0x80] sm:$0xff]
      %v513 = vld [vmem:[%s495 + $0x88] sm:$0xff]
      %v514 = vld [vmem:[%s495 + $0x90] sm:$0xff]
      %v515 = vld [vmem:[%s495 + $0x98] sm:$0xff]
      %v516 = vld [vmem:[%s495 + $0xa0] sm:$0xff]
      %v517 = vld [vmem:[%s495 + $0xa8] sm:$0xff]
      %v518 = vld [vmem:[%s495 + $0xb0] sm:$0xff]
      %v519 = vld [vmem:[%s495 + $0xb8] sm:$0xff]
      %v520 = vld [vmem:[%s495 + $0xc0] sm:$0xff]
      %v521 = vld [vmem:[%s495 + $0xc8] sm:$0xff]
      %v522 = vld [vmem:[%s495 + $0xd0] sm:$0xff]
      %v523 = vld [vmem:[%s495 + $0xd8] sm:$0xff]
      %v524 = vld [vmem:[%s495 + $0xe0] sm:$0xff]
      %v525 = vld [vmem:[%s495 + $0xe8] sm:$0xff]
      %v526 = vld [vmem:[%s495 + $0xf0] sm:$0xff]
      %v527 = vld [vmem:[%s495 + $0xf8] sm:$0xff]
      %v528 = vpack.c.bf16 %v497, %v496
      %v529 = vpack.c.bf16 %v499, %v498
      %v530 = vpack.c.bf16 %v501, %v500
      %v531 = vpack.c.bf16 %v503, %v502
      %v532 = vpack.c.bf16 %v505, %v504
      %v533 = vpack.c.bf16 %v507, %v506
      %v534 = vpack.c.bf16 %v509, %v508
      %v535 = vpack.c.bf16 %v511, %v510
      %v536 = vpack.c.bf16 %v513, %v512
      %v537 = vpack.c.bf16 %v515, %v514
      %v538 = vpack.c.bf16 %v517, %v516
      %v539 = vpack.c.bf16 %v519, %v518
      %v540 = vpack.c.bf16 %v521, %v520
      %v541 = vpack.c.bf16 %v523, %v522
      %v542 = vpack.c.bf16 %v525, %v524
      %v543 = vpack.c.bf16 %v527, %v526
      %544 = vst.msk [vmem:[#allocation3 + $0x8] sm:$0xff] %vm199, %v528
      %545 = vst.msk [vmem:[#allocation3 + $0x18] sm:$0xff] %vm199, %v529
      %546 = vst.msk [vmem:[#allocation3 + $0x28] sm:$0xff] %vm199, %v530
      %547 = vst.msk [vmem:[#allocation3 + $0x38] sm:$0xff] %vm199, %v531
      %548 = vst.msk [vmem:[#allocation3 + $0x48] sm:$0xff] %vm199, %v532
      %549 = vst.msk [vmem:[#allocation3 + $0x58] sm:$0xff] %vm199, %v533
      %550 = vst.msk [vmem:[#allocation3 + $0x68] sm:$0xff] %vm199, %v534
      %551 = vst.msk [vmem:[#allocation3 + $0x78] sm:$0xff] %vm199, %v535
      %552 = vst.msk [vmem:[#allocation3 + $0x88] sm:$0xff] %vm199, %v536
      %553 = vst.msk [vmem:[#allocation3 + $0x98] sm:$0xff] %vm199, %v537
      %554 = vst.msk [vmem:[#allocation3 + $0xa8] sm:$0xff] %vm199, %v538
      %555 = vst.msk [vmem:[#allocation3 + $0xb8] sm:$0xff] %vm199, %v539
      %556 = vst.msk [vmem:[#allocation3 + $0xc8] sm:$0xff] %vm199, %v540
      %557 = vst.msk [vmem:[#allocation3 + $0xd8] sm:$0xff] %vm199, %v541
      %558 = vst.msk [vmem:[#allocation3 + $0xe8] sm:$0xff] %vm199, %v542
      %559 = vst.msk [vmem:[#allocation3 + $0xf8] sm:$0xff] %vm199, %v543
      %v560 = vld [vmem:[#allocation3] sm:$0xff]
      %v561 = vld [vmem:[#allocation3 + $0x8] sm:$0xff]
      %v562 = vld [vmem:[#allocation3 + $0x10] sm:$0xff]
      %v563 = vld [vmem:[#allocation3 + $0x18] sm:$0xff]
      %v564 = vld [vmem:[#allocation3 + $0x20] sm:$0xff]
      %v565 = vld [vmem:[#allocation3 + $0x28] sm:$0xff]
      %v566 = vld [vmem:[#allocation3 + $0x30] sm:$0xff]
      %v567 = vld [vmem:[#allocation3 + $0x38] sm:$0xff]
      %v568 = vld [vmem:[#allocation3 + $0x40] sm:$0xff]
      %v569 = vld [vmem:[#allocation3 + $0x48] sm:$0xff]
      %v570 = vld [vmem:[#allocation3 + $0x50] sm:$0xff]
      %v571 = vld [vmem:[#allocation3 + $0x58] sm:$0xff]
      %v572 = vld [vmem:[#allocation3 + $0x60] sm:$0xff]
      %v573 = vld [vmem:[#allocation3 + $0x68] sm:$0xff]
      %v574 = vld [vmem:[#allocation3 + $0x70] sm:$0xff]
      %v575 = vld [vmem:[#allocation3 + $0x78] sm:$0xff]
      %v576 = vld [vmem:[#allocation3 + $0x80] sm:$0xff]
      %v577 = vld [vmem:[#allocation3 + $0x88] sm:$0xff]
      %v578 = vld [vmem:[#allocation3 + $0x90] sm:$0xff]
      %v579 = vld [vmem:[#allocation3 + $0x98] sm:$0xff]
      %v580 = vld [vmem:[#allocation3 + $0xa0] sm:$0xff]
      %v581 = vld [vmem:[#allocation3 + $0xa8] sm:$0xff]
      %v582 = vld [vmem:[#allocation3 + $0xb0] sm:$0xff]
      %v583 = vld [vmem:[#allocation3 + $0xb8] sm:$0xff]
      %v584 = vld [vmem:[#allocation3 + $0xc0] sm:$0xff]
      %v585 = vld [vmem:[#allocation3 + $0xc8] sm:$0xff]
      %v586 = vld [vmem:[#allocation3 + $0xd0] sm:$0xff]
      %v587 = vld [vmem:[#allocation3 + $0xd8] sm:$0xff]
      %v588 = vld [vmem:[#allocation3 + $0xe0] sm:$0xff]
      %v589 = vld [vmem:[#allocation3 + $0xe8] sm:$0xff]
      %v590 = vld [vmem:[#allocation3 + $0xf0] sm:$0xff]
      %v591 = vld [vmem:[#allocation3 + $0xf8] sm:$0xff]
      %v593 = vshrl.u32 %v560, 16
      %v595 = vrot.slane %v593, 7
      %v596 = vshll.u32 %v560, 16
      %v598 = vor.u32 %v595, %v596
      %v600 = vshrl.u32 %v561, 16
      %v602 = vrot.slane %v600, 7
      %v603 = vshll.u32 %v561, 16
      %v605 = vor.u32 %v602, %v603
      %v607 = vshrl.u32 %v562, 16
      %v609 = vrot.slane %v607, 7
      %v610 = vshll.u32 %v562, 16
      %v612 = vor.u32 %v609, %v610
      %v614 = vshrl.u32 %v563, 16
      %v616 = vrot.slane %v614, 7
      %v617 = vshll.u32 %v563, 16
      %v619 = vor.u32 %v616, %v617
      %v621 = vshrl.u32 %v564, 16
      %v623 = vrot.slane %v621, 7
      %v624 = vshll.u32 %v564, 16
      %v626 = vor.u32 %v623, %v624
      %v628 = vshrl.u32 %v565, 16
      %v630 = vrot.slane %v628, 7
      %v631 = vshll.u32 %v565, 16
      %v633 = vor.u32 %v630, %v631
      %v635 = vshrl.u32 %v566, 16
      %v637 = vrot.slane %v635, 7
      %v638 = vshll.u32 %v566, 16
      %v640 = vor.u32 %v637, %v638
      %v642 = vshrl.u32 %v567, 16
      %v644 = vrot.slane %v642, 7
      %v645 = vshll.u32 %v567, 16
      %v647 = vor.u32 %v644, %v645
      %v649 = vshrl.u32 %v568, 16
      %v651 = vrot.slane %v649, 7
      %v652 = vshll.u32 %v568, 16
      %v654 = vor.u32 %v651, %v652
      %v656 = vshrl.u32 %v569, 16
      %v658 = vrot.slane %v656, 7
      %v659 = vshll.u32 %v569, 16
      %v661 = vor.u32 %v658, %v659
      %v663 = vshrl.u32 %v570, 16
      %v665 = vrot.slane %v663, 7
      %v666 = vshll.u32 %v570, 16
      %v668 = vor.u32 %v665, %v666
      %v670 = vshrl.u32 %v571, 16
      %v672 = vrot.slane %v670, 7
      %v673 = vshll.u32 %v571, 16
      %v675 = vor.u32 %v672, %v673
      %v677 = vshrl.u32 %v572, 16
      %v679 = vrot.slane %v677, 7
      %v680 = vshll.u32 %v572, 16
      %v682 = vor.u32 %v679, %v680
      %v684 = vshrl.u32 %v573, 16
      %v686 = vrot.slane %v684, 7
      %v687 = vshll.u32 %v573, 16
      %v689 = vor.u32 %v686, %v687
      %v691 = vshrl.u32 %v574, 16
      %v693 = vrot.slane %v691, 7
      %v694 = vshll.u32 %v574, 16
      %v696 = vor.u32 %v693, %v694
      %v698 = vshrl.u32 %v575, 16
      %v700 = vrot.slane %v698, 7
      %v701 = vshll.u32 %v575, 16
      %v703 = vor.u32 %v700, %v701
      %v705 = vshrl.u32 %v576, 16
      %v707 = vrot.slane %v705, 7
      %v708 = vshll.u32 %v576, 16
      %v710 = vor.u32 %v707, %v708
      %v712 = vshrl.u32 %v577, 16
      %v714 = vrot.slane %v712, 7
      %v715 = vshll.u32 %v577, 16
      %v717 = vor.u32 %v714, %v715
      %v719 = vshrl.u32 %v578, 16
      %v721 = vrot.slane %v719, 7
      %v722 = vshll.u32 %v578, 16
      %v724 = vor.u32 %v721, %v722
      %v726 = vshrl.u32 %v579, 16
      %v728 = vrot.slane %v726, 7
      %v729 = vshll.u32 %v579, 16
      %v731 = vor.u32 %v728, %v729
      %v733 = vshrl.u32 %v580, 16
      %v735 = vrot.slane %v733, 7
      %v736 = vshll.u32 %v580, 16
      %v738 = vor.u32 %v735, %v736
      %v740 = vshrl.u32 %v581, 16
      %v742 = vrot.slane %v740, 7
      %v743 = vshll.u32 %v581, 16
      %v745 = vor.u32 %v742, %v743
      %v747 = vshrl.u32 %v582, 16
      %v749 = vrot.slane %v747, 7
      %v750 = vshll.u32 %v582, 16
      %v752 = vor.u32 %v749, %v750
      %v754 = vshrl.u32 %v583, 16
      %v756 = vrot.slane %v754, 7
      %v757 = vshll.u32 %v583, 16
      %v759 = vor.u32 %v756, %v757
      %v761 = vshrl.u32 %v584, 16
      %v763 = vrot.slane %v761, 7
      %v764 = vshll.u32 %v584, 16
      %v766 = vor.u32 %v763, %v764
      %v768 = vshrl.u32 %v585, 16
      %v770 = vrot.slane %v768, 7
      %v771 = vshll.u32 %v585, 16
      %v773 = vor.u32 %v770, %v771
      %v775 = vshrl.u32 %v586, 16
      %v777 = vrot.slane %v775, 7
      %v778 = vshll.u32 %v586, 16
      %v780 = vor.u32 %v777, %v778
      %v782 = vshrl.u32 %v587, 16
      %v784 = vrot.slane %v782, 7
      %v785 = vshll.u32 %v587, 16
      %v787 = vor.u32 %v784, %v785
      %v789 = vshrl.u32 %v588, 16
      %v791 = vrot.slane %v789, 7
      %v792 = vshll.u32 %v588, 16
      %v794 = vor.u32 %v791, %v792
      %v796 = vshrl.u32 %v589, 16
      %v798 = vrot.slane %v796, 7
      %v799 = vshll.u32 %v589, 16
      %v801 = vor.u32 %v798, %v799
      %v803 = vshrl.u32 %v590, 16
      %v805 = vrot.slane %v803, 7
      %v806 = vshll.u32 %v590, 16
      %v808 = vor.u32 %v805, %v806
      %v810 = vshrl.u32 %v591, 16
      %v812 = vrot.slane %v810, 7
      %v813 = vshll.u32 %v591, 16
      %v815 = vor.u32 %v812, %v813
      %vm848 = vcmask 1040384
      %vm849 = vsmask.f32 256
      %vm850 = vmand %vm848, %vm849
      %v851 = vsel %vm850, 0, %v598
      %v852 = vsel %vm850, 0, %v605
      %v853 = vsel %vm850, 0, %v612
      %v854 = vsel %vm850, 0, %v619
      %v855 = vsel %vm850, 0, %v626
      %v856 = vsel %vm850, 0, %v633
      %v857 = vsel %vm850, 0, %v640
      %v858 = vsel %vm850, 0, %v647
      %v859 = vsel %vm850, 0, %v654
      %v860 = vsel %vm850, 0, %v661
      %v861 = vsel %vm850, 0, %v668
      %v862 = vsel %vm850, 0, %v675
      %v863 = vsel %vm850, 0, %v682
      %v864 = vsel %vm850, 0, %v689
      %v865 = vsel %vm850, 0, %v696
      %v866 = vsel %vm850, 0, %v703
      %v867 = vsel %vm850, 0, %v710
      %v868 = vsel %vm850, 0, %v717
      %v869 = vsel %vm850, 0, %v724
      %v870 = vsel %vm850, 0, %v731
      %v871 = vsel %vm850, 0, %v738
      %v872 = vsel %vm850, 0, %v745
      %v873 = vsel %vm850, 0, %v752
      %v874 = vsel %vm850, 0, %v759
      %v875 = vsel %vm850, 0, %v766
      %v876 = vsel %vm850, 0, %v773
      %v877 = vsel %vm850, 0, %v780
      %v878 = vsel %vm850, 0, %v787
      %v879 = vsel %vm850, 0, %v794
      %v880 = vsel %vm850, 0, %v801
      %v881 = vsel %vm850, 0, %v808
      %v882 = vsel %vm850, 0, %v815
      %v883 = vld [vmem:[%s1] sm:$0xf]
      %v884 = vld [vmem:[%s1 + $0x4] sm:$0xf]
      %v885 = vld [vmem:[%s1 + $0x8] sm:$0xf]
      %v886 = vld [vmem:[%s1 + $0xc] sm:$0xf]
      %v887 = vld [vmem:[%s1 + $0x10] sm:$0xf]
      %v888 = vld [vmem:[%s1 + $0x14] sm:$0xf]
      %v889 = vld [vmem:[%s1 + $0x18] sm:$0xf]
      %v890 = vld [vmem:[%s1 + $0x1c] sm:$0xf]
      %v891 = vld [vmem:[%s1 + $0x20] sm:$0xf]
      %v892 = vld [vmem:[%s1 + $0x24] sm:$0xf]
      %v893 = vld [vmem:[%s1 + $0x28] sm:$0xf]
      %v894 = vld [vmem:[%s1 + $0x2c] sm:$0xf]
      %v895 = vld [vmem:[%s1 + $0x30] sm:$0xf]
      %v896 = vld [vmem:[%s1 + $0x34] sm:$0xf]
      %v897 = vld [vmem:[%s1 + $0x38] sm:$0xf]
      %v898 = vld [vmem:[%s1 + $0x3c] sm:$0xf]
      %v899 = vld [vmem:[%s1 + $0x40] sm:$0xf]
      %v900 = vld [vmem:[%s1 + $0x44] sm:$0xf]
      %v901 = vld [vmem:[%s1 + $0x48] sm:$0xf]
      %v902 = vld [vmem:[%s1 + $0x4c] sm:$0xf]
      %v903 = vld [vmem:[%s1 + $0x50] sm:$0xf]
      %v904 = vld [vmem:[%s1 + $0x54] sm:$0xf]
      %v905 = vld [vmem:[%s1 + $0x58] sm:$0xf]
      %v906 = vld [vmem:[%s1 + $0x5c] sm:$0xf]
      %v931 = vunpack.c.l.b16 %v883
      %v932 = vunpack.c.l.b16 %v884
      %v933 = vunpack.c.l.b16 %v885
      %v934 = vunpack.c.l.b16 %v886
      %v935 = vunpack.c.l.b16 %v887
      %v936 = vunpack.c.l.b16 %v888
      %v937 = vunpack.c.l.b16 %v889
      %v938 = vunpack.c.l.b16 %v890
      %v939 = vunpack.c.l.b16 %v891
      %v940 = vunpack.c.l.b16 %v892
      %v941 = vunpack.c.l.b16 %v893
      %v942 = vunpack.c.l.b16 %v894
      %v943 = vunpack.c.l.b16 %v895
      %v944 = vunpack.c.l.b16 %v896
      %v945 = vunpack.c.l.b16 %v897
      %v946 = vunpack.c.l.b16 %v898
      %v947 = vunpack.c.l.b16 %v899
      %v948 = vunpack.c.l.b16 %v900
      %v949 = vunpack.c.l.b16 %v901
      %v950 = vunpack.c.l.b16 %v902
      %v951 = vunpack.c.l.b16 %v903
      %v952 = vunpack.c.l.b16 %v904
      %v953 = vunpack.c.l.b16 %v905
      %v954 = vunpack.c.l.b16 %v906
      %v955 = vpack.c.b16 %v932, %v931
      %v956 = vpack.c.b16 %v934, %v933
      %v957 = vpack.c.b16 %v936, %v935
      %v958 = vpack.c.b16 %v938, %v937
      %v959 = vpack.c.b16 %v940, %v939
      %v960 = vpack.c.b16 %v942, %v941
      %v961 = vpack.c.b16 %v944, %v943
      %v962 = vpack.c.b16 %v946, %v945
      %v963 = vpack.c.b16 %v948, %v947
      %v964 = vpack.c.b16 %v950, %v949
      %v965 = vpack.c.b16 %v952, %v951
      %v966 = vpack.c.b16 %v954, %v953
      %v980 = vsel %vm199, %v852, 0
      %v983 = vsel %vm199, %v854, 0
      %v986 = vsel %vm199, %v856, 0
      %v989 = vsel %vm199, %v858, 0
      %v992 = vsel %vm199, %v860, 0
      %v995 = vsel %vm199, %v862, 0
      %v998 = vsel %vm199, %v864, 0
      %v1001 = vsel %vm199, %v866, 0
      %v1004 = vsel %vm199, %v868, 0
      %v1007 = vsel %vm199, %v870, 0
      %v1010 = vsel %vm199, %v872, 0
      %v1013 = vsel %vm199, %v874, 0
      %v1016 = vsel %vm199, %v876, 0
      %v1019 = vsel %vm199, %v878, 0
      %v1022 = vsel %vm199, %v880, 0
      %v1025 = vsel %vm199, %v882, 0
      %1027 = vmatprep.subr.bf16.mxu0 0
      %1028 = vmatpush1.bf16.msra.mxu0 %v955
      %1029 = vmatprep.subr.bf16.mxu0 0
      %1030 = vmatpush1.bf16.msra.mxu0 %v956
      %1031 = vmatprep.subr.bf16.mxu0 0
      %1032 = vmatpush1.bf16.msra.mxu0 %v957
      %1033 = vmatprep.subr.bf16.mxu0 0
      %1034 = vmatpush1.bf16.msra.mxu0 %v958
      %1035 = vmatprep.subr.bf16.mxu0 0
      %1036 = vmatpush1.bf16.msra.mxu0 %v959
      %1037 = vmatprep.subr.bf16.mxu0 0
      %1038 = vmatpush1.bf16.msra.mxu0 %v960
      %1039 = vmatprep.subr.bf16.mxu0 0
      %1040 = vmatpush1.bf16.msra.mxu0 %v961
      %1041 = vmatprep.subr.bf16.mxu0 0
      %1042 = vmatpush1.bf16.msra.mxu0 %v962
      %1043 = vmatprep.subr.bf16.mxu0 0
      %1044 = vmatpush1.bf16.msra.mxu0 %v963
      %1045 = vmatprep.subr.bf16.mxu0 0
      %1046 = vmatpush1.bf16.msra.mxu0 %v964
      %1047 = vmatprep.subr.bf16.mxu0 0
      %1048 = vmatpush1.bf16.msra.mxu0 %v965
      %1049 = vmatprep.subr.bf16.mxu0 0
      %1050 = vmatpush1.bf16.msra.mxu0 %v966
      %1051 = vmatprep.subr.bf16.mxu0 0
      %1052 = vmatpush1.bf16.msra.mxu0 0
      %1053 = vmatprep.subr.bf16.mxu0 0
      %1054 = vmatpush1.bf16.msra.mxu0 0
      %1055 = vmatprep.subr.bf16.mxu0 0
      %1056 = vmatpush1.bf16.msra.mxu0 0
      %1057 = vmatprep.subr.bf16.mxu0 0
      %1058 = vmatpush1.bf16.msra.mxu0 0
      %1059 = vmatprep.mubr.bf16.mxu0 %v980
      %1060 = vmatmul.mubr.bf16.gmra.mrb[0].mxu0 %v851
      %v1061 = vpop.f32.mrb[0].mxu0
      %v1062 = vadd.f32 0.0, %v1061
      %v1063 = vpop.f32.mrb[0].mxu0
      %v1064 = vpop.f32.mrb[0].mxu0
      %v1065 = vadd.f32 0.0, %v1064
      %v1066 = vpop.f32.mrb[0].mxu0
      %1067 = vmatprep.mubr.bf16.mxu0 %v983
      %1068 = vmatmul.mubr.bf16.gmra.mrb[0].mxu0 %v853
      %v1069 = vpop.f32.mrb[0].mxu0
      %v1070 = vadd.f32 0.0, %v1069
      %v1071 = vpop.f32.mrb[0].mxu0
      %v1072 = vpop.f32.mrb[0].mxu0
      %v1073 = vadd.f32 0.0, %v1072
      %v1074 = vpop.f32.mrb[0].mxu0
      %1075 = vmatprep.mubr.bf16.mxu0 %v986
      %1076 = vmatmul.mubr.bf16.gmra.mrb[0].mxu0 %v855
      %v1077 = vpop.f32.mrb[0].mxu0
      %v1078 = vadd.f32 0.0, %v1077
      %v1079 = vpop.f32.mrb[0].mxu0
      %v1080 = vpop.f32.mrb[0].mxu0
      %v1081 = vadd.f32 0.0, %v1080
      %v1082 = vpop.f32.mrb[0].mxu0
      %1083 = vmatprep.mubr.bf16.mxu0 %v989
      %1084 = vmatmul.mubr.bf16.gmra.mrb[0].mxu0 %v857
      %v1085 = vpop.f32.mrb[0].mxu0
      %v1086 = vadd.f32 0.0, %v1085
      %v1087 = vpop.f32.mrb[0].mxu0
      %v1088 = vpop.f32.mrb[0].mxu0
      %v1089 = vadd.f32 0.0, %v1088
      %v1090 = vpop.f32.mrb[0].mxu0
      %1091 = vmatprep.mubr.bf16.mxu0 %v992
      %1092 = vmatmul.mubr.bf16.gmra.mrb[0].mxu0 %v859
      %v1093 = vpop.f32.mrb[0].mxu0
      %v1094 = vadd.f32 0.0, %v1093
      %v1095 = vpop.f32.mrb[0].mxu0
      %v1096 = vpop.f32.mrb[0].mxu0
      %v1097 = vadd.f32 0.0, %v1096
      %v1098 = vpop.f32.mrb[0].mxu0
      %1099 = vmatprep.mubr.bf16.mxu0 %v995
      %1100 = vmatmul.mubr.bf16.gmra.mrb[0].mxu0 %v861
      %v1101 = vpop.f32.mrb[0].mxu0
      %v1102 = vadd.f32 0.0, %v1101
      %v1103 = vpop.f32.mrb[0].mxu0
      %v1104 = vpop.f32.mrb[0].mxu0
      %v1105 = vadd.f32 0.0, %v1104
      %v1106 = vpop.f32.mrb[0].mxu0
      %1107 = vmatprep.mubr.bf16.mxu0 %v998
      %1108 = vmatmul.mubr.bf16.gmra.mrb[0].mxu0 %v863
      %v1109 = vpop.f32.mrb[0].mxu0
      %v1110 = vadd.f32 0.0, %v1109
      %v1111 = vpop.f32.mrb[0].mxu0
      %v1112 = vpop.f32.mrb[0].mxu0
      %v1113 = vadd.f32 0.0, %v1112
      %v1114 = vpop.f32.mrb[0].mxu0
      %1115 = vmatprep.mubr.bf16.mxu0 %v1001
      %1116 = vmatmul.mubr.bf16.gmra.mrb[0].mxu0 %v865
      %v1117 = vpop.f32.mrb[0].mxu0
      %v1118 = vadd.f32 0.0, %v1117
      %v1119 = vpop.f32.mrb[0].mxu0
      %v1120 = vpop.f32.mrb[0].mxu0
      %v1121 = vadd.f32 0.0, %v1120
      %v1122 = vpop.f32.mrb[0].mxu0
      %1123 = vmatprep.mubr.bf16.mxu0 %v1004
      %1124 = vmatmul.mubr.bf16.gmra.mrb[0].mxu0 %v867
      %v1125 = vpop.f32.mrb[0].mxu0
      %v1126 = vadd.f32 0.0, %v1125
      %v1127 = vpop.f32.mrb[0].mxu0
      %v1128 = vpop.f32.mrb[0].mxu0
      %v1129 = vadd.f32 0.0, %v1128
      %v1130 = vpop.f32.mrb[0].mxu0
      %1131 = vmatprep.mubr.bf16.mxu0 %v1007
      %1132 = vmatmul.mubr.bf16.gmra.mrb[0].mxu0 %v869
      %v1133 = vpop.f32.mrb[0].mxu0
      %v1134 = vadd.f32 0.0, %v1133
      %v1135 = vpop.f32.mrb[0].mxu0
      %v1136 = vpop.f32.mrb[0].mxu0
      %v1137 = vadd.f32 0.0, %v1136
      %v1138 = vpop.f32.mrb[0].mxu0
      %1139 = vmatprep.mubr.bf16.mxu0 %v1010
      %1140 = vmatmul.mubr.bf16.gmra.mrb[0].mxu0 %v871
      %v1141 = vpop.f32.mrb[0].mxu0
      %v1142 = vadd.f32 0.0, %v1141
      %v1143 = vpop.f32.mrb[0].mxu0
      %v1144 = vpop.f32.mrb[0].mxu0
      %v1145 = vadd.f32 0.0, %v1144
      %v1146 = vpop.f32.mrb[0].mxu0
      %1147 = vmatprep.mubr.bf16.mxu0 %v1013
      %1148 = vmatmul.mubr.bf16.gmra.mrb[0].mxu0 %v873
      %v1149 = vpop.f32.mrb[0].mxu0
      %v1150 = vadd.f32 0.0, %v1149
      %v1151 = vpop.f32.mrb[0].mxu0
      %v1152 = vpop.f32.mrb[0].mxu0
      %v1153 = vadd.f32 0.0, %v1152
      %v1154 = vpop.f32.mrb[0].mxu0
      %1155 = vmatprep.mubr.bf16.mxu0 %v1016
      %1156 = vmatmul.mubr.bf16.gmra.mrb[0].mxu0 %v875
      %v1157 = vpop.f32.mrb[0].mxu0
      %v1158 = vadd.f32 0.0, %v1157
      %v1159 = vpop.f32.mrb[0].mxu0
      %v1160 = vpop.f32.mrb[0].mxu0
      %v1161 = vadd.f32 0.0, %v1160
      %v1162 = vpop.f32.mrb[0].mxu0
      %1163 = vmatprep.mubr.bf16.mxu0 %v1019
      %1164 = vmatmul.mubr.bf16.gmra.mrb[0].mxu0 %v877
      %v1165 = vpop.f32.mrb[0].mxu0
      %v1166 = vadd.f32 0.0, %v1165
      %v1167 = vpop.f32.mrb[0].mxu0
      %v1168 = vpop.f32.mrb[0].mxu0
      %v1169 = vadd.f32 0.0, %v1168
      %v1170 = vpop.f32.mrb[0].mxu0
      %1171 = vmatprep.mubr.bf16.mxu0 %v1022
      %1172 = vmatmul.mubr.bf16.gmra.mrb[0].mxu0 %v879
      %v1173 = vpop.f32.mrb[0].mxu0
      %v1174 = vadd.f32 0.0, %v1173
      %v1175 = vpop.f32.mrb[0].mxu0
      %v1176 = vpop.f32.mrb[0].mxu0
      %v1177 = vadd.f32 0.0, %v1176
      %v1178 = vpop.f32.mrb[0].mxu0
      %1179 = vmatprep.mubr.bf16.mxu0 %v1025
      %1180 = vmatmul.mubr.bf16.gmra.mrb[0].mxu0 %v881
      %v1181 = vpop.f32.mrb[0].mxu0
      %v1182 = vadd.f32 0.0, %v1181
      %v1183 = vpop.f32.mrb[0].mxu0
      %v1184 = vpop.f32.mrb[0].mxu0
      %v1185 = vadd.f32 0.0, %v1184
      %v1186 = vpop.f32.mrb[0].mxu0
      %1187 = vdwg.mxu0
      %1188 = vst.msk [vmem:[#allocation4] sm:$0xff] %vm199, %v1062
      %1189 = vst.msk [vmem:[#allocation4 + $0x8] sm:$0xff] %vm199, %v1065
      %1190 = vst.msk [vmem:[#allocation4 + $0x10] sm:$0xff] %vm199, %v1070
      %1191 = vst.msk [vmem:[#allocation4 + $0x18] sm:$0xff] %vm199, %v1073
      %1192 = vst.msk [vmem:[#allocation4 + $0x20] sm:$0xff] %vm199, %v1078
      %1193 = vst.msk [vmem:[#allocation4 + $0x28] sm:$0xff] %vm199, %v1081
      %1194 = vst.msk [vmem:[#allocation4 + $0x30] sm:$0xff] %vm199, %v1086
      %1195 = vst.msk [vmem:[#allocation4 + $0x38] sm:$0xff] %vm199, %v1089
      %1196 = vst.msk [vmem:[#allocation4 + $0x40] sm:$0xff] %vm199, %v1094
      %1197 = vst.msk [vmem:[#allocation4 + $0x48] sm:$0xff] %vm199, %v1097
      %1198 = vst.msk [vmem:[#allocation4 + $0x50] sm:$0xff] %vm199, %v1102
      %1199 = vst.msk [vmem:[#allocation4 + $0x58] sm:$0xff] %vm199, %v1105
      %1200 = vst.msk [vmem:[#allocation4 + $0x60] sm:$0xff] %vm199, %v1110
      %1201 = vst.msk [vmem:[#allocation4 + $0x68] sm:$0xff] %vm199, %v1113
      %1202 = vst.msk [vmem:[#allocation4 + $0x70] sm:$0xff] %vm199, %v1118
      %1203 = vst.msk [vmem:[#allocation4 + $0x78] sm:$0xff] %vm199, %v1121
      %1204 = vst.msk [vmem:[#allocation4 + $0x80] sm:$0xff] %vm199, %v1126
      %1205 = vst.msk [vmem:[#allocation4 + $0x88] sm:$0xff] %vm199, %v1129
      %1206 = vst.msk [vmem:[#allocation4 + $0x90] sm:$0xff] %vm199, %v1134
      %1207 = vst.msk [vmem:[#allocation4 + $0x98] sm:$0xff] %vm199, %v1137
      %1208 = vst.msk [vmem:[#allocation4 + $0xa0] sm:$0xff] %vm199, %v1142
      %1209 = vst.msk [vmem:[#allocation4 + $0xa8] sm:$0xff] %vm199, %v1145
      %1210 = vst.msk [vmem:[#allocation4 + $0xb0] sm:$0xff] %vm199, %v1150
      %1211 = vst.msk [vmem:[#allocation4 + $0xb8] sm:$0xff] %vm199, %v1153
      %1212 = vst.msk [vmem:[#allocation4 + $0xc0] sm:$0xff] %vm199, %v1158
      %1213 = vst.msk [vmem:[#allocation4 + $0xc8] sm:$0xff] %vm199, %v1161
      %1214 = vst.msk [vmem:[#allocation4 + $0xd0] sm:$0xff] %vm199, %v1166
      %1215 = vst.msk [vmem:[#allocation4 + $0xd8] sm:$0xff] %vm199, %v1169
      %1216 = vst.msk [vmem:[#allocation4 + $0xe0] sm:$0xff] %vm199, %v1174
      %1217 = vst.msk [vmem:[#allocation4 + $0xe8] sm:$0xff] %vm199, %v1177
      %1218 = vst.msk [vmem:[#allocation4 + $0xf0] sm:$0xff] %vm199, %v1182
      %1219 = vst.msk [vmem:[#allocation4 + $0xf8] sm:$0xff] %vm199, %v1185
      %v1220 = vld [vmem:[#allocation3] sm:$0xff]
      %v1221 = vld [vmem:[#allocation3 + $0x8] sm:$0xff]
      %v1222 = vld [vmem:[#allocation3 + $0x10] sm:$0xff]
      %v1223 = vld [vmem:[#allocation3 + $0x18] sm:$0xff]
      %v1224 = vld [vmem:[#allocation3 + $0x20] sm:$0xff]
      %v1225 = vld [vmem:[#allocation3 + $0x28] sm:$0xff]
      %v1226 = vld [vmem:[#allocation3 + $0x30] sm:$0xff]
      %v1227 = vld [vmem:[#allocation3 + $0x38] sm:$0xff]
      %v1228 = vld [vmem:[#allocation3 + $0x40] sm:$0xff]
      %v1229 = vld [vmem:[#allocation3 + $0x48] sm:$0xff]
      %v1230 = vld [vmem:[#allocation3 + $0x50] sm:$0xff]
      %v1231 = vld [vmem:[#allocation3 + $0x58] sm:$0xff]
      %v1232 = vld [vmem:[#allocation3 + $0x60] sm:$0xff]
      %v1233 = vld [vmem:[#allocation3 + $0x68] sm:$0xff]
      %v1234 = vld [vmem:[#allocation3 + $0x70] sm:$0xff]
      %v1235 = vld [vmem:[#allocation3 + $0x78] sm:$0xff]
      %v1236 = vld [vmem:[#allocation3 + $0x80] sm:$0xff]
      %v1237 = vld [vmem:[#allocation3 + $0x88] sm:$0xff]
      %v1238 = vld [vmem:[#allocation3 + $0x90] sm:$0xff]
      %v1239 = vld [vmem:[#allocation3 + $0x98] sm:$0xff]
      %v1240 = vld [vmem:[#allocation3 + $0xa0] sm:$0xff]
      %v1241 = vld [vmem:[#allocation3 + $0xa8] sm:$0xff]
      %v1242 = vld [vmem:[#allocation3 + $0xb0] sm:$0xff]
      %v1243 = vld [vmem:[#allocation3 + $0xb8] sm:$0xff]
      %v1244 = vld [vmem:[#allocation3 + $0xc0] sm:$0xff]
      %v1245 = vld [vmem:[#allocation3 + $0xc8] sm:$0xff]
      %v1246 = vld [vmem:[#allocation3 + $0xd0] sm:$0xff]
      %v1247 = vld [vmem:[#allocation3 + $0xd8] sm:$0xff]
      %v1248 = vld [vmem:[#allocation3 + $0xe0] sm:$0xff]
      %v1249 = vld [vmem:[#allocation3 + $0xe8] sm:$0xff]
      %v1250 = vld [vmem:[#allocation3 + $0xf0] sm:$0xff]
      %v1251 = vld [vmem:[#allocation3 + $0xf8] sm:$0xff]
      %s1252 = scalar_lea.vmem %s1, 96
      %v1253 = vld [vmem:[%s1252] sm:$0xf]
      %v1254 = vld [vmem:[%s1252 + $0x4] sm:$0xf]
      %v1255 = vld [vmem:[%s1252 + $0x8] sm:$0xf]
      %v1256 = vld [vmem:[%s1252 + $0xc] sm:$0xf]
      %v1257 = vld [vmem:[%s1252 + $0x10] sm:$0xf]
      %v1258 = vld [vmem:[%s1252 + $0x14] sm:$0xf]
      %v1259 = vld [vmem:[%s1252 + $0x18] sm:$0xf]
      %v1260 = vld [vmem:[%s1252 + $0x1c] sm:$0xf]
      %v1261 = vld [vmem:[%s1252 + $0x20] sm:$0xf]
      %v1262 = vld [vmem:[%s1252 + $0x24] sm:$0xf]
      %v1263 = vld [vmem:[%s1252 + $0x28] sm:$0xf]
      %v1264 = vld [vmem:[%s1252 + $0x2c] sm:$0xf]
      %v1265 = vld [vmem:[%s1252 + $0x30] sm:$0xf]
      %v1266 = vld [vmem:[%s1252 + $0x34] sm:$0xf]
      %v1267 = vld [vmem:[%s1252 + $0x38] sm:$0xf]
      %v1268 = vld [vmem:[%s1252 + $0x3c] sm:$0xf]
      %v1269 = vld [vmem:[%s1252 + $0x40] sm:$0xf]
      %v1270 = vld [vmem:[%s1252 + $0x44] sm:$0xf]
      %v1271 = vld [vmem:[%s1252 + $0x48] sm:$0xf]
      %v1272 = vld [vmem:[%s1252 + $0x4c] sm:$0xf]
      %v1273 = vld [vmem:[%s1252 + $0x50] sm:$0xf]
      %v1274 = vld [vmem:[%s1252 + $0x54] sm:$0xf]
      %v1275 = vld [vmem:[%s1252 + $0x58] sm:$0xf]
      %v1276 = vld [vmem:[%s1252 + $0x5c] sm:$0xf]
      %v1301 = vunpack.c.l.b16 %v1253
      %v1302 = vunpack.c.l.b16 %v1254
      %v1303 = vunpack.c.l.b16 %v1255
      %v1304 = vunpack.c.l.b16 %v1256
      %v1305 = vunpack.c.l.b16 %v1257
      %v1306 = vunpack.c.l.b16 %v1258
      %v1307 = vunpack.c.l.b16 %v1259
      %v1308 = vunpack.c.l.b16 %v1260
      %v1309 = vunpack.c.l.b16 %v1261
      %v1310 = vunpack.c.l.b16 %v1262
      %v1311 = vunpack.c.l.b16 %v1263
      %v1312 = vunpack.c.l.b16 %v1264
      %v1313 = vunpack.c.l.b16 %v1265
      %v1314 = vunpack.c.l.b16 %v1266
      %v1315 = vunpack.c.l.b16 %v1267
      %v1316 = vunpack.c.l.b16 %v1268
      %v1317 = vunpack.c.l.b16 %v1269
      %v1318 = vunpack.c.l.b16 %v1270
      %v1319 = vunpack.c.l.b16 %v1271
      %v1320 = vunpack.c.l.b16 %v1272
      %v1321 = vunpack.c.l.b16 %v1273
      %v1322 = vunpack.c.l.b16 %v1274
      %v1323 = vunpack.c.l.b16 %v1275
      %v1324 = vunpack.c.l.b16 %v1276
      %v1325 = vpack.c.b16 %v1302, %v1301
      %v1326 = vpack.c.b16 %v1304, %v1303
      %v1327 = vpack.c.b16 %v1306, %v1305
      %v1328 = vpack.c.b16 %v1308, %v1307
      %v1329 = vpack.c.b16 %v1310, %v1309
      %v1330 = vpack.c.b16 %v1312, %v1311
      %v1331 = vpack.c.b16 %v1314, %v1313
      %v1332 = vpack.c.b16 %v1316, %v1315
      %v1333 = vpack.c.b16 %v1318, %v1317
      %v1334 = vpack.c.b16 %v1320, %v1319
      %v1335 = vpack.c.b16 %v1322, %v1321
      %v1336 = vpack.c.b16 %v1324, %v1323
      %v1350 = vsel %vm199, %v1221, 0
      %v1353 = vsel %vm199, %v1223, 0
      %v1356 = vsel %vm199, %v1225, 0
      %v1359 = vsel %vm199, %v1227, 0
      %v1362 = vsel %vm199, %v1229, 0
      %v1365 = vsel %vm199, %v1231, 0
      %v1368 = vsel %vm199, %v1233, 0
      %v1371 = vsel %vm199, %v1235, 0
      %v1374 = vsel %vm199, %v1237, 0
      %v1377 = vsel %vm199, %v1239, 0
      %v1380 = vsel %vm199, %v1241, 0
      %v1383 = vsel %vm199, %v1243, 0
      %v1386 = vsel %vm199, %v1245, 0
      %v1389 = vsel %vm199, %v1247, 0
      %v1392 = vsel %vm199, %v1249, 0
      %v1395 = vsel %vm199, %v1251, 0
      %1397 = vmatprep.subr.bf16.mxu0 0
      %1398 = vmatpush1.bf16.msra.mxu0 %v1325
      %1399 = vmatprep.subr.bf16.mxu0 0
      %1400 = vmatpush1.bf16.msra.mxu0 %v1326
      %1401 = vmatprep.subr.bf16.mxu0 0
      %1402 = vmatpush1.bf16.msra.mxu0 %v1327
      %1403 = vmatprep.subr.bf16.mxu0 0
      %1404 = vmatpush1.bf16.msra.mxu0 %v1328
      %1405 = vmatprep.subr.bf16.mxu0 0
      %1406 = vmatpush1.bf16.msra.mxu0 %v1329
      %1407 = vmatprep.subr.bf16.mxu0 0
      %1408 = vmatpush1.bf16.msra.mxu0 %v1330
      %1409 = vmatprep.subr.bf16.mxu0 0
      %1410 = vmatpush1.bf16.msra.mxu0 %v1331
      %1411 = vmatprep.subr.bf16.mxu0 0
      %1412 = vmatpush1.bf16.msra.mxu0 %v1332
      %1413 = vmatprep.subr.bf16.mxu0 0
      %1414 = vmatpush1.bf16.msra.mxu0 %v1333
      %1415 = vmatprep.subr.bf16.mxu0 0
      %1416 = vmatpush1.bf16.msra.mxu0 %v1334
      %1417 = vmatprep.subr.bf16.mxu0 0
      %1418 = vmatpush1.bf16.msra.mxu0 %v1335
      %1419 = vmatprep.subr.bf16.mxu0 0
      %1420 = vmatpush1.bf16.msra.mxu0 %v1336
      %1421 = vmatprep.subr.bf16.mxu0 0
      %1422 = vmatpush1.bf16.msra.mxu0 0
      %1423 = vmatprep.subr.bf16.mxu0 0
      %1424 = vmatpush1.bf16.msra.mxu0 0
      %1425 = vmatprep.subr.bf16.mxu0 0
      %1426 = vmatpush1.bf16.msra.mxu0 0
      %1427 = vmatprep.subr.bf16.mxu0 0
      %1428 = vmatpush1.bf16.msra.mxu0 0
      %1429 = vmatprep.mubr.bf16.mxu0 %v1350
      %1430 = vmatmul.mubr.bf16.gmra.mrb[0].mxu0 %v1220
      %v1431 = vpop.f32.mrb[0].mxu0
      %v1432 = vadd.f32 0.0, %v1431
      %v1433 = vpop.f32.mrb[0].mxu0
      %v1434 = vpop.f32.mrb[0].mxu0
      %v1435 = vadd.f32 0.0, %v1434
      %v1436 = vpop.f32.mrb[0].mxu0
      %1437 = vmatprep.mubr.bf16.mxu0 %v1353
      %1438 = vmatmul.mubr.bf16.gmra.mrb[0].mxu0 %v1222
      %v1439 = vpop.f32.mrb[0].mxu0
      %v1440 = vadd.f32 0.0, %v1439
      %v1441 = vpop.f32.mrb[0].mxu0
      %v1442 = vpop.f32.mrb[0].mxu0
      %v1443 = vadd.f32 0.0, %v1442
      %v1444 = vpop.f32.mrb[0].mxu0
      %1445 = vmatprep.mubr.bf16.mxu0 %v1356
      %1446 = vmatmul.mubr.bf16.gmra.mrb[0].mxu0 %v1224
      %v1447 = vpop.f32.mrb[0].mxu0
      %v1448 = vadd.f32 0.0, %v1447
      %v1449 = vpop.f32.mrb[0].mxu0
      %v1450 = vpop.f32.mrb[0].mxu0
      %v1451 = vadd.f32 0.0, %v1450
      %v1452 = vpop.f32.mrb[0].mxu0
      %1453 = vmatprep.mubr.bf16.mxu0 %v1359
      %1454 = vmatmul.mubr.bf16.gmra.mrb[0].mxu0 %v1226
      %v1455 = vpop.f32.mrb[0].mxu0
      %v1456 = vadd.f32 0.0, %v1455
      %v1457 = vpop.f32.mrb[0].mxu0
      %v1458 = vpop.f32.mrb[0].mxu0
      %v1459 = vadd.f32 0.0, %v1458
      %v1460 = vpop.f32.mrb[0].mxu0
      %1461 = vmatprep.mubr.bf16.mxu0 %v1362
      %1462 = vmatmul.mubr.bf16.gmra.mrb[0].mxu0 %v1228
      %v1463 = vpop.f32.mrb[0].mxu0
      %v1464 = vadd.f32 0.0, %v1463
      %v1465 = vpop.f32.mrb[0].mxu0
      %v1466 = vpop.f32.mrb[0].mxu0
      %v1467 = vadd.f32 0.0, %v1466
      %v1468 = vpop.f32.mrb[0].mxu0
      %1469 = vmatprep.mubr.bf16.mxu0 %v1365
      %1470 = vmatmul.mubr.bf16.gmra.mrb[0].mxu0 %v1230
      %v1471 = vpop.f32.mrb[0].mxu0
      %v1472 = vadd.f32 0.0, %v1471
      %v1473 = vpop.f32.mrb[0].mxu0
      %v1474 = vpop.f32.mrb[0].mxu0
      %v1475 = vadd.f32 0.0, %v1474
      %v1476 = vpop.f32.mrb[0].mxu0
      %1477 = vmatprep.mubr.bf16.mxu0 %v1368
      %1478 = vmatmul.mubr.bf16.gmra.mrb[0].mxu0 %v1232
      %v1479 = vpop.f32.mrb[0].mxu0
      %v1480 = vadd.f32 0.0, %v1479
      %v1481 = vpop.f32.mrb[0].mxu0
      %v1482 = vpop.f32.mrb[0].mxu0
      %v1483 = vadd.f32 0.0, %v1482
      %v1484 = vpop.f32.mrb[0].mxu0
      %1485 = vmatprep.mubr.bf16.mxu0 %v1371
      %1486 = vmatmul.mubr.bf16.gmra.mrb[0].mxu0 %v1234
      %v1487 = vpop.f32.mrb[0].mxu0
      %v1488 = vadd.f32 0.0, %v1487
      %v1489 = vpop.f32.mrb[0].mxu0
      %v1490 = vpop.f32.mrb[0].mxu0
      %v1491 = vadd.f32 0.0, %v1490
      %v1492 = vpop.f32.mrb[0].mxu0
      %1493 = vmatprep.mubr.bf16.mxu0 %v1374
      %1494 = vmatmul.mubr.bf16.gmra.mrb[0].mxu0 %v1236
      %v1495 = vpop.f32.mrb[0].mxu0
      %v1496 = vadd.f32 0.0, %v1495
      %v1497 = vpop.f32.mrb[0].mxu0
      %v1498 = vpop.f32.mrb[0].mxu0
      %v1499 = vadd.f32 0.0, %v1498
      %v1500 = vpop.f32.mrb[0].mxu0
      %1501 = vmatprep.mubr.bf16.mxu0 %v1377
      %1502 = vmatmul.mubr.bf16.gmra.mrb[0].mxu0 %v1238
      %v1503 = vpop.f32.mrb[0].mxu0
      %v1504 = vadd.f32 0.0, %v1503
      %v1505 = vpop.f32.mrb[0].mxu0
      %v1506 = vpop.f32.mrb[0].mxu0
      %v1507 = vadd.f32 0.0, %v1506
      %v1508 = vpop.f32.mrb[0].mxu0
      %1509 = vmatprep.mubr.bf16.mxu0 %v1380
      %1510 = vmatmul.mubr.bf16.gmra.mrb[0].mxu0 %v1240
      %v1511 = vpop.f32.mrb[0].mxu0
      %v1512 = vadd.f32 0.0, %v1511
      %v1513 = vpop.f32.mrb[0].mxu0
      %v1514 = vpop.f32.mrb[0].mxu0
      %v1515 = vadd.f32 0.0, %v1514
      %v1516 = vpop.f32.mrb[0].mxu0
      %1517 = vmatprep.mubr.bf16.mxu0 %v1383
      %1518 = vmatmul.mubr.bf16.gmra.mrb[0].mxu0 %v1242
      %v1519 = vpop.f32.mrb[0].mxu0
      %v1520 = vadd.f32 0.0, %v1519
      %v1521 = vpop.f32.mrb[0].mxu0
      %v1522 = vpop.f32.mrb[0].mxu0
      %v1523 = vadd.f32 0.0, %v1522
      %v1524 = vpop.f32.mrb[0].mxu0
      %1525 = vmatprep.mubr.bf16.mxu0 %v1386
      %1526 = vmatmul.mubr.bf16.gmra.mrb[0].mxu0 %v1244
      %v1527 = vpop.f32.mrb[0].mxu0
      %v1528 = vadd.f32 0.0, %v1527
      %v1529 = vpop.f32.mrb[0].mxu0
      %v1530 = vpop.f32.mrb[0].mxu0
      %v1531 = vadd.f32 0.0, %v1530
      %v1532 = vpop.f32.mrb[0].mxu0
      %1533 = vmatprep.mubr.bf16.mxu0 %v1389
      %1534 = vmatmul.mubr.bf16.gmra.mrb[0].mxu0 %v1246
      %v1535 = vpop.f32.mrb[0].mxu0
      %v1536 = vadd.f32 0.0, %v1535
      %v1537 = vpop.f32.mrb[0].mxu0
      %v1538 = vpop.f32.mrb[0].mxu0
      %v1539 = vadd.f32 0.0, %v1538
      %v1540 = vpop.f32.mrb[0].mxu0
      %1541 = vmatprep.mubr.bf16.mxu0 %v1392
      %1542 = vmatmul.mubr.bf16.gmra.mrb[0].mxu0 %v1248
      %v1543 = vpop.f32.mrb[0].mxu0
      %v1544 = vadd.f32 0.0, %v1543
      %v1545 = vpop.f32.mrb[0].mxu0
      %v1546 = vpop.f32.mrb[0].mxu0
      %v1547 = vadd.f32 0.0, %v1546
      %v1548 = vpop.f32.mrb[0].mxu0
      %1549 = vmatprep.mubr.bf16.mxu0 %v1395
      %1550 = vmatmul.mubr.bf16.gmra.mrb[0].mxu0 %v1250
      %v1551 = vpop.f32.mrb[0].mxu0
      %v1552 = vadd.f32 0.0, %v1551
      %v1553 = vpop.f32.mrb[0].mxu0
      %v1554 = vpop.f32.mrb[0].mxu0
      %v1555 = vadd.f32 0.0, %v1554
      %v1556 = vpop.f32.mrb[0].mxu0
      %1557 = vdwg.mxu0
      %v1558 = vld [vmem:[#allocation4] sm:$0xff]
      %v1559 = vld [vmem:[#allocation4 + $0x8] sm:$0xff]
      %v1560 = vld [vmem:[#allocation4 + $0x10] sm:$0xff]
      %v1561 = vld [vmem:[#allocation4 + $0x18] sm:$0xff]
      %v1562 = vld [vmem:[#allocation4 + $0x20] sm:$0xff]
      %v1563 = vld [vmem:[#allocation4 + $0x28] sm:$0xff]
      %v1564 = vld [vmem:[#allocation4 + $0x30] sm:$0xff]
      %v1565 = vld [vmem:[#allocation4 + $0x38] sm:$0xff]
      %v1566 = vld [vmem:[#allocation4 + $0x40] sm:$0xff]
      %v1567 = vld [vmem:[#allocation4 + $0x48] sm:$0xff]
      %v1568 = vld [vmem:[#allocation4 + $0x50] sm:$0xff]
      %v1569 = vld [vmem:[#allocation4 + $0x58] sm:$0xff]
      %v1570 = vld [vmem:[#allocation4 + $0x60] sm:$0xff]
      %v1571 = vld [vmem:[#allocation4 + $0x68] sm:$0xff]
      %v1572 = vld [vmem:[#allocation4 + $0x70] sm:$0xff]
      %v1573 = vld [vmem:[#allocation4 + $0x78] sm:$0xff]
      %v1574 = vld [vmem:[#allocation4 + $0x80] sm:$0xff]
      %v1575 = vld [vmem:[#allocation4 + $0x88] sm:$0xff]
      %v1576 = vld [vmem:[#allocation4 + $0x90] sm:$0xff]
      %v1577 = vld [vmem:[#allocation4 + $0x98] sm:$0xff]
      %v1578 = vld [vmem:[#allocation4 + $0xa0] sm:$0xff]
      %v1579 = vld [vmem:[#allocation4 + $0xa8] sm:$0xff]
      %v1580 = vld [vmem:[#allocation4 + $0xb0] sm:$0xff]
      %v1581 = vld [vmem:[#allocation4 + $0xb8] sm:$0xff]
      %v1582 = vld [vmem:[#allocation4 + $0xc0] sm:$0xff]
      %v1583 = vld [vmem:[#allocation4 + $0xc8] sm:$0xff]
      %v1584 = vld [vmem:[#allocation4 + $0xd0] sm:$0xff]
      %v1585 = vld [vmem:[#allocation4 + $0xd8] sm:$0xff]
      %v1586 = vld [vmem:[#allocation4 + $0xe0] sm:$0xff]
      %v1587 = vld [vmem:[#allocation4 + $0xe8] sm:$0xff]
      %v1588 = vld [vmem:[#allocation4 + $0xf0] sm:$0xff]
      %v1589 = vld [vmem:[#allocation4 + $0xf8] sm:$0xff]
      %v1590 = vadd.f32 %v1558, %v1432
      %v1591 = vadd.f32 %v1559, %v1435
      %v1592 = vadd.f32 %v1560, %v1440
      %v1593 = vadd.f32 %v1561, %v1443
      %v1594 = vadd.f32 %v1562, %v1448
      %v1595 = vadd.f32 %v1563, %v1451
      %v1596 = vadd.f32 %v1564, %v1456
      %v1597 = vadd.f32 %v1565, %v1459
      %v1598 = vadd.f32 %v1566, %v1464
      %v1599 = vadd.f32 %v1567, %v1467
      %v1600 = vadd.f32 %v1568, %v1472
      %v1601 = vadd.f32 %v1569, %v1475
      %v1602 = vadd.f32 %v1570, %v1480
      %v1603 = vadd.f32 %v1571, %v1483
      %v1604 = vadd.f32 %v1572, %v1488
      %v1605 = vadd.f32 %v1573, %v1491
      %v1606 = vadd.f32 %v1574, %v1496
      %v1607 = vadd.f32 %v1575, %v1499
      %v1608 = vadd.f32 %v1576, %v1504
      %v1609 = vadd.f32 %v1577, %v1507
      %v1610 = vadd.f32 %v1578, %v1512
      %v1611 = vadd.f32 %v1579, %v1515
      %v1612 = vadd.f32 %v1580, %v1520
      %v1613 = vadd.f32 %v1581, %v1523
      %v1614 = vadd.f32 %v1582, %v1528
      %v1615 = vadd.f32 %v1583, %v1531
      %v1616 = vadd.f32 %v1584, %v1536
      %v1617 = vadd.f32 %v1585, %v1539
      %v1618 = vadd.f32 %v1586, %v1544
      %v1619 = vadd.f32 %v1587, %v1547
      %v1620 = vadd.f32 %v1588, %v1552
      %v1621 = vadd.f32 %v1589, %v1555
      %1622 = vst.msk [vmem:[#allocation4] sm:$0xff] %vm199, %v1590
      %1623 = vst.msk [vmem:[#allocation4 + $0x8] sm:$0xff] %vm199, %v1591
      %1624 = vst.msk [vmem:[#allocation4 + $0x10] sm:$0xff] %vm199, %v1592
      %1625 = vst.msk [vmem:[#allocation4 + $0x18] sm:$0xff] %vm199, %v1593
      %1626 = vst.msk [vmem:[#allocation4 + $0x20] sm:$0xff] %vm199, %v1594
      %1627 = vst.msk [vmem:[#allocation4 + $0x28] sm:$0xff] %vm199, %v1595
      %1628 = vst.msk [vmem:[#allocation4 + $0x30] sm:$0xff] %vm199, %v1596
      %1629 = vst.msk [vmem:[#allocation4 + $0x38] sm:$0xff] %vm199, %v1597
      %1630 = vst.msk [vmem:[#allocation4 + $0x40] sm:$0xff] %vm199, %v1598
      %1631 = vst.msk [vmem:[#allocation4 + $0x48] sm:$0xff] %vm199, %v1599
      %1632 = vst.msk [vmem:[#allocation4 + $0x50] sm:$0xff] %vm199, %v1600
      %1633 = vst.msk [vmem:[#allocation4 + $0x58] sm:$0xff] %vm199, %v1601
      %1634 = vst.msk [vmem:[#allocation4 + $0x60] sm:$0xff] %vm199, %v1602
      %1635 = vst.msk [vmem:[#allocation4 + $0x68] sm:$0xff] %vm199, %v1603
      %1636 = vst.msk [vmem:[#allocation4 + $0x70] sm:$0xff] %vm199, %v1604
      %1637 = vst.msk [vmem:[#allocation4 + $0x78] sm:$0xff] %vm199, %v1605
      %1638 = vst.msk [vmem:[#allocation4 + $0x80] sm:$0xff] %vm199, %v1606
      %1639 = vst.msk [vmem:[#allocation4 + $0x88] sm:$0xff] %vm199, %v1607
      %1640 = vst.msk [vmem:[#allocation4 + $0x90] sm:$0xff] %vm199, %v1608
      %1641 = vst.msk [vmem:[#allocation4 + $0x98] sm:$0xff] %vm199, %v1609
      %1642 = vst.msk [vmem:[#allocation4 + $0xa0] sm:$0xff] %vm199, %v1610
      %1643 = vst.msk [vmem:[#allocation4 + $0xa8] sm:$0xff] %vm199, %v1611
      %1644 = vst.msk [vmem:[#allocation4 + $0xb0] sm:$0xff] %vm199, %v1612
      %1645 = vst.msk [vmem:[#allocation4 + $0xb8] sm:$0xff] %vm199, %v1613
      %1646 = vst.msk [vmem:[#allocation4 + $0xc0] sm:$0xff] %vm199, %v1614
      %1647 = vst.msk [vmem:[#allocation4 + $0xc8] sm:$0xff] %vm199, %v1615
      %1648 = vst.msk [vmem:[#allocation4 + $0xd0] sm:$0xff] %vm199, %v1616
      %1649 = vst.msk [vmem:[#allocation4 + $0xd8] sm:$0xff] %vm199, %v1617
      %1650 = vst.msk [vmem:[#allocation4 + $0xe0] sm:$0xff] %vm199, %v1618
      %1651 = vst.msk [vmem:[#allocation4 + $0xe8] sm:$0xff] %vm199, %v1619
      %1652 = vst.msk [vmem:[#allocation4 + $0xf0] sm:$0xff] %vm199, %v1620
      %1653 = vst.msk [vmem:[#allocation4 + $0xf8] sm:$0xff] %vm199, %v1621
      %v1654 = vld [vmem:[#allocation3] sm:$0xff]
      %v1655 = vld [vmem:[#allocation3 + $0x8] sm:$0xff]
      %v1656 = vld [vmem:[#allocation3 + $0x10] sm:$0xff]
      %v1657 = vld [vmem:[#allocation3 + $0x18] sm:$0xff]
      %v1658 = vld [vmem:[#allocation3 + $0x20] sm:$0xff]
      %v1659 = vld [vmem:[#allocation3 + $0x28] sm:$0xff]
      %v1660 = vld [vmem:[#allocation3 + $0x30] sm:$0xff]
      %v1661 = vld [vmem:[#allocation3 + $0x38] sm:$0xff]
      %v1662 = vld [vmem:[#allocation3 + $0x40] sm:$0xff]
      %v1663 = vld [vmem:[#allocation3 + $0x48] sm:$0xff]
      %v1664 = vld [vmem:[#allocation3 + $0x50] sm:$0xff]
      %v1665 = vld [vmem:[#allocation3 + $0x58] sm:$0xff]
      %v1666 = vld [vmem:[#allocation3 + $0x60] sm:$0xff]
      %v1667 = vld [vmem:[#allocation3 + $0x68] sm:$0xff]
      %v1668 = vld [vmem:[#allocation3 + $0x70] sm:$0xff]
      %v1669 = vld [vmem:[#allocation3 + $0x78] sm:$0xff]
      %v1670 = vld [vmem:[#allocation3 + $0x80] sm:$0xff]
      %v1671 = vld [vmem:[#allocation3 + $0x88] sm:$0xff]
      %v1672 = vld [vmem:[#allocation3 + $0x90] sm:$0xff]
      %v1673 = vld [vmem:[#allocation3 + $0x98] sm:$0xff]
      %v1674 = vld [vmem:[#allocation3 + $0xa0] sm:$0xff]
      %v1675 = vld [vmem:[#allocation3 + $0xa8] sm:$0xff]
      %v1676 = vld [vmem:[#allocation3 + $0xb0] sm:$0xff]
      %v1677 = vld [vmem:[#allocation3 + $0xb8] sm:$0xff]
      %v1678 = vld [vmem:[#allocation3 + $0xc0] sm:$0xff]
      %v1679 = vld [vmem:[#allocation3 + $0xc8] sm:$0xff]
      %v1680 = vld [vmem:[#allocation3 + $0xd0] sm:$0xff]
      %v1681 = vld [vmem:[#allocation3 + $0xd8] sm:$0xff]
      %v1682 = vld [vmem:[#allocation3 + $0xe0] sm:$0xff]
      %v1683 = vld [vmem:[#allocation3 + $0xe8] sm:$0xff]
      %v1684 = vld [vmem:[#allocation3 + $0xf0] sm:$0xff]
      %v1685 = vld [vmem:[#allocation3 + $0xf8] sm:$0xff]
      %v1687 = vshrl.u32 %v1654, 16
      %v1689 = vshll.u32 %v1654, 16
      %v1691 = vrot.slane %v1689, 1
      %v1692 = vor.u32 %v1687, %v1691
      %v1694 = vshrl.u32 %v1655, 16
      %v1696 = vshll.u32 %v1655, 16
      %v1698 = vrot.slane %v1696, 1
      %v1699 = vor.u32 %v1694, %v1698
      %v1701 = vshrl.u32 %v1656, 16
      %v1703 = vshll.u32 %v1656, 16
      %v1705 = vrot.slane %v1703, 1
      %v1706 = vor.u32 %v1701, %v1705
      %v1708 = vshrl.u32 %v1657, 16
      %v1710 = vshll.u32 %v1657, 16
      %v1712 = vrot.slane %v1710, 1
      %v1713 = vor.u32 %v1708, %v1712
      %v1715 = vshrl.u32 %v1658, 16
      %v1717 = vshll.u32 %v1658, 16
      %v1719 = vrot.slane %v1717, 1
      %v1720 = vor.u32 %v1715, %v1719
      %v1722 = vshrl.u32 %v1659, 16
      %v1724 = vshll.u32 %v1659, 16
      %v1726 = vrot.slane %v1724, 1
      %v1727 = vor.u32 %v1722, %v1726
      %v1729 = vshrl.u32 %v1660, 16
      %v1731 = vshll.u32 %v1660, 16
      %v1733 = vrot.slane %v1731, 1
      %v1734 = vor.u32 %v1729, %v1733
      %v1736 = vshrl.u32 %v1661, 16
      %v1738 = vshll.u32 %v1661, 16
      %v1740 = vrot.slane %v1738, 1
      %v1741 = vor.u32 %v1736, %v1740
      %v1743 = vshrl.u32 %v1662, 16
      %v1745 = vshll.u32 %v1662, 16
      %v1747 = vrot.slane %v1745, 1
      %v1748 = vor.u32 %v1743, %v1747
      %v1750 = vshrl.u32 %v1663, 16
      %v1752 = vshll.u32 %v1663, 16
      %v1754 = vrot.slane %v1752, 1
      %v1755 = vor.u32 %v1750, %v1754
      %v1757 = vshrl.u32 %v1664, 16
      %v1759 = vshll.u32 %v1664, 16
      %v1761 = vrot.slane %v1759, 1
      %v1762 = vor.u32 %v1757, %v1761
      %v1764 = vshrl.u32 %v1665, 16
      %v1766 = vshll.u32 %v1665, 16
      %v1768 = vrot.slane %v1766, 1
      %v1769 = vor.u32 %v1764, %v1768
      %v1771 = vshrl.u32 %v1666, 16
      %v1773 = vshll.u32 %v1666, 16
      %v1775 = vrot.slane %v1773, 1
      %v1776 = vor.u32 %v1771, %v1775
      %v1778 = vshrl.u32 %v1667, 16
      %v1780 = vshll.u32 %v1667, 16
      %v1782 = vrot.slane %v1780, 1
      %v1783 = vor.u32 %v1778, %v1782
      %v1785 = vshrl.u32 %v1668, 16
      %v1787 = vshll.u32 %v1668, 16
      %v1789 = vrot.slane %v1787, 1
      %v1790 = vor.u32 %v1785, %v1789
      %v1792 = vshrl.u32 %v1669, 16
      %v1794 = vshll.u32 %v1669, 16
      %v1796 = vrot.slane %v1794, 1
      %v1797 = vor.u32 %v1792, %v1796
      %v1799 = vshrl.u32 %v1670, 16
      %v1801 = vshll.u32 %v1670, 16
      %v1803 = vrot.slane %v1801, 1
      %v1804 = vor.u32 %v1799, %v1803
      %v1806 = vshrl.u32 %v1671, 16
      %v1808 = vshll.u32 %v1671, 16
      %v1810 = vrot.slane %v1808, 1
      %v1811 = vor.u32 %v1806, %v1810
      %v1813 = vshrl.u32 %v1672, 16
      %v1815 = vshll.u32 %v1672, 16
      %v1817 = vrot.slane %v1815, 1
      %v1818 = vor.u32 %v1813, %v1817
      %v1820 = vshrl.u32 %v1673, 16
      %v1822 = vshll.u32 %v1673, 16
      %v1824 = vrot.slane %v1822, 1
      %v1825 = vor.u32 %v1820, %v1824
      %v1827 = vshrl.u32 %v1674, 16
      %v1829 = vshll.u32 %v1674, 16
      %v1831 = vrot.slane %v1829, 1
      %v1832 = vor.u32 %v1827, %v1831
      %v1834 = vshrl.u32 %v1675, 16
      %v1836 = vshll.u32 %v1675, 16
      %v1838 = vrot.slane %v1836, 1
      %v1839 = vor.u32 %v1834, %v1838
      %v1841 = vshrl.u32 %v1676, 16
      %v1843 = vshll.u32 %v1676, 16
      %v1845 = vrot.slane %v1843, 1
      %v1846 = vor.u32 %v1841, %v1845
      %v1848 = vshrl.u32 %v1677, 16
      %v1850 = vshll.u32 %v1677, 16
      %v1852 = vrot.slane %v1850, 1
      %v1853 = vor.u32 %v1848, %v1852
      %v1855 = vshrl.u32 %v1678, 16
      %v1857 = vshll.u32 %v1678, 16
      %v1859 = vrot.slane %v1857, 1
      %v1860 = vor.u32 %v1855, %v1859
      %v1862 = vshrl.u32 %v1679, 16
      %v1864 = vshll.u32 %v1679, 16
      %v1866 = vrot.slane %v1864, 1
      %v1867 = vor.u32 %v1862, %v1866
      %v1869 = vshrl.u32 %v1680, 16
      %v1871 = vshll.u32 %v1680, 16
      %v1873 = vrot.slane %v1871, 1
      %v1874 = vor.u32 %v1869, %v1873
      %v1876 = vshrl.u32 %v1681, 16
      %v1878 = vshll.u32 %v1681, 16
      %v1880 = vrot.slane %v1878, 1
      %v1881 = vor.u32 %v1876, %v1880
      %v1883 = vshrl.u32 %v1682, 16
      %v1885 = vshll.u32 %v1682, 16
      %v1887 = vrot.slane %v1885, 1
      %v1888 = vor.u32 %v1883, %v1887
      %v1890 = vshrl.u32 %v1683, 16
      %v1892 = vshll.u32 %v1683, 16
      %v1894 = vrot.slane %v1892, 1
      %v1895 = vor.u32 %v1890, %v1894
      %v1897 = vshrl.u32 %v1684, 16
      %v1899 = vshll.u32 %v1684, 16
      %v1901 = vrot.slane %v1899, 1
      %v1902 = vor.u32 %v1897, %v1901
      %v1904 = vshrl.u32 %v1685, 16
      %v1906 = vshll.u32 %v1685, 16
      %v1908 = vrot.slane %v1906, 1
      %v1909 = vor.u32 %v1904, %v1908
      %vm1942 = vcmask 1047552
      %vm1943 = vsmask.f32 7424
      %vm1944 = vmand %vm1942, %vm1943
      %v1945 = vsel %vm1944, %v1692, 0
      %v1946 = vsel %vm1944, %v1699, 0
      %v1947 = vsel %vm1944, %v1706, 0
      %v1948 = vsel %vm1944, %v1713, 0
      %v1949 = vsel %vm1944, %v1720, 0
      %v1950 = vsel %vm1944, %v1727, 0
      %v1951 = vsel %vm1944, %v1734, 0
      %v1952 = vsel %vm1944, %v1741, 0
      %v1953 = vsel %vm1944, %v1748, 0
      %v1954 = vsel %vm1944, %v1755, 0
      %v1955 = vsel %vm1944, %v1762, 0
      %v1956 = vsel %vm1944, %v1769, 0
      %v1957 = vsel %vm1944, %v1776, 0
      %v1958 = vsel %vm1944, %v1783, 0
      %v1959 = vsel %vm1944, %v1790, 0
      %v1960 = vsel %vm1944, %v1797, 0
      %v1961 = vsel %vm1944, %v1804, 0
      %v1962 = vsel %vm1944, %v1811, 0
      %v1963 = vsel %vm1944, %v1818, 0
      %v1964 = vsel %vm1944, %v1825, 0
      %v1965 = vsel %vm1944, %v1832, 0
      %v1966 = vsel %vm1944, %v1839, 0
      %v1967 = vsel %vm1944, %v1846, 0
      %v1968 = vsel %vm1944, %v1853, 0
      %v1969 = vsel %vm1944, %v1860, 0
      %v1970 = vsel %vm1944, %v1867, 0
      %v1971 = vsel %vm1944, %v1874, 0
      %v1972 = vsel %vm1944, %v1881, 0
      %v1973 = vsel %vm1944, %v1888, 0
      %v1974 = vsel %vm1944, %v1895, 0
      %v1975 = vsel %vm1944, %v1902, 0
      %v1976 = vsel %vm1944, %v1909, 0
      %s1977 = scalar_lea.vmem %s1, 192
      %v1978 = vld [vmem:[%s1977] sm:$0xf]
      %v1979 = vld [vmem:[%s1977 + $0x4] sm:$0xf]
      %v1980 = vld [vmem:[%s1977 + $0x8] sm:$0xf]
      %v1981 = vld [vmem:[%s1977 + $0xc] sm:$0xf]
      %v1982 = vld [vmem:[%s1977 + $0x10] sm:$0xf]
      %v1983 = vld [vmem:[%s1977 + $0x14] sm:$0xf]
      %v1984 = vld [vmem:[%s1977 + $0x18] sm:$0xf]
      %v1985 = vld [vmem:[%s1977 + $0x1c] sm:$0xf]
      %v1986 = vld [vmem:[%s1977 + $0x20] sm:$0xf]
      %v1987 = vld [vmem:[%s1977 + $0x24] sm:$0xf]
      %v1988 = vld [vmem:[%s1977 + $0x28] sm:$0xf]
      %v1989 = vld [vmem:[%s1977 + $0x2c] sm:$0xf]
      %v1990 = vld [vmem:[%s1977 + $0x30] sm:$0xf]
      %v1991 = vld [vmem:[%s1977 + $0x34] sm:$0xf]
      %v1992 = vld [vmem:[%s1977 + $0x38] sm:$0xf]
      %v1993 = vld [vmem:[%s1977 + $0x3c] sm:$0xf]
      %v1994 = vld [vmem:[%s1977 + $0x40] sm:$0xf]
      %v1995 = vld [vmem:[%s1977 + $0x44] sm:$0xf]
      %v1996 = vld [vmem:[%s1977 + $0x48] sm:$0xf]
      %v1997 = vld [vmem:[%s1977 + $0x4c] sm:$0xf]
      %v1998 = vld [vmem:[%s1977 + $0x50] sm:$0xf]
      %v1999 = vld [vmem:[%s1977 + $0x54] sm:$0xf]
      %v2000 = vld [vmem:[%s1977 + $0x58] sm:$0xf]
      %v2001 = vld [vmem:[%s1977 + $0x5c] sm:$0xf]
      %v2026 = vunpack.c.l.b16 %v1978
      %v2027 = vunpack.c.l.b16 %v1979
      %v2028 = vunpack.c.l.b16 %v1980
      %v2029 = vunpack.c.l.b16 %v1981
      %v2030 = vunpack.c.l.b16 %v1982
      %v2031 = vunpack.c.l.b16 %v1983
      %v2032 = vunpack.c.l.b16 %v1984
      %v2033 = vunpack.c.l.b16 %v1985
      %v2034 = vunpack.c.l.b16 %v1986
      %v2035 = vunpack.c.l.b16 %v1987
      %v2036 = vunpack.c.l.b16 %v1988
      %v2037 = vunpack.c.l.b16 %v1989
      %v2038 = vunpack.c.l.b16 %v1990
      %v2039 = vunpack.c.l.b16 %v1991
      %v2040 = vunpack.c.l.b16 %v1992
      %v2041 = vunpack.c.l.b16 %v1993
      %v2042 = vunpack.c.l.b16 %v1994
      %v2043 = vunpack.c.l.b16 %v1995
      %v2044 = vunpack.c.l.b16 %v1996
      %v2045 = vunpack.c.l.b16 %v1997
      %v2046 = vunpack.c.l.b16 %v1998
      %v2047 = vunpack.c.l.b16 %v1999
      %v2048 = vunpack.c.l.b16 %v2000
      %v2049 = vunpack.c.l.b16 %v2001
      %v2050 = vpack.c.b16 %v2027, %v2026
      %v2051 = vpack.c.b16 %v2029, %v2028
      %v2052 = vpack.c.b16 %v2031, %v2030
      %v2053 = vpack.c.b16 %v2033, %v2032
      %v2054 = vpack.c.b16 %v2035, %v2034
      %v2055 = vpack.c.b16 %v2037, %v2036
      %v2056 = vpack.c.b16 %v2039, %v2038
      %v2057 = vpack.c.b16 %v2041, %v2040
      %v2058 = vpack.c.b16 %v2043, %v2042
      %v2059 = vpack.c.b16 %v2045, %v2044
      %v2060 = vpack.c.b16 %v2047, %v2046
      %v2061 = vpack.c.b16 %v2049, %v2048
      %v2075 = vsel %vm199, %v1946, 0
      %v2078 = vsel %vm199, %v1948, 0
      %v2081 = vsel %vm199, %v1950, 0
      %v2084 = vsel %vm199, %v1952, 0
      %v2087 = vsel %vm199, %v1954, 0
      %v2090 = vsel %vm199, %v1956, 0
      %v2093 = vsel %vm199, %v1958, 0
      %v2096 = vsel %vm199, %v1960, 0
      %v2099 = vsel %vm199, %v1962, 0
      %v2102 = vsel %vm199, %v1964, 0
      %v2105 = vsel %vm199, %v1966, 0
      %v2108 = vsel %vm199, %v1968, 0
      %v2111 = vsel %vm199, %v1970, 0
      %v2114 = vsel %vm199, %v1972, 0
      %v2117 = vsel %vm199, %v1974, 0
      %v2120 = vsel %vm199, %v1976, 0
      %2122 = vmatprep.subr.bf16.mxu0 0
      %2123 = vmatpush1.bf16.msra.mxu0 %v2050
      %2124 = vmatprep.subr.bf16.mxu0 0
      %2125 = vmatpush1.bf16.msra.mxu0 %v2051
      %2126 = vmatprep.subr.bf16.mxu0 0
      %2127 = vmatpush1.bf16.msra.mxu0 %v2052
      %2128 = vmatprep.subr.bf16.mxu0 0
      %2129 = vmatpush1.bf16.msra.mxu0 %v2053
      %2130 = vmatprep.subr.bf16.mxu0 0
      %2131 = vmatpush1.bf16.msra.mxu0 %v2054
      %2132 = vmatprep.subr.bf16.mxu0 0
      %2133 = vmatpush1.bf16.msra.mxu0 %v2055
      %2134 = vmatprep.subr.bf16.mxu0 0
      %2135 = vmatpush1.bf16.msra.mxu0 %v2056
      %2136 = vmatprep.subr.bf16.mxu0 0
      %2137 = vmatpush1.bf16.msra.mxu0 %v2057
      %2138 = vmatprep.subr.bf16.mxu0 0
      %2139 = vmatpush1.bf16.msra.mxu0 %v2058
      %2140 = vmatprep.subr.bf16.mxu0 0
      %2141 = vmatpush1.bf16.msra.mxu0 %v2059
      %2142 = vmatprep.subr.bf16.mxu0 0
      %2143 = vmatpush1.bf16.msra.mxu0 %v2060
      %2144 = vmatprep.subr.bf16.mxu0 0
      %2145 = vmatpush1.bf16.msra.mxu0 %v2061
      %2146 = vmatprep.subr.bf16.mxu0 0
      %2147 = vmatpush1.bf16.msra.mxu0 0
      %2148 = vmatprep.subr.bf16.mxu0 0
      %2149 = vmatpush1.bf16.msra.mxu0 0
      %2150 = vmatprep.subr.bf16.mxu0 0
      %2151 = vmatpush1.bf16.msra.mxu0 0
      %2152 = vmatprep.subr.bf16.mxu0 0
      %2153 = vmatpush1.bf16.msra.mxu0 0
      %2154 = vmatprep.mubr.bf16.mxu0 %v2075
      %2155 = vmatmul.mubr.bf16.gmra.mrb[0].mxu0 %v1945
      %v2156 = vpop.f32.mrb[0].mxu0
      %v2157 = vadd.f32 0.0, %v2156
      %v2158 = vpop.f32.mrb[0].mxu0
      %v2159 = vpop.f32.mrb[0].mxu0
      %v2160 = vadd.f32 0.0, %v2159
      %v2161 = vpop.f32.mrb[0].mxu0
      %2162 = vmatprep.mubr.bf16.mxu0 %v2078
      %2163 = vmatmul.mubr.bf16.gmra.mrb[0].mxu0 %v1947
      %v2164 = vpop.f32.mrb[0].mxu0
      %v2165 = vadd.f32 0.0, %v2164
      %v2166 = vpop.f32.mrb[0].mxu0
      %v2167 = vpop.f32.mrb[0].mxu0
      %v2168 = vadd.f32 0.0, %v2167
      %v2169 = vpop.f32.mrb[0].mxu0
      %2170 = vmatprep.mubr.bf16.mxu0 %v2081
      %2171 = vmatmul.mubr.bf16.gmra.mrb[0].mxu0 %v1949
      %v2172 = vpop.f32.mrb[0].mxu0
      %v2173 = vadd.f32 0.0, %v2172
      %v2174 = vpop.f32.mrb[0].mxu0
      %v2175 = vpop.f32.mrb[0].mxu0
      %v2176 = vadd.f32 0.0, %v2175
      %v2177 = vpop.f32.mrb[0].mxu0
      %2178 = vmatprep.mubr.bf16.mxu0 %v2084
      %2179 = vmatmul.mubr.bf16.gmra.mrb[0].mxu0 %v1951
      %v2180 = vpop.f32.mrb[0].mxu0
      %v2181 = vadd.f32 0.0, %v2180
      %v2182 = vpop.f32.mrb[0].mxu0
      %v2183 = vpop.f32.mrb[0].mxu0
      %v2184 = vadd.f32 0.0, %v2183
      %v2185 = vpop.f32.mrb[0].mxu0
      %2186 = vmatprep.mubr.bf16.mxu0 %v2087
      %2187 = vmatmul.mubr.bf16.gmra.mrb[0].mxu0 %v1953
      %v2188 = vpop.f32.mrb[0].mxu0
      %v2189 = vadd.f32 0.0, %v2188
      %v2190 = vpop.f32.mrb[0].mxu0
      %v2191 = vpop.f32.mrb[0].mxu0
      %v2192 = vadd.f32 0.0, %v2191
      %v2193 = vpop.f32.mrb[0].mxu0
      %2194 = vmatprep.mubr.bf16.mxu0 %v2090
      %2195 = vmatmul.mubr.bf16.gmra.mrb[0].mxu0 %v1955
      %v2196 = vpop.f32.mrb[0].mxu0
      %v2197 = vadd.f32 0.0, %v2196
      %v2198 = vpop.f32.mrb[0].mxu0
      %v2199 = vpop.f32.mrb[0].mxu0
      %v2200 = vadd.f32 0.0, %v2199
      %v2201 = vpop.f32.mrb[0].mxu0
      %2202 = vmatprep.mubr.bf16.mxu0 %v2093
      %2203 = vmatmul.mubr.bf16.gmra.mrb[0].mxu0 %v1957
      %v2204 = vpop.f32.mrb[0].mxu0
      %v2205 = vadd.f32 0.0, %v2204
      %v2206 = vpop.f32.mrb[0].mxu0
      %v2207 = vpop.f32.mrb[0].mxu0
      %v2208 = vadd.f32 0.0, %v2207
      %v2209 = vpop.f32.mrb[0].mxu0
      %2210 = vmatprep.mubr.bf16.mxu0 %v2096
      %2211 = vmatmul.mubr.bf16.gmra.mrb[0].mxu0 %v1959
      %v2212 = vpop.f32.mrb[0].mxu0
      %v2213 = vadd.f32 0.0, %v2212
      %v2214 = vpop.f32.mrb[0].mxu0
      %v2215 = vpop.f32.mrb[0].mxu0
      %v2216 = vadd.f32 0.0, %v2215
      %v2217 = vpop.f32.mrb[0].mxu0
      %2218 = vmatprep.mubr.bf16.mxu0 %v2099
      %2219 = vmatmul.mubr.bf16.gmra.mrb[0].mxu0 %v1961
      %v2220 = vpop.f32.mrb[0].mxu0
      %v2221 = vadd.f32 0.0, %v2220
      %v2222 = vpop.f32.mrb[0].mxu0
      %v2223 = vpop.f32.mrb[0].mxu0
      %v2224 = vadd.f32 0.0, %v2223
      %v2225 = vpop.f32.mrb[0].mxu0
      %2226 = vmatprep.mubr.bf16.mxu0 %v2102
      %2227 = vmatmul.mubr.bf16.gmra.mrb[0].mxu0 %v1963
      %v2228 = vpop.f32.mrb[0].mxu0
      %v2229 = vadd.f32 0.0, %v2228
      %v2230 = vpop.f32.mrb[0].mxu0
      %v2231 = vpop.f32.mrb[0].mxu0
      %v2232 = vadd.f32 0.0, %v2231
      %v2233 = vpop.f32.mrb[0].mxu0
      %2234 = vmatprep.mubr.bf16.mxu0 %v2105
      %2235 = vmatmul.mubr.bf16.gmra.mrb[0].mxu0 %v1965
      %v2236 = vpop.f32.mrb[0].mxu0
      %v2237 = vadd.f32 0.0, %v2236
      %v2238 = vpop.f32.mrb[0].mxu0
      %v2239 = vpop.f32.mrb[0].mxu0
      %v2240 = vadd.f32 0.0, %v2239
      %v2241 = vpop.f32.mrb[0].mxu0
      %2242 = vmatprep.mubr.bf16.mxu0 %v2108
      %2243 = vmatmul.mubr.bf16.gmra.mrb[0].mxu0 %v1967
      %v2244 = vpop.f32.mrb[0].mxu0
      %v2245 = vadd.f32 0.0, %v2244
      %v2246 = vpop.f32.mrb[0].mxu0
      %v2247 = vpop.f32.mrb[0].mxu0
      %v2248 = vadd.f32 0.0, %v2247
      %v2249 = vpop.f32.mrb[0].mxu0
      %2250 = vmatprep.mubr.bf16.mxu0 %v2111
      %2251 = vmatmul.mubr.bf16.gmra.mrb[0].mxu0 %v1969
      %v2252 = vpop.f32.mrb[0].mxu0
      %v2253 = vadd.f32 0.0, %v2252
      %v2254 = vpop.f32.mrb[0].mxu0
      %v2255 = vpop.f32.mrb[0].mxu0
      %v2256 = vadd.f32 0.0, %v2255
      %v2257 = vpop.f32.mrb[0].mxu0
      %2258 = vmatprep.mubr.bf16.mxu0 %v2114
      %2259 = vmatmul.mubr.bf16.gmra.mrb[0].mxu0 %v1971
      %v2260 = vpop.f32.mrb[0].mxu0
      %v2261 = vadd.f32 0.0, %v2260
      %v2262 = vpop.f32.mrb[0].mxu0
      %v2263 = vpop.f32.mrb[0].mxu0
      %v2264 = vadd.f32 0.0, %v2263
      %v2265 = vpop.f32.mrb[0].mxu0
      %2266 = vmatprep.mubr.bf16.mxu0 %v2117
      %2267 = vmatmul.mubr.bf16.gmra.mrb[0].mxu0 %v1973
      %v2268 = vpop.f32.mrb[0].mxu0
      %v2269 = vadd.f32 0.0, %v2268
      %v2270 = vpop.f32.mrb[0].mxu0
      %v2271 = vpop.f32.mrb[0].mxu0
      %v2272 = vadd.f32 0.0, %v2271
      %v2273 = vpop.f32.mrb[0].mxu0
      %2274 = vmatprep.mubr.bf16.mxu0 %v2120
      %2275 = vmatmul.mubr.bf16.gmra.mrb[0].mxu0 %v1975
      %v2276 = vpop.f32.mrb[0].mxu0
      %v2277 = vadd.f32 0.0, %v2276
      %v2278 = vpop.f32.mrb[0].mxu0
      %v2279 = vpop.f32.mrb[0].mxu0
      %v2280 = vadd.f32 0.0, %v2279
      %v2281 = vpop.f32.mrb[0].mxu0
      %2282 = vdwg.mxu0
      %v2283 = vld [vmem:[#allocation4] sm:$0xff]
      %v2284 = vld [vmem:[#allocation4 + $0x8] sm:$0xff]
      %v2285 = vld [vmem:[#allocation4 + $0x10] sm:$0xff]
      %v2286 = vld [vmem:[#allocation4 + $0x18] sm:$0xff]
      %v2287 = vld [vmem:[#allocation4 + $0x20] sm:$0xff]
      %v2288 = vld [vmem:[#allocation4 + $0x28] sm:$0xff]
      %v2289 = vld [vmem:[#allocation4 + $0x30] sm:$0xff]
      %v2290 = vld [vmem:[#allocation4 + $0x38] sm:$0xff]
      %v2291 = vld [vmem:[#allocation4 + $0x40] sm:$0xff]
      %v2292 = vld [vmem:[#allocation4 + $0x48] sm:$0xff]
      %v2293 = vld [vmem:[#allocation4 + $0x50] sm:$0xff]
      %v2294 = vld [vmem:[#allocation4 + $0x58] sm:$0xff]
      %v2295 = vld [vmem:[#allocation4 + $0x60] sm:$0xff]
      %v2296 = vld [vmem:[#allocation4 + $0x68] sm:$0xff]
      %v2297 = vld [vmem:[#allocation4 + $0x70] sm:$0xff]
      %v2298 = vld [vmem:[#allocation4 + $0x78] sm:$0xff]
      %v2299 = vld [vmem:[#allocation4 + $0x80] sm:$0xff]
      %v2300 = vld [vmem:[#allocation4 + $0x88] sm:$0xff]
      %v2301 = vld [vmem:[#allocation4 + $0x90] sm:$0xff]
      %v2302 = vld [vmem:[#allocation4 + $0x98] sm:$0xff]
      %v2303 = vld [vmem:[#allocation4 + $0xa0] sm:$0xff]
      %v2304 = vld [vmem:[#allocation4 + $0xa8] sm:$0xff]
      %v2305 = vld [vmem:[#allocation4 + $0xb0] sm:$0xff]
      %v2306 = vld [vmem:[#allocation4 + $0xb8] sm:$0xff]
      %v2307 = vld [vmem:[#allocation4 + $0xc0] sm:$0xff]
      %v2308 = vld [vmem:[#allocation4 + $0xc8] sm:$0xff]
      %v2309 = vld [vmem:[#allocation4 + $0xd0] sm:$0xff]
      %v2310 = vld [vmem:[#allocation4 + $0xd8] sm:$0xff]
      %v2311 = vld [vmem:[#allocation4 + $0xe0] sm:$0xff]
      %v2312 = vld [vmem:[#allocation4 + $0xe8] sm:$0xff]
      %v2313 = vld [vmem:[#allocation4 + $0xf0] sm:$0xff]
      %v2314 = vld [vmem:[#allocation4 + $0xf8] sm:$0xff]
      %v2315 = vadd.f32 %v2283, %v2157
      %v2316 = vadd.f32 %v2284, %v2160
      %v2317 = vadd.f32 %v2285, %v2165
      %v2318 = vadd.f32 %v2286, %v2168
      %v2319 = vadd.f32 %v2287, %v2173
      %v2320 = vadd.f32 %v2288, %v2176
      %v2321 = vadd.f32 %v2289, %v2181
      %v2322 = vadd.f32 %v2290, %v2184
      %v2323 = vadd.f32 %v2291, %v2189
      %v2324 = vadd.f32 %v2292, %v2192
      %v2325 = vadd.f32 %v2293, %v2197
      %v2326 = vadd.f32 %v2294, %v2200
      %v2327 = vadd.f32 %v2295, %v2205
      %v2328 = vadd.f32 %v2296, %v2208
      %v2329 = vadd.f32 %v2297, %v2213
      %v2330 = vadd.f32 %v2298, %v2216
      %v2331 = vadd.f32 %v2299, %v2221
      %v2332 = vadd.f32 %v2300, %v2224
      %v2333 = vadd.f32 %v2301, %v2229
      %v2334 = vadd.f32 %v2302, %v2232
      %v2335 = vadd.f32 %v2303, %v2237
      %v2336 = vadd.f32 %v2304, %v2240
      %v2337 = vadd.f32 %v2305, %v2245
      %v2338 = vadd.f32 %v2306, %v2248
      %v2339 = vadd.f32 %v2307, %v2253
      %v2340 = vadd.f32 %v2308, %v2256
      %v2341 = vadd.f32 %v2309, %v2261
      %v2342 = vadd.f32 %v2310, %v2264
      %v2343 = vadd.f32 %v2311, %v2269
      %v2344 = vadd.f32 %v2312, %v2272
      %v2345 = vadd.f32 %v2313, %v2277
      %v2346 = vadd.f32 %v2314, %v2280
      %2347 = vst.msk [vmem:[#allocation4] sm:$0xff] %vm199, %v2315
      %2348 = vst.msk [vmem:[#allocation4 + $0x8] sm:$0xff] %vm199, %v2316
      %2349 = vst.msk [vmem:[#allocation4 + $0x10] sm:$0xff] %vm199, %v2317
      %2350 = vst.msk [vmem:[#allocation4 + $0x18] sm:$0xff] %vm199, %v2318
      %2351 = vst.msk [vmem:[#allocation4 + $0x20] sm:$0xff] %vm199, %v2319
      %2352 = vst.msk [vmem:[#allocation4 + $0x28] sm:$0xff] %vm199, %v2320
      %2353 = vst.msk [vmem:[#allocation4 + $0x30] sm:$0xff] %vm199, %v2321
      %2354 = vst.msk [vmem:[#allocation4 + $0x38] sm:$0xff] %vm199, %v2322
      %2355 = vst.msk [vmem:[#allocation4 + $0x40] sm:$0xff] %vm199, %v2323
      %2356 = vst.msk [vmem:[#allocation4 + $0x48] sm:$0xff] %vm199, %v2324
      %2357 = vst.msk [vmem:[#allocation4 + $0x50] sm:$0xff] %vm199, %v2325
      %2358 = vst.msk [vmem:[#allocation4 + $0x58] sm:$0xff] %vm199, %v2326
      %2359 = vst.msk [vmem:[#allocation4 + $0x60] sm:$0xff] %vm199, %v2327
      %2360 = vst.msk [vmem:[#allocation4 + $0x68] sm:$0xff] %vm199, %v2328
      %2361 = vst.msk [vmem:[#allocation4 + $0x70] sm:$0xff] %vm199, %v2329
      %2362 = vst.msk [vmem:[#allocation4 + $0x78] sm:$0xff] %vm199, %v2330
      %2363 = vst.msk [vmem:[#allocation4 + $0x80] sm:$0xff] %vm199, %v2331
      %2364 = vst.msk [vmem:[#allocation4 + $0x88] sm:$0xff] %vm199, %v2332
      %2365 = vst.msk [vmem:[#allocation4 + $0x90] sm:$0xff] %vm199, %v2333
      %2366 = vst.msk [vmem:[#allocation4 + $0x98] sm:$0xff] %vm199, %v2334
      %2367 = vst.msk [vmem:[#allocation4 + $0xa0] sm:$0xff] %vm199, %v2335
      %2368 = vst.msk [vmem:[#allocation4 + $0xa8] sm:$0xff] %vm199, %v2336
      %2369 = vst.msk [vmem:[#allocation4 + $0xb0] sm:$0xff] %vm199, %v2337
      %2370 = vst.msk [vmem:[#allocation4 + $0xb8] sm:$0xff] %vm199, %v2338
      %2371 = vst.msk [vmem:[#allocation4 + $0xc0] sm:$0xff] %vm199, %v2339
      %2372 = vst.msk [vmem:[#allocation4 + $0xc8] sm:$0xff] %vm199, %v2340
      %2373 = vst.msk [vmem:[#allocation4 + $0xd0] sm:$0xff] %vm199, %v2341
      %2374 = vst.msk [vmem:[#allocation4 + $0xd8] sm:$0xff] %vm199, %v2342
      %2375 = vst.msk [vmem:[#allocation4 + $0xe0] sm:$0xff] %vm199, %v2343
      %2376 = vst.msk [vmem:[#allocation4 + $0xe8] sm:$0xff] %vm199, %v2344
      %2377 = vst.msk [vmem:[#allocation4 + $0xf0] sm:$0xff] %vm199, %v2345
      %2378 = vst.msk [vmem:[#allocation4 + $0xf8] sm:$0xff] %vm199, %v2346
      %v2379 = vld [vmem:[#allocation4] sm:$0xff]
      %v2380 = vld [vmem:[#allocation4 + $0x8] sm:$0xff]
      %v2381 = vld [vmem:[#allocation4 + $0x10] sm:$0xff]
      %v2382 = vld [vmem:[#allocation4 + $0x18] sm:$0xff]
      %v2383 = vld [vmem:[#allocation4 + $0x20] sm:$0xff]
      %v2384 = vld [vmem:[#allocation4 + $0x28] sm:$0xff]
      %v2385 = vld [vmem:[#allocation4 + $0x30] sm:$0xff]
      %v2386 = vld [vmem:[#allocation4 + $0x38] sm:$0xff]
      %v2387 = vld [vmem:[#allocation4 + $0x40] sm:$0xff]
      %v2388 = vld [vmem:[#allocation4 + $0x48] sm:$0xff]
      %v2389 = vld [vmem:[#allocation4 + $0x50] sm:$0xff]
      %v2390 = vld [vmem:[#allocation4 + $0x58] sm:$0xff]
      %v2391 = vld [vmem:[#allocation4 + $0x60] sm:$0xff]
      %v2392 = vld [vmem:[#allocation4 + $0x68] sm:$0xff]
      %v2393 = vld [vmem:[#allocation4 + $0x70] sm:$0xff]
      %v2394 = vld [vmem:[#allocation4 + $0x78] sm:$0xff]
      %v2395 = vld [vmem:[#allocation4 + $0x80] sm:$0xff]
      %v2396 = vld [vmem:[#allocation4 + $0x88] sm:$0xff]
      %v2397 = vld [vmem:[#allocation4 + $0x90] sm:$0xff]
      %v2398 = vld [vmem:[#allocation4 + $0x98] sm:$0xff]
      %v2399 = vld [vmem:[#allocation4 + $0xa0] sm:$0xff]
      %v2400 = vld [vmem:[#allocation4 + $0xa8] sm:$0xff]
      %v2401 = vld [vmem:[#allocation4 + $0xb0] sm:$0xff]
      %v2402 = vld [vmem:[#allocation4 + $0xb8] sm:$0xff]
      %v2403 = vld [vmem:[#allocation4 + $0xc0] sm:$0xff]
      %v2404 = vld [vmem:[#allocation4 + $0xc8] sm:$0xff]
      %v2405 = vld [vmem:[#allocation4 + $0xd0] sm:$0xff]
      %v2406 = vld [vmem:[#allocation4 + $0xd8] sm:$0xff]
      %v2407 = vld [vmem:[#allocation4 + $0xe0] sm:$0xff]
      %v2408 = vld [vmem:[#allocation4 + $0xe8] sm:$0xff]
      %v2409 = vld [vmem:[#allocation4 + $0xf0] sm:$0xff]
      %v2410 = vld [vmem:[#allocation4 + $0xf8] sm:$0xff]
      %vm2411 = vcmp.ge.f32.partialorder %v2379, 0.0
      %vm2412 = vcmp.ge.f32.partialorder %v2380, 0.0
      %vm2413 = vcmp.ge.f32.partialorder %v2381, 0.0
      %vm2414 = vcmp.ge.f32.partialorder %v2382, 0.0
      %vm2415 = vcmp.ge.f32.partialorder %v2383, 0.0
      %vm2416 = vcmp.ge.f32.partialorder %v2384, 0.0
      %vm2417 = vcmp.ge.f32.partialorder %v2385, 0.0
      %vm2418 = vcmp.ge.f32.partialorder %v2386, 0.0
      %vm2419 = vcmp.ge.f32.partialorder %v2387, 0.0
      %vm2420 = vcmp.ge.f32.partialorder %v2388, 0.0
      %vm2421 = vcmp.ge.f32.partialorder %v2389, 0.0
      %vm2422 = vcmp.ge.f32.partialorder %v2390, 0.0
      %vm2423 = vcmp.ge.f32.partialorder %v2391, 0.0
      %vm2424 = vcmp.ge.f32.partialorder %v2392, 0.0
      %vm2425 = vcmp.ge.f32.partialorder %v2393, 0.0
      %vm2426 = vcmp.ge.f32.partialorder %v2394, 0.0
      %vm2427 = vcmp.ge.f32.partialorder %v2395, 0.0
      %vm2428 = vcmp.ge.f32.partialorder %v2396, 0.0
      %vm2429 = vcmp.ge.f32.partialorder %v2397, 0.0
      %vm2430 = vcmp.ge.f32.partialorder %v2398, 0.0
      %vm2431 = vcmp.ge.f32.partialorder %v2399, 0.0
      %vm2432 = vcmp.ge.f32.partialorder %v2400, 0.0
      %vm2433 = vcmp.ge.f32.partialorder %v2401, 0.0
      %vm2434 = vcmp.ge.f32.partialorder %v2402, 0.0
      %vm2435 = vcmp.ge.f32.partialorder %v2403, 0.0
      %vm2436 = vcmp.ge.f32.partialorder %v2404, 0.0
      %vm2437 = vcmp.ge.f32.partialorder %v2405, 0.0
      %vm2438 = vcmp.ge.f32.partialorder %v2406, 0.0
      %vm2439 = vcmp.ge.f32.partialorder %v2407, 0.0
      %vm2440 = vcmp.ge.f32.partialorder %v2408, 0.0
      %vm2441 = vcmp.ge.f32.partialorder %v2409, 0.0
      %vm2442 = vcmp.ge.f32.partialorder %v2410, 0.0
      %v2443 = vmul.f32 %v2379, 0.01
      %v2444 = vmul.f32 %v2380, 0.01
      %v2445 = vmul.f32 %v2381, 0.01
      %v2446 = vmul.f32 %v2382, 0.01
      %v2447 = vmul.f32 %v2383, 0.01
      %v2448 = vmul.f32 %v2384, 0.01
      %v2449 = vmul.f32 %v2385, 0.01
      %v2450 = vmul.f32 %v2386, 0.01
      %v2451 = vmul.f32 %v2387, 0.01
      %v2452 = vmul.f32 %v2388, 0.01
      %v2453 = vmul.f32 %v2389, 0.01
      %v2454 = vmul.f32 %v2390, 0.01
      %v2455 = vmul.f32 %v2391, 0.01
      %v2456 = vmul.f32 %v2392, 0.01
      %v2457 = vmul.f32 %v2393, 0.01
      %v2458 = vmul.f32 %v2394, 0.01
      %v2459 = vmul.f32 %v2395, 0.01
      %v2460 = vmul.f32 %v2396, 0.01
      %v2461 = vmul.f32 %v2397, 0.01
      %v2462 = vmul.f32 %v2398, 0.01
      %v2463 = vmul.f32 %v2399, 0.01
      %v2464 = vmul.f32 %v2400, 0.01
      %v2465 = vmul.f32 %v2401, 0.01
      %v2466 = vmul.f32 %v2402, 0.01
      %v2467 = vmul.f32 %v2403, 0.01
      %v2468 = vmul.f32 %v2404, 0.01
      %v2469 = vmul.f32 %v2405, 0.01
      %v2470 = vmul.f32 %v2406, 0.01
      %v2471 = vmul.f32 %v2407, 0.01
      %v2472 = vmul.f32 %v2408, 0.01
      %v2473 = vmul.f32 %v2409, 0.01
      %v2474 = vmul.f32 %v2410, 0.01
      %v2475 = vsel %vm2411, %v2379, %v2443
      %v2476 = vsel %vm2412, %v2380, %v2444
      %v2477 = vsel %vm2413, %v2381, %v2445
      %v2478 = vsel %vm2414, %v2382, %v2446
      %v2479 = vsel %vm2415, %v2383, %v2447
      %v2480 = vsel %vm2416, %v2384, %v2448
      %v2481 = vsel %vm2417, %v2385, %v2449
      %v2482 = vsel %vm2418, %v2386, %v2450
      %v2483 = vsel %vm2419, %v2387, %v2451
      %v2484 = vsel %vm2420, %v2388, %v2452
      %v2485 = vsel %vm2421, %v2389, %v2453
      %v2486 = vsel %vm2422, %v2390, %v2454
      %v2487 = vsel %vm2423, %v2391, %v2455
      %v2488 = vsel %vm2424, %v2392, %v2456
      %v2489 = vsel %vm2425, %v2393, %v2457
      %v2490 = vsel %vm2426, %v2394, %v2458
      %v2491 = vsel %vm2427, %v2395, %v2459
      %v2492 = vsel %vm2428, %v2396, %v2460
      %v2493 = vsel %vm2429, %v2397, %v2461
      %v2494 = vsel %vm2430, %v2398, %v2462
      %v2495 = vsel %vm2431, %v2399, %v2463
      %v2496 = vsel %vm2432, %v2400, %v2464
      %v2497 = vsel %vm2433, %v2401, %v2465
      %v2498 = vsel %vm2434, %v2402, %v2466
      %v2499 = vsel %vm2435, %v2403, %v2467
      %v2500 = vsel %vm2436, %v2404, %v2468
      %v2501 = vsel %vm2437, %v2405, %v2469
      %v2502 = vsel %vm2438, %v2406, %v2470
      %v2503 = vsel %vm2439, %v2407, %v2471
      %v2504 = vsel %vm2440, %v2408, %v2472
      %v2505 = vsel %vm2441, %v2409, %v2473
      %v2506 = vsel %vm2442, %v2410, %v2474
      %2507 = vst.msk [vmem:[%s268] sm:$0xff] %vm199, %v2475
      %2508 = vst.msk [vmem:[%s268 + $0x8] sm:$0xff] %vm199, %v2476
      %2509 = vst.msk [vmem:[%s268 + $0x10] sm:$0xff] %vm199, %v2477
      %2510 = vst.msk [vmem:[%s268 + $0x18] sm:$0xff] %vm199, %v2478
      %2511 = vst.msk [vmem:[%s268 + $0x20] sm:$0xff] %vm199, %v2479
      %2512 = vst.msk [vmem:[%s268 + $0x28] sm:$0xff] %vm199, %v2480
      %2513 = vst.msk [vmem:[%s268 + $0x30] sm:$0xff] %vm199, %v2481
      %2514 = vst.msk [vmem:[%s268 + $0x38] sm:$0xff] %vm199, %v2482
      %2515 = vst.msk [vmem:[%s268 + $0x40] sm:$0xff] %vm199, %v2483
      %2516 = vst.msk [vmem:[%s268 + $0x48] sm:$0xff] %vm199, %v2484
      %2517 = vst.msk [vmem:[%s268 + $0x50] sm:$0xff] %vm199, %v2485
      %2518 = vst.msk [vmem:[%s268 + $0x58] sm:$0xff] %vm199, %v2486
      %2519 = vst.msk [vmem:[%s268 + $0x60] sm:$0xff] %vm199, %v2487
      %2520 = vst.msk [vmem:[%s268 + $0x68] sm:$0xff] %vm199, %v2488
      %2521 = vst.msk [vmem:[%s268 + $0x70] sm:$0xff] %vm199, %v2489
      %2522 = vst.msk [vmem:[%s268 + $0x78] sm:$0xff] %vm199, %v2490
      %2523 = vst.msk [vmem:[%s268 + $0x80] sm:$0xff] %vm199, %v2491
      %2524 = vst.msk [vmem:[%s268 + $0x88] sm:$0xff] %vm199, %v2492
      %2525 = vst.msk [vmem:[%s268 + $0x90] sm:$0xff] %vm199, %v2493
      %2526 = vst.msk [vmem:[%s268 + $0x98] sm:$0xff] %vm199, %v2494
      %2527 = vst.msk [vmem:[%s268 + $0xa0] sm:$0xff] %vm199, %v2495
      %2528 = vst.msk [vmem:[%s268 + $0xa8] sm:$0xff] %vm199, %v2496
      %2529 = vst.msk [vmem:[%s268 + $0xb0] sm:$0xff] %vm199, %v2497
      %2530 = vst.msk [vmem:[%s268 + $0xb8] sm:$0xff] %vm199, %v2498
      %2531 = vst.msk [vmem:[%s268 + $0xc0] sm:$0xff] %vm199, %v2499
      %2532 = vst.msk [vmem:[%s268 + $0xc8] sm:$0xff] %vm199, %v2500
      %2533 = vst.msk [vmem:[%s268 + $0xd0] sm:$0xff] %vm199, %v2501
      %2534 = vst.msk [vmem:[%s268 + $0xd8] sm:$0xff] %vm199, %v2502
      %2535 = vst.msk [vmem:[%s268 + $0xe0] sm:$0xff] %vm199, %v2503
      %2536 = vst.msk [vmem:[%s268 + $0xe8] sm:$0xff] %vm199, %v2504
      %2537 = vst.msk [vmem:[%s268 + $0xf0] sm:$0xff] %vm199, %v2505
      %2538 = vst.msk [vmem:[%s268 + $0xf8] sm:$0xff] %vm199, %v2506
      loop: start=0, step=1, limit=10
      $region37: #{deblurring_forward.1} parent=35 // loop_pre_header
        _
      $region38: #{deblurring_forward.1} parent=35 // loop_header
        %s2540 = sphi 0, %s2544
        %p2541 = scmp.ge.s32.totalorder %s2540, 10
      $region39: #{deblurring_forward.1} parent=35 // loop_header_branch
        %2543 = sbr.rel (%p2541) target = $region43
      $region40: #{deblurring_forward.1} parent=35 // loop_body
        %v2545 = vld [vmem:[#allocation2] sm:$0xff]
        %v2546 = vld [vmem:[#allocation2 + $0x8] sm:$0xff]
        %v2547 = vld [vmem:[#allocation2 + $0x10] sm:$0xff]
        %v2548 = vld [vmem:[#allocation2 + $0x18] sm:$0xff]
        %v2549 = vld [vmem:[#allocation2 + $0x20] sm:$0xff]
        %v2550 = vld [vmem:[#allocation2 + $0x28] sm:$0xff]
        %v2551 = vld [vmem:[#allocation2 + $0x30] sm:$0xff]
        %v2552 = vld [vmem:[#allocation2 + $0x38] sm:$0xff]
        %v2553 = vld [vmem:[#allocation2 + $0x40] sm:$0xff]
        %v2554 = vld [vmem:[#allocation2 + $0x48] sm:$0xff]
        %v2555 = vld [vmem:[#allocation2 + $0x50] sm:$0xff]
        %v2556 = vld [vmem:[#allocation2 + $0x58] sm:$0xff]
        %v2557 = vld [vmem:[#allocation2 + $0x60] sm:$0xff]
        %v2558 = vld [vmem:[#allocation2 + $0x68] sm:$0xff]
        %v2559 = vld [vmem:[#allocation2 + $0x70] sm:$0xff]
        %v2560 = vld [vmem:[#allocation2 + $0x78] sm:$0xff]
        %v2561 = vld [vmem:[#allocation2 + $0x80] sm:$0xff]
        %v2562 = vld [vmem:[#allocation2 + $0x88] sm:$0xff]
        %v2563 = vld [vmem:[#allocation2 + $0x90] sm:$0xff]
        %v2564 = vld [vmem:[#allocation2 + $0x98] sm:$0xff]
        %v2565 = vld [vmem:[#allocation2 + $0xa0] sm:$0xff]
        %v2566 = vld [vmem:[#allocation2 + $0xa8] sm:$0xff]
        %v2567 = vld [vmem:[#allocation2 + $0xb0] sm:$0xff]
        %v2568 = vld [vmem:[#allocation2 + $0xb8] sm:$0xff]
        %v2569 = vld [vmem:[#allocation2 + $0xc0] sm:$0xff]
        %v2570 = vld [vmem:[#allocation2 + $0xc8] sm:$0xff]
        %v2571 = vld [vmem:[#allocation2 + $0xd0] sm:$0xff]
        %v2572 = vld [vmem:[#allocation2 + $0xd8] sm:$0xff]
        %v2573 = vld [vmem:[#allocation2 + $0xe0] sm:$0xff]
        %v2574 = vld [vmem:[#allocation2 + $0xe8] sm:$0xff]
        %v2575 = vld [vmem:[#allocation2 + $0xf0] sm:$0xff]
        %v2576 = vld [vmem:[#allocation2 + $0xf8] sm:$0xff]
        %v2577 = vpack.c.bf16 %v2546, %v2545
        %v2578 = vpack.c.bf16 %v2548, %v2547
        %v2579 = vpack.c.bf16 %v2550, %v2549
        %v2580 = vpack.c.bf16 %v2552, %v2551
        %v2581 = vpack.c.bf16 %v2554, %v2553
        %v2582 = vpack.c.bf16 %v2556, %v2555
        %v2583 = vpack.c.bf16 %v2558, %v2557
        %v2584 = vpack.c.bf16 %v2560, %v2559
        %v2585 = vpack.c.bf16 %v2562, %v2561
        %v2586 = vpack.c.bf16 %v2564, %v2563
        %v2587 = vpack.c.bf16 %v2566, %v2565
        %v2588 = vpack.c.bf16 %v2568, %v2567
        %v2589 = vpack.c.bf16 %v2570, %v2569
        %v2590 = vpack.c.bf16 %v2572, %v2571
        %v2591 = vpack.c.bf16 %v2574, %v2573
        %v2592 = vpack.c.bf16 %v2576, %v2575
        %2593 = vst.msk [vmem:[#allocation3] sm:$0xff] %vm199, %v2577
        %2594 = vst.msk [vmem:[#allocation3 + $0x10] sm:$0xff] %vm199, %v2578
        %2595 = vst.msk [vmem:[#allocation3 + $0x20] sm:$0xff] %vm199, %v2579
        %2596 = vst.msk [vmem:[#allocation3 + $0x30] sm:$0xff] %vm199, %v2580
        %2597 = vst.msk [vmem:[#allocation3 + $0x40] sm:$0xff] %vm199, %v2581
        %2598 = vst.msk [vmem:[#allocation3 + $0x50] sm:$0xff] %vm199, %v2582
        %2599 = vst.msk [vmem:[#allocation3 + $0x60] sm:$0xff] %vm199, %v2583
        %2600 = vst.msk [vmem:[#allocation3 + $0x70] sm:$0xff] %vm199, %v2584
        %2601 = vst.msk [vmem:[#allocation3 + $0x80] sm:$0xff] %vm199, %v2585
        %2602 = vst.msk [vmem:[#allocation3 + $0x90] sm:$0xff] %vm199, %v2586
        %2603 = vst.msk [vmem:[#allocation3 + $0xa0] sm:$0xff] %vm199, %v2587
        %2604 = vst.msk [vmem:[#allocation3 + $0xb0] sm:$0xff] %vm199, %v2588
        %2605 = vst.msk [vmem:[#allocation3 + $0xc0] sm:$0xff] %vm199, %v2589
        %2606 = vst.msk [vmem:[#allocation3 + $0xd0] sm:$0xff] %vm199, %v2590
        %2607 = vst.msk [vmem:[#allocation3 + $0xe0] sm:$0xff] %vm199, %v2591
        %2608 = vst.msk [vmem:[#allocation3 + $0xf0] sm:$0xff] %vm199, %v2592
        %v2609 = vld [vmem:[%s268] sm:$0xff]
        %v2610 = vld [vmem:[%s268 + $0x8] sm:$0xff]
        %v2611 = vld [vmem:[%s268 + $0x10] sm:$0xff]
        %v2612 = vld [vmem:[%s268 + $0x18] sm:$0xff]
        %v2613 = vld [vmem:[%s268 + $0x20] sm:$0xff]
        %v2614 = vld [vmem:[%s268 + $0x28] sm:$0xff]
        %v2615 = vld [vmem:[%s268 + $0x30] sm:$0xff]
        %v2616 = vld [vmem:[%s268 + $0x38] sm:$0xff]
        %v2617 = vld [vmem:[%s268 + $0x40] sm:$0xff]
        %v2618 = vld [vmem:[%s268 + $0x48] sm:$0xff]
        %v2619 = vld [vmem:[%s268 + $0x50] sm:$0xff]
        %v2620 = vld [vmem:[%s268 + $0x58] sm:$0xff]
        %v2621 = vld [vmem:[%s268 + $0x60] sm:$0xff]
        %v2622 = vld [vmem:[%s268 + $0x68] sm:$0xff]
        %v2623 = vld [vmem:[%s268 + $0x70] sm:$0xff]
        %v2624 = vld [vmem:[%s268 + $0x78] sm:$0xff]
        %v2625 = vld [vmem:[%s268 + $0x80] sm:$0xff]
        %v2626 = vld [vmem:[%s268 + $0x88] sm:$0xff]
        %v2627 = vld [vmem:[%s268 + $0x90] sm:$0xff]
        %v2628 = vld [vmem:[%s268 + $0x98] sm:$0xff]
        %v2629 = vld [vmem:[%s268 + $0xa0] sm:$0xff]
        %v2630 = vld [vmem:[%s268 + $0xa8] sm:$0xff]
        %v2631 = vld [vmem:[%s268 + $0xb0] sm:$0xff]
        %v2632 = vld [vmem:[%s268 + $0xb8] sm:$0xff]
        %v2633 = vld [vmem:[%s268 + $0xc0] sm:$0xff]
        %v2634 = vld [vmem:[%s268 + $0xc8] sm:$0xff]
        %v2635 = vld [vmem:[%s268 + $0xd0] sm:$0xff]
        %v2636 = vld [vmem:[%s268 + $0xd8] sm:$0xff]
        %v2637 = vld [vmem:[%s268 + $0xe0] sm:$0xff]
        %v2638 = vld [vmem:[%s268 + $0xe8] sm:$0xff]
        %v2639 = vld [vmem:[%s268 + $0xf0] sm:$0xff]
        %v2640 = vld [vmem:[%s268 + $0xf8] sm:$0xff]
        %v2641 = vpack.c.bf16 %v2610, %v2609
        %v2642 = vpack.c.bf16 %v2612, %v2611
        %v2643 = vpack.c.bf16 %v2614, %v2613
        %v2644 = vpack.c.bf16 %v2616, %v2615
        %v2645 = vpack.c.bf16 %v2618, %v2617
        %v2646 = vpack.c.bf16 %v2620, %v2619
        %v2647 = vpack.c.bf16 %v2622, %v2621
        %v2648 = vpack.c.bf16 %v2624, %v2623
        %v2649 = vpack.c.bf16 %v2626, %v2625
        %v2650 = vpack.c.bf16 %v2628, %v2627
        %v2651 = vpack.c.bf16 %v2630, %v2629
        %v2652 = vpack.c.bf16 %v2632, %v2631
        %v2653 = vpack.c.bf16 %v2634, %v2633
        %v2654 = vpack.c.bf16 %v2636, %v2635
        %v2655 = vpack.c.bf16 %v2638, %v2637
        %v2656 = vpack.c.bf16 %v2640, %v2639
        %2673 = vrot.lane.b32.xlu0 %v2641, 64
        %v2674 = vpop.permute.xlu0 %2673
        %2675 = vrot.lane.b32.xlu0 %v2642, 64
        %v2676 = vpop.permute.xlu0 %2675
        %2677 = vrot.lane.b32.xlu0 %v2643, 64
        %v2678 = vpop.permute.xlu0 %2677
        %2679 = vrot.lane.b32.xlu0 %v2644, 64
        %v2680 = vpop.permute.xlu0 %2679
        %2681 = vrot.lane.b32.xlu0 %v2645, 64
        %v2682 = vpop.permute.xlu0 %2681
        %2683 = vrot.lane.b32.xlu0 %v2646, 64
        %v2684 = vpop.permute.xlu0 %2683
        %2685 = vrot.lane.b32.xlu0 %v2647, 64
        %v2686 = vpop.permute.xlu0 %2685
        %2687 = vrot.lane.b32.xlu0 %v2648, 64
        %v2688 = vpop.permute.xlu0 %2687
        %2689 = vrot.lane.b32.xlu0 %v2649, 64
        %v2690 = vpop.permute.xlu0 %2689
        %2691 = vrot.lane.b32.xlu0 %v2650, 64
        %v2692 = vpop.permute.xlu0 %2691
        %2693 = vrot.lane.b32.xlu0 %v2651, 64
        %v2694 = vpop.permute.xlu0 %2693
        %2695 = vrot.lane.b32.xlu0 %v2652, 64
        %v2696 = vpop.permute.xlu0 %2695
        %2697 = vrot.lane.b32.xlu0 %v2653, 64
        %v2698 = vpop.permute.xlu0 %2697
        %2699 = vrot.lane.b32.xlu0 %v2654, 64
        %v2700 = vpop.permute.xlu0 %2699
        %2701 = vrot.lane.b32.xlu0 %v2655, 64
        %v2702 = vpop.permute.xlu0 %2701
        %2703 = vrot.lane.b32.xlu0 %v2656, 64
        %v2704 = vpop.permute.xlu0 %2703
        %2721 = vst.msk [vmem:[#allocation3] sm:$0xff] %vm478, %v2674
        %2722 = vst.msk [vmem:[#allocation3 + $0x10] sm:$0xff] %vm478, %v2676
        %2723 = vst.msk [vmem:[#allocation3 + $0x20] sm:$0xff] %vm478, %v2678
        %2724 = vst.msk [vmem:[#allocation3 + $0x30] sm:$0xff] %vm478, %v2680
        %2725 = vst.msk [vmem:[#allocation3 + $0x40] sm:$0xff] %vm478, %v2682
        %2726 = vst.msk [vmem:[#allocation3 + $0x50] sm:$0xff] %vm478, %v2684
        %2727 = vst.msk [vmem:[#allocation3 + $0x60] sm:$0xff] %vm478, %v2686
        %2728 = vst.msk [vmem:[#allocation3 + $0x70] sm:$0xff] %vm478, %v2688
        %2729 = vst.msk [vmem:[#allocation3 + $0x80] sm:$0xff] %vm478, %v2690
        %2730 = vst.msk [vmem:[#allocation3 + $0x90] sm:$0xff] %vm478, %v2692
        %2731 = vst.msk [vmem:[#allocation3 + $0xa0] sm:$0xff] %vm478, %v2694
        %2732 = vst.msk [vmem:[#allocation3 + $0xb0] sm:$0xff] %vm478, %v2696
        %2733 = vst.msk [vmem:[#allocation3 + $0xc0] sm:$0xff] %vm478, %v2698
        %2734 = vst.msk [vmem:[#allocation3 + $0xd0] sm:$0xff] %vm478, %v2700
        %2735 = vst.msk [vmem:[#allocation3 + $0xe0] sm:$0xff] %vm478, %v2702
        %2736 = vst.msk [vmem:[#allocation3 + $0xf0] sm:$0xff] %vm478, %v2704
        %v2737 = vld [vmem:[%s495] sm:$0xff]
        %v2738 = vld [vmem:[%s495 + $0x8] sm:$0xff]
        %v2739 = vld [vmem:[%s495 + $0x10] sm:$0xff]
        %v2740 = vld [vmem:[%s495 + $0x18] sm:$0xff]
        %v2741 = vld [vmem:[%s495 + $0x20] sm:$0xff]
        %v2742 = vld [vmem:[%s495 + $0x28] sm:$0xff]
        %v2743 = vld [vmem:[%s495 + $0x30] sm:$0xff]
        %v2744 = vld [vmem:[%s495 + $0x38] sm:$0xff]
        %v2745 = vld [vmem:[%s495 + $0x40] sm:$0xff]
        %v2746 = vld [vmem:[%s495 + $0x48] sm:$0xff]
        %v2747 = vld [vmem:[%s495 + $0x50] sm:$0xff]
        %v2748 = vld [vmem:[%s495 + $0x58] sm:$0xff]
        %v2749 = vld [vmem:[%s495 + $0x60] sm:$0xff]
        %v2750 = vld [vmem:[%s495 + $0x68] sm:$0xff]
        %v2751 = vld [vmem:[%s495 + $0x70] sm:$0xff]
        %v2752 = vld [vmem:[%s495 + $0x78] sm:$0xff]
        %v2753 = vld [vmem:[%s495 + $0x80] sm:$0xff]
        %v2754 = vld [vmem:[%s495 + $0x88] sm:$0xff]
        %v2755 = vld [vmem:[%s495 + $0x90] sm:$0xff]
        %v2756 = vld [vmem:[%s495 + $0x98] sm:$0xff]
        %v2757 = vld [vmem:[%s495 + $0xa0] sm:$0xff]
        %v2758 = vld [vmem:[%s495 + $0xa8] sm:$0xff]
        %v2759 = vld [vmem:[%s495 + $0xb0] sm:$0xff]
        %v2760 = vld [vmem:[%s495 + $0xb8] sm:$0xff]
        %v2761 = vld [vmem:[%s495 + $0xc0] sm:$0xff]
        %v2762 = vld [vmem:[%s495 + $0xc8] sm:$0xff]
        %v2763 = vld [vmem:[%s495 + $0xd0] sm:$0xff]
        %v2764 = vld [vmem:[%s495 + $0xd8] sm:$0xff]
        %v2765 = vld [vmem:[%s495 + $0xe0] sm:$0xff]
        %v2766 = vld [vmem:[%s495 + $0xe8] sm:$0xff]
        %v2767 = vld [vmem:[%s495 + $0xf0] sm:$0xff]
        %v2768 = vld [vmem:[%s495 + $0xf8] sm:$0xff]
        %v2769 = vpack.c.bf16 %v2738, %v2737
        %v2770 = vpack.c.bf16 %v2740, %v2739
        %v2771 = vpack.c.bf16 %v2742, %v2741
        %v2772 = vpack.c.bf16 %v2744, %v2743
        %v2773 = vpack.c.bf16 %v2746, %v2745
        %v2774 = vpack.c.bf16 %v2748, %v2747
        %v2775 = vpack.c.bf16 %v2750, %v2749
        %v2776 = vpack.c.bf16 %v2752, %v2751
        %v2777 = vpack.c.bf16 %v2754, %v2753
        %v2778 = vpack.c.bf16 %v2756, %v2755
        %v2779 = vpack.c.bf16 %v2758, %v2757
        %v2780 = vpack.c.bf16 %v2760, %v2759
        %v2781 = vpack.c.bf16 %v2762, %v2761
        %v2782 = vpack.c.bf16 %v2764, %v2763
        %v2783 = vpack.c.bf16 %v2766, %v2765
        %v2784 = vpack.c.bf16 %v2768, %v2767
        %2785 = vst.msk [vmem:[#allocation3 + $0x8] sm:$0xff] %vm199, %v2769
        %2786 = vst.msk [vmem:[#allocation3 + $0x18] sm:$0xff] %vm199, %v2770
        %2787 = vst.msk [vmem:[#allocation3 + $0x28] sm:$0xff] %vm199, %v2771
        %2788 = vst.msk [vmem:[#allocation3 + $0x38] sm:$0xff] %vm199, %v2772
        %2789 = vst.msk [vmem:[#allocation3 + $0x48] sm:$0xff] %vm199, %v2773
        %2790 = vst.msk [vmem:[#allocation3 + $0x58] sm:$0xff] %vm199, %v2774
        %2791 = vst.msk [vmem:[#allocation3 + $0x68] sm:$0xff] %vm199, %v2775
        %2792 = vst.msk [vmem:[#allocation3 + $0x78] sm:$0xff] %vm199, %v2776
        %2793 = vst.msk [vmem:[#allocation3 + $0x88] sm:$0xff] %vm199, %v2777
        %2794 = vst.msk [vmem:[#allocation3 + $0x98] sm:$0xff] %vm199, %v2778
        %2795 = vst.msk [vmem:[#allocation3 + $0xa8] sm:$0xff] %vm199, %v2779
        %2796 = vst.msk [vmem:[#allocation3 + $0xb8] sm:$0xff] %vm199, %v2780
        %2797 = vst.msk [vmem:[#allocation3 + $0xc8] sm:$0xff] %vm199, %v2781
        %2798 = vst.msk [vmem:[#allocation3 + $0xd8] sm:$0xff] %vm199, %v2782
        %2799 = vst.msk [vmem:[#allocation3 + $0xe8] sm:$0xff] %vm199, %v2783
        %2800 = vst.msk [vmem:[#allocation3 + $0xf8] sm:$0xff] %vm199, %v2784
        %v2801 = vld [vmem:[#allocation3] sm:$0xff]
        %v2802 = vld [vmem:[#allocation3 + $0x8] sm:$0xff]
        %v2803 = vld [vmem:[#allocation3 + $0x10] sm:$0xff]
        %v2804 = vld [vmem:[#allocation3 + $0x18] sm:$0xff]
        %v2805 = vld [vmem:[#allocation3 + $0x20] sm:$0xff]
        %v2806 = vld [vmem:[#allocation3 + $0x28] sm:$0xff]
        %v2807 = vld [vmem:[#allocation3 + $0x30] sm:$0xff]
        %v2808 = vld [vmem:[#allocation3 + $0x38] sm:$0xff]
        %v2809 = vld [vmem:[#allocation3 + $0x40] sm:$0xff]
        %v2810 = vld [vmem:[#allocation3 + $0x48] sm:$0xff]
        %v2811 = vld [vmem:[#allocation3 + $0x50] sm:$0xff]
        %v2812 = vld [vmem:[#allocation3 + $0x58] sm:$0xff]
        %v2813 = vld [vmem:[#allocation3 + $0x60] sm:$0xff]
        %v2814 = vld [vmem:[#allocation3 + $0x68] sm:$0xff]
        %v2815 = vld [vmem:[#allocation3 + $0x70] sm:$0xff]
        %v2816 = vld [vmem:[#allocation3 + $0x78] sm:$0xff]
        %v2817 = vld [vmem:[#allocation3 + $0x80] sm:$0xff]
        %v2818 = vld [vmem:[#allocation3 + $0x88] sm:$0xff]
        %v2819 = vld [vmem:[#allocation3 + $0x90] sm:$0xff]
        %v2820 = vld [vmem:[#allocation3 + $0x98] sm:$0xff]
        %v2821 = vld [vmem:[#allocation3 + $0xa0] sm:$0xff]
        %v2822 = vld [vmem:[#allocation3 + $0xa8] sm:$0xff]
        %v2823 = vld [vmem:[#allocation3 + $0xb0] sm:$0xff]
        %v2824 = vld [vmem:[#allocation3 + $0xb8] sm:$0xff]
        %v2825 = vld [vmem:[#allocation3 + $0xc0] sm:$0xff]
        %v2826 = vld [vmem:[#allocation3 + $0xc8] sm:$0xff]
        %v2827 = vld [vmem:[#allocation3 + $0xd0] sm:$0xff]
        %v2828 = vld [vmem:[#allocation3 + $0xd8] sm:$0xff]
        %v2829 = vld [vmem:[#allocation3 + $0xe0] sm:$0xff]
        %v2830 = vld [vmem:[#allocation3 + $0xe8] sm:$0xff]
        %v2831 = vld [vmem:[#allocation3 + $0xf0] sm:$0xff]
        %v2832 = vld [vmem:[#allocation3 + $0xf8] sm:$0xff]
        %v2834 = vshrl.u32 %v2801, 16
        %v2836 = vrot.slane %v2834, 7
        %v2837 = vshll.u32 %v2801, 16
        %v2839 = vor.u32 %v2836, %v2837
        %v2841 = vshrl.u32 %v2802, 16
        %v2843 = vrot.slane %v2841, 7
        %v2844 = vshll.u32 %v2802, 16
        %v2846 = vor.u32 %v2843, %v2844
        %v2848 = vshrl.u32 %v2803, 16
        %v2850 = vrot.slane %v2848, 7
        %v2851 = vshll.u32 %v2803, 16
        %v2853 = vor.u32 %v2850, %v2851
        %v2855 = vshrl.u32 %v2804, 16
        %v2857 = vrot.slane %v2855, 7
        %v2858 = vshll.u32 %v2804, 16
        %v2860 = vor.u32 %v2857, %v2858
        %v2862 = vshrl.u32 %v2805, 16
        %v2864 = vrot.slane %v2862, 7
        %v2865 = vshll.u32 %v2805, 16
        %v2867 = vor.u32 %v2864, %v2865
        %v2869 = vshrl.u32 %v2806, 16
        %v2871 = vrot.slane %v2869, 7
        %v2872 = vshll.u32 %v2806, 16
        %v2874 = vor.u32 %v2871, %v2872
        %v2876 = vshrl.u32 %v2807, 16
        %v2878 = vrot.slane %v2876, 7
        %v2879 = vshll.u32 %v2807, 16
        %v2881 = vor.u32 %v2878, %v2879
        %v2883 = vshrl.u32 %v2808, 16
        %v2885 = vrot.slane %v2883, 7
        %v2886 = vshll.u32 %v2808, 16
        %v2888 = vor.u32 %v2885, %v2886
        %v2890 = vshrl.u32 %v2809, 16
        %v2892 = vrot.slane %v2890, 7
        %v2893 = vshll.u32 %v2809, 16
        %v2895 = vor.u32 %v2892, %v2893
        %v2897 = vshrl.u32 %v2810, 16
        %v2899 = vrot.slane %v2897, 7
        %v2900 = vshll.u32 %v2810, 16
        %v2902 = vor.u32 %v2899, %v2900
        %v2904 = vshrl.u32 %v2811, 16
        %v2906 = vrot.slane %v2904, 7
        %v2907 = vshll.u32 %v2811, 16
        %v2909 = vor.u32 %v2906, %v2907
        %v2911 = vshrl.u32 %v2812, 16
        %v2913 = vrot.slane %v2911, 7
        %v2914 = vshll.u32 %v2812, 16
        %v2916 = vor.u32 %v2913, %v2914
        %v2918 = vshrl.u32 %v2813, 16
        %v2920 = vrot.slane %v2918, 7
        %v2921 = vshll.u32 %v2813, 16
        %v2923 = vor.u32 %v2920, %v2921
        %v2925 = vshrl.u32 %v2814, 16
        %v2927 = vrot.slane %v2925, 7
        %v2928 = vshll.u32 %v2814, 16
        %v2930 = vor.u32 %v2927, %v2928
        %v2932 = vshrl.u32 %v2815, 16
        %v2934 = vrot.slane %v2932, 7
        %v2935 = vshll.u32 %v2815, 16
        %v2937 = vor.u32 %v2934, %v2935
        %v2939 = vshrl.u32 %v2816, 16
        %v2941 = vrot.slane %v2939, 7
        %v2942 = vshll.u32 %v2816, 16
        %v2944 = vor.u32 %v2941, %v2942
        %v2946 = vshrl.u32 %v2817, 16
        %v2948 = vrot.slane %v2946, 7
        %v2949 = vshll.u32 %v2817, 16
        %v2951 = vor.u32 %v2948, %v2949
        %v2953 = vshrl.u32 %v2818, 16
        %v2955 = vrot.slane %v2953, 7
        %v2956 = vshll.u32 %v2818, 16
        %v2958 = vor.u32 %v2955, %v2956
        %v2960 = vshrl.u32 %v2819, 16
        %v2962 = vrot.slane %v2960, 7
        %v2963 = vshll.u32 %v2819, 16
        %v2965 = vor.u32 %v2962, %v2963
        %v2967 = vshrl.u32 %v2820, 16
        %v2969 = vrot.slane %v2967, 7
        %v2970 = vshll.u32 %v2820, 16
        %v2972 = vor.u32 %v2969, %v2970
        %v2974 = vshrl.u32 %v2821, 16
        %v2976 = vrot.slane %v2974, 7
        %v2977 = vshll.u32 %v2821, 16
        %v2979 = vor.u32 %v2976, %v2977
        %v2981 = vshrl.u32 %v2822, 16
        %v2983 = vrot.slane %v2981, 7
        %v2984 = vshll.u32 %v2822, 16
        %v2986 = vor.u32 %v2983, %v2984
        %v2988 = vshrl.u32 %v2823, 16
        %v2990 = vrot.slane %v2988, 7
        %v2991 = vshll.u32 %v2823, 16
        %v2993 = vor.u32 %v2990, %v2991
        %v2995 = vshrl.u32 %v2824, 16
        %v2997 = vrot.slane %v2995, 7
        %v2998 = vshll.u32 %v2824, 16
        %v3000 = vor.u32 %v2997, %v2998
        %v3002 = vshrl.u32 %v2825, 16
        %v3004 = vrot.slane %v3002, 7
        %v3005 = vshll.u32 %v2825, 16
        %v3007 = vor.u32 %v3004, %v3005
        %v3009 = vshrl.u32 %v2826, 16
        %v3011 = vrot.slane %v3009, 7
        %v3012 = vshll.u32 %v2826, 16
        %v3014 = vor.u32 %v3011, %v3012
        %v3016 = vshrl.u32 %v2827, 16
        %v3018 = vrot.slane %v3016, 7
        %v3019 = vshll.u32 %v2827, 16
        %v3021 = vor.u32 %v3018, %v3019
        %v3023 = vshrl.u32 %v2828, 16
        %v3025 = vrot.slane %v3023, 7
        %v3026 = vshll.u32 %v2828, 16
        %v3028 = vor.u32 %v3025, %v3026
        %v3030 = vshrl.u32 %v2829, 16
        %v3032 = vrot.slane %v3030, 7
        %v3033 = vshll.u32 %v2829, 16
        %v3035 = vor.u32 %v3032, %v3033
        %v3037 = vshrl.u32 %v2830, 16
        %v3039 = vrot.slane %v3037, 7
        %v3040 = vshll.u32 %v2830, 16
        %v3042 = vor.u32 %v3039, %v3040
        %v3044 = vshrl.u32 %v2831, 16
        %v3046 = vrot.slane %v3044, 7
        %v3047 = vshll.u32 %v2831, 16
        %v3049 = vor.u32 %v3046, %v3047
        %v3051 = vshrl.u32 %v2832, 16
        %v3053 = vrot.slane %v3051, 7
        %v3054 = vshll.u32 %v2832, 16
        %v3056 = vor.u32 %v3053, %v3054
        %v3089 = vsel %vm850, 0, %v2839
        %v3090 = vsel %vm850, 0, %v2846
        %v3091 = vsel %vm850, 0, %v2853
        %v3092 = vsel %vm850, 0, %v2860
        %v3093 = vsel %vm850, 0, %v2867
        %v3094 = vsel %vm850, 0, %v2874
        %v3095 = vsel %vm850, 0, %v2881
        %v3096 = vsel %vm850, 0, %v2888
        %v3097 = vsel %vm850, 0, %v2895
        %v3098 = vsel %vm850, 0, %v2902
        %v3099 = vsel %vm850, 0, %v2909
        %v3100 = vsel %vm850, 0, %v2916
        %v3101 = vsel %vm850, 0, %v2923
        %v3102 = vsel %vm850, 0, %v2930
        %v3103 = vsel %vm850, 0, %v2937
        %v3104 = vsel %vm850, 0, %v2944
        %v3105 = vsel %vm850, 0, %v2951
        %v3106 = vsel %vm850, 0, %v2958
        %v3107 = vsel %vm850, 0, %v2965
        %v3108 = vsel %vm850, 0, %v2972
        %v3109 = vsel %vm850, 0, %v2979
        %v3110 = vsel %vm850, 0, %v2986
        %v3111 = vsel %vm850, 0, %v2993
        %v3112 = vsel %vm850, 0, %v3000
        %v3113 = vsel %vm850, 0, %v3007
        %v3114 = vsel %vm850, 0, %v3014
        %v3115 = vsel %vm850, 0, %v3021
        %v3116 = vsel %vm850, 0, %v3028
        %v3117 = vsel %vm850, 0, %v3035
        %v3118 = vsel %vm850, 0, %v3042
        %v3119 = vsel %vm850, 0, %v3049
        %v3120 = vsel %vm850, 0, %v3056
        %v3121 = vld [vmem:[%s2] sm:$0xf]
        %v3122 = vld [vmem:[%s2 + $0x4] sm:$0xf]
        %v3123 = vld [vmem:[%s2 + $0x8] sm:$0xf]
        %v3124 = vld [vmem:[%s2 + $0xc] sm:$0xf]
        %v3125 = vld [vmem:[%s2 + $0x10] sm:$0xf]
        %v3126 = vld [vmem:[%s2 + $0x14] sm:$0xf]
        %v3127 = vld [vmem:[%s2 + $0x18] sm:$0xf]
        %v3128 = vld [vmem:[%s2 + $0x1c] sm:$0xf]
        %v3129 = vld [vmem:[%s2 + $0x20] sm:$0xf]
        %v3130 = vld [vmem:[%s2 + $0x24] sm:$0xf]
        %v3131 = vld [vmem:[%s2 + $0x28] sm:$0xf]
        %v3132 = vld [vmem:[%s2 + $0x2c] sm:$0xf]
        %v3133 = vld [vmem:[%s2 + $0x30] sm:$0xf]
        %v3134 = vld [vmem:[%s2 + $0x34] sm:$0xf]
        %v3135 = vld [vmem:[%s2 + $0x38] sm:$0xf]
        %v3136 = vld [vmem:[%s2 + $0x3c] sm:$0xf]
        %v3137 = vld [vmem:[%s2 + $0x40] sm:$0xf]
        %v3138 = vld [vmem:[%s2 + $0x44] sm:$0xf]
        %v3139 = vld [vmem:[%s2 + $0x48] sm:$0xf]
        %v3140 = vld [vmem:[%s2 + $0x4c] sm:$0xf]
        %v3141 = vld [vmem:[%s2 + $0x50] sm:$0xf]
        %v3142 = vld [vmem:[%s2 + $0x54] sm:$0xf]
        %v3143 = vld [vmem:[%s2 + $0x58] sm:$0xf]
        %v3144 = vld [vmem:[%s2 + $0x5c] sm:$0xf]
        %v3169 = vunpack.c.l.b16 %v3121
        %v3170 = vunpack.c.l.b16 %v3122
        %v3171 = vunpack.c.l.b16 %v3123
        %v3172 = vunpack.c.l.b16 %v3124
        %v3173 = vunpack.c.l.b16 %v3125
        %v3174 = vunpack.c.l.b16 %v3126
        %v3175 = vunpack.c.l.b16 %v3127
        %v3176 = vunpack.c.l.b16 %v3128
        %v3177 = vunpack.c.l.b16 %v3129
        %v3178 = vunpack.c.l.b16 %v3130
        %v3179 = vunpack.c.l.b16 %v3131
        %v3180 = vunpack.c.l.b16 %v3132
        %v3181 = vunpack.c.l.b16 %v3133
        %v3182 = vunpack.c.l.b16 %v3134
        %v3183 = vunpack.c.l.b16 %v3135
        %v3184 = vunpack.c.l.b16 %v3136
        %v3185 = vunpack.c.l.b16 %v3137
        %v3186 = vunpack.c.l.b16 %v3138
        %v3187 = vunpack.c.l.b16 %v3139
        %v3188 = vunpack.c.l.b16 %v3140
        %v3189 = vunpack.c.l.b16 %v3141
        %v3190 = vunpack.c.l.b16 %v3142
        %v3191 = vunpack.c.l.b16 %v3143
        %v3192 = vunpack.c.l.b16 %v3144
        %v3193 = vpack.c.b16 %v3170, %v3169
        %v3194 = vpack.c.b16 %v3172, %v3171
        %v3195 = vpack.c.b16 %v3174, %v3173
        %v3196 = vpack.c.b16 %v3176, %v3175
        %v3197 = vpack.c.b16 %v3178, %v3177
        %v3198 = vpack.c.b16 %v3180, %v3179
        %v3199 = vpack.c.b16 %v3182, %v3181
        %v3200 = vpack.c.b16 %v3184, %v3183
        %v3201 = vpack.c.b16 %v3186, %v3185
        %v3202 = vpack.c.b16 %v3188, %v3187
        %v3203 = vpack.c.b16 %v3190, %v3189
        %v3204 = vpack.c.b16 %v3192, %v3191
        %v3218 = vsel %vm199, %v3090, 0
        %v3221 = vsel %vm199, %v3092, 0
        %v3224 = vsel %vm199, %v3094, 0
        %v3227 = vsel %vm199, %v3096, 0
        %v3230 = vsel %vm199, %v3098, 0
        %v3233 = vsel %vm199, %v3100, 0
        %v3236 = vsel %vm199, %v3102, 0
        %v3239 = vsel %vm199, %v3104, 0
        %v3242 = vsel %vm199, %v3106, 0
        %v3245 = vsel %vm199, %v3108, 0
        %v3248 = vsel %vm199, %v3110, 0
        %v3251 = vsel %vm199, %v3112, 0
        %v3254 = vsel %vm199, %v3114, 0
        %v3257 = vsel %vm199, %v3116, 0
        %v3260 = vsel %vm199, %v3118, 0
        %v3263 = vsel %vm199, %v3120, 0
        %3265 = vmatprep.subr.bf16.mxu0 0
        %3266 = vmatpush1.bf16.msra.mxu0 %v3193
        %3267 = vmatprep.subr.bf16.mxu0 0
        %3268 = vmatpush1.bf16.msra.mxu0 %v3194
        %3269 = vmatprep.subr.bf16.mxu0 0
        %3270 = vmatpush1.bf16.msra.mxu0 %v3195
        %3271 = vmatprep.subr.bf16.mxu0 0
        %3272 = vmatpush1.bf16.msra.mxu0 %v3196
        %3273 = vmatprep.subr.bf16.mxu0 0
        %3274 = vmatpush1.bf16.msra.mxu0 %v3197
        %3275 = vmatprep.subr.bf16.mxu0 0
        %3276 = vmatpush1.bf16.msra.mxu0 %v3198
        %3277 = vmatprep.subr.bf16.mxu0 0
        %3278 = vmatpush1.bf16.msra.mxu0 %v3199
        %3279 = vmatprep.subr.bf16.mxu0 0
        %3280 = vmatpush1.bf16.msra.mxu0 %v3200
        %3281 = vmatprep.subr.bf16.mxu0 0
        %3282 = vmatpush1.bf16.msra.mxu0 %v3201
        %3283 = vmatprep.subr.bf16.mxu0 0
        %3284 = vmatpush1.bf16.msra.mxu0 %v3202
        %3285 = vmatprep.subr.bf16.mxu0 0
        %3286 = vmatpush1.bf16.msra.mxu0 %v3203
        %3287 = vmatprep.subr.bf16.mxu0 0
        %3288 = vmatpush1.bf16.msra.mxu0 %v3204
        %3289 = vmatprep.subr.bf16.mxu0 0
        %3290 = vmatpush1.bf16.msra.mxu0 0
        %3291 = vmatprep.subr.bf16.mxu0 0
        %3292 = vmatpush1.bf16.msra.mxu0 0
        %3293 = vmatprep.subr.bf16.mxu0 0
        %3294 = vmatpush1.bf16.msra.mxu0 0
        %3295 = vmatprep.subr.bf16.mxu0 0
        %3296 = vmatpush1.bf16.msra.mxu0 0
        %3297 = vmatprep.mubr.bf16.mxu0 %v3218
        %3298 = vmatmul.mubr.bf16.gmra.mrb[0].mxu0 %v3089
        %v3299 = vpop.f32.mrb[0].mxu0
        %v3300 = vadd.f32 0.0, %v3299
        %v3301 = vpop.f32.mrb[0].mxu0
        %v3302 = vpop.f32.mrb[0].mxu0
        %v3303 = vadd.f32 0.0, %v3302
        %v3304 = vpop.f32.mrb[0].mxu0
        %3305 = vmatprep.mubr.bf16.mxu0 %v3221
        %3306 = vmatmul.mubr.bf16.gmra.mrb[0].mxu0 %v3091
        %v3307 = vpop.f32.mrb[0].mxu0
        %v3308 = vadd.f32 0.0, %v3307
        %v3309 = vpop.f32.mrb[0].mxu0
        %v3310 = vpop.f32.mrb[0].mxu0
        %v3311 = vadd.f32 0.0, %v3310
        %v3312 = vpop.f32.mrb[0].mxu0
        %3313 = vmatprep.mubr.bf16.mxu0 %v3224
        %3314 = vmatmul.mubr.bf16.gmra.mrb[0].mxu0 %v3093
        %v3315 = vpop.f32.mrb[0].mxu0
        %v3316 = vadd.f32 0.0, %v3315
        %v3317 = vpop.f32.mrb[0].mxu0
        %v3318 = vpop.f32.mrb[0].mxu0
        %v3319 = vadd.f32 0.0, %v3318
        %v3320 = vpop.f32.mrb[0].mxu0
        %3321 = vmatprep.mubr.bf16.mxu0 %v3227
        %3322 = vmatmul.mubr.bf16.gmra.mrb[0].mxu0 %v3095
        %v3323 = vpop.f32.mrb[0].mxu0
        %v3324 = vadd.f32 0.0, %v3323
        %v3325 = vpop.f32.mrb[0].mxu0
        %v3326 = vpop.f32.mrb[0].mxu0
        %v3327 = vadd.f32 0.0, %v3326
        %v3328 = vpop.f32.mrb[0].mxu0
        %3329 = vmatprep.mubr.bf16.mxu0 %v3230
        %3330 = vmatmul.mubr.bf16.gmra.mrb[0].mxu0 %v3097
        %v3331 = vpop.f32.mrb[0].mxu0
        %v3332 = vadd.f32 0.0, %v3331
        %v3333 = vpop.f32.mrb[0].mxu0
        %v3334 = vpop.f32.mrb[0].mxu0
        %v3335 = vadd.f32 0.0, %v3334
        %v3336 = vpop.f32.mrb[0].mxu0
        %3337 = vmatprep.mubr.bf16.mxu0 %v3233
        %3338 = vmatmul.mubr.bf16.gmra.mrb[0].mxu0 %v3099
        %v3339 = vpop.f32.mrb[0].mxu0
        %v3340 = vadd.f32 0.0, %v3339
        %v3341 = vpop.f32.mrb[0].mxu0
        %v3342 = vpop.f32.mrb[0].mxu0
        %v3343 = vadd.f32 0.0, %v3342
        %v3344 = vpop.f32.mrb[0].mxu0
        %3345 = vmatprep.mubr.bf16.mxu0 %v3236
        %3346 = vmatmul.mubr.bf16.gmra.mrb[0].mxu0 %v3101
        %v3347 = vpop.f32.mrb[0].mxu0
        %v3348 = vadd.f32 0.0, %v3347
        %v3349 = vpop.f32.mrb[0].mxu0
        %v3350 = vpop.f32.mrb[0].mxu0
        %v3351 = vadd.f32 0.0, %v3350
        %v3352 = vpop.f32.mrb[0].mxu0
        %3353 = vmatprep.mubr.bf16.mxu0 %v3239
        %3354 = vmatmul.mubr.bf16.gmra.mrb[0].mxu0 %v3103
        %v3355 = vpop.f32.mrb[0].mxu0
        %v3356 = vadd.f32 0.0, %v3355
        %v3357 = vpop.f32.mrb[0].mxu0
        %v3358 = vpop.f32.mrb[0].mxu0
        %v3359 = vadd.f32 0.0, %v3358
        %v3360 = vpop.f32.mrb[0].mxu0
        %3361 = vmatprep.mubr.bf16.mxu0 %v3242
        %3362 = vmatmul.mubr.bf16.gmra.mrb[0].mxu0 %v3105
        %v3363 = vpop.f32.mrb[0].mxu0
        %v3364 = vadd.f32 0.0, %v3363
        %v3365 = vpop.f32.mrb[0].mxu0
        %v3366 = vpop.f32.mrb[0].mxu0
        %v3367 = vadd.f32 0.0, %v3366
        %v3368 = vpop.f32.mrb[0].mxu0
        %3369 = vmatprep.mubr.bf16.mxu0 %v3245
        %3370 = vmatmul.mubr.bf16.gmra.mrb[0].mxu0 %v3107
        %v3371 = vpop.f32.mrb[0].mxu0
        %v3372 = vadd.f32 0.0, %v3371
        %v3373 = vpop.f32.mrb[0].mxu0
        %v3374 = vpop.f32.mrb[0].mxu0
        %v3375 = vadd.f32 0.0, %v3374
        %v3376 = vpop.f32.mrb[0].mxu0
        %3377 = vmatprep.mubr.bf16.mxu0 %v3248
        %3378 = vmatmul.mubr.bf16.gmra.mrb[0].mxu0 %v3109
        %v3379 = vpop.f32.mrb[0].mxu0
        %v3380 = vadd.f32 0.0, %v3379
        %v3381 = vpop.f32.mrb[0].mxu0
        %v3382 = vpop.f32.mrb[0].mxu0
        %v3383 = vadd.f32 0.0, %v3382
        %v3384 = vpop.f32.mrb[0].mxu0
        %3385 = vmatprep.mubr.bf16.mxu0 %v3251
        %3386 = vmatmul.mubr.bf16.gmra.mrb[0].mxu0 %v3111
        %v3387 = vpop.f32.mrb[0].mxu0
        %v3388 = vadd.f32 0.0, %v3387
        %v3389 = vpop.f32.mrb[0].mxu0
        %v3390 = vpop.f32.mrb[0].mxu0
        %v3391 = vadd.f32 0.0, %v3390
        %v3392 = vpop.f32.mrb[0].mxu0
        %3393 = vmatprep.mubr.bf16.mxu0 %v3254
        %3394 = vmatmul.mubr.bf16.gmra.mrb[0].mxu0 %v3113
        %v3395 = vpop.f32.mrb[0].mxu0
        %v3396 = vadd.f32 0.0, %v3395
        %v3397 = vpop.f32.mrb[0].mxu0
        %v3398 = vpop.f32.mrb[0].mxu0
        %v3399 = vadd.f32 0.0, %v3398
        %v3400 = vpop.f32.mrb[0].mxu0
        %3401 = vmatprep.mubr.bf16.mxu0 %v3257
        %3402 = vmatmul.mubr.bf16.gmra.mrb[0].mxu0 %v3115
        %v3403 = vpop.f32.mrb[0].mxu0
        %v3404 = vadd.f32 0.0, %v3403
        %v3405 = vpop.f32.mrb[0].mxu0
        %v3406 = vpop.f32.mrb[0].mxu0
        %v3407 = vadd.f32 0.0, %v3406
        %v3408 = vpop.f32.mrb[0].mxu0
        %3409 = vmatprep.mubr.bf16.mxu0 %v3260
        %3410 = vmatmul.mubr.bf16.gmra.mrb[0].mxu0 %v3117
        %v3411 = vpop.f32.mrb[0].mxu0
        %v3412 = vadd.f32 0.0, %v3411
        %v3413 = vpop.f32.mrb[0].mxu0
        %v3414 = vpop.f32.mrb[0].mxu0
        %v3415 = vadd.f32 0.0, %v3414
        %v3416 = vpop.f32.mrb[0].mxu0
        %3417 = vmatprep.mubr.bf16.mxu0 %v3263
        %3418 = vmatmul.mubr.bf16.gmra.mrb[0].mxu0 %v3119
        %v3419 = vpop.f32.mrb[0].mxu0
        %v3420 = vadd.f32 0.0, %v3419
        %v3421 = vpop.f32.mrb[0].mxu0
        %v3422 = vpop.f32.mrb[0].mxu0
        %v3423 = vadd.f32 0.0, %v3422
        %v3424 = vpop.f32.mrb[0].mxu0
        %3425 = vdwg.mxu0
        %3426 = vst.msk [vmem:[#allocation4] sm:$0xff] %vm199, %v3300
        %3427 = vst.msk [vmem:[#allocation4 + $0x8] sm:$0xff] %vm199, %v3303
        %3428 = vst.msk [vmem:[#allocation4 + $0x10] sm:$0xff] %vm199, %v3308
        %3429 = vst.msk [vmem:[#allocation4 + $0x18] sm:$0xff] %vm199, %v3311
        %3430 = vst.msk [vmem:[#allocation4 + $0x20] sm:$0xff] %vm199, %v3316
        %3431 = vst.msk [vmem:[#allocation4 + $0x28] sm:$0xff] %vm199, %v3319
        %3432 = vst.msk [vmem:[#allocation4 + $0x30] sm:$0xff] %vm199, %v3324
        %3433 = vst.msk [vmem:[#allocation4 + $0x38] sm:$0xff] %vm199, %v3327
        %3434 = vst.msk [vmem:[#allocation4 + $0x40] sm:$0xff] %vm199, %v3332
        %3435 = vst.msk [vmem:[#allocation4 + $0x48] sm:$0xff] %vm199, %v3335
        %3436 = vst.msk [vmem:[#allocation4 + $0x50] sm:$0xff] %vm199, %v3340
        %3437 = vst.msk [vmem:[#allocation4 + $0x58] sm:$0xff] %vm199, %v3343
        %3438 = vst.msk [vmem:[#allocation4 + $0x60] sm:$0xff] %vm199, %v3348
        %3439 = vst.msk [vmem:[#allocation4 + $0x68] sm:$0xff] %vm199, %v3351
        %3440 = vst.msk [vmem:[#allocation4 + $0x70] sm:$0xff] %vm199, %v3356
        %3441 = vst.msk [vmem:[#allocation4 + $0x78] sm:$0xff] %vm199, %v3359
        %3442 = vst.msk [vmem:[#allocation4 + $0x80] sm:$0xff] %vm199, %v3364
        %3443 = vst.msk [vmem:[#allocation4 + $0x88] sm:$0xff] %vm199, %v3367
        %3444 = vst.msk [vmem:[#allocation4 + $0x90] sm:$0xff] %vm199, %v3372
        %3445 = vst.msk [vmem:[#allocation4 + $0x98] sm:$0xff] %vm199, %v3375
        %3446 = vst.msk [vmem:[#allocation4 + $0xa0] sm:$0xff] %vm199, %v3380
        %3447 = vst.msk [vmem:[#allocation4 + $0xa8] sm:$0xff] %vm199, %v3383
        %3448 = vst.msk [vmem:[#allocation4 + $0xb0] sm:$0xff] %vm199, %v3388
        %3449 = vst.msk [vmem:[#allocation4 + $0xb8] sm:$0xff] %vm199, %v3391
        %3450 = vst.msk [vmem:[#allocation4 + $0xc0] sm:$0xff] %vm199, %v3396
        %3451 = vst.msk [vmem:[#allocation4 + $0xc8] sm:$0xff] %vm199, %v3399
        %3452 = vst.msk [vmem:[#allocation4 + $0xd0] sm:$0xff] %vm199, %v3404
        %3453 = vst.msk [vmem:[#allocation4 + $0xd8] sm:$0xff] %vm199, %v3407
        %3454 = vst.msk [vmem:[#allocation4 + $0xe0] sm:$0xff] %vm199, %v3412
        %3455 = vst.msk [vmem:[#allocation4 + $0xe8] sm:$0xff] %vm199, %v3415
        %3456 = vst.msk [vmem:[#allocation4 + $0xf0] sm:$0xff] %vm199, %v3420
        %3457 = vst.msk [vmem:[#allocation4 + $0xf8] sm:$0xff] %vm199, %v3423
        %v3458 = vld [vmem:[#allocation3] sm:$0xff]
        %v3459 = vld [vmem:[#allocation3 + $0x8] sm:$0xff]
        %v3460 = vld [vmem:[#allocation3 + $0x10] sm:$0xff]
        %v3461 = vld [vmem:[#allocation3 + $0x18] sm:$0xff]
        %v3462 = vld [vmem:[#allocation3 + $0x20] sm:$0xff]
        %v3463 = vld [vmem:[#allocation3 + $0x28] sm:$0xff]
        %v3464 = vld [vmem:[#allocation3 + $0x30] sm:$0xff]
        %v3465 = vld [vmem:[#allocation3 + $0x38] sm:$0xff]
        %v3466 = vld [vmem:[#allocation3 + $0x40] sm:$0xff]
        %v3467 = vld [vmem:[#allocation3 + $0x48] sm:$0xff]
        %v3468 = vld [vmem:[#allocation3 + $0x50] sm:$0xff]
        %v3469 = vld [vmem:[#allocation3 + $0x58] sm:$0xff]
        %v3470 = vld [vmem:[#allocation3 + $0x60] sm:$0xff]
        %v3471 = vld [vmem:[#allocation3 + $0x68] sm:$0xff]
        %v3472 = vld [vmem:[#allocation3 + $0x70] sm:$0xff]
        %v3473 = vld [vmem:[#allocation3 + $0x78] sm:$0xff]
        %v3474 = vld [vmem:[#allocation3 + $0x80] sm:$0xff]
        %v3475 = vld [vmem:[#allocation3 + $0x88] sm:$0xff]
        %v3476 = vld [vmem:[#allocation3 + $0x90] sm:$0xff]
        %v3477 = vld [vmem:[#allocation3 + $0x98] sm:$0xff]
        %v3478 = vld [vmem:[#allocation3 + $0xa0] sm:$0xff]
        %v3479 = vld [vmem:[#allocation3 + $0xa8] sm:$0xff]
        %v3480 = vld [vmem:[#allocation3 + $0xb0] sm:$0xff]
        %v3481 = vld [vmem:[#allocation3 + $0xb8] sm:$0xff]
        %v3482 = vld [vmem:[#allocation3 + $0xc0] sm:$0xff]
        %v3483 = vld [vmem:[#allocation3 + $0xc8] sm:$0xff]
        %v3484 = vld [vmem:[#allocation3 + $0xd0] sm:$0xff]
        %v3485 = vld [vmem:[#allocation3 + $0xd8] sm:$0xff]
        %v3486 = vld [vmem:[#allocation3 + $0xe0] sm:$0xff]
        %v3487 = vld [vmem:[#allocation3 + $0xe8] sm:$0xff]
        %v3488 = vld [vmem:[#allocation3 + $0xf0] sm:$0xff]
        %v3489 = vld [vmem:[#allocation3 + $0xf8] sm:$0xff]
        %s3490 = scalar_lea.vmem %s2, 96
        %v3491 = vld [vmem:[%s3490] sm:$0xf]
        %v3492 = vld [vmem:[%s3490 + $0x4] sm:$0xf]
        %v3493 = vld [vmem:[%s3490 + $0x8] sm:$0xf]
        %v3494 = vld [vmem:[%s3490 + $0xc] sm:$0xf]
        %v3495 = vld [vmem:[%s3490 + $0x10] sm:$0xf]
        %v3496 = vld [vmem:[%s3490 + $0x14] sm:$0xf]
        %v3497 = vld [vmem:[%s3490 + $0x18] sm:$0xf]
        %v3498 = vld [vmem:[%s3490 + $0x1c] sm:$0xf]
        %v3499 = vld [vmem:[%s3490 + $0x20] sm:$0xf]
        %v3500 = vld [vmem:[%s3490 + $0x24] sm:$0xf]
        %v3501 = vld [vmem:[%s3490 + $0x28] sm:$0xf]
        %v3502 = vld [vmem:[%s3490 + $0x2c] sm:$0xf]
        %v3503 = vld [vmem:[%s3490 + $0x30] sm:$0xf]
        %v3504 = vld [vmem:[%s3490 + $0x34] sm:$0xf]
        %v3505 = vld [vmem:[%s3490 + $0x38] sm:$0xf]
        %v3506 = vld [vmem:[%s3490 + $0x3c] sm:$0xf]
        %v3507 = vld [vmem:[%s3490 + $0x40] sm:$0xf]
        %v3508 = vld [vmem:[%s3490 + $0x44] sm:$0xf]
        %v3509 = vld [vmem:[%s3490 + $0x48] sm:$0xf]
        %v3510 = vld [vmem:[%s3490 + $0x4c] sm:$0xf]
        %v3511 = vld [vmem:[%s3490 + $0x50] sm:$0xf]
        %v3512 = vld [vmem:[%s3490 + $0x54] sm:$0xf]
        %v3513 = vld [vmem:[%s3490 + $0x58] sm:$0xf]
        %v3514 = vld [vmem:[%s3490 + $0x5c] sm:$0xf]
        %v3539 = vunpack.c.l.b16 %v3491
        %v3540 = vunpack.c.l.b16 %v3492
        %v3541 = vunpack.c.l.b16 %v3493
        %v3542 = vunpack.c.l.b16 %v3494
        %v3543 = vunpack.c.l.b16 %v3495
        %v3544 = vunpack.c.l.b16 %v3496
        %v3545 = vunpack.c.l.b16 %v3497
        %v3546 = vunpack.c.l.b16 %v3498
        %v3547 = vunpack.c.l.b16 %v3499
        %v3548 = vunpack.c.l.b16 %v3500
        %v3549 = vunpack.c.l.b16 %v3501
        %v3550 = vunpack.c.l.b16 %v3502
        %v3551 = vunpack.c.l.b16 %v3503
        %v3552 = vunpack.c.l.b16 %v3504
        %v3553 = vunpack.c.l.b16 %v3505
        %v3554 = vunpack.c.l.b16 %v3506
        %v3555 = vunpack.c.l.b16 %v3507
        %v3556 = vunpack.c.l.b16 %v3508
        %v3557 = vunpack.c.l.b16 %v3509
        %v3558 = vunpack.c.l.b16 %v3510
        %v3559 = vunpack.c.l.b16 %v3511
        %v3560 = vunpack.c.l.b16 %v3512
        %v3561 = vunpack.c.l.b16 %v3513
        %v3562 = vunpack.c.l.b16 %v3514
        %v3563 = vpack.c.b16 %v3540, %v3539
        %v3564 = vpack.c.b16 %v3542, %v3541
        %v3565 = vpack.c.b16 %v3544, %v3543
        %v3566 = vpack.c.b16 %v3546, %v3545
        %v3567 = vpack.c.b16 %v3548, %v3547
        %v3568 = vpack.c.b16 %v3550, %v3549
        %v3569 = vpack.c.b16 %v3552, %v3551
        %v3570 = vpack.c.b16 %v3554, %v3553
        %v3571 = vpack.c.b16 %v3556, %v3555
        %v3572 = vpack.c.b16 %v3558, %v3557
        %v3573 = vpack.c.b16 %v3560, %v3559
        %v3574 = vpack.c.b16 %v3562, %v3561
        %v3588 = vsel %vm199, %v3459, 0
        %v3591 = vsel %vm199, %v3461, 0
        %v3594 = vsel %vm199, %v3463, 0
        %v3597 = vsel %vm199, %v3465, 0
        %v3600 = vsel %vm199, %v3467, 0
        %v3603 = vsel %vm199, %v3469, 0
        %v3606 = vsel %vm199, %v3471, 0
        %v3609 = vsel %vm199, %v3473, 0
        %v3612 = vsel %vm199, %v3475, 0
        %v3615 = vsel %vm199, %v3477, 0
        %v3618 = vsel %vm199, %v3479, 0
        %v3621 = vsel %vm199, %v3481, 0
        %v3624 = vsel %vm199, %v3483, 0
        %v3627 = vsel %vm199, %v3485, 0
        %v3630 = vsel %vm199, %v3487, 0
        %v3633 = vsel %vm199, %v3489, 0
        %3635 = vmatprep.subr.bf16.mxu0 0
        %3636 = vmatpush1.bf16.msra.mxu0 %v3563
        %3637 = vmatprep.subr.bf16.mxu0 0
        %3638 = vmatpush1.bf16.msra.mxu0 %v3564
        %3639 = vmatprep.subr.bf16.mxu0 0
        %3640 = vmatpush1.bf16.msra.mxu0 %v3565
        %3641 = vmatprep.subr.bf16.mxu0 0
        %3642 = vmatpush1.bf16.msra.mxu0 %v3566
        %3643 = vmatprep.subr.bf16.mxu0 0
        %3644 = vmatpush1.bf16.msra.mxu0 %v3567
        %3645 = vmatprep.subr.bf16.mxu0 0
        %3646 = vmatpush1.bf16.msra.mxu0 %v3568
        %3647 = vmatprep.subr.bf16.mxu0 0
        %3648 = vmatpush1.bf16.msra.mxu0 %v3569
        %3649 = vmatprep.subr.bf16.mxu0 0
        %3650 = vmatpush1.bf16.msra.mxu0 %v3570
        %3651 = vmatprep.subr.bf16.mxu0 0
        %3652 = vmatpush1.bf16.msra.mxu0 %v3571
        %3653 = vmatprep.subr.bf16.mxu0 0
        %3654 = vmatpush1.bf16.msra.mxu0 %v3572
        %3655 = vmatprep.subr.bf16.mxu0 0
        %3656 = vmatpush1.bf16.msra.mxu0 %v3573
        %3657 = vmatprep.subr.bf16.mxu0 0
        %3658 = vmatpush1.bf16.msra.mxu0 %v3574
        %3659 = vmatprep.subr.bf16.mxu0 0
        %3660 = vmatpush1.bf16.msra.mxu0 0
        %3661 = vmatprep.subr.bf16.mxu0 0
        %3662 = vmatpush1.bf16.msra.mxu0 0
        %3663 = vmatprep.subr.bf16.mxu0 0
        %3664 = vmatpush1.bf16.msra.mxu0 0
        %3665 = vmatprep.subr.bf16.mxu0 0
        %3666 = vmatpush1.bf16.msra.mxu0 0
        %3667 = vmatprep.mubr.bf16.mxu0 %v3588
        %3668 = vmatmul.mubr.bf16.gmra.mrb[0].mxu0 %v3458
        %v3669 = vpop.f32.mrb[0].mxu0
        %v3670 = vadd.f32 0.0, %v3669
        %v3671 = vpop.f32.mrb[0].mxu0
        %v3672 = vpop.f32.mrb[0].mxu0
        %v3673 = vadd.f32 0.0, %v3672
        %v3674 = vpop.f32.mrb[0].mxu0
        %3675 = vmatprep.mubr.bf16.mxu0 %v3591
        %3676 = vmatmul.mubr.bf16.gmra.mrb[0].mxu0 %v3460
        %v3677 = vpop.f32.mrb[0].mxu0
        %v3678 = vadd.f32 0.0, %v3677
        %v3679 = vpop.f32.mrb[0].mxu0
        %v3680 = vpop.f32.mrb[0].mxu0
        %v3681 = vadd.f32 0.0, %v3680
        %v3682 = vpop.f32.mrb[0].mxu0
        %3683 = vmatprep.mubr.bf16.mxu0 %v3594
        %3684 = vmatmul.mubr.bf16.gmra.mrb[0].mxu0 %v3462
        %v3685 = vpop.f32.mrb[0].mxu0
        %v3686 = vadd.f32 0.0, %v3685
        %v3687 = vpop.f32.mrb[0].mxu0
        %v3688 = vpop.f32.mrb[0].mxu0
        %v3689 = vadd.f32 0.0, %v3688
        %v3690 = vpop.f32.mrb[0].mxu0
        %3691 = vmatprep.mubr.bf16.mxu0 %v3597
        %3692 = vmatmul.mubr.bf16.gmra.mrb[0].mxu0 %v3464
        %v3693 = vpop.f32.mrb[0].mxu0
        %v3694 = vadd.f32 0.0, %v3693
        %v3695 = vpop.f32.mrb[0].mxu0
        %v3696 = vpop.f32.mrb[0].mxu0
        %v3697 = vadd.f32 0.0, %v3696
        %v3698 = vpop.f32.mrb[0].mxu0
        %3699 = vmatprep.mubr.bf16.mxu0 %v3600
        %3700 = vmatmul.mubr.bf16.gmra.mrb[0].mxu0 %v3466
        %v3701 = vpop.f32.mrb[0].mxu0
        %v3702 = vadd.f32 0.0, %v3701
        %v3703 = vpop.f32.mrb[0].mxu0
        %v3704 = vpop.f32.mrb[0].mxu0
        %v3705 = vadd.f32 0.0, %v3704
        %v3706 = vpop.f32.mrb[0].mxu0
        %3707 = vmatprep.mubr.bf16.mxu0 %v3603
        %3708 = vmatmul.mubr.bf16.gmra.mrb[0].mxu0 %v3468
        %v3709 = vpop.f32.mrb[0].mxu0
        %v3710 = vadd.f32 0.0, %v3709
        %v3711 = vpop.f32.mrb[0].mxu0
        %v3712 = vpop.f32.mrb[0].mxu0
        %v3713 = vadd.f32 0.0, %v3712
        %v3714 = vpop.f32.mrb[0].mxu0
        %3715 = vmatprep.mubr.bf16.mxu0 %v3606
        %3716 = vmatmul.mubr.bf16.gmra.mrb[0].mxu0 %v3470
        %v3717 = vpop.f32.mrb[0].mxu0
        %v3718 = vadd.f32 0.0, %v3717
        %v3719 = vpop.f32.mrb[0].mxu0
        %v3720 = vpop.f32.mrb[0].mxu0
        %v3721 = vadd.f32 0.0, %v3720
        %v3722 = vpop.f32.mrb[0].mxu0
        %3723 = vmatprep.mubr.bf16.mxu0 %v3609
        %3724 = vmatmul.mubr.bf16.gmra.mrb[0].mxu0 %v3472
        %v3725 = vpop.f32.mrb[0].mxu0
        %v3726 = vadd.f32 0.0, %v3725
        %v3727 = vpop.f32.mrb[0].mxu0
        %v3728 = vpop.f32.mrb[0].mxu0
        %v3729 = vadd.f32 0.0, %v3728
        %v3730 = vpop.f32.mrb[0].mxu0
        %3731 = vmatprep.mubr.bf16.mxu0 %v3612
        %3732 = vmatmul.mubr.bf16.gmra.mrb[0].mxu0 %v3474
        %v3733 = vpop.f32.mrb[0].mxu0
        %v3734 = vadd.f32 0.0, %v3733
        %v3735 = vpop.f32.mrb[0].mxu0
        %v3736 = vpop.f32.mrb[0].mxu0
        %v3737 = vadd.f32 0.0, %v3736
        %v3738 = vpop.f32.mrb[0].mxu0
        %3739 = vmatprep.mubr.bf16.mxu0 %v3615
        %3740 = vmatmul.mubr.bf16.gmra.mrb[0].mxu0 %v3476
        %v3741 = vpop.f32.mrb[0].mxu0
        %v3742 = vadd.f32 0.0, %v3741
        %v3743 = vpop.f32.mrb[0].mxu0
        %v3744 = vpop.f32.mrb[0].mxu0
        %v3745 = vadd.f32 0.0, %v3744
        %v3746 = vpop.f32.mrb[0].mxu0
        %3747 = vmatprep.mubr.bf16.mxu0 %v3618
        %3748 = vmatmul.mubr.bf16.gmra.mrb[0].mxu0 %v3478
        %v3749 = vpop.f32.mrb[0].mxu0
        %v3750 = vadd.f32 0.0, %v3749
        %v3751 = vpop.f32.mrb[0].mxu0
        %v3752 = vpop.f32.mrb[0].mxu0
        %v3753 = vadd.f32 0.0, %v3752
        %v3754 = vpop.f32.mrb[0].mxu0
        %3755 = vmatprep.mubr.bf16.mxu0 %v3621
        %3756 = vmatmul.mubr.bf16.gmra.mrb[0].mxu0 %v3480
        %v3757 = vpop.f32.mrb[0].mxu0
        %v3758 = vadd.f32 0.0, %v3757
        %v3759 = vpop.f32.mrb[0].mxu0
        %v3760 = vpop.f32.mrb[0].mxu0
        %v3761 = vadd.f32 0.0, %v3760
        %v3762 = vpop.f32.mrb[0].mxu0
        %3763 = vmatprep.mubr.bf16.mxu0 %v3624
        %3764 = vmatmul.mubr.bf16.gmra.mrb[0].mxu0 %v3482
        %v3765 = vpop.f32.mrb[0].mxu0
        %v3766 = vadd.f32 0.0, %v3765
        %v3767 = vpop.f32.mrb[0].mxu0
        %v3768 = vpop.f32.mrb[0].mxu0
        %v3769 = vadd.f32 0.0, %v3768
        %v3770 = vpop.f32.mrb[0].mxu0
        %3771 = vmatprep.mubr.bf16.mxu0 %v3627
        %3772 = vmatmul.mubr.bf16.gmra.mrb[0].mxu0 %v3484
        %v3773 = vpop.f32.mrb[0].mxu0
        %v3774 = vadd.f32 0.0, %v3773
        %v3775 = vpop.f32.mrb[0].mxu0
        %v3776 = vpop.f32.mrb[0].mxu0
        %v3777 = vadd.f32 0.0, %v3776
        %v3778 = vpop.f32.mrb[0].mxu0
        %3779 = vmatprep.mubr.bf16.mxu0 %v3630
        %3780 = vmatmul.mubr.bf16.gmra.mrb[0].mxu0 %v3486
        %v3781 = vpop.f32.mrb[0].mxu0
        %v3782 = vadd.f32 0.0, %v3781
        %v3783 = vpop.f32.mrb[0].mxu0
        %v3784 = vpop.f32.mrb[0].mxu0
        %v3785 = vadd.f32 0.0, %v3784
        %v3786 = vpop.f32.mrb[0].mxu0
        %3787 = vmatprep.mubr.bf16.mxu0 %v3633
        %3788 = vmatmul.mubr.bf16.gmra.mrb[0].mxu0 %v3488
        %v3789 = vpop.f32.mrb[0].mxu0
        %v3790 = vadd.f32 0.0, %v3789
        %v3791 = vpop.f32.mrb[0].mxu0
        %v3792 = vpop.f32.mrb[0].mxu0
        %v3793 = vadd.f32 0.0, %v3792
        %v3794 = vpop.f32.mrb[0].mxu0
        %3795 = vdwg.mxu0
        %v3796 = vld [vmem:[#allocation4] sm:$0xff]
        %v3797 = vld [vmem:[#allocation4 + $0x8] sm:$0xff]
        %v3798 = vld [vmem:[#allocation4 + $0x10] sm:$0xff]
        %v3799 = vld [vmem:[#allocation4 + $0x18] sm:$0xff]
        %v3800 = vld [vmem:[#allocation4 + $0x20] sm:$0xff]
        %v3801 = vld [vmem:[#allocation4 + $0x28] sm:$0xff]
        %v3802 = vld [vmem:[#allocation4 + $0x30] sm:$0xff]
        %v3803 = vld [vmem:[#allocation4 + $0x38] sm:$0xff]
        %v3804 = vld [vmem:[#allocation4 + $0x40] sm:$0xff]
        %v3805 = vld [vmem:[#allocation4 + $0x48] sm:$0xff]
        %v3806 = vld [vmem:[#allocation4 + $0x50] sm:$0xff]
        %v3807 = vld [vmem:[#allocation4 + $0x58] sm:$0xff]
        %v3808 = vld [vmem:[#allocation4 + $0x60] sm:$0xff]
        %v3809 = vld [vmem:[#allocation4 + $0x68] sm:$0xff]
        %v3810 = vld [vmem:[#allocation4 + $0x70] sm:$0xff]
        %v3811 = vld [vmem:[#allocation4 + $0x78] sm:$0xff]
        %v3812 = vld [vmem:[#allocation4 + $0x80] sm:$0xff]
        %v3813 = vld [vmem:[#allocation4 + $0x88] sm:$0xff]
        %v3814 = vld [vmem:[#allocation4 + $0x90] sm:$0xff]
        %v3815 = vld [vmem:[#allocation4 + $0x98] sm:$0xff]
        %v3816 = vld [vmem:[#allocation4 + $0xa0] sm:$0xff]
        %v3817 = vld [vmem:[#allocation4 + $0xa8] sm:$0xff]
        %v3818 = vld [vmem:[#allocation4 + $0xb0] sm:$0xff]
        %v3819 = vld [vmem:[#allocation4 + $0xb8] sm:$0xff]
        %v3820 = vld [vmem:[#allocation4 + $0xc0] sm:$0xff]
        %v3821 = vld [vmem:[#allocation4 + $0xc8] sm:$0xff]
        %v3822 = vld [vmem:[#allocation4 + $0xd0] sm:$0xff]
        %v3823 = vld [vmem:[#allocation4 + $0xd8] sm:$0xff]
        %v3824 = vld [vmem:[#allocation4 + $0xe0] sm:$0xff]
        %v3825 = vld [vmem:[#allocation4 + $0xe8] sm:$0xff]
        %v3826 = vld [vmem:[#allocation4 + $0xf0] sm:$0xff]
        %v3827 = vld [vmem:[#allocation4 + $0xf8] sm:$0xff]
        %v3828 = vadd.f32 %v3796, %v3670
        %v3829 = vadd.f32 %v3797, %v3673
        %v3830 = vadd.f32 %v3798, %v3678
        %v3831 = vadd.f32 %v3799, %v3681
        %v3832 = vadd.f32 %v3800, %v3686
        %v3833 = vadd.f32 %v3801, %v3689
        %v3834 = vadd.f32 %v3802, %v3694
        %v3835 = vadd.f32 %v3803, %v3697
        %v3836 = vadd.f32 %v3804, %v3702
        %v3837 = vadd.f32 %v3805, %v3705
        %v3838 = vadd.f32 %v3806, %v3710
        %v3839 = vadd.f32 %v3807, %v3713
        %v3840 = vadd.f32 %v3808, %v3718
        %v3841 = vadd.f32 %v3809, %v3721
        %v3842 = vadd.f32 %v3810, %v3726
        %v3843 = vadd.f32 %v3811, %v3729
        %v3844 = vadd.f32 %v3812, %v3734
        %v3845 = vadd.f32 %v3813, %v3737
        %v3846 = vadd.f32 %v3814, %v3742
        %v3847 = vadd.f32 %v3815, %v3745
        %v3848 = vadd.f32 %v3816, %v3750
        %v3849 = vadd.f32 %v3817, %v3753
        %v3850 = vadd.f32 %v3818, %v3758
        %v3851 = vadd.f32 %v3819, %v3761
        %v3852 = vadd.f32 %v3820, %v3766
        %v3853 = vadd.f32 %v3821, %v3769
        %v3854 = vadd.f32 %v3822, %v3774
        %v3855 = vadd.f32 %v3823, %v3777
        %v3856 = vadd.f32 %v3824, %v3782
        %v3857 = vadd.f32 %v3825, %v3785
        %v3858 = vadd.f32 %v3826, %v3790
        %v3859 = vadd.f32 %v3827, %v3793
        %3860 = vst.msk [vmem:[#allocation4] sm:$0xff] %vm199, %v3828
        %3861 = vst.msk [vmem:[#allocation4 + $0x8] sm:$0xff] %vm199, %v3829
        %3862 = vst.msk [vmem:[#allocation4 + $0x10] sm:$0xff] %vm199, %v3830
        %3863 = vst.msk [vmem:[#allocation4 + $0x18] sm:$0xff] %vm199, %v3831
        %3864 = vst.msk [vmem:[#allocation4 + $0x20] sm:$0xff] %vm199, %v3832
        %3865 = vst.msk [vmem:[#allocation4 + $0x28] sm:$0xff] %vm199, %v3833
        %3866 = vst.msk [vmem:[#allocation4 + $0x30] sm:$0xff] %vm199, %v3834
        %3867 = vst.msk [vmem:[#allocation4 + $0x38] sm:$0xff] %vm199, %v3835
        %3868 = vst.msk [vmem:[#allocation4 + $0x40] sm:$0xff] %vm199, %v3836
        %3869 = vst.msk [vmem:[#allocation4 + $0x48] sm:$0xff] %vm199, %v3837
        %3870 = vst.msk [vmem:[#allocation4 + $0x50] sm:$0xff] %vm199, %v3838
        %3871 = vst.msk [vmem:[#allocation4 + $0x58] sm:$0xff] %vm199, %v3839
        %3872 = vst.msk [vmem:[#allocation4 + $0x60] sm:$0xff] %vm199, %v3840
        %3873 = vst.msk [vmem:[#allocation4 + $0x68] sm:$0xff] %vm199, %v3841
        %3874 = vst.msk [vmem:[#allocation4 + $0x70] sm:$0xff] %vm199, %v3842
        %3875 = vst.msk [vmem:[#allocation4 + $0x78] sm:$0xff] %vm199, %v3843
        %3876 = vst.msk [vmem:[#allocation4 + $0x80] sm:$0xff] %vm199, %v3844
        %3877 = vst.msk [vmem:[#allocation4 + $0x88] sm:$0xff] %vm199, %v3845
        %3878 = vst.msk [vmem:[#allocation4 + $0x90] sm:$0xff] %vm199, %v3846
        %3879 = vst.msk [vmem:[#allocation4 + $0x98] sm:$0xff] %vm199, %v3847
        %3880 = vst.msk [vmem:[#allocation4 + $0xa0] sm:$0xff] %vm199, %v3848
        %3881 = vst.msk [vmem:[#allocation4 + $0xa8] sm:$0xff] %vm199, %v3849
        %3882 = vst.msk [vmem:[#allocation4 + $0xb0] sm:$0xff] %vm199, %v3850
        %3883 = vst.msk [vmem:[#allocation4 + $0xb8] sm:$0xff] %vm199, %v3851
        %3884 = vst.msk [vmem:[#allocation4 + $0xc0] sm:$0xff] %vm199, %v3852
        %3885 = vst.msk [vmem:[#allocation4 + $0xc8] sm:$0xff] %vm199, %v3853
        %3886 = vst.msk [vmem:[#allocation4 + $0xd0] sm:$0xff] %vm199, %v3854
        %3887 = vst.msk [vmem:[#allocation4 + $0xd8] sm:$0xff] %vm199, %v3855
        %3888 = vst.msk [vmem:[#allocation4 + $0xe0] sm:$0xff] %vm199, %v3856
        %3889 = vst.msk [vmem:[#allocation4 + $0xe8] sm:$0xff] %vm199, %v3857
        %3890 = vst.msk [vmem:[#allocation4 + $0xf0] sm:$0xff] %vm199, %v3858
        %3891 = vst.msk [vmem:[#allocation4 + $0xf8] sm:$0xff] %vm199, %v3859
        %v3892 = vld [vmem:[#allocation3] sm:$0xff]
        %v3893 = vld [vmem:[#allocation3 + $0x8] sm:$0xff]
        %v3894 = vld [vmem:[#allocation3 + $0x10] sm:$0xff]
        %v3895 = vld [vmem:[#allocation3 + $0x18] sm:$0xff]
        %v3896 = vld [vmem:[#allocation3 + $0x20] sm:$0xff]
        %v3897 = vld [vmem:[#allocation3 + $0x28] sm:$0xff]
        %v3898 = vld [vmem:[#allocation3 + $0x30] sm:$0xff]
        %v3899 = vld [vmem:[#allocation3 + $0x38] sm:$0xff]
        %v3900 = vld [vmem:[#allocation3 + $0x40] sm:$0xff]
        %v3901 = vld [vmem:[#allocation3 + $0x48] sm:$0xff]
        %v3902 = vld [vmem:[#allocation3 + $0x50] sm:$0xff]
        %v3903 = vld [vmem:[#allocation3 + $0x58] sm:$0xff]
        %v3904 = vld [vmem:[#allocation3 + $0x60] sm:$0xff]
        %v3905 = vld [vmem:[#allocation3 + $0x68] sm:$0xff]
        %v3906 = vld [vmem:[#allocation3 + $0x70] sm:$0xff]
        %v3907 = vld [vmem:[#allocation3 + $0x78] sm:$0xff]
        %v3908 = vld [vmem:[#allocation3 + $0x80] sm:$0xff]
        %v3909 = vld [vmem:[#allocation3 + $0x88] sm:$0xff]
        %v3910 = vld [vmem:[#allocation3 + $0x90] sm:$0xff]
        %v3911 = vld [vmem:[#allocation3 + $0x98] sm:$0xff]
        %v3912 = vld [vmem:[#allocation3 + $0xa0] sm:$0xff]
        %v3913 = vld [vmem:[#allocation3 + $0xa8] sm:$0xff]
        %v3914 = vld [vmem:[#allocation3 + $0xb0] sm:$0xff]
        %v3915 = vld [vmem:[#allocation3 + $0xb8] sm:$0xff]
        %v3916 = vld [vmem:[#allocation3 + $0xc0] sm:$0xff]
        %v3917 = vld [vmem:[#allocation3 + $0xc8] sm:$0xff]
        %v3918 = vld [vmem:[#allocation3 + $0xd0] sm:$0xff]
        %v3919 = vld [vmem:[#allocation3 + $0xd8] sm:$0xff]
        %v3920 = vld [vmem:[#allocation3 + $0xe0] sm:$0xff]
        %v3921 = vld [vmem:[#allocation3 + $0xe8] sm:$0xff]
        %v3922 = vld [vmem:[#allocation3 + $0xf0] sm:$0xff]
        %v3923 = vld [vmem:[#allocation3 + $0xf8] sm:$0xff]
        %v3925 = vshrl.u32 %v3892, 16
        %v3927 = vshll.u32 %v3892, 16
        %v3929 = vrot.slane %v3927, 1
        %v3930 = vor.u32 %v3925, %v3929
        %v3932 = vshrl.u32 %v3893, 16
        %v3934 = vshll.u32 %v3893, 16
        %v3936 = vrot.slane %v3934, 1
        %v3937 = vor.u32 %v3932, %v3936
        %v3939 = vshrl.u32 %v3894, 16
        %v3941 = vshll.u32 %v3894, 16
        %v3943 = vrot.slane %v3941, 1
        %v3944 = vor.u32 %v3939, %v3943
        %v3946 = vshrl.u32 %v3895, 16
        %v3948 = vshll.u32 %v3895, 16
        %v3950 = vrot.slane %v3948, 1
        %v3951 = vor.u32 %v3946, %v3950
        %v3953 = vshrl.u32 %v3896, 16
        %v3955 = vshll.u32 %v3896, 16
        %v3957 = vrot.slane %v3955, 1
        %v3958 = vor.u32 %v3953, %v3957
        %v3960 = vshrl.u32 %v3897, 16
        %v3962 = vshll.u32 %v3897, 16
        %v3964 = vrot.slane %v3962, 1
        %v3965 = vor.u32 %v3960, %v3964
        %v3967 = vshrl.u32 %v3898, 16
        %v3969 = vshll.u32 %v3898, 16
        %v3971 = vrot.slane %v3969, 1
        %v3972 = vor.u32 %v3967, %v3971
        %v3974 = vshrl.u32 %v3899, 16
        %v3976 = vshll.u32 %v3899, 16
        %v3978 = vrot.slane %v3976, 1
        %v3979 = vor.u32 %v3974, %v3978
        %v3981 = vshrl.u32 %v3900, 16
        %v3983 = vshll.u32 %v3900, 16
        %v3985 = vrot.slane %v3983, 1
        %v3986 = vor.u32 %v3981, %v3985
        %v3988 = vshrl.u32 %v3901, 16
        %v3990 = vshll.u32 %v3901, 16
        %v3992 = vrot.slane %v3990, 1
        %v3993 = vor.u32 %v3988, %v3992
        %v3995 = vshrl.u32 %v3902, 16
        %v3997 = vshll.u32 %v3902, 16
        %v3999 = vrot.slane %v3997, 1
        %v4000 = vor.u32 %v3995, %v3999
        %v4002 = vshrl.u32 %v3903, 16
        %v4004 = vshll.u32 %v3903, 16
        %v4006 = vrot.slane %v4004, 1
        %v4007 = vor.u32 %v4002, %v4006
        %v4009 = vshrl.u32 %v3904, 16
        %v4011 = vshll.u32 %v3904, 16
        %v4013 = vrot.slane %v4011, 1
        %v4014 = vor.u32 %v4009, %v4013
        %v4016 = vshrl.u32 %v3905, 16
        %v4018 = vshll.u32 %v3905, 16
        %v4020 = vrot.slane %v4018, 1
        %v4021 = vor.u32 %v4016, %v4020
        %v4023 = vshrl.u32 %v3906, 16
        %v4025 = vshll.u32 %v3906, 16
        %v4027 = vrot.slane %v4025, 1
        %v4028 = vor.u32 %v4023, %v4027
        %v4030 = vshrl.u32 %v3907, 16
        %v4032 = vshll.u32 %v3907, 16
        %v4034 = vrot.slane %v4032, 1
        %v4035 = vor.u32 %v4030, %v4034
        %v4037 = vshrl.u32 %v3908, 16
        %v4039 = vshll.u32 %v3908, 16
        %v4041 = vrot.slane %v4039, 1
        %v4042 = vor.u32 %v4037, %v4041
        %v4044 = vshrl.u32 %v3909, 16
        %v4046 = vshll.u32 %v3909, 16
        %v4048 = vrot.slane %v4046, 1
        %v4049 = vor.u32 %v4044, %v4048
        %v4051 = vshrl.u32 %v3910, 16
        %v4053 = vshll.u32 %v3910, 16
        %v4055 = vrot.slane %v4053, 1
        %v4056 = vor.u32 %v4051, %v4055
        %v4058 = vshrl.u32 %v3911, 16
        %v4060 = vshll.u32 %v3911, 16
        %v4062 = vrot.slane %v4060, 1
        %v4063 = vor.u32 %v4058, %v4062
        %v4065 = vshrl.u32 %v3912, 16
        %v4067 = vshll.u32 %v3912, 16
        %v4069 = vrot.slane %v4067, 1
        %v4070 = vor.u32 %v4065, %v4069
        %v4072 = vshrl.u32 %v3913, 16
        %v4074 = vshll.u32 %v3913, 16
        %v4076 = vrot.slane %v4074, 1
        %v4077 = vor.u32 %v4072, %v4076
        %v4079 = vshrl.u32 %v3914, 16
        %v4081 = vshll.u32 %v3914, 16
        %v4083 = vrot.slane %v4081, 1
        %v4084 = vor.u32 %v4079, %v4083
        %v4086 = vshrl.u32 %v3915, 16
        %v4088 = vshll.u32 %v3915, 16
        %v4090 = vrot.slane %v4088, 1
        %v4091 = vor.u32 %v4086, %v4090
        %v4093 = vshrl.u32 %v3916, 16
        %v4095 = vshll.u32 %v3916, 16
        %v4097 = vrot.slane %v4095, 1
        %v4098 = vor.u32 %v4093, %v4097
        %v4100 = vshrl.u32 %v3917, 16
        %v4102 = vshll.u32 %v3917, 16
        %v4104 = vrot.slane %v4102, 1
        %v4105 = vor.u32 %v4100, %v4104
        %v4107 = vshrl.u32 %v3918, 16
        %v4109 = vshll.u32 %v3918, 16
        %v4111 = vrot.slane %v4109, 1
        %v4112 = vor.u32 %v4107, %v4111
        %v4114 = vshrl.u32 %v3919, 16
        %v4116 = vshll.u32 %v3919, 16
        %v4118 = vrot.slane %v4116, 1
        %v4119 = vor.u32 %v4114, %v4118
        %v4121 = vshrl.u32 %v3920, 16
        %v4123 = vshll.u32 %v3920, 16
        %v4125 = vrot.slane %v4123, 1
        %v4126 = vor.u32 %v4121, %v4125
        %v4128 = vshrl.u32 %v3921, 16
        %v4130 = vshll.u32 %v3921, 16
        %v4132 = vrot.slane %v4130, 1
        %v4133 = vor.u32 %v4128, %v4132
        %v4135 = vshrl.u32 %v3922, 16
        %v4137 = vshll.u32 %v3922, 16
        %v4139 = vrot.slane %v4137, 1
        %v4140 = vor.u32 %v4135, %v4139
        %v4142 = vshrl.u32 %v3923, 16
        %v4144 = vshll.u32 %v3923, 16
        %v4146 = vrot.slane %v4144, 1
        %v4147 = vor.u32 %v4142, %v4146
        %v4180 = vsel %vm1944, %v3930, 0
        %v4181 = vsel %vm1944, %v3937, 0
        %v4182 = vsel %vm1944, %v3944, 0
        %v4183 = vsel %vm1944, %v3951, 0
        %v4184 = vsel %vm1944, %v3958, 0
        %v4185 = vsel %vm1944, %v3965, 0
        %v4186 = vsel %vm1944, %v3972, 0
        %v4187 = vsel %vm1944, %v3979, 0
        %v4188 = vsel %vm1944, %v3986, 0
        %v4189 = vsel %vm1944, %v3993, 0
        %v4190 = vsel %vm1944, %v4000, 0
        %v4191 = vsel %vm1944, %v4007, 0
        %v4192 = vsel %vm1944, %v4014, 0
        %v4193 = vsel %vm1944, %v4021, 0
        %v4194 = vsel %vm1944, %v4028, 0
        %v4195 = vsel %vm1944, %v4035, 0
        %v4196 = vsel %vm1944, %v4042, 0
        %v4197 = vsel %vm1944, %v4049, 0
        %v4198 = vsel %vm1944, %v4056, 0
        %v4199 = vsel %vm1944, %v4063, 0
        %v4200 = vsel %vm1944, %v4070, 0
        %v4201 = vsel %vm1944, %v4077, 0
        %v4202 = vsel %vm1944, %v4084, 0
        %v4203 = vsel %vm1944, %v4091, 0
        %v4204 = vsel %vm1944, %v4098, 0
        %v4205 = vsel %vm1944, %v4105, 0
        %v4206 = vsel %vm1944, %v4112, 0
        %v4207 = vsel %vm1944, %v4119, 0
        %v4208 = vsel %vm1944, %v4126, 0
        %v4209 = vsel %vm1944, %v4133, 0
        %v4210 = vsel %vm1944, %v4140, 0
        %v4211 = vsel %vm1944, %v4147, 0
        %s4212 = scalar_lea.vmem %s2, 192
        %v4213 = vld [vmem:[%s4212] sm:$0xf]
        %v4214 = vld [vmem:[%s4212 + $0x4] sm:$0xf]
        %v4215 = vld [vmem:[%s4212 + $0x8] sm:$0xf]
        %v4216 = vld [vmem:[%s4212 + $0xc] sm:$0xf]
        %v4217 = vld [vmem:[%s4212 + $0x10] sm:$0xf]
        %v4218 = vld [vmem:[%s4212 + $0x14] sm:$0xf]
        %v4219 = vld [vmem:[%s4212 + $0x18] sm:$0xf]
        %v4220 = vld [vmem:[%s4212 + $0x1c] sm:$0xf]
        %v4221 = vld [vmem:[%s4212 + $0x20] sm:$0xf]
        %v4222 = vld [vmem:[%s4212 + $0x24] sm:$0xf]
        %v4223 = vld [vmem:[%s4212 + $0x28] sm:$0xf]
        %v4224 = vld [vmem:[%s4212 + $0x2c] sm:$0xf]
        %v4225 = vld [vmem:[%s4212 + $0x30] sm:$0xf]
        %v4226 = vld [vmem:[%s4212 + $0x34] sm:$0xf]
        %v4227 = vld [vmem:[%s4212 + $0x38] sm:$0xf]
        %v4228 = vld [vmem:[%s4212 + $0x3c] sm:$0xf]
        %v4229 = vld [vmem:[%s4212 + $0x40] sm:$0xf]
        %v4230 = vld [vmem:[%s4212 + $0x44] sm:$0xf]
        %v4231 = vld [vmem:[%s4212 + $0x48] sm:$0xf]
        %v4232 = vld [vmem:[%s4212 + $0x4c] sm:$0xf]
        %v4233 = vld [vmem:[%s4212 + $0x50] sm:$0xf]
        %v4234 = vld [vmem:[%s4212 + $0x54] sm:$0xf]
        %v4235 = vld [vmem:[%s4212 + $0x58] sm:$0xf]
        %v4236 = vld [vmem:[%s4212 + $0x5c] sm:$0xf]
        %v4261 = vunpack.c.l.b16 %v4213
        %v4262 = vunpack.c.l.b16 %v4214
        %v4263 = vunpack.c.l.b16 %v4215
        %v4264 = vunpack.c.l.b16 %v4216
        %v4265 = vunpack.c.l.b16 %v4217
        %v4266 = vunpack.c.l.b16 %v4218
        %v4267 = vunpack.c.l.b16 %v4219
        %v4268 = vunpack.c.l.b16 %v4220
        %v4269 = vunpack.c.l.b16 %v4221
        %v4270 = vunpack.c.l.b16 %v4222
        %v4271 = vunpack.c.l.b16 %v4223
        %v4272 = vunpack.c.l.b16 %v4224
        %v4273 = vunpack.c.l.b16 %v4225
        %v4274 = vunpack.c.l.b16 %v4226
        %v4275 = vunpack.c.l.b16 %v4227
        %v4276 = vunpack.c.l.b16 %v4228
        %v4277 = vunpack.c.l.b16 %v4229
        %v4278 = vunpack.c.l.b16 %v4230
        %v4279 = vunpack.c.l.b16 %v4231
        %v4280 = vunpack.c.l.b16 %v4232
        %v4281 = vunpack.c.l.b16 %v4233
        %v4282 = vunpack.c.l.b16 %v4234
        %v4283 = vunpack.c.l.b16 %v4235
        %v4284 = vunpack.c.l.b16 %v4236
        %v4285 = vpack.c.b16 %v4262, %v4261
        %v4286 = vpack.c.b16 %v4264, %v4263
        %v4287 = vpack.c.b16 %v4266, %v4265
        %v4288 = vpack.c.b16 %v4268, %v4267
        %v4289 = vpack.c.b16 %v4270, %v4269
        %v4290 = vpack.c.b16 %v4272, %v4271
        %v4291 = vpack.c.b16 %v4274, %v4273
        %v4292 = vpack.c.b16 %v4276, %v4275
        %v4293 = vpack.c.b16 %v4278, %v4277
        %v4294 = vpack.c.b16 %v4280, %v4279
        %v4295 = vpack.c.b16 %v4282, %v4281
        %v4296 = vpack.c.b16 %v4284, %v4283
        %v4310 = vsel %vm199, %v4181, 0
        %v4313 = vsel %vm199, %v4183, 0
        %v4316 = vsel %vm199, %v4185, 0
        %v4319 = vsel %vm199, %v4187, 0
        %v4322 = vsel %vm199, %v4189, 0
        %v4325 = vsel %vm199, %v4191, 0
        %v4328 = vsel %vm199, %v4193, 0
        %v4331 = vsel %vm199, %v4195, 0
        %v4334 = vsel %vm199, %v4197, 0
        %v4337 = vsel %vm199, %v4199, 0
        %v4340 = vsel %vm199, %v4201, 0
        %v4343 = vsel %vm199, %v4203, 0
        %v4346 = vsel %vm199, %v4205, 0
        %v4349 = vsel %vm199, %v4207, 0
        %v4352 = vsel %vm199, %v4209, 0
        %v4355 = vsel %vm199, %v4211, 0
        %4357 = vmatprep.subr.bf16.mxu0 0
        %4358 = vmatpush1.bf16.msra.mxu0 %v4285
        %4359 = vmatprep.subr.bf16.mxu0 0
        %4360 = vmatpush1.bf16.msra.mxu0 %v4286
        %4361 = vmatprep.subr.bf16.mxu0 0
        %4362 = vmatpush1.bf16.msra.mxu0 %v4287
        %4363 = vmatprep.subr.bf16.mxu0 0
        %4364 = vmatpush1.bf16.msra.mxu0 %v4288
        %4365 = vmatprep.subr.bf16.mxu0 0
        %4366 = vmatpush1.bf16.msra.mxu0 %v4289
        %4367 = vmatprep.subr.bf16.mxu0 0
        %4368 = vmatpush1.bf16.msra.mxu0 %v4290
        %4369 = vmatprep.subr.bf16.mxu0 0
        %4370 = vmatpush1.bf16.msra.mxu0 %v4291
        %4371 = vmatprep.subr.bf16.mxu0 0
        %4372 = vmatpush1.bf16.msra.mxu0 %v4292
        %4373 = vmatprep.subr.bf16.mxu0 0
        %4374 = vmatpush1.bf16.msra.mxu0 %v4293
        %4375 = vmatprep.subr.bf16.mxu0 0
        %4376 = vmatpush1.bf16.msra.mxu0 %v4294
        %4377 = vmatprep.subr.bf16.mxu0 0
        %4378 = vmatpush1.bf16.msra.mxu0 %v4295
        %4379 = vmatprep.subr.bf16.mxu0 0
        %4380 = vmatpush1.bf16.msra.mxu0 %v4296
        %4381 = vmatprep.subr.bf16.mxu0 0
        %4382 = vmatpush1.bf16.msra.mxu0 0
        %4383 = vmatprep.subr.bf16.mxu0 0
        %4384 = vmatpush1.bf16.msra.mxu0 0
        %4385 = vmatprep.subr.bf16.mxu0 0
        %4386 = vmatpush1.bf16.msra.mxu0 0
        %4387 = vmatprep.subr.bf16.mxu0 0
        %4388 = vmatpush1.bf16.msra.mxu0 0
        %4389 = vmatprep.mubr.bf16.mxu0 %v4310
        %4390 = vmatmul.mubr.bf16.gmra.mrb[0].mxu0 %v4180
        %v4391 = vpop.f32.mrb[0].mxu0
        %v4392 = vadd.f32 0.0, %v4391
        %v4393 = vpop.f32.mrb[0].mxu0
        %v4394 = vpop.f32.mrb[0].mxu0
        %v4395 = vadd.f32 0.0, %v4394
        %v4396 = vpop.f32.mrb[0].mxu0
        %4397 = vmatprep.mubr.bf16.mxu0 %v4313
        %4398 = vmatmul.mubr.bf16.gmra.mrb[0].mxu0 %v4182
        %v4399 = vpop.f32.mrb[0].mxu0
        %v4400 = vadd.f32 0.0, %v4399
        %v4401 = vpop.f32.mrb[0].mxu0
        %v4402 = vpop.f32.mrb[0].mxu0
        %v4403 = vadd.f32 0.0, %v4402
        %v4404 = vpop.f32.mrb[0].mxu0
        %4405 = vmatprep.mubr.bf16.mxu0 %v4316
        %4406 = vmatmul.mubr.bf16.gmra.mrb[0].mxu0 %v4184
        %v4407 = vpop.f32.mrb[0].mxu0
        %v4408 = vadd.f32 0.0, %v4407
        %v4409 = vpop.f32.mrb[0].mxu0
        %v4410 = vpop.f32.mrb[0].mxu0
        %v4411 = vadd.f32 0.0, %v4410
        %v4412 = vpop.f32.mrb[0].mxu0
        %4413 = vmatprep.mubr.bf16.mxu0 %v4319
        %4414 = vmatmul.mubr.bf16.gmra.mrb[0].mxu0 %v4186
        %v4415 = vpop.f32.mrb[0].mxu0
        %v4416 = vadd.f32 0.0, %v4415
        %v4417 = vpop.f32.mrb[0].mxu0
        %v4418 = vpop.f32.mrb[0].mxu0
        %v4419 = vadd.f32 0.0, %v4418
        %v4420 = vpop.f32.mrb[0].mxu0
        %4421 = vmatprep.mubr.bf16.mxu0 %v4322
        %4422 = vmatmul.mubr.bf16.gmra.mrb[0].mxu0 %v4188
        %v4423 = vpop.f32.mrb[0].mxu0
        %v4424 = vadd.f32 0.0, %v4423
        %v4425 = vpop.f32.mrb[0].mxu0
        %v4426 = vpop.f32.mrb[0].mxu0
        %v4427 = vadd.f32 0.0, %v4426
        %v4428 = vpop.f32.mrb[0].mxu0
        %4429 = vmatprep.mubr.bf16.mxu0 %v4325
        %4430 = vmatmul.mubr.bf16.gmra.mrb[0].mxu0 %v4190
        %v4431 = vpop.f32.mrb[0].mxu0
        %v4432 = vadd.f32 0.0, %v4431
        %v4433 = vpop.f32.mrb[0].mxu0
        %v4434 = vpop.f32.mrb[0].mxu0
        %v4435 = vadd.f32 0.0, %v4434
        %v4436 = vpop.f32.mrb[0].mxu0
        %4437 = vmatprep.mubr.bf16.mxu0 %v4328
        %4438 = vmatmul.mubr.bf16.gmra.mrb[0].mxu0 %v4192
        %v4439 = vpop.f32.mrb[0].mxu0
        %v4440 = vadd.f32 0.0, %v4439
        %v4441 = vpop.f32.mrb[0].mxu0
        %v4442 = vpop.f32.mrb[0].mxu0
        %v4443 = vadd.f32 0.0, %v4442
        %v4444 = vpop.f32.mrb[0].mxu0
        %4445 = vmatprep.mubr.bf16.mxu0 %v4331
        %4446 = vmatmul.mubr.bf16.gmra.mrb[0].mxu0 %v4194
        %v4447 = vpop.f32.mrb[0].mxu0
        %v4448 = vadd.f32 0.0, %v4447
        %v4449 = vpop.f32.mrb[0].mxu0
        %v4450 = vpop.f32.mrb[0].mxu0
        %v4451 = vadd.f32 0.0, %v4450
        %v4452 = vpop.f32.mrb[0].mxu0
        %4453 = vmatprep.mubr.bf16.mxu0 %v4334
        %4454 = vmatmul.mubr.bf16.gmra.mrb[0].mxu0 %v4196
        %v4455 = vpop.f32.mrb[0].mxu0
        %v4456 = vadd.f32 0.0, %v4455
        %v4457 = vpop.f32.mrb[0].mxu0
        %v4458 = vpop.f32.mrb[0].mxu0
        %v4459 = vadd.f32 0.0, %v4458
        %v4460 = vpop.f32.mrb[0].mxu0
        %4461 = vmatprep.mubr.bf16.mxu0 %v4337
        %4462 = vmatmul.mubr.bf16.gmra.mrb[0].mxu0 %v4198
        %v4463 = vpop.f32.mrb[0].mxu0
        %v4464 = vadd.f32 0.0, %v4463
        %v4465 = vpop.f32.mrb[0].mxu0
        %v4466 = vpop.f32.mrb[0].mxu0
        %v4467 = vadd.f32 0.0, %v4466
        %v4468 = vpop.f32.mrb[0].mxu0
        %4469 = vmatprep.mubr.bf16.mxu0 %v4340
        %4470 = vmatmul.mubr.bf16.gmra.mrb[0].mxu0 %v4200
        %v4471 = vpop.f32.mrb[0].mxu0
        %v4472 = vadd.f32 0.0, %v4471
        %v4473 = vpop.f32.mrb[0].mxu0
        %v4474 = vpop.f32.mrb[0].mxu0
        %v4475 = vadd.f32 0.0, %v4474
        %v4476 = vpop.f32.mrb[0].mxu0
        %4477 = vmatprep.mubr.bf16.mxu0 %v4343
        %4478 = vmatmul.mubr.bf16.gmra.mrb[0].mxu0 %v4202
        %v4479 = vpop.f32.mrb[0].mxu0
        %v4480 = vadd.f32 0.0, %v4479
        %v4481 = vpop.f32.mrb[0].mxu0
        %v4482 = vpop.f32.mrb[0].mxu0
        %v4483 = vadd.f32 0.0, %v4482
        %v4484 = vpop.f32.mrb[0].mxu0
        %4485 = vmatprep.mubr.bf16.mxu0 %v4346
        %4486 = vmatmul.mubr.bf16.gmra.mrb[0].mxu0 %v4204
        %v4487 = vpop.f32.mrb[0].mxu0
        %v4488 = vadd.f32 0.0, %v4487
        %v4489 = vpop.f32.mrb[0].mxu0
        %v4490 = vpop.f32.mrb[0].mxu0
        %v4491 = vadd.f32 0.0, %v4490
        %v4492 = vpop.f32.mrb[0].mxu0
        %4493 = vmatprep.mubr.bf16.mxu0 %v4349
        %4494 = vmatmul.mubr.bf16.gmra.mrb[0].mxu0 %v4206
        %v4495 = vpop.f32.mrb[0].mxu0
        %v4496 = vadd.f32 0.0, %v4495
        %v4497 = vpop.f32.mrb[0].mxu0
        %v4498 = vpop.f32.mrb[0].mxu0
        %v4499 = vadd.f32 0.0, %v4498
        %v4500 = vpop.f32.mrb[0].mxu0
        %4501 = vmatprep.mubr.bf16.mxu0 %v4352
        %4502 = vmatmul.mubr.bf16.gmra.mrb[0].mxu0 %v4208
        %v4503 = vpop.f32.mrb[0].mxu0
        %v4504 = vadd.f32 0.0, %v4503
        %v4505 = vpop.f32.mrb[0].mxu0
        %v4506 = vpop.f32.mrb[0].mxu0
        %v4507 = vadd.f32 0.0, %v4506
        %v4508 = vpop.f32.mrb[0].mxu0
        %4509 = vmatprep.mubr.bf16.mxu0 %v4355
        %4510 = vmatmul.mubr.bf16.gmra.mrb[0].mxu0 %v4210
        %v4511 = vpop.f32.mrb[0].mxu0
        %v4512 = vadd.f32 0.0, %v4511
        %v4513 = vpop.f32.mrb[0].mxu0
        %v4514 = vpop.f32.mrb[0].mxu0
        %v4515 = vadd.f32 0.0, %v4514
        %v4516 = vpop.f32.mrb[0].mxu0
        %4517 = vdwg.mxu0
        %v4518 = vld [vmem:[#allocation4] sm:$0xff]
        %v4519 = vld [vmem:[#allocation4 + $0x8] sm:$0xff]
        %v4520 = vld [vmem:[#allocation4 + $0x10] sm:$0xff]
        %v4521 = vld [vmem:[#allocation4 + $0x18] sm:$0xff]
        %v4522 = vld [vmem:[#allocation4 + $0x20] sm:$0xff]
        %v4523 = vld [vmem:[#allocation4 + $0x28] sm:$0xff]
        %v4524 = vld [vmem:[#allocation4 + $0x30] sm:$0xff]
        %v4525 = vld [vmem:[#allocation4 + $0x38] sm:$0xff]
        %v4526 = vld [vmem:[#allocation4 + $0x40] sm:$0xff]
        %v4527 = vld [vmem:[#allocation4 + $0x48] sm:$0xff]
        %v4528 = vld [vmem:[#allocation4 + $0x50] sm:$0xff]
        %v4529 = vld [vmem:[#allocation4 + $0x58] sm:$0xff]
        %v4530 = vld [vmem:[#allocation4 + $0x60] sm:$0xff]
        %v4531 = vld [vmem:[#allocation4 + $0x68] sm:$0xff]
        %v4532 = vld [vmem:[#allocation4 + $0x70] sm:$0xff]
        %v4533 = vld [vmem:[#allocation4 + $0x78] sm:$0xff]
        %v4534 = vld [vmem:[#allocation4 + $0x80] sm:$0xff]
        %v4535 = vld [vmem:[#allocation4 + $0x88] sm:$0xff]
        %v4536 = vld [vmem:[#allocation4 + $0x90] sm:$0xff]
        %v4537 = vld [vmem:[#allocation4 + $0x98] sm:$0xff]
        %v4538 = vld [vmem:[#allocation4 + $0xa0] sm:$0xff]
        %v4539 = vld [vmem:[#allocation4 + $0xa8] sm:$0xff]
        %v4540 = vld [vmem:[#allocation4 + $0xb0] sm:$0xff]
        %v4541 = vld [vmem:[#allocation4 + $0xb8] sm:$0xff]
        %v4542 = vld [vmem:[#allocation4 + $0xc0] sm:$0xff]
        %v4543 = vld [vmem:[#allocation4 + $0xc8] sm:$0xff]
        %v4544 = vld [vmem:[#allocation4 + $0xd0] sm:$0xff]
        %v4545 = vld [vmem:[#allocation4 + $0xd8] sm:$0xff]
        %v4546 = vld [vmem:[#allocation4 + $0xe0] sm:$0xff]
        %v4547 = vld [vmem:[#allocation4 + $0xe8] sm:$0xff]
        %v4548 = vld [vmem:[#allocation4 + $0xf0] sm:$0xff]
        %v4549 = vld [vmem:[#allocation4 + $0xf8] sm:$0xff]
        %v4550 = vadd.f32 %v4518, %v4392
        %v4551 = vadd.f32 %v4519, %v4395
        %v4552 = vadd.f32 %v4520, %v4400
        %v4553 = vadd.f32 %v4521, %v4403
        %v4554 = vadd.f32 %v4522, %v4408
        %v4555 = vadd.f32 %v4523, %v4411
        %v4556 = vadd.f32 %v4524, %v4416
        %v4557 = vadd.f32 %v4525, %v4419
        %v4558 = vadd.f32 %v4526, %v4424
        %v4559 = vadd.f32 %v4527, %v4427
        %v4560 = vadd.f32 %v4528, %v4432
        %v4561 = vadd.f32 %v4529, %v4435
        %v4562 = vadd.f32 %v4530, %v4440
        %v4563 = vadd.f32 %v4531, %v4443
        %v4564 = vadd.f32 %v4532, %v4448
        %v4565 = vadd.f32 %v4533, %v4451
        %v4566 = vadd.f32 %v4534, %v4456
        %v4567 = vadd.f32 %v4535, %v4459
        %v4568 = vadd.f32 %v4536, %v4464
        %v4569 = vadd.f32 %v4537, %v4467
        %v4570 = vadd.f32 %v4538, %v4472
        %v4571 = vadd.f32 %v4539, %v4475
        %v4572 = vadd.f32 %v4540, %v4480
        %v4573 = vadd.f32 %v4541, %v4483
        %v4574 = vadd.f32 %v4542, %v4488
        %v4575 = vadd.f32 %v4543, %v4491
        %v4576 = vadd.f32 %v4544, %v4496
        %v4577 = vadd.f32 %v4545, %v4499
        %v4578 = vadd.f32 %v4546, %v4504
        %v4579 = vadd.f32 %v4547, %v4507
        %v4580 = vadd.f32 %v4548, %v4512
        %v4581 = vadd.f32 %v4549, %v4515
        %4582 = vst.msk [vmem:[#allocation4] sm:$0xff] %vm199, %v4550
        %4583 = vst.msk [vmem:[#allocation4 + $0x8] sm:$0xff] %vm199, %v4551
        %4584 = vst.msk [vmem:[#allocation4 + $0x10] sm:$0xff] %vm199, %v4552
        %4585 = vst.msk [vmem:[#allocation4 + $0x18] sm:$0xff] %vm199, %v4553
        %4586 = vst.msk [vmem:[#allocation4 + $0x20] sm:$0xff] %vm199, %v4554
        %4587 = vst.msk [vmem:[#allocation4 + $0x28] sm:$0xff] %vm199, %v4555
        %4588 = vst.msk [vmem:[#allocation4 + $0x30] sm:$0xff] %vm199, %v4556
        %4589 = vst.msk [vmem:[#allocation4 + $0x38] sm:$0xff] %vm199, %v4557
        %4590 = vst.msk [vmem:[#allocation4 + $0x40] sm:$0xff] %vm199, %v4558
        %4591 = vst.msk [vmem:[#allocation4 + $0x48] sm:$0xff] %vm199, %v4559
        %4592 = vst.msk [vmem:[#allocation4 + $0x50] sm:$0xff] %vm199, %v4560
        %4593 = vst.msk [vmem:[#allocation4 + $0x58] sm:$0xff] %vm199, %v4561
        %4594 = vst.msk [vmem:[#allocation4 + $0x60] sm:$0xff] %vm199, %v4562
        %4595 = vst.msk [vmem:[#allocation4 + $0x68] sm:$0xff] %vm199, %v4563
        %4596 = vst.msk [vmem:[#allocation4 + $0x70] sm:$0xff] %vm199, %v4564
        %4597 = vst.msk [vmem:[#allocation4 + $0x78] sm:$0xff] %vm199, %v4565
        %4598 = vst.msk [vmem:[#allocation4 + $0x80] sm:$0xff] %vm199, %v4566
        %4599 = vst.msk [vmem:[#allocation4 + $0x88] sm:$0xff] %vm199, %v4567
        %4600 = vst.msk [vmem:[#allocation4 + $0x90] sm:$0xff] %vm199, %v4568
        %4601 = vst.msk [vmem:[#allocation4 + $0x98] sm:$0xff] %vm199, %v4569
        %4602 = vst.msk [vmem:[#allocation4 + $0xa0] sm:$0xff] %vm199, %v4570
        %4603 = vst.msk [vmem:[#allocation4 + $0xa8] sm:$0xff] %vm199, %v4571
        %4604 = vst.msk [vmem:[#allocation4 + $0xb0] sm:$0xff] %vm199, %v4572
        %4605 = vst.msk [vmem:[#allocation4 + $0xb8] sm:$0xff] %vm199, %v4573
        %4606 = vst.msk [vmem:[#allocation4 + $0xc0] sm:$0xff] %vm199, %v4574
        %4607 = vst.msk [vmem:[#allocation4 + $0xc8] sm:$0xff] %vm199, %v4575
        %4608 = vst.msk [vmem:[#allocation4 + $0xd0] sm:$0xff] %vm199, %v4576
        %4609 = vst.msk [vmem:[#allocation4 + $0xd8] sm:$0xff] %vm199, %v4577
        %4610 = vst.msk [vmem:[#allocation4 + $0xe0] sm:$0xff] %vm199, %v4578
        %4611 = vst.msk [vmem:[#allocation4 + $0xe8] sm:$0xff] %vm199, %v4579
        %4612 = vst.msk [vmem:[#allocation4 + $0xf0] sm:$0xff] %vm199, %v4580
        %4613 = vst.msk [vmem:[#allocation4 + $0xf8] sm:$0xff] %vm199, %v4581
        %v4614 = vld [vmem:[#allocation4] sm:$0xff]
        %v4615 = vld [vmem:[#allocation4 + $0x8] sm:$0xff]
        %v4616 = vld [vmem:[#allocation4 + $0x10] sm:$0xff]
        %v4617 = vld [vmem:[#allocation4 + $0x18] sm:$0xff]
        %v4618 = vld [vmem:[#allocation4 + $0x20] sm:$0xff]
        %v4619 = vld [vmem:[#allocation4 + $0x28] sm:$0xff]
        %v4620 = vld [vmem:[#allocation4 + $0x30] sm:$0xff]
        %v4621 = vld [vmem:[#allocation4 + $0x38] sm:$0xff]
        %v4622 = vld [vmem:[#allocation4 + $0x40] sm:$0xff]
        %v4623 = vld [vmem:[#allocation4 + $0x48] sm:$0xff]
        %v4624 = vld [vmem:[#allocation4 + $0x50] sm:$0xff]
        %v4625 = vld [vmem:[#allocation4 + $0x58] sm:$0xff]
        %v4626 = vld [vmem:[#allocation4 + $0x60] sm:$0xff]
        %v4627 = vld [vmem:[#allocation4 + $0x68] sm:$0xff]
        %v4628 = vld [vmem:[#allocation4 + $0x70] sm:$0xff]
        %v4629 = vld [vmem:[#allocation4 + $0x78] sm:$0xff]
        %v4630 = vld [vmem:[#allocation4 + $0x80] sm:$0xff]
        %v4631 = vld [vmem:[#allocation4 + $0x88] sm:$0xff]
        %v4632 = vld [vmem:[#allocation4 + $0x90] sm:$0xff]
        %v4633 = vld [vmem:[#allocation4 + $0x98] sm:$0xff]
        %v4634 = vld [vmem:[#allocation4 + $0xa0] sm:$0xff]
        %v4635 = vld [vmem:[#allocation4 + $0xa8] sm:$0xff]
        %v4636 = vld [vmem:[#allocation4 + $0xb0] sm:$0xff]
        %v4637 = vld [vmem:[#allocation4 + $0xb8] sm:$0xff]
        %v4638 = vld [vmem:[#allocation4 + $0xc0] sm:$0xff]
        %v4639 = vld [vmem:[#allocation4 + $0xc8] sm:$0xff]
        %v4640 = vld [vmem:[#allocation4 + $0xd0] sm:$0xff]
        %v4641 = vld [vmem:[#allocation4 + $0xd8] sm:$0xff]
        %v4642 = vld [vmem:[#allocation4 + $0xe0] sm:$0xff]
        %v4643 = vld [vmem:[#allocation4 + $0xe8] sm:$0xff]
        %v4644 = vld [vmem:[#allocation4 + $0xf0] sm:$0xff]
        %v4645 = vld [vmem:[#allocation4 + $0xf8] sm:$0xff]
        %vm4646 = vcmp.ge.f32.partialorder %v4614, 0.0
        %vm4647 = vcmp.ge.f32.partialorder %v4615, 0.0
        %vm4648 = vcmp.ge.f32.partialorder %v4616, 0.0
        %vm4649 = vcmp.ge.f32.partialorder %v4617, 0.0
        %vm4650 = vcmp.ge.f32.partialorder %v4618, 0.0
        %vm4651 = vcmp.ge.f32.partialorder %v4619, 0.0
        %vm4652 = vcmp.ge.f32.partialorder %v4620, 0.0
        %vm4653 = vcmp.ge.f32.partialorder %v4621, 0.0
        %vm4654 = vcmp.ge.f32.partialorder %v4622, 0.0
        %vm4655 = vcmp.ge.f32.partialorder %v4623, 0.0
        %vm4656 = vcmp.ge.f32.partialorder %v4624, 0.0
        %vm4657 = vcmp.ge.f32.partialorder %v4625, 0.0
        %vm4658 = vcmp.ge.f32.partialorder %v4626, 0.0
        %vm4659 = vcmp.ge.f32.partialorder %v4627, 0.0
        %vm4660 = vcmp.ge.f32.partialorder %v4628, 0.0
        %vm4661 = vcmp.ge.f32.partialorder %v4629, 0.0
        %vm4662 = vcmp.ge.f32.partialorder %v4630, 0.0
        %vm4663 = vcmp.ge.f32.partialorder %v4631, 0.0
        %vm4664 = vcmp.ge.f32.partialorder %v4632, 0.0
        %vm4665 = vcmp.ge.f32.partialorder %v4633, 0.0
        %vm4666 = vcmp.ge.f32.partialorder %v4634, 0.0
        %vm4667 = vcmp.ge.f32.partialorder %v4635, 0.0
        %vm4668 = vcmp.ge.f32.partialorder %v4636, 0.0
        %vm4669 = vcmp.ge.f32.partialorder %v4637, 0.0
        %vm4670 = vcmp.ge.f32.partialorder %v4638, 0.0
        %vm4671 = vcmp.ge.f32.partialorder %v4639, 0.0
        %vm4672 = vcmp.ge.f32.partialorder %v4640, 0.0
        %vm4673 = vcmp.ge.f32.partialorder %v4641, 0.0
        %vm4674 = vcmp.ge.f32.partialorder %v4642, 0.0
        %vm4675 = vcmp.ge.f32.partialorder %v4643, 0.0
        %vm4676 = vcmp.ge.f32.partialorder %v4644, 0.0
        %vm4677 = vcmp.ge.f32.partialorder %v4645, 0.0
        %v4678 = vmul.f32 %v4614, 0.01
        %v4679 = vmul.f32 %v4615, 0.01
        %v4680 = vmul.f32 %v4616, 0.01
        %v4681 = vmul.f32 %v4617, 0.01
        %v4682 = vmul.f32 %v4618, 0.01
        %v4683 = vmul.f32 %v4619, 0.01
        %v4684 = vmul.f32 %v4620, 0.01
        %v4685 = vmul.f32 %v4621, 0.01
        %v4686 = vmul.f32 %v4622, 0.01
        %v4687 = vmul.f32 %v4623, 0.01
        %v4688 = vmul.f32 %v4624, 0.01
        %v4689 = vmul.f32 %v4625, 0.01
        %v4690 = vmul.f32 %v4626, 0.01
        %v4691 = vmul.f32 %v4627, 0.01
        %v4692 = vmul.f32 %v4628, 0.01
        %v4693 = vmul.f32 %v4629, 0.01
        %v4694 = vmul.f32 %v4630, 0.01
        %v4695 = vmul.f32 %v4631, 0.01
        %v4696 = vmul.f32 %v4632, 0.01
        %v4697 = vmul.f32 %v4633, 0.01
        %v4698 = vmul.f32 %v4634, 0.01
        %v4699 = vmul.f32 %v4635, 0.01
        %v4700 = vmul.f32 %v4636, 0.01
        %v4701 = vmul.f32 %v4637, 0.01
        %v4702 = vmul.f32 %v4638, 0.01
        %v4703 = vmul.f32 %v4639, 0.01
        %v4704 = vmul.f32 %v4640, 0.01
        %v4705 = vmul.f32 %v4641, 0.01
        %v4706 = vmul.f32 %v4642, 0.01
        %v4707 = vmul.f32 %v4643, 0.01
        %v4708 = vmul.f32 %v4644, 0.01
        %v4709 = vmul.f32 %v4645, 0.01
        %v4710 = vsel %vm4646, %v4614, %v4678
        %v4711 = vsel %vm4647, %v4615, %v4679
        %v4712 = vsel %vm4648, %v4616, %v4680
        %v4713 = vsel %vm4649, %v4617, %v4681
        %v4714 = vsel %vm4650, %v4618, %v4682
        %v4715 = vsel %vm4651, %v4619, %v4683
        %v4716 = vsel %vm4652, %v4620, %v4684
        %v4717 = vsel %vm4653, %v4621, %v4685
        %v4718 = vsel %vm4654, %v4622, %v4686
        %v4719 = vsel %vm4655, %v4623, %v4687
        %v4720 = vsel %vm4656, %v4624, %v4688
        %v4721 = vsel %vm4657, %v4625, %v4689
        %v4722 = vsel %vm4658, %v4626, %v4690
        %v4723 = vsel %vm4659, %v4627, %v4691
        %v4724 = vsel %vm4660, %v4628, %v4692
        %v4725 = vsel %vm4661, %v4629, %v4693
        %v4726 = vsel %vm4662, %v4630, %v4694
        %v4727 = vsel %vm4663, %v4631, %v4695
        %v4728 = vsel %vm4664, %v4632, %v4696
        %v4729 = vsel %vm4665, %v4633, %v4697
        %v4730 = vsel %vm4666, %v4634, %v4698
        %v4731 = vsel %vm4667, %v4635, %v4699
        %v4732 = vsel %vm4668, %v4636, %v4700
        %v4733 = vsel %vm4669, %v4637, %v4701
        %v4734 = vsel %vm4670, %v4638, %v4702
        %v4735 = vsel %vm4671, %v4639, %v4703
        %v4736 = vsel %vm4672, %v4640, %v4704
        %v4737 = vsel %vm4673, %v4641, %v4705
        %v4738 = vsel %vm4674, %v4642, %v4706
        %v4739 = vsel %vm4675, %v4643, %v4707
        %v4740 = vsel %vm4676, %v4644, %v4708
        %v4741 = vsel %vm4677, %v4645, %v4709
        %4742 = vst.msk [vmem:[%s268] sm:$0xff] %vm199, %v4710
        %4743 = vst.msk [vmem:[%s268 + $0x8] sm:$0xff] %vm199, %v4711
        %4744 = vst.msk [vmem:[%s268 + $0x10] sm:$0xff] %vm199, %v4712
        %4745 = vst.msk [vmem:[%s268 + $0x18] sm:$0xff] %vm199, %v4713
        %4746 = vst.msk [vmem:[%s268 + $0x20] sm:$0xff] %vm199, %v4714
        %4747 = vst.msk [vmem:[%s268 + $0x28] sm:$0xff] %vm199, %v4715
        %4748 = vst.msk [vmem:[%s268 + $0x30] sm:$0xff] %vm199, %v4716
        %4749 = vst.msk [vmem:[%s268 + $0x38] sm:$0xff] %vm199, %v4717
        %4750 = vst.msk [vmem:[%s268 + $0x40] sm:$0xff] %vm199, %v4718
        %4751 = vst.msk [vmem:[%s268 + $0x48] sm:$0xff] %vm199, %v4719
        %4752 = vst.msk [vmem:[%s268 + $0x50] sm:$0xff] %vm199, %v4720
        %4753 = vst.msk [vmem:[%s268 + $0x58] sm:$0xff] %vm199, %v4721
        %4754 = vst.msk [vmem:[%s268 + $0x60] sm:$0xff] %vm199, %v4722
        %4755 = vst.msk [vmem:[%s268 + $0x68] sm:$0xff] %vm199, %v4723
        %4756 = vst.msk [vmem:[%s268 + $0x70] sm:$0xff] %vm199, %v4724
        %4757 = vst.msk [vmem:[%s268 + $0x78] sm:$0xff] %vm199, %v4725
        %4758 = vst.msk [vmem:[%s268 + $0x80] sm:$0xff] %vm199, %v4726
        %4759 = vst.msk [vmem:[%s268 + $0x88] sm:$0xff] %vm199, %v4727
        %4760 = vst.msk [vmem:[%s268 + $0x90] sm:$0xff] %vm199, %v4728
        %4761 = vst.msk [vmem:[%s268 + $0x98] sm:$0xff] %vm199, %v4729
        %4762 = vst.msk [vmem:[%s268 + $0xa0] sm:$0xff] %vm199, %v4730
        %4763 = vst.msk [vmem:[%s268 + $0xa8] sm:$0xff] %vm199, %v4731
        %4764 = vst.msk [vmem:[%s268 + $0xb0] sm:$0xff] %vm199, %v4732
        %4765 = vst.msk [vmem:[%s268 + $0xb8] sm:$0xff] %vm199, %v4733
        %4766 = vst.msk [vmem:[%s268 + $0xc0] sm:$0xff] %vm199, %v4734
        %4767 = vst.msk [vmem:[%s268 + $0xc8] sm:$0xff] %vm199, %v4735
        %4768 = vst.msk [vmem:[%s268 + $0xd0] sm:$0xff] %vm199, %v4736
        %4769 = vst.msk [vmem:[%s268 + $0xd8] sm:$0xff] %vm199, %v4737
        %4770 = vst.msk [vmem:[%s268 + $0xe0] sm:$0xff] %vm199, %v4738
        %4771 = vst.msk [vmem:[%s268 + $0xe8] sm:$0xff] %vm199, %v4739
        %4772 = vst.msk [vmem:[%s268 + $0xf0] sm:$0xff] %vm199, %v4740
        %4773 = vst.msk [vmem:[%s268 + $0xf8] sm:$0xff] %vm199, %v4741
      $region41: #{deblurring_forward.1} parent=35 // loop_footer
        %s2544 = sadd.s32 1, %s2540
      $region42: #{deblurring_forward.1} parent=35 // loop_footer_branch
        %2539 = sbr.rel target = $region38
      $region43: #{deblurring_forward.1} parent=35 // loop_exit
        _
      %v4774 = vld [vmem:[#allocation2] sm:$0xff]
      %v4775 = vld [vmem:[#allocation2 + $0x8] sm:$0xff]
      %v4776 = vld [vmem:[#allocation2 + $0x10] sm:$0xff]
      %v4777 = vld [vmem:[#allocation2 + $0x18] sm:$0xff]
      %v4778 = vld [vmem:[#allocation2 + $0x20] sm:$0xff]
      %v4779 = vld [vmem:[#allocation2 + $0x28] sm:$0xff]
      %v4780 = vld [vmem:[#allocation2 + $0x30] sm:$0xff]
      %v4781 = vld [vmem:[#allocation2 + $0x38] sm:$0xff]
      %v4782 = vld [vmem:[#allocation2 + $0x40] sm:$0xff]
      %v4783 = vld [vmem:[#allocation2 + $0x48] sm:$0xff]
      %v4784 = vld [vmem:[#allocation2 + $0x50] sm:$0xff]
      %v4785 = vld [vmem:[#allocation2 + $0x58] sm:$0xff]
      %v4786 = vld [vmem:[#allocation2 + $0x60] sm:$0xff]
      %v4787 = vld [vmem:[#allocation2 + $0x68] sm:$0xff]
      %v4788 = vld [vmem:[#allocation2 + $0x70] sm:$0xff]
      %v4789 = vld [vmem:[#allocation2 + $0x78] sm:$0xff]
      %v4790 = vld [vmem:[#allocation2 + $0x80] sm:$0xff]
      %v4791 = vld [vmem:[#allocation2 + $0x88] sm:$0xff]
      %v4792 = vld [vmem:[#allocation2 + $0x90] sm:$0xff]
      %v4793 = vld [vmem:[#allocation2 + $0x98] sm:$0xff]
      %v4794 = vld [vmem:[#allocation2 + $0xa0] sm:$0xff]
      %v4795 = vld [vmem:[#allocation2 + $0xa8] sm:$0xff]
      %v4796 = vld [vmem:[#allocation2 + $0xb0] sm:$0xff]
      %v4797 = vld [vmem:[#allocation2 + $0xb8] sm:$0xff]
      %v4798 = vld [vmem:[#allocation2 + $0xc0] sm:$0xff]
      %v4799 = vld [vmem:[#allocation2 + $0xc8] sm:$0xff]
      %v4800 = vld [vmem:[#allocation2 + $0xd0] sm:$0xff]
      %v4801 = vld [vmem:[#allocation2 + $0xd8] sm:$0xff]
      %v4802 = vld [vmem:[#allocation2 + $0xe0] sm:$0xff]
      %v4803 = vld [vmem:[#allocation2 + $0xe8] sm:$0xff]
      %v4804 = vld [vmem:[#allocation2 + $0xf0] sm:$0xff]
      %v4805 = vld [vmem:[#allocation2 + $0xf8] sm:$0xff]
      %v4806 = vpack.c.bf16 %v4775, %v4774
      %v4807 = vpack.c.bf16 %v4777, %v4776
      %v4808 = vpack.c.bf16 %v4779, %v4778
      %v4809 = vpack.c.bf16 %v4781, %v4780
      %v4810 = vpack.c.bf16 %v4783, %v4782
      %v4811 = vpack.c.bf16 %v4785, %v4784
      %v4812 = vpack.c.bf16 %v4787, %v4786
      %v4813 = vpack.c.bf16 %v4789, %v4788
      %v4814 = vpack.c.bf16 %v4791, %v4790
      %v4815 = vpack.c.bf16 %v4793, %v4792
      %v4816 = vpack.c.bf16 %v4795, %v4794
      %v4817 = vpack.c.bf16 %v4797, %v4796
      %v4818 = vpack.c.bf16 %v4799, %v4798
      %v4819 = vpack.c.bf16 %v4801, %v4800
      %v4820 = vpack.c.bf16 %v4803, %v4802
      %v4821 = vpack.c.bf16 %v4805, %v4804
      %4822 = vst.msk [vmem:[#allocation3] sm:$0xff] %vm199, %v4806
      %4823 = vst.msk [vmem:[#allocation3 + $0x10] sm:$0xff] %vm199, %v4807
      %4824 = vst.msk [vmem:[#allocation3 + $0x20] sm:$0xff] %vm199, %v4808
      %4825 = vst.msk [vmem:[#allocation3 + $0x30] sm:$0xff] %vm199, %v4809
      %4826 = vst.msk [vmem:[#allocation3 + $0x40] sm:$0xff] %vm199, %v4810
      %4827 = vst.msk [vmem:[#allocation3 + $0x50] sm:$0xff] %vm199, %v4811
      %4828 = vst.msk [vmem:[#allocation3 + $0x60] sm:$0xff] %vm199, %v4812
      %4829 = vst.msk [vmem:[#allocation3 + $0x70] sm:$0xff] %vm199, %v4813
      %4830 = vst.msk [vmem:[#allocation3 + $0x80] sm:$0xff] %vm199, %v4814
      %4831 = vst.msk [vmem:[#allocation3 + $0x90] sm:$0xff] %vm199, %v4815
      %4832 = vst.msk [vmem:[#allocation3 + $0xa0] sm:$0xff] %vm199, %v4816
      %4833 = vst.msk [vmem:[#allocation3 + $0xb0] sm:$0xff] %vm199, %v4817
      %4834 = vst.msk [vmem:[#allocation3 + $0xc0] sm:$0xff] %vm199, %v4818
      %4835 = vst.msk [vmem:[#allocation3 + $0xd0] sm:$0xff] %vm199, %v4819
      %4836 = vst.msk [vmem:[#allocation3 + $0xe0] sm:$0xff] %vm199, %v4820
      %4837 = vst.msk [vmem:[#allocation3 + $0xf0] sm:$0xff] %vm199, %v4821
      %v4838 = vld [vmem:[%s268] sm:$0xff]
      %v4839 = vld [vmem:[%s268 + $0x8] sm:$0xff]
      %v4840 = vld [vmem:[%s268 + $0x10] sm:$0xff]
      %v4841 = vld [vmem:[%s268 + $0x18] sm:$0xff]
      %v4842 = vld [vmem:[%s268 + $0x20] sm:$0xff]
      %v4843 = vld [vmem:[%s268 + $0x28] sm:$0xff]
      %v4844 = vld [vmem:[%s268 + $0x30] sm:$0xff]
      %v4845 = vld [vmem:[%s268 + $0x38] sm:$0xff]
      %v4846 = vld [vmem:[%s268 + $0x40] sm:$0xff]
      %v4847 = vld [vmem:[%s268 + $0x48] sm:$0xff]
      %v4848 = vld [vmem:[%s268 + $0x50] sm:$0xff]
      %v4849 = vld [vmem:[%s268 + $0x58] sm:$0xff]
      %v4850 = vld [vmem:[%s268 + $0x60] sm:$0xff]
      %v4851 = vld [vmem:[%s268 + $0x68] sm:$0xff]
      %v4852 = vld [vmem:[%s268 + $0x70] sm:$0xff]
      %v4853 = vld [vmem:[%s268 + $0x78] sm:$0xff]
      %v4854 = vld [vmem:[%s268 + $0x80] sm:$0xff]
      %v4855 = vld [vmem:[%s268 + $0x88] sm:$0xff]
      %v4856 = vld [vmem:[%s268 + $0x90] sm:$0xff]
      %v4857 = vld [vmem:[%s268 + $0x98] sm:$0xff]
      %v4858 = vld [vmem:[%s268 + $0xa0] sm:$0xff]
      %v4859 = vld [vmem:[%s268 + $0xa8] sm:$0xff]
      %v4860 = vld [vmem:[%s268 + $0xb0] sm:$0xff]
      %v4861 = vld [vmem:[%s268 + $0xb8] sm:$0xff]
      %v4862 = vld [vmem:[%s268 + $0xc0] sm:$0xff]
      %v4863 = vld [vmem:[%s268 + $0xc8] sm:$0xff]
      %v4864 = vld [vmem:[%s268 + $0xd0] sm:$0xff]
      %v4865 = vld [vmem:[%s268 + $0xd8] sm:$0xff]
      %v4866 = vld [vmem:[%s268 + $0xe0] sm:$0xff]
      %v4867 = vld [vmem:[%s268 + $0xe8] sm:$0xff]
      %v4868 = vld [vmem:[%s268 + $0xf0] sm:$0xff]
      %v4869 = vld [vmem:[%s268 + $0xf8] sm:$0xff]
      %v4870 = vpack.c.bf16 %v4839, %v4838
      %v4871 = vpack.c.bf16 %v4841, %v4840
      %v4872 = vpack.c.bf16 %v4843, %v4842
      %v4873 = vpack.c.bf16 %v4845, %v4844
      %v4874 = vpack.c.bf16 %v4847, %v4846
      %v4875 = vpack.c.bf16 %v4849, %v4848
      %v4876 = vpack.c.bf16 %v4851, %v4850
      %v4877 = vpack.c.bf16 %v4853, %v4852
      %v4878 = vpack.c.bf16 %v4855, %v4854
      %v4879 = vpack.c.bf16 %v4857, %v4856
      %v4880 = vpack.c.bf16 %v4859, %v4858
      %v4881 = vpack.c.bf16 %v4861, %v4860
      %v4882 = vpack.c.bf16 %v4863, %v4862
      %v4883 = vpack.c.bf16 %v4865, %v4864
      %v4884 = vpack.c.bf16 %v4867, %v4866
      %v4885 = vpack.c.bf16 %v4869, %v4868
      %4902 = vrot.lane.b32.xlu0 %v4870, 64
      %v4903 = vpop.permute.xlu0 %4902
      %4904 = vrot.lane.b32.xlu0 %v4871, 64
      %v4905 = vpop.permute.xlu0 %4904
      %4906 = vrot.lane.b32.xlu0 %v4872, 64
      %v4907 = vpop.permute.xlu0 %4906
      %4908 = vrot.lane.b32.xlu0 %v4873, 64
      %v4909 = vpop.permute.xlu0 %4908
      %4910 = vrot.lane.b32.xlu0 %v4874, 64
      %v4911 = vpop.permute.xlu0 %4910
      %4912 = vrot.lane.b32.xlu0 %v4875, 64
      %v4913 = vpop.permute.xlu0 %4912
      %4914 = vrot.lane.b32.xlu0 %v4876, 64
      %v4915 = vpop.permute.xlu0 %4914
      %4916 = vrot.lane.b32.xlu0 %v4877, 64
      %v4917 = vpop.permute.xlu0 %4916
      %4918 = vrot.lane.b32.xlu0 %v4878, 64
      %v4919 = vpop.permute.xlu0 %4918
      %4920 = vrot.lane.b32.xlu0 %v4879, 64
      %v4921 = vpop.permute.xlu0 %4920
      %4922 = vrot.lane.b32.xlu0 %v4880, 64
      %v4923 = vpop.permute.xlu0 %4922
      %4924 = vrot.lane.b32.xlu0 %v4881, 64
      %v4925 = vpop.permute.xlu0 %4924
      %4926 = vrot.lane.b32.xlu0 %v4882, 64
      %v4927 = vpop.permute.xlu0 %4926
      %4928 = vrot.lane.b32.xlu0 %v4883, 64
      %v4929 = vpop.permute.xlu0 %4928
      %4930 = vrot.lane.b32.xlu0 %v4884, 64
      %v4931 = vpop.permute.xlu0 %4930
      %4932 = vrot.lane.b32.xlu0 %v4885, 64
      %v4933 = vpop.permute.xlu0 %4932
      %4950 = vst.msk [vmem:[#allocation3] sm:$0xff] %vm478, %v4903
      %4951 = vst.msk [vmem:[#allocation3 + $0x10] sm:$0xff] %vm478, %v4905
      %4952 = vst.msk [vmem:[#allocation3 + $0x20] sm:$0xff] %vm478, %v4907
      %4953 = vst.msk [vmem:[#allocation3 + $0x30] sm:$0xff] %vm478, %v4909
      %4954 = vst.msk [vmem:[#allocation3 + $0x40] sm:$0xff] %vm478, %v4911
      %4955 = vst.msk [vmem:[#allocation3 + $0x50] sm:$0xff] %vm478, %v4913
      %4956 = vst.msk [vmem:[#allocation3 + $0x60] sm:$0xff] %vm478, %v4915
      %4957 = vst.msk [vmem:[#allocation3 + $0x70] sm:$0xff] %vm478, %v4917
      %4958 = vst.msk [vmem:[#allocation3 + $0x80] sm:$0xff] %vm478, %v4919
      %4959 = vst.msk [vmem:[#allocation3 + $0x90] sm:$0xff] %vm478, %v4921
      %4960 = vst.msk [vmem:[#allocation3 + $0xa0] sm:$0xff] %vm478, %v4923
      %4961 = vst.msk [vmem:[#allocation3 + $0xb0] sm:$0xff] %vm478, %v4925
      %4962 = vst.msk [vmem:[#allocation3 + $0xc0] sm:$0xff] %vm478, %v4927
      %4963 = vst.msk [vmem:[#allocation3 + $0xd0] sm:$0xff] %vm478, %v4929
      %4964 = vst.msk [vmem:[#allocation3 + $0xe0] sm:$0xff] %vm478, %v4931
      %4965 = vst.msk [vmem:[#allocation3 + $0xf0] sm:$0xff] %vm478, %v4933
      %v4966 = vld [vmem:[%s495] sm:$0xff]
      %v4967 = vld [vmem:[%s495 + $0x8] sm:$0xff]
      %v4968 = vld [vmem:[%s495 + $0x10] sm:$0xff]
      %v4969 = vld [vmem:[%s495 + $0x18] sm:$0xff]
      %v4970 = vld [vmem:[%s495 + $0x20] sm:$0xff]
      %v4971 = vld [vmem:[%s495 + $0x28] sm:$0xff]
      %v4972 = vld [vmem:[%s495 + $0x30] sm:$0xff]
      %v4973 = vld [vmem:[%s495 + $0x38] sm:$0xff]
      %v4974 = vld [vmem:[%s495 + $0x40] sm:$0xff]
      %v4975 = vld [vmem:[%s495 + $0x48] sm:$0xff]
      %v4976 = vld [vmem:[%s495 + $0x50] sm:$0xff]
      %v4977 = vld [vmem:[%s495 + $0x58] sm:$0xff]
      %v4978 = vld [vmem:[%s495 + $0x60] sm:$0xff]
      %v4979 = vld [vmem:[%s495 + $0x68] sm:$0xff]
      %v4980 = vld [vmem:[%s495 + $0x70] sm:$0xff]
      %v4981 = vld [vmem:[%s495 + $0x78] sm:$0xff]
      %v4982 = vld [vmem:[%s495 + $0x80] sm:$0xff]
      %v4983 = vld [vmem:[%s495 + $0x88] sm:$0xff]
      %v4984 = vld [vmem:[%s495 + $0x90] sm:$0xff]
      %v4985 = vld [vmem:[%s495 + $0x98] sm:$0xff]
      %v4986 = vld [vmem:[%s495 + $0xa0] sm:$0xff]
      %v4987 = vld [vmem:[%s495 + $0xa8] sm:$0xff]
      %v4988 = vld [vmem:[%s495 + $0xb0] sm:$0xff]
      %v4989 = vld [vmem:[%s495 + $0xb8] sm:$0xff]
      %v4990 = vld [vmem:[%s495 + $0xc0] sm:$0xff]
      %v4991 = vld [vmem:[%s495 + $0xc8] sm:$0xff]
      %v4992 = vld [vmem:[%s495 + $0xd0] sm:$0xff]
      %v4993 = vld [vmem:[%s495 + $0xd8] sm:$0xff]
      %v4994 = vld [vmem:[%s495 + $0xe0] sm:$0xff]
      %v4995 = vld [vmem:[%s495 + $0xe8] sm:$0xff]
      %v4996 = vld [vmem:[%s495 + $0xf0] sm:$0xff]
      %v4997 = vld [vmem:[%s495 + $0xf8] sm:$0xff]
      %v4998 = vpack.c.bf16 %v4967, %v4966
      %v4999 = vpack.c.bf16 %v4969, %v4968
      %v5000 = vpack.c.bf16 %v4971, %v4970
      %v5001 = vpack.c.bf16 %v4973, %v4972
      %v5002 = vpack.c.bf16 %v4975, %v4974
      %v5003 = vpack.c.bf16 %v4977, %v4976
      %v5004 = vpack.c.bf16 %v4979, %v4978
      %v5005 = vpack.c.bf16 %v4981, %v4980
      %v5006 = vpack.c.bf16 %v4983, %v4982
      %v5007 = vpack.c.bf16 %v4985, %v4984
      %v5008 = vpack.c.bf16 %v4987, %v4986
      %v5009 = vpack.c.bf16 %v4989, %v4988
      %v5010 = vpack.c.bf16 %v4991, %v4990
      %v5011 = vpack.c.bf16 %v4993, %v4992
      %v5012 = vpack.c.bf16 %v4995, %v4994
      %v5013 = vpack.c.bf16 %v4997, %v4996
      %5014 = vst.msk [vmem:[#allocation3 + $0x8] sm:$0xff] %vm199, %v4998
      %5015 = vst.msk [vmem:[#allocation3 + $0x18] sm:$0xff] %vm199, %v4999
      %5016 = vst.msk [vmem:[#allocation3 + $0x28] sm:$0xff] %vm199, %v5000
      %5017 = vst.msk [vmem:[#allocation3 + $0x38] sm:$0xff] %vm199, %v5001
      %5018 = vst.msk [vmem:[#allocation3 + $0x48] sm:$0xff] %vm199, %v5002
      %5019 = vst.msk [vmem:[#allocation3 + $0x58] sm:$0xff] %vm199, %v5003
      %5020 = vst.msk [vmem:[#allocation3 + $0x68] sm:$0xff] %vm199, %v5004
      %5021 = vst.msk [vmem:[#allocation3 + $0x78] sm:$0xff] %vm199, %v5005
      %5022 = vst.msk [vmem:[#allocation3 + $0x88] sm:$0xff] %vm199, %v5006
      %5023 = vst.msk [vmem:[#allocation3 + $0x98] sm:$0xff] %vm199, %v5007
      %5024 = vst.msk [vmem:[#allocation3 + $0xa8] sm:$0xff] %vm199, %v5008
      %5025 = vst.msk [vmem:[#allocation3 + $0xb8] sm:$0xff] %vm199, %v5009
      %5026 = vst.msk [vmem:[#allocation3 + $0xc8] sm:$0xff] %vm199, %v5010
      %5027 = vst.msk [vmem:[#allocation3 + $0xd8] sm:$0xff] %vm199, %v5011
      %5028 = vst.msk [vmem:[#allocation3 + $0xe8] sm:$0xff] %vm199, %v5012
      %5029 = vst.msk [vmem:[#allocation3 + $0xf8] sm:$0xff] %vm199, %v5013
      %v5030 = vld [vmem:[#allocation3] sm:$0xff]
      %v5031 = vld [vmem:[#allocation3 + $0x8] sm:$0xff]
      %v5032 = vld [vmem:[#allocation3 + $0x10] sm:$0xff]
      %v5033 = vld [vmem:[#allocation3 + $0x18] sm:$0xff]
      %v5034 = vld [vmem:[#allocation3 + $0x20] sm:$0xff]
      %v5035 = vld [vmem:[#allocation3 + $0x28] sm:$0xff]
      %v5036 = vld [vmem:[#allocation3 + $0x30] sm:$0xff]
      %v5037 = vld [vmem:[#allocation3 + $0x38] sm:$0xff]
      %v5038 = vld [vmem:[#allocation3 + $0x40] sm:$0xff]
      %v5039 = vld [vmem:[#allocation3 + $0x48] sm:$0xff]
      %v5040 = vld [vmem:[#allocation3 + $0x50] sm:$0xff]
      %v5041 = vld [vmem:[#allocation3 + $0x58] sm:$0xff]
      %v5042 = vld [vmem:[#allocation3 + $0x60] sm:$0xff]
      %v5043 = vld [vmem:[#allocation3 + $0x68] sm:$0xff]
      %v5044 = vld [vmem:[#allocation3 + $0x70] sm:$0xff]
      %v5045 = vld [vmem:[#allocation3 + $0x78] sm:$0xff]
      %v5046 = vld [vmem:[#allocation3 + $0x80] sm:$0xff]
      %v5047 = vld [vmem:[#allocation3 + $0x88] sm:$0xff]
      %v5048 = vld [vmem:[#allocation3 + $0x90] sm:$0xff]
      %v5049 = vld [vmem:[#allocation3 + $0x98] sm:$0xff]
      %v5050 = vld [vmem:[#allocation3 + $0xa0] sm:$0xff]
      %v5051 = vld [vmem:[#allocation3 + $0xa8] sm:$0xff]
      %v5052 = vld [vmem:[#allocation3 + $0xb0] sm:$0xff]
      %v5053 = vld [vmem:[#allocation3 + $0xb8] sm:$0xff]
      %v5054 = vld [vmem:[#allocation3 + $0xc0] sm:$0xff]
      %v5055 = vld [vmem:[#allocation3 + $0xc8] sm:$0xff]
      %v5056 = vld [vmem:[#allocation3 + $0xd0] sm:$0xff]
      %v5057 = vld [vmem:[#allocation3 + $0xd8] sm:$0xff]
      %v5058 = vld [vmem:[#allocation3 + $0xe0] sm:$0xff]
      %v5059 = vld [vmem:[#allocation3 + $0xe8] sm:$0xff]
      %v5060 = vld [vmem:[#allocation3 + $0xf0] sm:$0xff]
      %v5061 = vld [vmem:[#allocation3 + $0xf8] sm:$0xff]
      %v5063 = vshrl.u32 %v5030, 16
      %v5065 = vrot.slane %v5063, 7
      %v5066 = vshll.u32 %v5030, 16
      %v5068 = vor.u32 %v5065, %v5066
      %v5070 = vshrl.u32 %v5031, 16
      %v5072 = vrot.slane %v5070, 7
      %v5073 = vshll.u32 %v5031, 16
      %v5075 = vor.u32 %v5072, %v5073
      %v5077 = vshrl.u32 %v5032, 16
      %v5079 = vrot.slane %v5077, 7
      %v5080 = vshll.u32 %v5032, 16
      %v5082 = vor.u32 %v5079, %v5080
      %v5084 = vshrl.u32 %v5033, 16
      %v5086 = vrot.slane %v5084, 7
      %v5087 = vshll.u32 %v5033, 16
      %v5089 = vor.u32 %v5086, %v5087
      %v5091 = vshrl.u32 %v5034, 16
      %v5093 = vrot.slane %v5091, 7
      %v5094 = vshll.u32 %v5034, 16
      %v5096 = vor.u32 %v5093, %v5094
      %v5098 = vshrl.u32 %v5035, 16
      %v5100 = vrot.slane %v5098, 7
      %v5101 = vshll.u32 %v5035, 16
      %v5103 = vor.u32 %v5100, %v5101
      %v5105 = vshrl.u32 %v5036, 16
      %v5107 = vrot.slane %v5105, 7
      %v5108 = vshll.u32 %v5036, 16
      %v5110 = vor.u32 %v5107, %v5108
      %v5112 = vshrl.u32 %v5037, 16
      %v5114 = vrot.slane %v5112, 7
      %v5115 = vshll.u32 %v5037, 16
      %v5117 = vor.u32 %v5114, %v5115
      %v5119 = vshrl.u32 %v5038, 16
      %v5121 = vrot.slane %v5119, 7
      %v5122 = vshll.u32 %v5038, 16
      %v5124 = vor.u32 %v5121, %v5122
      %v5126 = vshrl.u32 %v5039, 16
      %v5128 = vrot.slane %v5126, 7
      %v5129 = vshll.u32 %v5039, 16
      %v5131 = vor.u32 %v5128, %v5129
      %v5133 = vshrl.u32 %v5040, 16
      %v5135 = vrot.slane %v5133, 7
      %v5136 = vshll.u32 %v5040, 16
      %v5138 = vor.u32 %v5135, %v5136
      %v5140 = vshrl.u32 %v5041, 16
      %v5142 = vrot.slane %v5140, 7
      %v5143 = vshll.u32 %v5041, 16
      %v5145 = vor.u32 %v5142, %v5143
      %v5147 = vshrl.u32 %v5042, 16
      %v5149 = vrot.slane %v5147, 7
      %v5150 = vshll.u32 %v5042, 16
      %v5152 = vor.u32 %v5149, %v5150
      %v5154 = vshrl.u32 %v5043, 16
      %v5156 = vrot.slane %v5154, 7
      %v5157 = vshll.u32 %v5043, 16
      %v5159 = vor.u32 %v5156, %v5157
      %v5161 = vshrl.u32 %v5044, 16
      %v5163 = vrot.slane %v5161, 7
      %v5164 = vshll.u32 %v5044, 16
      %v5166 = vor.u32 %v5163, %v5164
      %v5168 = vshrl.u32 %v5045, 16
      %v5170 = vrot.slane %v5168, 7
      %v5171 = vshll.u32 %v5045, 16
      %v5173 = vor.u32 %v5170, %v5171
      %v5175 = vshrl.u32 %v5046, 16
      %v5177 = vrot.slane %v5175, 7
      %v5178 = vshll.u32 %v5046, 16
      %v5180 = vor.u32 %v5177, %v5178
      %v5182 = vshrl.u32 %v5047, 16
      %v5184 = vrot.slane %v5182, 7
      %v5185 = vshll.u32 %v5047, 16
      %v5187 = vor.u32 %v5184, %v5185
      %v5189 = vshrl.u32 %v5048, 16
      %v5191 = vrot.slane %v5189, 7
      %v5192 = vshll.u32 %v5048, 16
      %v5194 = vor.u32 %v5191, %v5192
      %v5196 = vshrl.u32 %v5049, 16
      %v5198 = vrot.slane %v5196, 7
      %v5199 = vshll.u32 %v5049, 16
      %v5201 = vor.u32 %v5198, %v5199
      %v5203 = vshrl.u32 %v5050, 16
      %v5205 = vrot.slane %v5203, 7
      %v5206 = vshll.u32 %v5050, 16
      %v5208 = vor.u32 %v5205, %v5206
      %v5210 = vshrl.u32 %v5051, 16
      %v5212 = vrot.slane %v5210, 7
      %v5213 = vshll.u32 %v5051, 16
      %v5215 = vor.u32 %v5212, %v5213
      %v5217 = vshrl.u32 %v5052, 16
      %v5219 = vrot.slane %v5217, 7
      %v5220 = vshll.u32 %v5052, 16
      %v5222 = vor.u32 %v5219, %v5220
      %v5224 = vshrl.u32 %v5053, 16
      %v5226 = vrot.slane %v5224, 7
      %v5227 = vshll.u32 %v5053, 16
      %v5229 = vor.u32 %v5226, %v5227
      %v5231 = vshrl.u32 %v5054, 16
      %v5233 = vrot.slane %v5231, 7
      %v5234 = vshll.u32 %v5054, 16
      %v5236 = vor.u32 %v5233, %v5234
      %v5238 = vshrl.u32 %v5055, 16
      %v5240 = vrot.slane %v5238, 7
      %v5241 = vshll.u32 %v5055, 16
      %v5243 = vor.u32 %v5240, %v5241
      %v5245 = vshrl.u32 %v5056, 16
      %v5247 = vrot.slane %v5245, 7
      %v5248 = vshll.u32 %v5056, 16
      %v5250 = vor.u32 %v5247, %v5248
      %v5252 = vshrl.u32 %v5057, 16
      %v5254 = vrot.slane %v5252, 7
      %v5255 = vshll.u32 %v5057, 16
      %v5257 = vor.u32 %v5254, %v5255
      %v5259 = vshrl.u32 %v5058, 16
      %v5261 = vrot.slane %v5259, 7
      %v5262 = vshll.u32 %v5058, 16
      %v5264 = vor.u32 %v5261, %v5262
      %v5266 = vshrl.u32 %v5059, 16
      %v5268 = vrot.slane %v5266, 7
      %v5269 = vshll.u32 %v5059, 16
      %v5271 = vor.u32 %v5268, %v5269
      %v5273 = vshrl.u32 %v5060, 16
      %v5275 = vrot.slane %v5273, 7
      %v5276 = vshll.u32 %v5060, 16
      %v5278 = vor.u32 %v5275, %v5276
      %v5280 = vshrl.u32 %v5061, 16
      %v5282 = vrot.slane %v5280, 7
      %v5283 = vshll.u32 %v5061, 16
      %v5285 = vor.u32 %v5282, %v5283
      %v5318 = vsel %vm850, 0, %v5068
      %v5319 = vsel %vm850, 0, %v5075
      %v5320 = vsel %vm850, 0, %v5082
      %v5321 = vsel %vm850, 0, %v5089
      %v5322 = vsel %vm850, 0, %v5096
      %v5323 = vsel %vm850, 0, %v5103
      %v5324 = vsel %vm850, 0, %v5110
      %v5325 = vsel %vm850, 0, %v5117
      %v5326 = vsel %vm850, 0, %v5124
      %v5327 = vsel %vm850, 0, %v5131
      %v5328 = vsel %vm850, 0, %v5138
      %v5329 = vsel %vm850, 0, %v5145
      %v5330 = vsel %vm850, 0, %v5152
      %v5331 = vsel %vm850, 0, %v5159
      %v5332 = vsel %vm850, 0, %v5166
      %v5333 = vsel %vm850, 0, %v5173
      %v5334 = vsel %vm850, 0, %v5180
      %v5335 = vsel %vm850, 0, %v5187
      %v5336 = vsel %vm850, 0, %v5194
      %v5337 = vsel %vm850, 0, %v5201
      %v5338 = vsel %vm850, 0, %v5208
      %v5339 = vsel %vm850, 0, %v5215
      %v5340 = vsel %vm850, 0, %v5222
      %v5341 = vsel %vm850, 0, %v5229
      %v5342 = vsel %vm850, 0, %v5236
      %v5343 = vsel %vm850, 0, %v5243
      %v5344 = vsel %vm850, 0, %v5250
      %v5345 = vsel %vm850, 0, %v5257
      %v5346 = vsel %vm850, 0, %v5264
      %v5347 = vsel %vm850, 0, %v5271
      %v5348 = vsel %vm850, 0, %v5278
      %v5349 = vsel %vm850, 0, %v5285
      %v5350 = vld [vmem:[%s3] sm:$0xf]
      %v5351 = vld [vmem:[%s3 + $0x4] sm:$0xf]
      %v5352 = vld [vmem:[%s3 + $0x8] sm:$0xf]
      %v5353 = vld [vmem:[%s3 + $0xc] sm:$0xf]
      %v5354 = vld [vmem:[%s3 + $0x10] sm:$0xf]
      %v5355 = vld [vmem:[%s3 + $0x14] sm:$0xf]
      %v5356 = vld [vmem:[%s3 + $0x18] sm:$0xf]
      %v5357 = vld [vmem:[%s3 + $0x1c] sm:$0xf]
      %v5358 = vld [vmem:[%s3 + $0x20] sm:$0xf]
      %v5359 = vld [vmem:[%s3 + $0x24] sm:$0xf]
      %v5360 = vld [vmem:[%s3 + $0x28] sm:$0xf]
      %v5361 = vld [vmem:[%s3 + $0x2c] sm:$0xf]
      %v5362 = vld [vmem:[%s3 + $0x30] sm:$0xf]
      %v5363 = vld [vmem:[%s3 + $0x34] sm:$0xf]
      %v5364 = vld [vmem:[%s3 + $0x38] sm:$0xf]
      %v5365 = vld [vmem:[%s3 + $0x3c] sm:$0xf]
      %v5366 = vld [vmem:[%s3 + $0x40] sm:$0xf]
      %v5367 = vld [vmem:[%s3 + $0x44] sm:$0xf]
      %v5368 = vld [vmem:[%s3 + $0x48] sm:$0xf]
      %v5369 = vld [vmem:[%s3 + $0x4c] sm:$0xf]
      %v5370 = vld [vmem:[%s3 + $0x50] sm:$0xf]
      %v5371 = vld [vmem:[%s3 + $0x54] sm:$0xf]
      %v5372 = vld [vmem:[%s3 + $0x58] sm:$0xf]
      %v5373 = vld [vmem:[%s3 + $0x5c] sm:$0xf]
      %v5398 = vunpack.c.l.b16 %v5350
      %v5399 = vunpack.c.l.b16 %v5351
      %v5400 = vunpack.c.l.b16 %v5352
      %v5401 = vunpack.c.l.b16 %v5353
      %v5402 = vunpack.c.l.b16 %v5354
      %v5403 = vunpack.c.l.b16 %v5355
      %v5404 = vunpack.c.l.b16 %v5356
      %v5405 = vunpack.c.l.b16 %v5357
      %v5406 = vunpack.c.l.b16 %v5358
      %v5407 = vunpack.c.l.b16 %v5359
      %v5408 = vunpack.c.l.b16 %v5360
      %v5409 = vunpack.c.l.b16 %v5361
      %v5410 = vunpack.c.l.b16 %v5362
      %v5411 = vunpack.c.l.b16 %v5363
      %v5412 = vunpack.c.l.b16 %v5364
      %v5413 = vunpack.c.l.b16 %v5365
      %v5414 = vunpack.c.l.b16 %v5366
      %v5415 = vunpack.c.l.b16 %v5367
      %v5416 = vunpack.c.l.b16 %v5368
      %v5417 = vunpack.c.l.b16 %v5369
      %v5418 = vunpack.c.l.b16 %v5370
      %v5419 = vunpack.c.l.b16 %v5371
      %v5420 = vunpack.c.l.b16 %v5372
      %v5421 = vunpack.c.l.b16 %v5373
      %v5422 = vpack.c.b16 %v5399, %v5398
      %v5423 = vpack.c.b16 %v5401, %v5400
      %v5424 = vpack.c.b16 %v5403, %v5402
      %v5425 = vpack.c.b16 %v5405, %v5404
      %v5426 = vpack.c.b16 %v5407, %v5406
      %v5427 = vpack.c.b16 %v5409, %v5408
      %v5428 = vpack.c.b16 %v5411, %v5410
      %v5429 = vpack.c.b16 %v5413, %v5412
      %v5430 = vpack.c.b16 %v5415, %v5414
      %v5431 = vpack.c.b16 %v5417, %v5416
      %v5432 = vpack.c.b16 %v5419, %v5418
      %v5433 = vpack.c.b16 %v5421, %v5420
      %v5447 = vsel %vm199, %v5319, 0
      %v5450 = vsel %vm199, %v5321, 0
      %v5453 = vsel %vm199, %v5323, 0
      %v5456 = vsel %vm199, %v5325, 0
      %v5459 = vsel %vm199, %v5327, 0
      %v5462 = vsel %vm199, %v5329, 0
      %v5465 = vsel %vm199, %v5331, 0
      %v5468 = vsel %vm199, %v5333, 0
      %v5471 = vsel %vm199, %v5335, 0
      %v5474 = vsel %vm199, %v5337, 0
      %v5477 = vsel %vm199, %v5339, 0
      %v5480 = vsel %vm199, %v5341, 0
      %v5483 = vsel %vm199, %v5343, 0
      %v5486 = vsel %vm199, %v5345, 0
      %v5489 = vsel %vm199, %v5347, 0
      %v5492 = vsel %vm199, %v5349, 0
      %5494 = vmatprep.subr.bf16.mxu0 0
      %5495 = vmatpush1.bf16.msra.mxu0 %v5422
      %5496 = vmatprep.subr.bf16.mxu0 0
      %5497 = vmatpush1.bf16.msra.mxu0 %v5423
      %5498 = vmatprep.subr.bf16.mxu0 0
      %5499 = vmatpush1.bf16.msra.mxu0 %v5424
      %5500 = vmatprep.subr.bf16.mxu0 0
      %5501 = vmatpush1.bf16.msra.mxu0 %v5425
      %5502 = vmatprep.subr.bf16.mxu0 0
      %5503 = vmatpush1.bf16.msra.mxu0 %v5426
      %5504 = vmatprep.subr.bf16.mxu0 0
      %5505 = vmatpush1.bf16.msra.mxu0 %v5427
      %5506 = vmatprep.subr.bf16.mxu0 0
      %5507 = vmatpush1.bf16.msra.mxu0 %v5428
      %5508 = vmatprep.subr.bf16.mxu0 0
      %5509 = vmatpush1.bf16.msra.mxu0 %v5429
      %5510 = vmatprep.subr.bf16.mxu0 0
      %5511 = vmatpush1.bf16.msra.mxu0 %v5430
      %5512 = vmatprep.subr.bf16.mxu0 0
      %5513 = vmatpush1.bf16.msra.mxu0 %v5431
      %5514 = vmatprep.subr.bf16.mxu0 0
      %5515 = vmatpush1.bf16.msra.mxu0 %v5432
      %5516 = vmatprep.subr.bf16.mxu0 0
      %5517 = vmatpush1.bf16.msra.mxu0 %v5433
      %5518 = vmatprep.subr.bf16.mxu0 0
      %5519 = vmatpush1.bf16.msra.mxu0 0
      %5520 = vmatprep.subr.bf16.mxu0 0
      %5521 = vmatpush1.bf16.msra.mxu0 0
      %5522 = vmatprep.subr.bf16.mxu0 0
      %5523 = vmatpush1.bf16.msra.mxu0 0
      %5524 = vmatprep.subr.bf16.mxu0 0
      %5525 = vmatpush1.bf16.msra.mxu0 0
      %5526 = vmatprep.mubr.bf16.mxu0 %v5447
      %5527 = vmatmul.mubr.bf16.gmra.mrb[0].mxu0 %v5318
      %v5528 = vpop.f32.mrb[0].mxu0
      %v5529 = vadd.f32 0.0, %v5528
      %v5530 = vpop.f32.mrb[0].mxu0
      %v5531 = vpop.f32.mrb[0].mxu0
      %v5532 = vadd.f32 0.0, %v5531
      %v5533 = vpop.f32.mrb[0].mxu0
      %5534 = vmatprep.mubr.bf16.mxu0 %v5450
      %5535 = vmatmul.mubr.bf16.gmra.mrb[0].mxu0 %v5320
      %v5536 = vpop.f32.mrb[0].mxu0
      %v5537 = vadd.f32 0.0, %v5536
      %v5538 = vpop.f32.mrb[0].mxu0
      %v5539 = vpop.f32.mrb[0].mxu0
      %v5540 = vadd.f32 0.0, %v5539
      %v5541 = vpop.f32.mrb[0].mxu0
      %5542 = vmatprep.mubr.bf16.mxu0 %v5453
      %5543 = vmatmul.mubr.bf16.gmra.mrb[0].mxu0 %v5322
      %v5544 = vpop.f32.mrb[0].mxu0
      %v5545 = vadd.f32 0.0, %v5544
      %v5546 = vpop.f32.mrb[0].mxu0
      %v5547 = vpop.f32.mrb[0].mxu0
      %v5548 = vadd.f32 0.0, %v5547
      %v5549 = vpop.f32.mrb[0].mxu0
      %5550 = vmatprep.mubr.bf16.mxu0 %v5456
      %5551 = vmatmul.mubr.bf16.gmra.mrb[0].mxu0 %v5324
      %v5552 = vpop.f32.mrb[0].mxu0
      %v5553 = vadd.f32 0.0, %v5552
      %v5554 = vpop.f32.mrb[0].mxu0
      %v5555 = vpop.f32.mrb[0].mxu0
      %v5556 = vadd.f32 0.0, %v5555
      %v5557 = vpop.f32.mrb[0].mxu0
      %5558 = vmatprep.mubr.bf16.mxu0 %v5459
      %5559 = vmatmul.mubr.bf16.gmra.mrb[0].mxu0 %v5326
      %v5560 = vpop.f32.mrb[0].mxu0
      %v5561 = vadd.f32 0.0, %v5560
      %v5562 = vpop.f32.mrb[0].mxu0
      %v5563 = vpop.f32.mrb[0].mxu0
      %v5564 = vadd.f32 0.0, %v5563
      %v5565 = vpop.f32.mrb[0].mxu0
      %5566 = vmatprep.mubr.bf16.mxu0 %v5462
      %5567 = vmatmul.mubr.bf16.gmra.mrb[0].mxu0 %v5328
      %v5568 = vpop.f32.mrb[0].mxu0
      %v5569 = vadd.f32 0.0, %v5568
      %v5570 = vpop.f32.mrb[0].mxu0
      %v5571 = vpop.f32.mrb[0].mxu0
      %v5572 = vadd.f32 0.0, %v5571
      %v5573 = vpop.f32.mrb[0].mxu0
      %5574 = vmatprep.mubr.bf16.mxu0 %v5465
      %5575 = vmatmul.mubr.bf16.gmra.mrb[0].mxu0 %v5330
      %v5576 = vpop.f32.mrb[0].mxu0
      %v5577 = vadd.f32 0.0, %v5576
      %v5578 = vpop.f32.mrb[0].mxu0
      %v5579 = vpop.f32.mrb[0].mxu0
      %v5580 = vadd.f32 0.0, %v5579
      %v5581 = vpop.f32.mrb[0].mxu0
      %5582 = vmatprep.mubr.bf16.mxu0 %v5468
      %5583 = vmatmul.mubr.bf16.gmra.mrb[0].mxu0 %v5332
      %v5584 = vpop.f32.mrb[0].mxu0
      %v5585 = vadd.f32 0.0, %v5584
      %v5586 = vpop.f32.mrb[0].mxu0
      %v5587 = vpop.f32.mrb[0].mxu0
      %v5588 = vadd.f32 0.0, %v5587
      %v5589 = vpop.f32.mrb[0].mxu0
      %5590 = vmatprep.mubr.bf16.mxu0 %v5471
      %5591 = vmatmul.mubr.bf16.gmra.mrb[0].mxu0 %v5334
      %v5592 = vpop.f32.mrb[0].mxu0
      %v5593 = vadd.f32 0.0, %v5592
      %v5594 = vpop.f32.mrb[0].mxu0
      %v5595 = vpop.f32.mrb[0].mxu0
      %v5596 = vadd.f32 0.0, %v5595
      %v5597 = vpop.f32.mrb[0].mxu0
      %5598 = vmatprep.mubr.bf16.mxu0 %v5474
      %5599 = vmatmul.mubr.bf16.gmra.mrb[0].mxu0 %v5336
      %v5600 = vpop.f32.mrb[0].mxu0
      %v5601 = vadd.f32 0.0, %v5600
      %v5602 = vpop.f32.mrb[0].mxu0
      %v5603 = vpop.f32.mrb[0].mxu0
      %v5604 = vadd.f32 0.0, %v5603
      %v5605 = vpop.f32.mrb[0].mxu0
      %5606 = vmatprep.mubr.bf16.mxu0 %v5477
      %5607 = vmatmul.mubr.bf16.gmra.mrb[0].mxu0 %v5338
      %v5608 = vpop.f32.mrb[0].mxu0
      %v5609 = vadd.f32 0.0, %v5608
      %v5610 = vpop.f32.mrb[0].mxu0
      %v5611 = vpop.f32.mrb[0].mxu0
      %v5612 = vadd.f32 0.0, %v5611
      %v5613 = vpop.f32.mrb[0].mxu0
      %5614 = vmatprep.mubr.bf16.mxu0 %v5480
      %5615 = vmatmul.mubr.bf16.gmra.mrb[0].mxu0 %v5340
      %v5616 = vpop.f32.mrb[0].mxu0
      %v5617 = vadd.f32 0.0, %v5616
      %v5618 = vpop.f32.mrb[0].mxu0
      %v5619 = vpop.f32.mrb[0].mxu0
      %v5620 = vadd.f32 0.0, %v5619
      %v5621 = vpop.f32.mrb[0].mxu0
      %5622 = vmatprep.mubr.bf16.mxu0 %v5483
      %5623 = vmatmul.mubr.bf16.gmra.mrb[0].mxu0 %v5342
      %v5624 = vpop.f32.mrb[0].mxu0
      %v5625 = vadd.f32 0.0, %v5624
      %v5626 = vpop.f32.mrb[0].mxu0
      %v5627 = vpop.f32.mrb[0].mxu0
      %v5628 = vadd.f32 0.0, %v5627
      %v5629 = vpop.f32.mrb[0].mxu0
      %5630 = vmatprep.mubr.bf16.mxu0 %v5486
      %5631 = vmatmul.mubr.bf16.gmra.mrb[0].mxu0 %v5344
      %v5632 = vpop.f32.mrb[0].mxu0
      %v5633 = vadd.f32 0.0, %v5632
      %v5634 = vpop.f32.mrb[0].mxu0
      %v5635 = vpop.f32.mrb[0].mxu0
      %v5636 = vadd.f32 0.0, %v5635
      %v5637 = vpop.f32.mrb[0].mxu0
      %5638 = vmatprep.mubr.bf16.mxu0 %v5489
      %5639 = vmatmul.mubr.bf16.gmra.mrb[0].mxu0 %v5346
      %v5640 = vpop.f32.mrb[0].mxu0
      %v5641 = vadd.f32 0.0, %v5640
      %v5642 = vpop.f32.mrb[0].mxu0
      %v5643 = vpop.f32.mrb[0].mxu0
      %v5644 = vadd.f32 0.0, %v5643
      %v5645 = vpop.f32.mrb[0].mxu0
      %5646 = vmatprep.mubr.bf16.mxu0 %v5492
      %5647 = vmatmul.mubr.bf16.gmra.mrb[0].mxu0 %v5348
      %v5648 = vpop.f32.mrb[0].mxu0
      %v5649 = vadd.f32 0.0, %v5648
      %v5650 = vpop.f32.mrb[0].mxu0
      %v5651 = vpop.f32.mrb[0].mxu0
      %v5652 = vadd.f32 0.0, %v5651
      %v5653 = vpop.f32.mrb[0].mxu0
      %5654 = vdwg.mxu0
      %5655 = vst.msk [vmem:[#allocation4] sm:$0xff] %vm199, %v5529
      %5656 = vst.msk [vmem:[#allocation4 + $0x8] sm:$0xff] %vm199, %v5532
      %5657 = vst.msk [vmem:[#allocation4 + $0x10] sm:$0xff] %vm199, %v5537
      %5658 = vst.msk [vmem:[#allocation4 + $0x18] sm:$0xff] %vm199, %v5540
      %5659 = vst.msk [vmem:[#allocation4 + $0x20] sm:$0xff] %vm199, %v5545
      %5660 = vst.msk [vmem:[#allocation4 + $0x28] sm:$0xff] %vm199, %v5548
      %5661 = vst.msk [vmem:[#allocation4 + $0x30] sm:$0xff] %vm199, %v5553
      %5662 = vst.msk [vmem:[#allocation4 + $0x38] sm:$0xff] %vm199, %v5556
      %5663 = vst.msk [vmem:[#allocation4 + $0x40] sm:$0xff] %vm199, %v5561
      %5664 = vst.msk [vmem:[#allocation4 + $0x48] sm:$0xff] %vm199, %v5564
      %5665 = vst.msk [vmem:[#allocation4 + $0x50] sm:$0xff] %vm199, %v5569
      %5666 = vst.msk [vmem:[#allocation4 + $0x58] sm:$0xff] %vm199, %v5572
      %5667 = vst.msk [vmem:[#allocation4 + $0x60] sm:$0xff] %vm199, %v5577
      %5668 = vst.msk [vmem:[#allocation4 + $0x68] sm:$0xff] %vm199, %v5580
      %5669 = vst.msk [vmem:[#allocation4 + $0x70] sm:$0xff] %vm199, %v5585
      %5670 = vst.msk [vmem:[#allocation4 + $0x78] sm:$0xff] %vm199, %v5588
      %5671 = vst.msk [vmem:[#allocation4 + $0x80] sm:$0xff] %vm199, %v5593
      %5672 = vst.msk [vmem:[#allocation4 + $0x88] sm:$0xff] %vm199, %v5596
      %5673 = vst.msk [vmem:[#allocation4 + $0x90] sm:$0xff] %vm199, %v5601
      %5674 = vst.msk [vmem:[#allocation4 + $0x98] sm:$0xff] %vm199, %v5604
      %5675 = vst.msk [vmem:[#allocation4 + $0xa0] sm:$0xff] %vm199, %v5609
      %5676 = vst.msk [vmem:[#allocation4 + $0xa8] sm:$0xff] %vm199, %v5612
      %5677 = vst.msk [vmem:[#allocation4 + $0xb0] sm:$0xff] %vm199, %v5617
      %5678 = vst.msk [vmem:[#allocation4 + $0xb8] sm:$0xff] %vm199, %v5620
      %5679 = vst.msk [vmem:[#allocation4 + $0xc0] sm:$0xff] %vm199, %v5625
      %5680 = vst.msk [vmem:[#allocation4 + $0xc8] sm:$0xff] %vm199, %v5628
      %5681 = vst.msk [vmem:[#allocation4 + $0xd0] sm:$0xff] %vm199, %v5633
      %5682 = vst.msk [vmem:[#allocation4 + $0xd8] sm:$0xff] %vm199, %v5636
      %5683 = vst.msk [vmem:[#allocation4 + $0xe0] sm:$0xff] %vm199, %v5641
      %5684 = vst.msk [vmem:[#allocation4 + $0xe8] sm:$0xff] %vm199, %v5644
      %5685 = vst.msk [vmem:[#allocation4 + $0xf0] sm:$0xff] %vm199, %v5649
      %5686 = vst.msk [vmem:[#allocation4 + $0xf8] sm:$0xff] %vm199, %v5652
      %v5687 = vld [vmem:[#allocation3] sm:$0xff]
      %v5688 = vld [vmem:[#allocation3 + $0x8] sm:$0xff]
      %v5689 = vld [vmem:[#allocation3 + $0x10] sm:$0xff]
      %v5690 = vld [vmem:[#allocation3 + $0x18] sm:$0xff]
      %v5691 = vld [vmem:[#allocation3 + $0x20] sm:$0xff]
      %v5692 = vld [vmem:[#allocation3 + $0x28] sm:$0xff]
      %v5693 = vld [vmem:[#allocation3 + $0x30] sm:$0xff]
      %v5694 = vld [vmem:[#allocation3 + $0x38] sm:$0xff]
      %v5695 = vld [vmem:[#allocation3 + $0x40] sm:$0xff]
      %v5696 = vld [vmem:[#allocation3 + $0x48] sm:$0xff]
      %v5697 = vld [vmem:[#allocation3 + $0x50] sm:$0xff]
      %v5698 = vld [vmem:[#allocation3 + $0x58] sm:$0xff]
      %v5699 = vld [vmem:[#allocation3 + $0x60] sm:$0xff]
      %v5700 = vld [vmem:[#allocation3 + $0x68] sm:$0xff]
      %v5701 = vld [vmem:[#allocation3 + $0x70] sm:$0xff]
      %v5702 = vld [vmem:[#allocation3 + $0x78] sm:$0xff]
      %v5703 = vld [vmem:[#allocation3 + $0x80] sm:$0xff]
      %v5704 = vld [vmem:[#allocation3 + $0x88] sm:$0xff]
      %v5705 = vld [vmem:[#allocation3 + $0x90] sm:$0xff]
      %v5706 = vld [vmem:[#allocation3 + $0x98] sm:$0xff]
      %v5707 = vld [vmem:[#allocation3 + $0xa0] sm:$0xff]
      %v5708 = vld [vmem:[#allocation3 + $0xa8] sm:$0xff]
      %v5709 = vld [vmem:[#allocation3 + $0xb0] sm:$0xff]
      %v5710 = vld [vmem:[#allocation3 + $0xb8] sm:$0xff]
      %v5711 = vld [vmem:[#allocation3 + $0xc0] sm:$0xff]
      %v5712 = vld [vmem:[#allocation3 + $0xc8] sm:$0xff]
      %v5713 = vld [vmem:[#allocation3 + $0xd0] sm:$0xff]
      %v5714 = vld [vmem:[#allocation3 + $0xd8] sm:$0xff]
      %v5715 = vld [vmem:[#allocation3 + $0xe0] sm:$0xff]
      %v5716 = vld [vmem:[#allocation3 + $0xe8] sm:$0xff]
      %v5717 = vld [vmem:[#allocation3 + $0xf0] sm:$0xff]
      %v5718 = vld [vmem:[#allocation3 + $0xf8] sm:$0xff]
      %s5719 = scalar_lea.vmem %s3, 96
      %v5720 = vld [vmem:[%s5719] sm:$0xf]
      %v5721 = vld [vmem:[%s5719 + $0x4] sm:$0xf]
      %v5722 = vld [vmem:[%s5719 + $0x8] sm:$0xf]
      %v5723 = vld [vmem:[%s5719 + $0xc] sm:$0xf]
      %v5724 = vld [vmem:[%s5719 + $0x10] sm:$0xf]
      %v5725 = vld [vmem:[%s5719 + $0x14] sm:$0xf]
      %v5726 = vld [vmem:[%s5719 + $0x18] sm:$0xf]
      %v5727 = vld [vmem:[%s5719 + $0x1c] sm:$0xf]
      %v5728 = vld [vmem:[%s5719 + $0x20] sm:$0xf]
      %v5729 = vld [vmem:[%s5719 + $0x24] sm:$0xf]
      %v5730 = vld [vmem:[%s5719 + $0x28] sm:$0xf]
      %v5731 = vld [vmem:[%s5719 + $0x2c] sm:$0xf]
      %v5732 = vld [vmem:[%s5719 + $0x30] sm:$0xf]
      %v5733 = vld [vmem:[%s5719 + $0x34] sm:$0xf]
      %v5734 = vld [vmem:[%s5719 + $0x38] sm:$0xf]
      %v5735 = vld [vmem:[%s5719 + $0x3c] sm:$0xf]
      %v5736 = vld [vmem:[%s5719 + $0x40] sm:$0xf]
      %v5737 = vld [vmem:[%s5719 + $0x44] sm:$0xf]
      %v5738 = vld [vmem:[%s5719 + $0x48] sm:$0xf]
      %v5739 = vld [vmem:[%s5719 + $0x4c] sm:$0xf]
      %v5740 = vld [vmem:[%s5719 + $0x50] sm:$0xf]
      %v5741 = vld [vmem:[%s5719 + $0x54] sm:$0xf]
      %v5742 = vld [vmem:[%s5719 + $0x58] sm:$0xf]
      %v5743 = vld [vmem:[%s5719 + $0x5c] sm:$0xf]
      %v5768 = vunpack.c.l.b16 %v5720
      %v5769 = vunpack.c.l.b16 %v5721
      %v5770 = vunpack.c.l.b16 %v5722
      %v5771 = vunpack.c.l.b16 %v5723
      %v5772 = vunpack.c.l.b16 %v5724
      %v5773 = vunpack.c.l.b16 %v5725
      %v5774 = vunpack.c.l.b16 %v5726
      %v5775 = vunpack.c.l.b16 %v5727
      %v5776 = vunpack.c.l.b16 %v5728
      %v5777 = vunpack.c.l.b16 %v5729
      %v5778 = vunpack.c.l.b16 %v5730
      %v5779 = vunpack.c.l.b16 %v5731
      %v5780 = vunpack.c.l.b16 %v5732
      %v5781 = vunpack.c.l.b16 %v5733
      %v5782 = vunpack.c.l.b16 %v5734
      %v5783 = vunpack.c.l.b16 %v5735
      %v5784 = vunpack.c.l.b16 %v5736
      %v5785 = vunpack.c.l.b16 %v5737
      %v5786 = vunpack.c.l.b16 %v5738
      %v5787 = vunpack.c.l.b16 %v5739
      %v5788 = vunpack.c.l.b16 %v5740
      %v5789 = vunpack.c.l.b16 %v5741
      %v5790 = vunpack.c.l.b16 %v5742
      %v5791 = vunpack.c.l.b16 %v5743
      %v5792 = vpack.c.b16 %v5769, %v5768
      %v5793 = vpack.c.b16 %v5771, %v5770
      %v5794 = vpack.c.b16 %v5773, %v5772
      %v5795 = vpack.c.b16 %v5775, %v5774
      %v5796 = vpack.c.b16 %v5777, %v5776
      %v5797 = vpack.c.b16 %v5779, %v5778
      %v5798 = vpack.c.b16 %v5781, %v5780
      %v5799 = vpack.c.b16 %v5783, %v5782
      %v5800 = vpack.c.b16 %v5785, %v5784
      %v5801 = vpack.c.b16 %v5787, %v5786
      %v5802 = vpack.c.b16 %v5789, %v5788
      %v5803 = vpack.c.b16 %v5791, %v5790
      %v5817 = vsel %vm199, %v5688, 0
      %v5820 = vsel %vm199, %v5690, 0
      %v5823 = vsel %vm199, %v5692, 0
      %v5826 = vsel %vm199, %v5694, 0
      %v5829 = vsel %vm199, %v5696, 0
      %v5832 = vsel %vm199, %v5698, 0
      %v5835 = vsel %vm199, %v5700, 0
      %v5838 = vsel %vm199, %v5702, 0
      %v5841 = vsel %vm199, %v5704, 0
      %v5844 = vsel %vm199, %v5706, 0
      %v5847 = vsel %vm199, %v5708, 0
      %v5850 = vsel %vm199, %v5710, 0
      %v5853 = vsel %vm199, %v5712, 0
      %v5856 = vsel %vm199, %v5714, 0
      %v5859 = vsel %vm199, %v5716, 0
      %v5862 = vsel %vm199, %v5718, 0
      %5864 = vmatprep.subr.bf16.mxu0 0
      %5865 = vmatpush1.bf16.msra.mxu0 %v5792
      %5866 = vmatprep.subr.bf16.mxu0 0
      %5867 = vmatpush1.bf16.msra.mxu0 %v5793
      %5868 = vmatprep.subr.bf16.mxu0 0
      %5869 = vmatpush1.bf16.msra.mxu0 %v5794
      %5870 = vmatprep.subr.bf16.mxu0 0
      %5871 = vmatpush1.bf16.msra.mxu0 %v5795
      %5872 = vmatprep.subr.bf16.mxu0 0
      %5873 = vmatpush1.bf16.msra.mxu0 %v5796
      %5874 = vmatprep.subr.bf16.mxu0 0
      %5875 = vmatpush1.bf16.msra.mxu0 %v5797
      %5876 = vmatprep.subr.bf16.mxu0 0
      %5877 = vmatpush1.bf16.msra.mxu0 %v5798
      %5878 = vmatprep.subr.bf16.mxu0 0
      %5879 = vmatpush1.bf16.msra.mxu0 %v5799
      %5880 = vmatprep.subr.bf16.mxu0 0
      %5881 = vmatpush1.bf16.msra.mxu0 %v5800
      %5882 = vmatprep.subr.bf16.mxu0 0
      %5883 = vmatpush1.bf16.msra.mxu0 %v5801
      %5884 = vmatprep.subr.bf16.mxu0 0
      %5885 = vmatpush1.bf16.msra.mxu0 %v5802
      %5886 = vmatprep.subr.bf16.mxu0 0
      %5887 = vmatpush1.bf16.msra.mxu0 %v5803
      %5888 = vmatprep.subr.bf16.mxu0 0
      %5889 = vmatpush1.bf16.msra.mxu0 0
      %5890 = vmatprep.subr.bf16.mxu0 0
      %5891 = vmatpush1.bf16.msra.mxu0 0
      %5892 = vmatprep.subr.bf16.mxu0 0
      %5893 = vmatpush1.bf16.msra.mxu0 0
      %5894 = vmatprep.subr.bf16.mxu0 0
      %5895 = vmatpush1.bf16.msra.mxu0 0
      %5896 = vmatprep.mubr.bf16.mxu0 %v5817
      %5897 = vmatmul.mubr.bf16.gmra.mrb[0].mxu0 %v5687
      %v5898 = vpop.f32.mrb[0].mxu0
      %v5899 = vadd.f32 0.0, %v5898
      %v5900 = vpop.f32.mrb[0].mxu0
      %v5901 = vpop.f32.mrb[0].mxu0
      %v5902 = vadd.f32 0.0, %v5901
      %v5903 = vpop.f32.mrb[0].mxu0
      %5904 = vmatprep.mubr.bf16.mxu0 %v5820
      %5905 = vmatmul.mubr.bf16.gmra.mrb[0].mxu0 %v5689
      %v5906 = vpop.f32.mrb[0].mxu0
      %v5907 = vadd.f32 0.0, %v5906
      %v5908 = vpop.f32.mrb[0].mxu0
      %v5909 = vpop.f32.mrb[0].mxu0
      %v5910 = vadd.f32 0.0, %v5909
      %v5911 = vpop.f32.mrb[0].mxu0
      %5912 = vmatprep.mubr.bf16.mxu0 %v5823
      %5913 = vmatmul.mubr.bf16.gmra.mrb[0].mxu0 %v5691
      %v5914 = vpop.f32.mrb[0].mxu0
      %v5915 = vadd.f32 0.0, %v5914
      %v5916 = vpop.f32.mrb[0].mxu0
      %v5917 = vpop.f32.mrb[0].mxu0
      %v5918 = vadd.f32 0.0, %v5917
      %v5919 = vpop.f32.mrb[0].mxu0
      %5920 = vmatprep.mubr.bf16.mxu0 %v5826
      %5921 = vmatmul.mubr.bf16.gmra.mrb[0].mxu0 %v5693
      %v5922 = vpop.f32.mrb[0].mxu0
      %v5923 = vadd.f32 0.0, %v5922
      %v5924 = vpop.f32.mrb[0].mxu0
      %v5925 = vpop.f32.mrb[0].mxu0
      %v5926 = vadd.f32 0.0, %v5925
      %v5927 = vpop.f32.mrb[0].mxu0
      %5928 = vmatprep.mubr.bf16.mxu0 %v5829
      %5929 = vmatmul.mubr.bf16.gmra.mrb[0].mxu0 %v5695
      %v5930 = vpop.f32.mrb[0].mxu0
      %v5931 = vadd.f32 0.0, %v5930
      %v5932 = vpop.f32.mrb[0].mxu0
      %v5933 = vpop.f32.mrb[0].mxu0
      %v5934 = vadd.f32 0.0, %v5933
      %v5935 = vpop.f32.mrb[0].mxu0
      %5936 = vmatprep.mubr.bf16.mxu0 %v5832
      %5937 = vmatmul.mubr.bf16.gmra.mrb[0].mxu0 %v5697
      %v5938 = vpop.f32.mrb[0].mxu0
      %v5939 = vadd.f32 0.0, %v5938
      %v5940 = vpop.f32.mrb[0].mxu0
      %v5941 = vpop.f32.mrb[0].mxu0
      %v5942 = vadd.f32 0.0, %v5941
      %v5943 = vpop.f32.mrb[0].mxu0
      %5944 = vmatprep.mubr.bf16.mxu0 %v5835
      %5945 = vmatmul.mubr.bf16.gmra.mrb[0].mxu0 %v5699
      %v5946 = vpop.f32.mrb[0].mxu0
      %v5947 = vadd.f32 0.0, %v5946
      %v5948 = vpop.f32.mrb[0].mxu0
      %v5949 = vpop.f32.mrb[0].mxu0
      %v5950 = vadd.f32 0.0, %v5949
      %v5951 = vpop.f32.mrb[0].mxu0
      %5952 = vmatprep.mubr.bf16.mxu0 %v5838
      %5953 = vmatmul.mubr.bf16.gmra.mrb[0].mxu0 %v5701
      %v5954 = vpop.f32.mrb[0].mxu0
      %v5955 = vadd.f32 0.0, %v5954
      %v5956 = vpop.f32.mrb[0].mxu0
      %v5957 = vpop.f32.mrb[0].mxu0
      %v5958 = vadd.f32 0.0, %v5957
      %v5959 = vpop.f32.mrb[0].mxu0
      %5960 = vmatprep.mubr.bf16.mxu0 %v5841
      %5961 = vmatmul.mubr.bf16.gmra.mrb[0].mxu0 %v5703
      %v5962 = vpop.f32.mrb[0].mxu0
      %v5963 = vadd.f32 0.0, %v5962
      %v5964 = vpop.f32.mrb[0].mxu0
      %v5965 = vpop.f32.mrb[0].mxu0
      %v5966 = vadd.f32 0.0, %v5965
      %v5967 = vpop.f32.mrb[0].mxu0
      %5968 = vmatprep.mubr.bf16.mxu0 %v5844
      %5969 = vmatmul.mubr.bf16.gmra.mrb[0].mxu0 %v5705
      %v5970 = vpop.f32.mrb[0].mxu0
      %v5971 = vadd.f32 0.0, %v5970
      %v5972 = vpop.f32.mrb[0].mxu0
      %v5973 = vpop.f32.mrb[0].mxu0
      %v5974 = vadd.f32 0.0, %v5973
      %v5975 = vpop.f32.mrb[0].mxu0
      %5976 = vmatprep.mubr.bf16.mxu0 %v5847
      %5977 = vmatmul.mubr.bf16.gmra.mrb[0].mxu0 %v5707
      %v5978 = vpop.f32.mrb[0].mxu0
      %v5979 = vadd.f32 0.0, %v5978
      %v5980 = vpop.f32.mrb[0].mxu0
      %v5981 = vpop.f32.mrb[0].mxu0
      %v5982 = vadd.f32 0.0, %v5981
      %v5983 = vpop.f32.mrb[0].mxu0
      %5984 = vmatprep.mubr.bf16.mxu0 %v5850
      %5985 = vmatmul.mubr.bf16.gmra.mrb[0].mxu0 %v5709
      %v5986 = vpop.f32.mrb[0].mxu0
      %v5987 = vadd.f32 0.0, %v5986
      %v5988 = vpop.f32.mrb[0].mxu0
      %v5989 = vpop.f32.mrb[0].mxu0
      %v5990 = vadd.f32 0.0, %v5989
      %v5991 = vpop.f32.mrb[0].mxu0
      %5992 = vmatprep.mubr.bf16.mxu0 %v5853
      %5993 = vmatmul.mubr.bf16.gmra.mrb[0].mxu0 %v5711
      %v5994 = vpop.f32.mrb[0].mxu0
      %v5995 = vadd.f32 0.0, %v5994
      %v5996 = vpop.f32.mrb[0].mxu0
      %v5997 = vpop.f32.mrb[0].mxu0
      %v5998 = vadd.f32 0.0, %v5997
      %v5999 = vpop.f32.mrb[0].mxu0
      %6000 = vmatprep.mubr.bf16.mxu0 %v5856
      %6001 = vmatmul.mubr.bf16.gmra.mrb[0].mxu0 %v5713
      %v6002 = vpop.f32.mrb[0].mxu0
      %v6003 = vadd.f32 0.0, %v6002
      %v6004 = vpop.f32.mrb[0].mxu0
      %v6005 = vpop.f32.mrb[0].mxu0
      %v6006 = vadd.f32 0.0, %v6005
      %v6007 = vpop.f32.mrb[0].mxu0
      %6008 = vmatprep.mubr.bf16.mxu0 %v5859
      %6009 = vmatmul.mubr.bf16.gmra.mrb[0].mxu0 %v5715
      %v6010 = vpop.f32.mrb[0].mxu0
      %v6011 = vadd.f32 0.0, %v6010
      %v6012 = vpop.f32.mrb[0].mxu0
      %v6013 = vpop.f32.mrb[0].mxu0
      %v6014 = vadd.f32 0.0, %v6013
      %v6015 = vpop.f32.mrb[0].mxu0
      %6016 = vmatprep.mubr.bf16.mxu0 %v5862
      %6017 = vmatmul.mubr.bf16.gmra.mrb[0].mxu0 %v5717
      %v6018 = vpop.f32.mrb[0].mxu0
      %v6019 = vadd.f32 0.0, %v6018
      %v6020 = vpop.f32.mrb[0].mxu0
      %v6021 = vpop.f32.mrb[0].mxu0
      %v6022 = vadd.f32 0.0, %v6021
      %v6023 = vpop.f32.mrb[0].mxu0
      %6024 = vdwg.mxu0
      %v6025 = vld [vmem:[#allocation4] sm:$0xff]
      %v6026 = vld [vmem:[#allocation4 + $0x8] sm:$0xff]
      %v6027 = vld [vmem:[#allocation4 + $0x10] sm:$0xff]
      %v6028 = vld [vmem:[#allocation4 + $0x18] sm:$0xff]
      %v6029 = vld [vmem:[#allocation4 + $0x20] sm:$0xff]
      %v6030 = vld [vmem:[#allocation4 + $0x28] sm:$0xff]
      %v6031 = vld [vmem:[#allocation4 + $0x30] sm:$0xff]
      %v6032 = vld [vmem:[#allocation4 + $0x38] sm:$0xff]
      %v6033 = vld [vmem:[#allocation4 + $0x40] sm:$0xff]
      %v6034 = vld [vmem:[#allocation4 + $0x48] sm:$0xff]
      %v6035 = vld [vmem:[#allocation4 + $0x50] sm:$0xff]
      %v6036 = vld [vmem:[#allocation4 + $0x58] sm:$0xff]
      %v6037 = vld [vmem:[#allocation4 + $0x60] sm:$0xff]
      %v6038 = vld [vmem:[#allocation4 + $0x68] sm:$0xff]
      %v6039 = vld [vmem:[#allocation4 + $0x70] sm:$0xff]
      %v6040 = vld [vmem:[#allocation4 + $0x78] sm:$0xff]
      %v6041 = vld [vmem:[#allocation4 + $0x80] sm:$0xff]
      %v6042 = vld [vmem:[#allocation4 + $0x88] sm:$0xff]
      %v6043 = vld [vmem:[#allocation4 + $0x90] sm:$0xff]
      %v6044 = vld [vmem:[#allocation4 + $0x98] sm:$0xff]
      %v6045 = vld [vmem:[#allocation4 + $0xa0] sm:$0xff]
      %v6046 = vld [vmem:[#allocation4 + $0xa8] sm:$0xff]
      %v6047 = vld [vmem:[#allocation4 + $0xb0] sm:$0xff]
      %v6048 = vld [vmem:[#allocation4 + $0xb8] sm:$0xff]
      %v6049 = vld [vmem:[#allocation4 + $0xc0] sm:$0xff]
      %v6050 = vld [vmem:[#allocation4 + $0xc8] sm:$0xff]
      %v6051 = vld [vmem:[#allocation4 + $0xd0] sm:$0xff]
      %v6052 = vld [vmem:[#allocation4 + $0xd8] sm:$0xff]
      %v6053 = vld [vmem:[#allocation4 + $0xe0] sm:$0xff]
      %v6054 = vld [vmem:[#allocation4 + $0xe8] sm:$0xff]
      %v6055 = vld [vmem:[#allocation4 + $0xf0] sm:$0xff]
      %v6056 = vld [vmem:[#allocation4 + $0xf8] sm:$0xff]
      %v6057 = vadd.f32 %v6025, %v5899
      %v6058 = vadd.f32 %v6026, %v5902
      %v6059 = vadd.f32 %v6027, %v5907
      %v6060 = vadd.f32 %v6028, %v5910
      %v6061 = vadd.f32 %v6029, %v5915
      %v6062 = vadd.f32 %v6030, %v5918
      %v6063 = vadd.f32 %v6031, %v5923
      %v6064 = vadd.f32 %v6032, %v5926
      %v6065 = vadd.f32 %v6033, %v5931
      %v6066 = vadd.f32 %v6034, %v5934
      %v6067 = vadd.f32 %v6035, %v5939
      %v6068 = vadd.f32 %v6036, %v5942
      %v6069 = vadd.f32 %v6037, %v5947
      %v6070 = vadd.f32 %v6038, %v5950
      %v6071 = vadd.f32 %v6039, %v5955
      %v6072 = vadd.f32 %v6040, %v5958
      %v6073 = vadd.f32 %v6041, %v5963
      %v6074 = vadd.f32 %v6042, %v5966
      %v6075 = vadd.f32 %v6043, %v5971
      %v6076 = vadd.f32 %v6044, %v5974
      %v6077 = vadd.f32 %v6045, %v5979
      %v6078 = vadd.f32 %v6046, %v5982
      %v6079 = vadd.f32 %v6047, %v5987
      %v6080 = vadd.f32 %v6048, %v5990
      %v6081 = vadd.f32 %v6049, %v5995
      %v6082 = vadd.f32 %v6050, %v5998
      %v6083 = vadd.f32 %v6051, %v6003
      %v6084 = vadd.f32 %v6052, %v6006
      %v6085 = vadd.f32 %v6053, %v6011
      %v6086 = vadd.f32 %v6054, %v6014
      %v6087 = vadd.f32 %v6055, %v6019
      %v6088 = vadd.f32 %v6056, %v6022
      %6089 = vst.msk [vmem:[#allocation4] sm:$0xff] %vm199, %v6057
      %6090 = vst.msk [vmem:[#allocation4 + $0x8] sm:$0xff] %vm199, %v6058
      %6091 = vst.msk [vmem:[#allocation4 + $0x10] sm:$0xff] %vm199, %v6059
      %6092 = vst.msk [vmem:[#allocation4 + $0x18] sm:$0xff] %vm199, %v6060
      %6093 = vst.msk [vmem:[#allocation4 + $0x20] sm:$0xff] %vm199, %v6061
      %6094 = vst.msk [vmem:[#allocation4 + $0x28] sm:$0xff] %vm199, %v6062
      %6095 = vst.msk [vmem:[#allocation4 + $0x30] sm:$0xff] %vm199, %v6063
      %6096 = vst.msk [vmem:[#allocation4 + $0x38] sm:$0xff] %vm199, %v6064
      %6097 = vst.msk [vmem:[#allocation4 + $0x40] sm:$0xff] %vm199, %v6065
      %6098 = vst.msk [vmem:[#allocation4 + $0x48] sm:$0xff] %vm199, %v6066
      %6099 = vst.msk [vmem:[#allocation4 + $0x50] sm:$0xff] %vm199, %v6067
      %6100 = vst.msk [vmem:[#allocation4 + $0x58] sm:$0xff] %vm199, %v6068
      %6101 = vst.msk [vmem:[#allocation4 + $0x60] sm:$0xff] %vm199, %v6069
      %6102 = vst.msk [vmem:[#allocation4 + $0x68] sm:$0xff] %vm199, %v6070
      %6103 = vst.msk [vmem:[#allocation4 + $0x70] sm:$0xff] %vm199, %v6071
      %6104 = vst.msk [vmem:[#allocation4 + $0x78] sm:$0xff] %vm199, %v6072
      %6105 = vst.msk [vmem:[#allocation4 + $0x80] sm:$0xff] %vm199, %v6073
      %6106 = vst.msk [vmem:[#allocation4 + $0x88] sm:$0xff] %vm199, %v6074
      %6107 = vst.msk [vmem:[#allocation4 + $0x90] sm:$0xff] %vm199, %v6075
      %6108 = vst.msk [vmem:[#allocation4 + $0x98] sm:$0xff] %vm199, %v6076
      %6109 = vst.msk [vmem:[#allocation4 + $0xa0] sm:$0xff] %vm199, %v6077
      %6110 = vst.msk [vmem:[#allocation4 + $0xa8] sm:$0xff] %vm199, %v6078
      %6111 = vst.msk [vmem:[#allocation4 + $0xb0] sm:$0xff] %vm199, %v6079
      %6112 = vst.msk [vmem:[#allocation4 + $0xb8] sm:$0xff] %vm199, %v6080
      %6113 = vst.msk [vmem:[#allocation4 + $0xc0] sm:$0xff] %vm199, %v6081
      %6114 = vst.msk [vmem:[#allocation4 + $0xc8] sm:$0xff] %vm199, %v6082
      %6115 = vst.msk [vmem:[#allocation4 + $0xd0] sm:$0xff] %vm199, %v6083
      %6116 = vst.msk [vmem:[#allocation4 + $0xd8] sm:$0xff] %vm199, %v6084
      %6117 = vst.msk [vmem:[#allocation4 + $0xe0] sm:$0xff] %vm199, %v6085
      %6118 = vst.msk [vmem:[#allocation4 + $0xe8] sm:$0xff] %vm199, %v6086
      %6119 = vst.msk [vmem:[#allocation4 + $0xf0] sm:$0xff] %vm199, %v6087
      %6120 = vst.msk [vmem:[#allocation4 + $0xf8] sm:$0xff] %vm199, %v6088
      %v6121 = vld [vmem:[#allocation3] sm:$0xff]
      %v6122 = vld [vmem:[#allocation3 + $0x8] sm:$0xff]
      %v6123 = vld [vmem:[#allocation3 + $0x10] sm:$0xff]
      %v6124 = vld [vmem:[#allocation3 + $0x18] sm:$0xff]
      %v6125 = vld [vmem:[#allocation3 + $0x20] sm:$0xff]
      %v6126 = vld [vmem:[#allocation3 + $0x28] sm:$0xff]
      %v6127 = vld [vmem:[#allocation3 + $0x30] sm:$0xff]
      %v6128 = vld [vmem:[#allocation3 + $0x38] sm:$0xff]
      %v6129 = vld [vmem:[#allocation3 + $0x40] sm:$0xff]
      %v6130 = vld [vmem:[#allocation3 + $0x48] sm:$0xff]
      %v6131 = vld [vmem:[#allocation3 + $0x50] sm:$0xff]
      %v6132 = vld [vmem:[#allocation3 + $0x58] sm:$0xff]
      %v6133 = vld [vmem:[#allocation3 + $0x60] sm:$0xff]
      %v6134 = vld [vmem:[#allocation3 + $0x68] sm:$0xff]
      %v6135 = vld [vmem:[#allocation3 + $0x70] sm:$0xff]
      %v6136 = vld [vmem:[#allocation3 + $0x78] sm:$0xff]
      %v6137 = vld [vmem:[#allocation3 + $0x80] sm:$0xff]
      %v6138 = vld [vmem:[#allocation3 + $0x88] sm:$0xff]
      %v6139 = vld [vmem:[#allocation3 + $0x90] sm:$0xff]
      %v6140 = vld [vmem:[#allocation3 + $0x98] sm:$0xff]
      %v6141 = vld [vmem:[#allocation3 + $0xa0] sm:$0xff]
      %v6142 = vld [vmem:[#allocation3 + $0xa8] sm:$0xff]
      %v6143 = vld [vmem:[#allocation3 + $0xb0] sm:$0xff]
      %v6144 = vld [vmem:[#allocation3 + $0xb8] sm:$0xff]
      %v6145 = vld [vmem:[#allocation3 + $0xc0] sm:$0xff]
      %v6146 = vld [vmem:[#allocation3 + $0xc8] sm:$0xff]
      %v6147 = vld [vmem:[#allocation3 + $0xd0] sm:$0xff]
      %v6148 = vld [vmem:[#allocation3 + $0xd8] sm:$0xff]
      %v6149 = vld [vmem:[#allocation3 + $0xe0] sm:$0xff]
      %v6150 = vld [vmem:[#allocation3 + $0xe8] sm:$0xff]
      %v6151 = vld [vmem:[#allocation3 + $0xf0] sm:$0xff]
      %v6152 = vld [vmem:[#allocation3 + $0xf8] sm:$0xff]
      %v6154 = vshrl.u32 %v6121, 16
      %v6156 = vshll.u32 %v6121, 16
      %v6158 = vrot.slane %v6156, 1
      %v6159 = vor.u32 %v6154, %v6158
      %v6161 = vshrl.u32 %v6122, 16
      %v6163 = vshll.u32 %v6122, 16
      %v6165 = vrot.slane %v6163, 1
      %v6166 = vor.u32 %v6161, %v6165
      %v6168 = vshrl.u32 %v6123, 16
      %v6170 = vshll.u32 %v6123, 16
      %v6172 = vrot.slane %v6170, 1
      %v6173 = vor.u32 %v6168, %v6172
      %v6175 = vshrl.u32 %v6124, 16
      %v6177 = vshll.u32 %v6124, 16
      %v6179 = vrot.slane %v6177, 1
      %v6180 = vor.u32 %v6175, %v6179
      %v6182 = vshrl.u32 %v6125, 16
      %v6184 = vshll.u32 %v6125, 16
      %v6186 = vrot.slane %v6184, 1
      %v6187 = vor.u32 %v6182, %v6186
      %v6189 = vshrl.u32 %v6126, 16
      %v6191 = vshll.u32 %v6126, 16
      %v6193 = vrot.slane %v6191, 1
      %v6194 = vor.u32 %v6189, %v6193
      %v6196 = vshrl.u32 %v6127, 16
      %v6198 = vshll.u32 %v6127, 16
      %v6200 = vrot.slane %v6198, 1
      %v6201 = vor.u32 %v6196, %v6200
      %v6203 = vshrl.u32 %v6128, 16
      %v6205 = vshll.u32 %v6128, 16
      %v6207 = vrot.slane %v6205, 1
      %v6208 = vor.u32 %v6203, %v6207
      %v6210 = vshrl.u32 %v6129, 16
      %v6212 = vshll.u32 %v6129, 16
      %v6214 = vrot.slane %v6212, 1
      %v6215 = vor.u32 %v6210, %v6214
      %v6217 = vshrl.u32 %v6130, 16
      %v6219 = vshll.u32 %v6130, 16
      %v6221 = vrot.slane %v6219, 1
      %v6222 = vor.u32 %v6217, %v6221
      %v6224 = vshrl.u32 %v6131, 16
      %v6226 = vshll.u32 %v6131, 16
      %v6228 = vrot.slane %v6226, 1
      %v6229 = vor.u32 %v6224, %v6228
      %v6231 = vshrl.u32 %v6132, 16
      %v6233 = vshll.u32 %v6132, 16
      %v6235 = vrot.slane %v6233, 1
      %v6236 = vor.u32 %v6231, %v6235
      %v6238 = vshrl.u32 %v6133, 16
      %v6240 = vshll.u32 %v6133, 16
      %v6242 = vrot.slane %v6240, 1
      %v6243 = vor.u32 %v6238, %v6242
      %v6245 = vshrl.u32 %v6134, 16
      %v6247 = vshll.u32 %v6134, 16
      %v6249 = vrot.slane %v6247, 1
      %v6250 = vor.u32 %v6245, %v6249
      %v6252 = vshrl.u32 %v6135, 16
      %v6254 = vshll.u32 %v6135, 16
      %v6256 = vrot.slane %v6254, 1
      %v6257 = vor.u32 %v6252, %v6256
      %v6259 = vshrl.u32 %v6136, 16
      %v6261 = vshll.u32 %v6136, 16
      %v6263 = vrot.slane %v6261, 1
      %v6264 = vor.u32 %v6259, %v6263
      %v6266 = vshrl.u32 %v6137, 16
      %v6268 = vshll.u32 %v6137, 16
      %v6270 = vrot.slane %v6268, 1
      %v6271 = vor.u32 %v6266, %v6270
      %v6273 = vshrl.u32 %v6138, 16
      %v6275 = vshll.u32 %v6138, 16
      %v6277 = vrot.slane %v6275, 1
      %v6278 = vor.u32 %v6273, %v6277
      %v6280 = vshrl.u32 %v6139, 16
      %v6282 = vshll.u32 %v6139, 16
      %v6284 = vrot.slane %v6282, 1
      %v6285 = vor.u32 %v6280, %v6284
      %v6287 = vshrl.u32 %v6140, 16
      %v6289 = vshll.u32 %v6140, 16
      %v6291 = vrot.slane %v6289, 1
      %v6292 = vor.u32 %v6287, %v6291
      %v6294 = vshrl.u32 %v6141, 16
      %v6296 = vshll.u32 %v6141, 16
      %v6298 = vrot.slane %v6296, 1
      %v6299 = vor.u32 %v6294, %v6298
      %v6301 = vshrl.u32 %v6142, 16
      %v6303 = vshll.u32 %v6142, 16
      %v6305 = vrot.slane %v6303, 1
      %v6306 = vor.u32 %v6301, %v6305
      %v6308 = vshrl.u32 %v6143, 16
      %v6310 = vshll.u32 %v6143, 16
      %v6312 = vrot.slane %v6310, 1
      %v6313 = vor.u32 %v6308, %v6312
      %v6315 = vshrl.u32 %v6144, 16
      %v6317 = vshll.u32 %v6144, 16
      %v6319 = vrot.slane %v6317, 1
      %v6320 = vor.u32 %v6315, %v6319
      %v6322 = vshrl.u32 %v6145, 16
      %v6324 = vshll.u32 %v6145, 16
      %v6326 = vrot.slane %v6324, 1
      %v6327 = vor.u32 %v6322, %v6326
      %v6329 = vshrl.u32 %v6146, 16
      %v6331 = vshll.u32 %v6146, 16
      %v6333 = vrot.slane %v6331, 1
      %v6334 = vor.u32 %v6329, %v6333
      %v6336 = vshrl.u32 %v6147, 16
      %v6338 = vshll.u32 %v6147, 16
      %v6340 = vrot.slane %v6338, 1
      %v6341 = vor.u32 %v6336, %v6340
      %v6343 = vshrl.u32 %v6148, 16
      %v6345 = vshll.u32 %v6148, 16
      %v6347 = vrot.slane %v6345, 1
      %v6348 = vor.u32 %v6343, %v6347
      %v6350 = vshrl.u32 %v6149, 16
      %v6352 = vshll.u32 %v6149, 16
      %v6354 = vrot.slane %v6352, 1
      %v6355 = vor.u32 %v6350, %v6354
      %v6357 = vshrl.u32 %v6150, 16
      %v6359 = vshll.u32 %v6150, 16
      %v6361 = vrot.slane %v6359, 1
      %v6362 = vor.u32 %v6357, %v6361
      %v6364 = vshrl.u32 %v6151, 16
      %v6366 = vshll.u32 %v6151, 16
      %v6368 = vrot.slane %v6366, 1
      %v6369 = vor.u32 %v6364, %v6368
      %v6371 = vshrl.u32 %v6152, 16
      %v6373 = vshll.u32 %v6152, 16
      %v6375 = vrot.slane %v6373, 1
      %v6376 = vor.u32 %v6371, %v6375
      %v6409 = vsel %vm1944, %v6159, 0
      %v6410 = vsel %vm1944, %v6166, 0
      %v6411 = vsel %vm1944, %v6173, 0
      %v6412 = vsel %vm1944, %v6180, 0
      %v6413 = vsel %vm1944, %v6187, 0
      %v6414 = vsel %vm1944, %v6194, 0
      %v6415 = vsel %vm1944, %v6201, 0
      %v6416 = vsel %vm1944, %v6208, 0
      %v6417 = vsel %vm1944, %v6215, 0
      %v6418 = vsel %vm1944, %v6222, 0
      %v6419 = vsel %vm1944, %v6229, 0
      %v6420 = vsel %vm1944, %v6236, 0
      %v6421 = vsel %vm1944, %v6243, 0
      %v6422 = vsel %vm1944, %v6250, 0
      %v6423 = vsel %vm1944, %v6257, 0
      %v6424 = vsel %vm1944, %v6264, 0
      %v6425 = vsel %vm1944, %v6271, 0
      %v6426 = vsel %vm1944, %v6278, 0
      %v6427 = vsel %vm1944, %v6285, 0
      %v6428 = vsel %vm1944, %v6292, 0
      %v6429 = vsel %vm1944, %v6299, 0
      %v6430 = vsel %vm1944, %v6306, 0
      %v6431 = vsel %vm1944, %v6313, 0
      %v6432 = vsel %vm1944, %v6320, 0
      %v6433 = vsel %vm1944, %v6327, 0
      %v6434 = vsel %vm1944, %v6334, 0
      %v6435 = vsel %vm1944, %v6341, 0
      %v6436 = vsel %vm1944, %v6348, 0
      %v6437 = vsel %vm1944, %v6355, 0
      %v6438 = vsel %vm1944, %v6362, 0
      %v6439 = vsel %vm1944, %v6369, 0
      %v6440 = vsel %vm1944, %v6376, 0
      %s6441 = scalar_lea.vmem %s3, 192
      %v6442 = vld [vmem:[%s6441] sm:$0xf]
      %v6443 = vld [vmem:[%s6441 + $0x4] sm:$0xf]
      %v6444 = vld [vmem:[%s6441 + $0x8] sm:$0xf]
      %v6445 = vld [vmem:[%s6441 + $0xc] sm:$0xf]
      %v6446 = vld [vmem:[%s6441 + $0x10] sm:$0xf]
      %v6447 = vld [vmem:[%s6441 + $0x14] sm:$0xf]
      %v6448 = vld [vmem:[%s6441 + $0x18] sm:$0xf]
      %v6449 = vld [vmem:[%s6441 + $0x1c] sm:$0xf]
      %v6450 = vld [vmem:[%s6441 + $0x20] sm:$0xf]
      %v6451 = vld [vmem:[%s6441 + $0x24] sm:$0xf]
      %v6452 = vld [vmem:[%s6441 + $0x28] sm:$0xf]
      %v6453 = vld [vmem:[%s6441 + $0x2c] sm:$0xf]
      %v6454 = vld [vmem:[%s6441 + $0x30] sm:$0xf]
      %v6455 = vld [vmem:[%s6441 + $0x34] sm:$0xf]
      %v6456 = vld [vmem:[%s6441 + $0x38] sm:$0xf]
      %v6457 = vld [vmem:[%s6441 + $0x3c] sm:$0xf]
      %v6458 = vld [vmem:[%s6441 + $0x40] sm:$0xf]
      %v6459 = vld [vmem:[%s6441 + $0x44] sm:$0xf]
      %v6460 = vld [vmem:[%s6441 + $0x48] sm:$0xf]
      %v6461 = vld [vmem:[%s6441 + $0x4c] sm:$0xf]
      %v6462 = vld [vmem:[%s6441 + $0x50] sm:$0xf]
      %v6463 = vld [vmem:[%s6441 + $0x54] sm:$0xf]
      %v6464 = vld [vmem:[%s6441 + $0x58] sm:$0xf]
      %v6465 = vld [vmem:[%s6441 + $0x5c] sm:$0xf]
      %v6490 = vunpack.c.l.b16 %v6442
      %v6491 = vunpack.c.l.b16 %v6443
      %v6492 = vunpack.c.l.b16 %v6444
      %v6493 = vunpack.c.l.b16 %v6445
      %v6494 = vunpack.c.l.b16 %v6446
      %v6495 = vunpack.c.l.b16 %v6447
      %v6496 = vunpack.c.l.b16 %v6448
      %v6497 = vunpack.c.l.b16 %v6449
      %v6498 = vunpack.c.l.b16 %v6450
      %v6499 = vunpack.c.l.b16 %v6451
      %v6500 = vunpack.c.l.b16 %v6452
      %v6501 = vunpack.c.l.b16 %v6453
      %v6502 = vunpack.c.l.b16 %v6454
      %v6503 = vunpack.c.l.b16 %v6455
      %v6504 = vunpack.c.l.b16 %v6456
      %v6505 = vunpack.c.l.b16 %v6457
      %v6506 = vunpack.c.l.b16 %v6458
      %v6507 = vunpack.c.l.b16 %v6459
      %v6508 = vunpack.c.l.b16 %v6460
      %v6509 = vunpack.c.l.b16 %v6461
      %v6510 = vunpack.c.l.b16 %v6462
      %v6511 = vunpack.c.l.b16 %v6463
      %v6512 = vunpack.c.l.b16 %v6464
      %v6513 = vunpack.c.l.b16 %v6465
      %v6514 = vpack.c.b16 %v6491, %v6490
      %v6515 = vpack.c.b16 %v6493, %v6492
      %v6516 = vpack.c.b16 %v6495, %v6494
      %v6517 = vpack.c.b16 %v6497, %v6496
      %v6518 = vpack.c.b16 %v6499, %v6498
      %v6519 = vpack.c.b16 %v6501, %v6500
      %v6520 = vpack.c.b16 %v6503, %v6502
      %v6521 = vpack.c.b16 %v6505, %v6504
      %v6522 = vpack.c.b16 %v6507, %v6506
      %v6523 = vpack.c.b16 %v6509, %v6508
      %v6524 = vpack.c.b16 %v6511, %v6510
      %v6525 = vpack.c.b16 %v6513, %v6512
      %v6539 = vsel %vm199, %v6410, 0
      %v6542 = vsel %vm199, %v6412, 0
      %v6545 = vsel %vm199, %v6414, 0
      %v6548 = vsel %vm199, %v6416, 0
      %v6551 = vsel %vm199, %v6418, 0
      %v6554 = vsel %vm199, %v6420, 0
      %v6557 = vsel %vm199, %v6422, 0
      %v6560 = vsel %vm199, %v6424, 0
      %v6563 = vsel %vm199, %v6426, 0
      %v6566 = vsel %vm199, %v6428, 0
      %v6569 = vsel %vm199, %v6430, 0
      %v6572 = vsel %vm199, %v6432, 0
      %v6575 = vsel %vm199, %v6434, 0
      %v6578 = vsel %vm199, %v6436, 0
      %v6581 = vsel %vm199, %v6438, 0
      %v6584 = vsel %vm199, %v6440, 0
      %6586 = vmatprep.subr.bf16.mxu0 0
      %6587 = vmatpush1.bf16.msra.mxu0 %v6514
      %6588 = vmatprep.subr.bf16.mxu0 0
      %6589 = vmatpush1.bf16.msra.mxu0 %v6515
      %6590 = vmatprep.subr.bf16.mxu0 0
      %6591 = vmatpush1.bf16.msra.mxu0 %v6516
      %6592 = vmatprep.subr.bf16.mxu0 0
      %6593 = vmatpush1.bf16.msra.mxu0 %v6517
      %6594 = vmatprep.subr.bf16.mxu0 0
      %6595 = vmatpush1.bf16.msra.mxu0 %v6518
      %6596 = vmatprep.subr.bf16.mxu0 0
      %6597 = vmatpush1.bf16.msra.mxu0 %v6519
      %6598 = vmatprep.subr.bf16.mxu0 0
      %6599 = vmatpush1.bf16.msra.mxu0 %v6520
      %6600 = vmatprep.subr.bf16.mxu0 0
      %6601 = vmatpush1.bf16.msra.mxu0 %v6521
      %6602 = vmatprep.subr.bf16.mxu0 0
      %6603 = vmatpush1.bf16.msra.mxu0 %v6522
      %6604 = vmatprep.subr.bf16.mxu0 0
      %6605 = vmatpush1.bf16.msra.mxu0 %v6523
      %6606 = vmatprep.subr.bf16.mxu0 0
      %6607 = vmatpush1.bf16.msra.mxu0 %v6524
      %6608 = vmatprep.subr.bf16.mxu0 0
      %6609 = vmatpush1.bf16.msra.mxu0 %v6525
      %6610 = vmatprep.subr.bf16.mxu0 0
      %6611 = vmatpush1.bf16.msra.mxu0 0
      %6612 = vmatprep.subr.bf16.mxu0 0
      %6613 = vmatpush1.bf16.msra.mxu0 0
      %6614 = vmatprep.subr.bf16.mxu0 0
      %6615 = vmatpush1.bf16.msra.mxu0 0
      %6616 = vmatprep.subr.bf16.mxu0 0
      %6617 = vmatpush1.bf16.msra.mxu0 0
      %6618 = vmatprep.mubr.bf16.mxu0 %v6539
      %6619 = vmatmul.mubr.bf16.gmra.mrb[0].mxu0 %v6409
      %v6620 = vpop.f32.mrb[0].mxu0
      %v6621 = vadd.f32 0.0, %v6620
      %v6622 = vpop.f32.mrb[0].mxu0
      %v6623 = vpop.f32.mrb[0].mxu0
      %v6624 = vadd.f32 0.0, %v6623
      %v6625 = vpop.f32.mrb[0].mxu0
      %6626 = vmatprep.mubr.bf16.mxu0 %v6542
      %6627 = vmatmul.mubr.bf16.gmra.mrb[0].mxu0 %v6411
      %v6628 = vpop.f32.mrb[0].mxu0
      %v6629 = vadd.f32 0.0, %v6628
      %v6630 = vpop.f32.mrb[0].mxu0
      %v6631 = vpop.f32.mrb[0].mxu0
      %v6632 = vadd.f32 0.0, %v6631
      %v6633 = vpop.f32.mrb[0].mxu0
      %6634 = vmatprep.mubr.bf16.mxu0 %v6545
      %6635 = vmatmul.mubr.bf16.gmra.mrb[0].mxu0 %v6413
      %v6636 = vpop.f32.mrb[0].mxu0
      %v6637 = vadd.f32 0.0, %v6636
      %v6638 = vpop.f32.mrb[0].mxu0
      %v6639 = vpop.f32.mrb[0].mxu0
      %v6640 = vadd.f32 0.0, %v6639
      %v6641 = vpop.f32.mrb[0].mxu0
      %6642 = vmatprep.mubr.bf16.mxu0 %v6548
      %6643 = vmatmul.mubr.bf16.gmra.mrb[0].mxu0 %v6415
      %v6644 = vpop.f32.mrb[0].mxu0
      %v6645 = vadd.f32 0.0, %v6644
      %v6646 = vpop.f32.mrb[0].mxu0
      %v6647 = vpop.f32.mrb[0].mxu0
      %v6648 = vadd.f32 0.0, %v6647
      %v6649 = vpop.f32.mrb[0].mxu0
      %6650 = vmatprep.mubr.bf16.mxu0 %v6551
      %6651 = vmatmul.mubr.bf16.gmra.mrb[0].mxu0 %v6417
      %v6652 = vpop.f32.mrb[0].mxu0
      %v6653 = vadd.f32 0.0, %v6652
      %v6654 = vpop.f32.mrb[0].mxu0
      %v6655 = vpop.f32.mrb[0].mxu0
      %v6656 = vadd.f32 0.0, %v6655
      %v6657 = vpop.f32.mrb[0].mxu0
      %6658 = vmatprep.mubr.bf16.mxu0 %v6554
      %6659 = vmatmul.mubr.bf16.gmra.mrb[0].mxu0 %v6419
      %v6660 = vpop.f32.mrb[0].mxu0
      %v6661 = vadd.f32 0.0, %v6660
      %v6662 = vpop.f32.mrb[0].mxu0
      %v6663 = vpop.f32.mrb[0].mxu0
      %v6664 = vadd.f32 0.0, %v6663
      %v6665 = vpop.f32.mrb[0].mxu0
      %6666 = vmatprep.mubr.bf16.mxu0 %v6557
      %6667 = vmatmul.mubr.bf16.gmra.mrb[0].mxu0 %v6421
      %v6668 = vpop.f32.mrb[0].mxu0
      %v6669 = vadd.f32 0.0, %v6668
      %v6670 = vpop.f32.mrb[0].mxu0
      %v6671 = vpop.f32.mrb[0].mxu0
      %v6672 = vadd.f32 0.0, %v6671
      %v6673 = vpop.f32.mrb[0].mxu0
      %6674 = vmatprep.mubr.bf16.mxu0 %v6560
      %6675 = vmatmul.mubr.bf16.gmra.mrb[0].mxu0 %v6423
      %v6676 = vpop.f32.mrb[0].mxu0
      %v6677 = vadd.f32 0.0, %v6676
      %v6678 = vpop.f32.mrb[0].mxu0
      %v6679 = vpop.f32.mrb[0].mxu0
      %v6680 = vadd.f32 0.0, %v6679
      %v6681 = vpop.f32.mrb[0].mxu0
      %6682 = vmatprep.mubr.bf16.mxu0 %v6563
      %6683 = vmatmul.mubr.bf16.gmra.mrb[0].mxu0 %v6425
      %v6684 = vpop.f32.mrb[0].mxu0
      %v6685 = vadd.f32 0.0, %v6684
      %v6686 = vpop.f32.mrb[0].mxu0
      %v6687 = vpop.f32.mrb[0].mxu0
      %v6688 = vadd.f32 0.0, %v6687
      %v6689 = vpop.f32.mrb[0].mxu0
      %6690 = vmatprep.mubr.bf16.mxu0 %v6566
      %6691 = vmatmul.mubr.bf16.gmra.mrb[0].mxu0 %v6427
      %v6692 = vpop.f32.mrb[0].mxu0
      %v6693 = vadd.f32 0.0, %v6692
      %v6694 = vpop.f32.mrb[0].mxu0
      %v6695 = vpop.f32.mrb[0].mxu0
      %v6696 = vadd.f32 0.0, %v6695
      %v6697 = vpop.f32.mrb[0].mxu0
      %6698 = vmatprep.mubr.bf16.mxu0 %v6569
      %6699 = vmatmul.mubr.bf16.gmra.mrb[0].mxu0 %v6429
      %v6700 = vpop.f32.mrb[0].mxu0
      %v6701 = vadd.f32 0.0, %v6700
      %v6702 = vpop.f32.mrb[0].mxu0
      %v6703 = vpop.f32.mrb[0].mxu0
      %v6704 = vadd.f32 0.0, %v6703
      %v6705 = vpop.f32.mrb[0].mxu0
      %6706 = vmatprep.mubr.bf16.mxu0 %v6572
      %6707 = vmatmul.mubr.bf16.gmra.mrb[0].mxu0 %v6431
      %v6708 = vpop.f32.mrb[0].mxu0
      %v6709 = vadd.f32 0.0, %v6708
      %v6710 = vpop.f32.mrb[0].mxu0
      %v6711 = vpop.f32.mrb[0].mxu0
      %v6712 = vadd.f32 0.0, %v6711
      %v6713 = vpop.f32.mrb[0].mxu0
      %6714 = vmatprep.mubr.bf16.mxu0 %v6575
      %6715 = vmatmul.mubr.bf16.gmra.mrb[0].mxu0 %v6433
      %v6716 = vpop.f32.mrb[0].mxu0
      %v6717 = vadd.f32 0.0, %v6716
      %v6718 = vpop.f32.mrb[0].mxu0
      %v6719 = vpop.f32.mrb[0].mxu0
      %v6720 = vadd.f32 0.0, %v6719
      %v6721 = vpop.f32.mrb[0].mxu0
      %6722 = vmatprep.mubr.bf16.mxu0 %v6578
      %6723 = vmatmul.mubr.bf16.gmra.mrb[0].mxu0 %v6435
      %v6724 = vpop.f32.mrb[0].mxu0
      %v6725 = vadd.f32 0.0, %v6724
      %v6726 = vpop.f32.mrb[0].mxu0
      %v6727 = vpop.f32.mrb[0].mxu0
      %v6728 = vadd.f32 0.0, %v6727
      %v6729 = vpop.f32.mrb[0].mxu0
      %6730 = vmatprep.mubr.bf16.mxu0 %v6581
      %6731 = vmatmul.mubr.bf16.gmra.mrb[0].mxu0 %v6437
      %v6732 = vpop.f32.mrb[0].mxu0
      %v6733 = vadd.f32 0.0, %v6732
      %v6734 = vpop.f32.mrb[0].mxu0
      %v6735 = vpop.f32.mrb[0].mxu0
      %v6736 = vadd.f32 0.0, %v6735
      %v6737 = vpop.f32.mrb[0].mxu0
      %6738 = vmatprep.mubr.bf16.mxu0 %v6584
      %6739 = vmatmul.mubr.bf16.gmra.mrb[0].mxu0 %v6439
      %v6740 = vpop.f32.mrb[0].mxu0
      %v6741 = vadd.f32 0.0, %v6740
      %v6742 = vpop.f32.mrb[0].mxu0
      %v6743 = vpop.f32.mrb[0].mxu0
      %v6744 = vadd.f32 0.0, %v6743
      %v6745 = vpop.f32.mrb[0].mxu0
      %6746 = vdwg.mxu0
      %v6747 = vld [vmem:[#allocation4] sm:$0xff]
      %v6748 = vld [vmem:[#allocation4 + $0x8] sm:$0xff]
      %v6749 = vld [vmem:[#allocation4 + $0x10] sm:$0xff]
      %v6750 = vld [vmem:[#allocation4 + $0x18] sm:$0xff]
      %v6751 = vld [vmem:[#allocation4 + $0x20] sm:$0xff]
      %v6752 = vld [vmem:[#allocation4 + $0x28] sm:$0xff]
      %v6753 = vld [vmem:[#allocation4 + $0x30] sm:$0xff]
      %v6754 = vld [vmem:[#allocation4 + $0x38] sm:$0xff]
      %v6755 = vld [vmem:[#allocation4 + $0x40] sm:$0xff]
      %v6756 = vld [vmem:[#allocation4 + $0x48] sm:$0xff]
      %v6757 = vld [vmem:[#allocation4 + $0x50] sm:$0xff]
      %v6758 = vld [vmem:[#allocation4 + $0x58] sm:$0xff]
      %v6759 = vld [vmem:[#allocation4 + $0x60] sm:$0xff]
      %v6760 = vld [vmem:[#allocation4 + $0x68] sm:$0xff]
      %v6761 = vld [vmem:[#allocation4 + $0x70] sm:$0xff]
      %v6762 = vld [vmem:[#allocation4 + $0x78] sm:$0xff]
      %v6763 = vld [vmem:[#allocation4 + $0x80] sm:$0xff]
      %v6764 = vld [vmem:[#allocation4 + $0x88] sm:$0xff]
      %v6765 = vld [vmem:[#allocation4 + $0x90] sm:$0xff]
      %v6766 = vld [vmem:[#allocation4 + $0x98] sm:$0xff]
      %v6767 = vld [vmem:[#allocation4 + $0xa0] sm:$0xff]
      %v6768 = vld [vmem:[#allocation4 + $0xa8] sm:$0xff]
      %v6769 = vld [vmem:[#allocation4 + $0xb0] sm:$0xff]
      %v6770 = vld [vmem:[#allocation4 + $0xb8] sm:$0xff]
      %v6771 = vld [vmem:[#allocation4 + $0xc0] sm:$0xff]
      %v6772 = vld [vmem:[#allocation4 + $0xc8] sm:$0xff]
      %v6773 = vld [vmem:[#allocation4 + $0xd0] sm:$0xff]
      %v6774 = vld [vmem:[#allocation4 + $0xd8] sm:$0xff]
      %v6775 = vld [vmem:[#allocation4 + $0xe0] sm:$0xff]
      %v6776 = vld [vmem:[#allocation4 + $0xe8] sm:$0xff]
      %v6777 = vld [vmem:[#allocation4 + $0xf0] sm:$0xff]
      %v6778 = vld [vmem:[#allocation4 + $0xf8] sm:$0xff]
      %v6779 = vadd.f32 %v6747, %v6621
      %v6780 = vadd.f32 %v6748, %v6624
      %v6781 = vadd.f32 %v6749, %v6629
      %v6782 = vadd.f32 %v6750, %v6632
      %v6783 = vadd.f32 %v6751, %v6637
      %v6784 = vadd.f32 %v6752, %v6640
      %v6785 = vadd.f32 %v6753, %v6645
      %v6786 = vadd.f32 %v6754, %v6648
      %v6787 = vadd.f32 %v6755, %v6653
      %v6788 = vadd.f32 %v6756, %v6656
      %v6789 = vadd.f32 %v6757, %v6661
      %v6790 = vadd.f32 %v6758, %v6664
      %v6791 = vadd.f32 %v6759, %v6669
      %v6792 = vadd.f32 %v6760, %v6672
      %v6793 = vadd.f32 %v6761, %v6677
      %v6794 = vadd.f32 %v6762, %v6680
      %v6795 = vadd.f32 %v6763, %v6685
      %v6796 = vadd.f32 %v6764, %v6688
      %v6797 = vadd.f32 %v6765, %v6693
      %v6798 = vadd.f32 %v6766, %v6696
      %v6799 = vadd.f32 %v6767, %v6701
      %v6800 = vadd.f32 %v6768, %v6704
      %v6801 = vadd.f32 %v6769, %v6709
      %v6802 = vadd.f32 %v6770, %v6712
      %v6803 = vadd.f32 %v6771, %v6717
      %v6804 = vadd.f32 %v6772, %v6720
      %v6805 = vadd.f32 %v6773, %v6725
      %v6806 = vadd.f32 %v6774, %v6728
      %v6807 = vadd.f32 %v6775, %v6733
      %v6808 = vadd.f32 %v6776, %v6736
      %v6809 = vadd.f32 %v6777, %v6741
      %v6810 = vadd.f32 %v6778, %v6744
      %6811 = vst.msk [vmem:[#allocation4] sm:$0xff] %vm199, %v6779
      %6812 = vst.msk [vmem:[#allocation4 + $0x8] sm:$0xff] %vm199, %v6780
      %6813 = vst.msk [vmem:[#allocation4 + $0x10] sm:$0xff] %vm199, %v6781
      %6814 = vst.msk [vmem:[#allocation4 + $0x18] sm:$0xff] %vm199, %v6782
      %6815 = vst.msk [vmem:[#allocation4 + $0x20] sm:$0xff] %vm199, %v6783
      %6816 = vst.msk [vmem:[#allocation4 + $0x28] sm:$0xff] %vm199, %v6784
      %6817 = vst.msk [vmem:[#allocation4 + $0x30] sm:$0xff] %vm199, %v6785
      %6818 = vst.msk [vmem:[#allocation4 + $0x38] sm:$0xff] %vm199, %v6786
      %6819 = vst.msk [vmem:[#allocation4 + $0x40] sm:$0xff] %vm199, %v6787
      %6820 = vst.msk [vmem:[#allocation4 + $0x48] sm:$0xff] %vm199, %v6788
      %6821 = vst.msk [vmem:[#allocation4 + $0x50] sm:$0xff] %vm199, %v6789
      %6822 = vst.msk [vmem:[#allocation4 + $0x58] sm:$0xff] %vm199, %v6790
      %6823 = vst.msk [vmem:[#allocation4 + $0x60] sm:$0xff] %vm199, %v6791
      %6824 = vst.msk [vmem:[#allocation4 + $0x68] sm:$0xff] %vm199, %v6792
      %6825 = vst.msk [vmem:[#allocation4 + $0x70] sm:$0xff] %vm199, %v6793
      %6826 = vst.msk [vmem:[#allocation4 + $0x78] sm:$0xff] %vm199, %v6794
      %6827 = vst.msk [vmem:[#allocation4 + $0x80] sm:$0xff] %vm199, %v6795
      %6828 = vst.msk [vmem:[#allocation4 + $0x88] sm:$0xff] %vm199, %v6796
      %6829 = vst.msk [vmem:[#allocation4 + $0x90] sm:$0xff] %vm199, %v6797
      %6830 = vst.msk [vmem:[#allocation4 + $0x98] sm:$0xff] %vm199, %v6798
      %6831 = vst.msk [vmem:[#allocation4 + $0xa0] sm:$0xff] %vm199, %v6799
      %6832 = vst.msk [vmem:[#allocation4 + $0xa8] sm:$0xff] %vm199, %v6800
      %6833 = vst.msk [vmem:[#allocation4 + $0xb0] sm:$0xff] %vm199, %v6801
      %6834 = vst.msk [vmem:[#allocation4 + $0xb8] sm:$0xff] %vm199, %v6802
      %6835 = vst.msk [vmem:[#allocation4 + $0xc0] sm:$0xff] %vm199, %v6803
      %6836 = vst.msk [vmem:[#allocation4 + $0xc8] sm:$0xff] %vm199, %v6804
      %6837 = vst.msk [vmem:[#allocation4 + $0xd0] sm:$0xff] %vm199, %v6805
      %6838 = vst.msk [vmem:[#allocation4 + $0xd8] sm:$0xff] %vm199, %v6806
      %6839 = vst.msk [vmem:[#allocation4 + $0xe0] sm:$0xff] %vm199, %v6807
      %6840 = vst.msk [vmem:[#allocation4 + $0xe8] sm:$0xff] %vm199, %v6808
      %6841 = vst.msk [vmem:[#allocation4 + $0xf0] sm:$0xff] %vm199, %v6809
      %6842 = vst.msk [vmem:[#allocation4 + $0xf8] sm:$0xff] %vm199, %v6810
      %v6843 = vld [vmem:[#allocation4] sm:$0xff]
      %v6844 = vld [vmem:[#allocation4 + $0x8] sm:$0xff]
      %v6845 = vld [vmem:[#allocation4 + $0x10] sm:$0xff]
      %v6846 = vld [vmem:[#allocation4 + $0x18] sm:$0xff]
      %v6847 = vld [vmem:[#allocation4 + $0x20] sm:$0xff]
      %v6848 = vld [vmem:[#allocation4 + $0x28] sm:$0xff]
      %v6849 = vld [vmem:[#allocation4 + $0x30] sm:$0xff]
      %v6850 = vld [vmem:[#allocation4 + $0x38] sm:$0xff]
      %v6851 = vld [vmem:[#allocation4 + $0x40] sm:$0xff]
      %v6852 = vld [vmem:[#allocation4 + $0x48] sm:$0xff]
      %v6853 = vld [vmem:[#allocation4 + $0x50] sm:$0xff]
      %v6854 = vld [vmem:[#allocation4 + $0x58] sm:$0xff]
      %v6855 = vld [vmem:[#allocation4 + $0x60] sm:$0xff]
      %v6856 = vld [vmem:[#allocation4 + $0x68] sm:$0xff]
      %v6857 = vld [vmem:[#allocation4 + $0x70] sm:$0xff]
      %v6858 = vld [vmem:[#allocation4 + $0x78] sm:$0xff]
      %v6859 = vld [vmem:[#allocation4 + $0x80] sm:$0xff]
      %v6860 = vld [vmem:[#allocation4 + $0x88] sm:$0xff]
      %v6861 = vld [vmem:[#allocation4 + $0x90] sm:$0xff]
      %v6862 = vld [vmem:[#allocation4 + $0x98] sm:$0xff]
      %v6863 = vld [vmem:[#allocation4 + $0xa0] sm:$0xff]
      %v6864 = vld [vmem:[#allocation4 + $0xa8] sm:$0xff]
      %v6865 = vld [vmem:[#allocation4 + $0xb0] sm:$0xff]
      %v6866 = vld [vmem:[#allocation4 + $0xb8] sm:$0xff]
      %v6867 = vld [vmem:[#allocation4 + $0xc0] sm:$0xff]
      %v6868 = vld [vmem:[#allocation4 + $0xc8] sm:$0xff]
      %v6869 = vld [vmem:[#allocation4 + $0xd0] sm:$0xff]
      %v6870 = vld [vmem:[#allocation4 + $0xd8] sm:$0xff]
      %v6871 = vld [vmem:[#allocation4 + $0xe0] sm:$0xff]
      %v6872 = vld [vmem:[#allocation4 + $0xe8] sm:$0xff]
      %v6873 = vld [vmem:[#allocation4 + $0xf0] sm:$0xff]
      %v6874 = vld [vmem:[#allocation4 + $0xf8] sm:$0xff]
      %v6875 = vld [vmem:[%s192] sm:$0xff]
      %v6876 = vld [vmem:[%s192 + $0x8] sm:$0xff]
      %v6877 = vld [vmem:[%s192 + $0x10] sm:$0xff]
      %v6878 = vld [vmem:[%s192 + $0x18] sm:$0xff]
      %v6879 = vld [vmem:[%s192 + $0x20] sm:$0xff]
      %v6880 = vld [vmem:[%s192 + $0x28] sm:$0xff]
      %v6881 = vld [vmem:[%s192 + $0x30] sm:$0xff]
      %v6882 = vld [vmem:[%s192 + $0x38] sm:$0xff]
      %v6883 = vld [vmem:[%s192 + $0x40] sm:$0xff]
      %v6884 = vld [vmem:[%s192 + $0x48] sm:$0xff]
      %v6885 = vld [vmem:[%s192 + $0x50] sm:$0xff]
      %v6886 = vld [vmem:[%s192 + $0x58] sm:$0xff]
      %v6887 = vld [vmem:[%s192 + $0x60] sm:$0xff]
      %v6888 = vld [vmem:[%s192 + $0x68] sm:$0xff]
      %v6889 = vld [vmem:[%s192 + $0x70] sm:$0xff]
      %v6890 = vld [vmem:[%s192 + $0x78] sm:$0xff]
      %v6891 = vld [vmem:[%s192 + $0x80] sm:$0xff]
      %v6892 = vld [vmem:[%s192 + $0x88] sm:$0xff]
      %v6893 = vld [vmem:[%s192 + $0x90] sm:$0xff]
      %v6894 = vld [vmem:[%s192 + $0x98] sm:$0xff]
      %v6895 = vld [vmem:[%s192 + $0xa0] sm:$0xff]
      %v6896 = vld [vmem:[%s192 + $0xa8] sm:$0xff]
      %v6897 = vld [vmem:[%s192 + $0xb0] sm:$0xff]
      %v6898 = vld [vmem:[%s192 + $0xb8] sm:$0xff]
      %v6899 = vld [vmem:[%s192 + $0xc0] sm:$0xff]
      %v6900 = vld [vmem:[%s192 + $0xc8] sm:$0xff]
      %v6901 = vld [vmem:[%s192 + $0xd0] sm:$0xff]
      %v6902 = vld [vmem:[%s192 + $0xd8] sm:$0xff]
      %v6903 = vld [vmem:[%s192 + $0xe0] sm:$0xff]
      %v6904 = vld [vmem:[%s192 + $0xe8] sm:$0xff]
      %v6905 = vld [vmem:[%s192 + $0xf0] sm:$0xff]
      %v6906 = vld [vmem:[%s192 + $0xf8] sm:$0xff]
      %v6907 = vadd.f32 %v6843, %v6875
      %v6908 = vadd.f32 %v6844, %v6876
      %v6909 = vadd.f32 %v6845, %v6877
      %v6910 = vadd.f32 %v6846, %v6878
      %v6911 = vadd.f32 %v6847, %v6879
      %v6912 = vadd.f32 %v6848, %v6880
      %v6913 = vadd.f32 %v6849, %v6881
      %v6914 = vadd.f32 %v6850, %v6882
      %v6915 = vadd.f32 %v6851, %v6883
      %v6916 = vadd.f32 %v6852, %v6884
      %v6917 = vadd.f32 %v6853, %v6885
      %v6918 = vadd.f32 %v6854, %v6886
      %v6919 = vadd.f32 %v6855, %v6887
      %v6920 = vadd.f32 %v6856, %v6888
      %v6921 = vadd.f32 %v6857, %v6889
      %v6922 = vadd.f32 %v6858, %v6890
      %v6923 = vadd.f32 %v6859, %v6891
      %v6924 = vadd.f32 %v6860, %v6892
      %v6925 = vadd.f32 %v6861, %v6893
      %v6926 = vadd.f32 %v6862, %v6894
      %v6927 = vadd.f32 %v6863, %v6895
      %v6928 = vadd.f32 %v6864, %v6896
      %v6929 = vadd.f32 %v6865, %v6897
      %v6930 = vadd.f32 %v6866, %v6898
      %v6931 = vadd.f32 %v6867, %v6899
      %v6932 = vadd.f32 %v6868, %v6900
      %v6933 = vadd.f32 %v6869, %v6901
      %v6934 = vadd.f32 %v6870, %v6902
      %v6935 = vadd.f32 %v6871, %v6903
      %v6936 = vadd.f32 %v6872, %v6904
      %v6937 = vadd.f32 %v6873, %v6905
      %v6938 = vadd.f32 %v6874, %v6906
      %6939 = vst.msk [vmem:[%s197] sm:$0xff] %vm269, %v6907
      %6940 = vst.msk [vmem:[%s197 + $0x8] sm:$0xff] %vm269, %v6908
      %6941 = vst.msk [vmem:[%s197 + $0x10] sm:$0xff] %vm269, %v6909
      %6942 = vst.msk [vmem:[%s197 + $0x18] sm:$0xff] %vm269, %v6910
      %6943 = vst.msk [vmem:[%s197 + $0x20] sm:$0xff] %vm269, %v6911
      %6944 = vst.msk [vmem:[%s197 + $0x28] sm:$0xff] %vm269, %v6912
      %6945 = vst.msk [vmem:[%s197 + $0x30] sm:$0xff] %vm269, %v6913
      %6946 = vst.msk [vmem:[%s197 + $0x38] sm:$0xff] %vm269, %v6914
      %6947 = vst.msk [vmem:[%s197 + $0x40] sm:$0xff] %vm269, %v6915
      %6948 = vst.msk [vmem:[%s197 + $0x48] sm:$0xff] %vm269, %v6916
      %6949 = vst.msk [vmem:[%s197 + $0x50] sm:$0xff] %vm269, %v6917
      %6950 = vst.msk [vmem:[%s197 + $0x58] sm:$0xff] %vm269, %v6918
      %6951 = vst.msk [vmem:[%s197 + $0x60] sm:$0xff] %vm269, %v6919
      %6952 = vst.msk [vmem:[%s197 + $0x68] sm:$0xff] %vm269, %v6920
      %6953 = vst.msk [vmem:[%s197 + $0x70] sm:$0xff] %vm269, %v6921
      %6954 = vst.msk [vmem:[%s197 + $0x78] sm:$0xff] %vm269, %v6922
      %6955 = vst.msk [vmem:[%s197 + $0x80] sm:$0xff] %vm269, %v6923
      %6956 = vst.msk [vmem:[%s197 + $0x88] sm:$0xff] %vm269, %v6924
      %6957 = vst.msk [vmem:[%s197 + $0x90] sm:$0xff] %vm269, %v6925
      %6958 = vst.msk [vmem:[%s197 + $0x98] sm:$0xff] %vm269, %v6926
      %6959 = vst.msk [vmem:[%s197 + $0xa0] sm:$0xff] %vm269, %v6927
      %6960 = vst.msk [vmem:[%s197 + $0xa8] sm:$0xff] %vm269, %v6928
      %6961 = vst.msk [vmem:[%s197 + $0xb0] sm:$0xff] %vm269, %v6929
      %6962 = vst.msk [vmem:[%s197 + $0xb8] sm:$0xff] %vm269, %v6930
      %6963 = vst.msk [vmem:[%s197 + $0xc0] sm:$0xff] %vm269, %v6931
      %6964 = vst.msk [vmem:[%s197 + $0xc8] sm:$0xff] %vm269, %v6932
      %6965 = vst.msk [vmem:[%s197 + $0xd0] sm:$0xff] %vm269, %v6933
      %6966 = vst.msk [vmem:[%s197 + $0xd8] sm:$0xff] %vm269, %v6934
      %6967 = vst.msk [vmem:[%s197 + $0xe0] sm:$0xff] %vm269, %v6935
      %6968 = vst.msk [vmem:[%s197 + $0xe8] sm:$0xff] %vm269, %v6936
      %6969 = vst.msk [vmem:[%s197 + $0xf0] sm:$0xff] %vm269, %v6937
      %6970 = vst.msk [vmem:[%s197 + $0xf8] sm:$0xff] %vm269, %v6938
      %p6971 = scmp.lt.s32.totalorder %s15, 1
      %s6972 = scalar_select %p6971, %s15, 1
      %s6973 = smul.addr %s6972, 32
      %s6974 = smul.addr %s6973, 8
      %s6975 = scalar_lea.vmem %s4, %s6974
      // Predicated region
      $region44: #{deblurring_forward.1} parent=35 // pred_check
        %p6976 = pneg %p122
      $region45: #{deblurring_forward.1} parent=35 // pred_check_branch
        %6978 = sbr.rel (%p6976) target = $region47
      $region46: #{deblurring_forward.1} parent=35 // pred_region
        _
      $region47: #{deblurring_forward.1} parent=35 // pred_fallthru
        _
    $region36: #{deblurring_forward.1} parent=5 // pred_fallthru
      _
    %p6979 = scmp.le.s32.totalorder 2, %s10
    // Predicated region
    $region48: #{deblurring_forward.1} parent=5 // pred_check
      %p6980 = pneg %p6979
    $region49: #{deblurring_forward.1} parent=5 // pred_check_branch
      %6982 = sbr.rel (%p6980) target = $region51
    $region50: #{deblurring_forward.1} parent=5 // pred_region
      %s6983 = ssub.s32 %s10, 2
      // Predicated region
      $region52: #{deblurring_forward.1} parent=50 // pred_check
        %p6984 = pneg %p128
      $region53: #{deblurring_forward.1} parent=50 // pred_check_branch
        %6986 = sbr.rel (%p6984) target = $region55
      $region54: #{deblurring_forward.1} parent=50 // pred_region
        %p6987 = scmp.lt.s32.totalorder %s16, 1
        %s6988 = scalar_select %p6987, %s16, 1
        %s6989 = smul.addr %s6988, 32
        %s6990 = smul.addr %s6989, 8
        %s6991 = scalar_lea.vmem %s4, %s6990
      $region55: #{deblurring_forward.1} parent=50 // pred_fallthru
        _
    $region51: #{deblurring_forward.1} parent=5 // pred_fallthru
      _
  $region6: #{deblurring_forward.1} parent=0 // loop_footer
    %s14 = sadd.s32 1, %s10
  $region7: #{deblurring_forward.1} parent=0 // loop_footer_branch
    %9 = sbr.rel target = $region3
  $region8: #{deblurring_forward.1} parent=0 // loop_exit
    _

</llo_original>
